<compile_context>
chip_gen: v7x
topology: tpu7x:2x2x1
jax: 0.10.0
libtpu: 0.0.40
codegen_flags: <defaults>
</compile_context>

<pallas_src>
import functools

import jax
import jax.numpy as jnp
from jax import lax
from jax.experimental import pallas as pl
from jax.experimental.pallas import tpu as pltpu

# ---- hyperparameters (dgllife GAT defaults used by GNNEncoder) -------------------------
IN_FEATS = 27            # GAT(in_feats=27)
HIDDEN = 32              # hidden_feats per head (dgllife default [32, 32])
HEADS = 4                # num_heads (dgllife default [4, 4])
HD = HEADS * HIDDEN      # 128 (flattened per-head width)
GNN_OUT = HIDDEN         # last agg mode is 'mean' -> gnn_out_feats = hidden_feats[-1]
ASSO_DIM = 128           # hidden_layer_sizes[-1]
NUM_TARGETS = ASSO_DIM   # LayerNorm(num_targets) is applied to gnn_last output
LRELU_ALPHA = 0.2
LN_EPS = 1e-5
NEG_INF = -1e30

# Dst-node tile: 128 fills the v5e MXU rows and half of v6e/v7x's 256; raise to 256 on
# v6e/v7x for large graphs.  Kept at 128 so the small test graph needs only one tile.
T_DST = 128
MXU_DTYPE = jnp.bfloat16         # matmul operand dtype; accumulation stays f32
# Sized for big-N graphs while leaving double-buffer headroom under v7x's 64 MiB VMEM;
# v5e/v6e (128 MiB physical) could go higher before resorting to src-dimension tiling.
VMEM_LIMIT_BYTES = 48 * 1024 * 1024


# ---------------------------------------------------------------------------------------
# Per-layer projection kernel (hoisted out of the attention loop), tiled over node rows.
#   outputs: z (bf16, MXU operand only), [optional] Linear residual (f32),
#            left attention scores el_t = a_l @ z^T (f32, [HEADS, N]).
# ---------------------------------------------------------------------------------------
def gat_project_kernel(x_ref, wcat_ref, alt_ref, *out_refs, has_res_fc):
    if has_res_fc:
        z_ref, resid_ref, elt_ref = out_refs
    else:
        z_ref, elt_ref = out_refs

    x = x_ref[...].astype(MXU_DTYPE)
    wcat = wcat_ref[...].astype(MXU_DTYPE)
    zfull = jnp.dot(x, wcat, preferred_element_type=jnp.float32)      # [T, HD | 2*HD]
    z = zfull[:, :HD]
    z_bf = z.astype(MXU_DTYPE)
    z_ref[...] = z_bf                                                 # bf16 resident operand
    if has_res_fc:
        resid_ref[...] = zfull[:, HD:]                                # fused Linear residual

    # Left attention scores for all heads in one matmul: [HEADS, T] = a_l @ z^T.
    elt_ref[...] = lax.dot_general(alt_ref[...].astype(MXU_DTYPE), z_bf,
                                   (((1,), (1,)), ((), ())),
                                   preferred_element_type=jnp.float32)


def gat_project(x, wcat, alt, *, has_res_fc, t_dst):
    n, fin = x.shape
    w = wcat.shape[1]
    n_tiles = n // t_dst

    out_shape = [jax.ShapeDtypeStruct((n, HD), MXU_DTYPE)]
    out_specs = [pl.BlockSpec((t_dst, HD), lambda i: (i, 0))]
    if has_res_fc:
        out_shape.append(jax.ShapeDtypeStruct((n, HD), jnp.float32))
        out_specs.append(pl.BlockSpec((t_dst, HD), lambda i: (i, 0)))
    out_shape.append(jax.ShapeDtypeStruct((HEADS, n), jnp.float32))
    out_specs.append(pl.BlockSpec((HEADS, t_dst), lambda i: (0, i)))

    cost = pl.CostEstimate(
        flops=int(2 * n * fin * w + 2 * n * HD * HEADS),
        transcendentals=0,
        bytes_accessed=int(4 * n * fin + 4 * fin * w + 2 * n * HD
                           + (4 * n * HD if has_res_fc else 0) + 4 * HEADS * n))

    return pl.pallas_call(
        functools.partial(gat_project_kernel, has_res_fc=has_res_fc),
        out_shape=tuple(out_shape),
        grid=(n_tiles,),
        in_specs=[
            pl.BlockSpec((t_dst, fin), lambda i: (i, 0)),     # node-feature row tile
            pl.BlockSpec(wcat.shape, lambda i: (0, 0)),       # [W | res] weights, resident
            pl.BlockSpec(alt.shape, lambda i: (0, 0)),        # block-diag a_l, resident
        ],
        out_specs=tuple(out_specs),
        compiler_params=pltpu.CompilerParams(
            dimension_semantics=("parallel",),
            vmem_limit_bytes=VMEM_LIMIT_BYTES),
        cost_estimate=cost,
    )(x, wcat, alt)


# ---------------------------------------------------------------------------------------
# GAT attention kernel (both layers), tiled over destination-node rows.
#   z (bf16) and el_t are resident; the int8 adjacency row block and residual dst tile
#   are streamed (double-buffered by BlockSpec).
# ---------------------------------------------------------------------------------------
def gat_attention_kernel(z_ref, elt_ref, adj_ref, resid_ref, ar_ref, b_ref, out_ref,
                         *, apply_elu, t_dst):
    i = pl.program_id(0)
    row0 = pl.multiple_of(i * t_dst, t_dst)

    z_all = z_ref[...]                                       # [N, HD] bf16 (resident)
    z_dst = z_ref[pl.ds(row0, t_dst), :]                     # [T, HD] bf16 (slice of resident z)
    # Right scores for all heads of the dst tile: [T, HEADS].
    er = jnp.dot(z_dst, ar_ref[...].astype(MXU_DTYPE), preferred_element_type=jnp.float32)
    elt = elt_ref[...]                                       # [HEADS, N] f32 (resident)

    # Additive edge mask built once per tile; masked entries underflow to 0 after exp.
    # TODO(synk): on v5e bit-pack the adjacency (1 bit/edge) to cut the only O(N^2) HBM
    #             stream by 8x; int8 is already adequate on v6e/v7x bandwidth.
    ebias = jnp.where(adj_ref[...].astype(jnp.float32) > 0.0, 0.0, NEG_INF)     # [T, N]

    for k in range(HEADS):                                   # static unroll; [T,N] temps die per head
        e = er[:, k:k + 1] + elt[k:k + 1, :]                 # [T, N]
        e = jnp.maximum(e, LRELU_ALPHA * e) + ebias          # LeakyReLU(0.2) + edge mask
        e = e - jnp.max(e, axis=1, keepdims=True)
        p = jnp.exp(e)
        # deferred softmax normalization; rowsum >= exp(0) for any row with an edge
        inv = pl.reciprocal(jnp.sum(p, axis=1, keepdims=True), approx=True)     # EUP
        zk = z_all[:, k * HIDDEN:(k + 1) * HIDDEN]           # [N, HIDDEN] bf16
        agg = jnp.dot(p.astype(MXU_DTYPE), zk, preferred_element_type=jnp.float32)
        out_ref[:, k * HIDDEN:(k + 1) * HIDDEN] = agg * inv  # direct lane-slice write

    h = out_ref[...] + resid_ref[...] + b_ref[...]           # residual + bias, full lane width
    if apply_elu:
        # robust ELU: never exponentiate the positive branch
        h = jnp.where(h > 0.0, h, jnp.exp(jnp.minimum(h, 0.0)) - 1.0)
    out_ref[...] = h


def gat_attention(z_bf, elt, adj_i8, resid, ar, b, *, apply_elu, t_dst):
    n = z_bf.shape[0]
    n_tiles = n // t_dst
    cost = pl.CostEstimate(
        flops=int(2 * n * HD * HEADS                 # right-score matmuls
                  + 2 * n * n * HD                   # attention aggregation matmuls
                  + 8 * n * n * HEADS),              # elementwise attention math
        transcendentals=int(n * n * HEADS),
        bytes_accessed=int(n * n                     # int8 adjacency stream
                           + 2 * n * HD              # resident bf16 z
                           + 4 * HEADS * n           # el_t
                           + 8 * n * HD))            # residual in + output (f32)
    return pl.pallas_call(
        functools.partial(gat_attention_kernel, apply_elu=apply_elu, t_dst=t_dst),
        out_shape=jax.ShapeDtypeStruct((n, HD), jnp.float32),
        grid=(n_tiles,),
        in_specs=[
            pl.BlockSpec((n, HD), lambda i: (0, 0)),          # z (all src, resident, bf16)
            pl.BlockSpec((HEADS, n), lambda i: (0, 0)),       # left scores (resident)
            pl.BlockSpec((t_dst, n), lambda i: (i, 0)),       # adjacency row block (int8)
            pl.BlockSpec((t_dst, HD), lambda i: (i, 0)),      # residual dst tile
            pl.BlockSpec(ar.shape, lambda i: (0, 0)),         # block-diag a_r
            pl.BlockSpec(b.shape, lambda i: (0, 0)),          # bias
        ],
        out_specs=pl.BlockSpec((t_dst, HD), lambda i: (i, 0)),
        compiler_params=pltpu.CompilerParams(
            dimension_semantics=("parallel",),                # dst tiles are independent
            vmem_limit_bytes=VMEM_LIMIT_BYTES),
        cost_estimate=cost,
    )(z_bf, elt, adj_i8, resid, ar, b)


# ---------------------------------------------------------------------------------------
# Readout (head-mean + WeightedSumAndMax) + gnn_last + LayerNorm kernel.
# Streamed over node tiles with running sum / max accumulators in VMEM scratch.
# ---------------------------------------------------------------------------------------
def readout_kernel(hcat2_ref, memt_t_ref, memt_ref, s_ref, wr_ref, br_ref, wg_ref, bg_ref,
                   out_ref, hsum_ref, hmax_ref, *, num_graphs):
    step = pl.program_id(0)

    @pl.when(step == 0)
    def _():
        hsum_ref[...] = jnp.zeros_like(hsum_ref)
        hmax_ref[...] = jnp.full_like(hmax_ref, NEG_INF)

    hcat2 = hcat2_ref[...]                                             # [T, HD]
    # head-mean of (attention + identity residual + bias) as one small f32 matmul
    h2 = jnp.dot(hcat2, s_ref[...], preferred_element_type=jnp.float32)     # [T, GNN_OUT]

    # atom gate; sigmoid(x) = 0.5*(tanh(x/2)+1) -> EUP tanh, no inf intermediate
    logits = jnp.sum(h2 * wr_ref[...], axis=-1, keepdims=True) + br_ref[...]   # [T, 1]
    w_atom = 0.5 * (jnp.tanh(0.5 * logits) + 1.0)

    hsum_ref[...] += jnp.dot(memt_t_ref[...], h2 * w_atom,
                             preferred_element_type=jnp.float32)       # [G, GNN_OUT]

    # per-graph masked running max over this node tile (node-major membership keeps the
    # mask in sublanes; no [G, N, GNN_OUT] materialization)
    memt = memt_ref[...]                                               # [T, G]
    tile_max = []
    for g in range(num_graphs):                                        # static, G is small
        masked = jnp.where(memt[:, g:g + 1] != 0.0, h2, NEG_INF)       # [T, GNN_OUT]
        tile_max.append(jnp.max(masked, axis=0, keepdims=True))        # [1, GNN_OUT]
    hmax_ref[...] = jnp.maximum(hmax_ref[...], jnp.concatenate(tile_max, axis=0))

    @pl.when(step == pl.num_programs(0) - 1)
    def _():
        graph = jnp.concatenate([hsum_ref[...], hmax_ref[...]], axis=-1)   # [G, 2*GNN_OUT]
        y = jnp.dot(graph, wg_ref[...], preferred_element_type=jnp.float32) + bg_ref[...]
        mu = jnp.mean(y, axis=-1, keepdims=True)
        d = y - mu
        var = jnp.mean(d * d, axis=-1, keepdims=True)
        out_ref[...] = d * lax.rsqrt(var + LN_EPS)                     # LayerNorm, no affine


def readout_and_head(hcat2, memt_t, memt, s_mat, wr_row, br, wg, bg, *, t_node):
    n = hcat2.shape[0]
    g = memt_t.shape[0]
    n_tiles = n // t_node
    return pl.pallas_call(
        functools.partial(readout_kernel, num_graphs=g),
        out_shape=jax.ShapeDtypeStruct((g, NUM_TARGETS), jnp.float32),
        grid=(n_tiles,),
        in_specs=[
            pl.BlockSpec((t_node, HD), lambda i: (i, 0)),     # node-feature tile
            pl.BlockSpec((g, t_node), lambda i: (0, i)),      # membership, graph-major (sum)
            pl.BlockSpec((t_node, g), lambda i: (i, 0)),      # membership, node-major (max)
            pl.BlockSpec(s_mat.shape, lambda i: (0, 0)),
            pl.BlockSpec(wr_row.shape, lambda i: (0, 0)),
            pl.BlockSpec(br.shape, lambda i: (0, 0)),
            pl.BlockSpec(wg.shape, lambda i: (0, 0)),
            pl.BlockSpec(bg.shape, lambda i: (0, 0)),
        ],
        out_specs=pl.BlockSpec((g, NUM_TARGETS), lambda i: (0, 0)),    # resident accumulator
        scratch_shapes=[pltpu.VMEM((g, GNN_OUT), jnp.float32),         # running weighted sum
                        pltpu.VMEM((g, GNN_OUT), jnp.float32)],        # running max
        compiler_params=pltpu.CompilerParams(
            dimension_semantics=("arbitrary",),               # node tiles form a reduction
            vmem_limit_bytes=VMEM_LIMIT_BYTES),
    )(hcat2, memt_t, memt, s_mat, wr_row, br, wg, bg)


# ---------------------------------------------------------------------------------------
# Host-side preparation + forward.
# ---------------------------------------------------------------------------------------
def _block_diag_scores(a_l, a_r):
    """Block-diagonal score matrices so all heads' el/er come from one matmul per side."""
    alt = jnp.zeros((HEADS, HD), jnp.float32)     # row k holds a_l[k] at lanes k*32:(k+1)*32
    ar = jnp.zeros((HD, HEADS), jnp.float32)      # col k holds a_r[k] at rows  k*32:(k+1)*32
    for k in range(HEADS):
        alt = alt.at[k, k * HIDDEN:(k + 1) * HIDDEN].set(a_l[k])
        ar = ar.at[k * HIDDEN:(k + 1) * HIDDEN, k].set(a_r[k])
    return alt, ar


def _pad_graph(x, adj, memt, t_dst):
    n = x.shape[0]
    n_pad = ((n + t_dst - 1) // t_dst) * t_dst
    if n_pad == n:
        return x, adj, memt
    pad = n_pad - n
    x = jnp.pad(x, ((0, pad), (0, 0)))
    adj = jnp.pad(adj, ((0, pad), (0, pad)))
    idx = jnp.arange(n, n_pad)
    adj = adj.at[idx, idx].set(1.0)               # self-loops keep padded softmax rows benign
    memt = jnp.pad(memt, ((0, pad), (0, 0)))      # padded nodes belong to no graph
    return x, adj, memt


@functools.partial(jax.jit, static_argnames=("t_dst",))
def gnn_encoder_forward(x, adj, memt, params, *, t_dst=T_DST):
    x, adj, memt = _pad_graph(x, adj, memt, t_dst)
    adj_i8 = (adj > 0).astype(jnp.int8)           # 4x smaller adjacency stream than f32

    # weight prep: fused [W1 | res1], block-diagonal score matrices, head-mean matrix
    wcat1 = jnp.concatenate([params["w1"], params["res1"]], axis=1)        # [27, 2*HD]
    alt1, ar1 = _block_diag_scores(params["al1"], params["ar1"])
    alt2, ar2 = _block_diag_scores(params["al2"], params["ar2"])
    s_mat = jnp.concatenate([jnp.eye(HIDDEN, dtype=jnp.float32)] * HEADS,
                            axis=0) * (1.0 / HEADS)                        # [HD, GNN_OUT]

    # GAT layer 1: agg='flatten', Linear residual, bias, ELU
    z1, resid1, elt1 = gat_project(x, wcat1, alt1, has_res_fc=True, t_dst=t_dst)
    h1 = gat_attention(z1, elt1, adj_i8, resid1, ar1, params["b1"],
                       apply_elu=True, t_dst=t_dst)

    # GAT layer 2: identity residual (h1), bias, no activation; head-mean deferred to readout
    z2, elt2 = gat_project(h1, params["w2"], alt2, has_res_fc=False, t_dst=t_dst)
    hcat2 = gat_attention(z2, elt2, adj_i8, h1, ar2, params["b2"],
                          apply_elu=False, t_dst=t_dst)

    memt_t = memt.T                               # [G, N] (tiny, built in the wrapper)
    wr_row = params["wr"].T                       # [1, GNN_OUT]
    return readout_and_head(hcat2, memt_t, memt, s_mat, wr_row,
                            params["br"], params["wg"], params["bg"], t_node=t_dst)


def init_params(key):
    ks = jax.random.split(key, 10)

    def lin(k, shape, scale=0.1):
        return jax.random.normal(k, shape, jnp.float32) * scale

    return {
        # GAT layer 1 (in=27 -> 4 x 32)
        "w1":   lin(ks[0], (IN_FEATS, HD)),
        "al1":  lin(ks[1], (HEADS, HIDDEN)),
        "ar1":  lin(ks[2], (HEADS, HIDDEN)),
        "res1": lin(ks[3], (IN_FEATS, HD)),
        "b1":   jnp.zeros((1, HD), jnp.float32),
        # GAT layer 2 (in=128 -> 4 x 32, identity residual)
        "w2":   lin(ks[4], (HD, HD)),
        "al2":  lin(ks[5], (HEADS, HIDDEN)),
        "ar2":  lin(ks[6], (HEADS, HIDDEN)),
        "b2":   jnp.zeros((1, HD), jnp.float32),
        # WeightedSumAndMax atom-weighting Linear(32, 1)
        "wr":   lin(ks[7], (GNN_OUT, 1)),
        "br":   jnp.zeros((1, 1), jnp.float32),
        # gnn_last: Linear(2*gnn_out_feats, asso_dim)
        "wg":   lin(ks[8], (2 * GNN_OUT, ASSO_DIM)),
        "bg":   lin(ks[9], (1, ASSO_DIM)),
    }


if __name__ == "__main__":
    key = jax.random.PRNGKey(0)
    k_param, k_x = jax.random.split(key)

    # Small synthetic batched graph: 4 molecules, 16 atoms each (64 nodes, padded to one
    # 128-row dst tile inside the kernels).
    N_PER_G, N_GRAPHS = 16, 4
    N = N_PER_G * N_GRAPHS

    x = jax.random.normal(k_x, (N, IN_FEATS), jnp.float32)

    # Bidirectional chain within each molecule + self-loops; adj[dst, src].
    adj_rows = [[0.0] * N for _ in range(N)]
    for g in range(N_GRAPHS):
        base = g * N_PER_G
        for i in range(N_PER_G):
            adj_rows[base + i][base + i] = 1.0
            if i + 1 < N_PER_G:
                adj_rows[base + i][base + i + 1] = 1.0
                adj_rows[base + i + 1][base + i] = 1.0
    adj = jnp.array(adj_rows, jnp.float32)

    # Node -> graph one-hot membership, [N, G].
    memt = jnp.array(
        [[1.0 if (n // N_PER_G) == g else 0.0 for g in range(N_GRAPHS)]
         for n in range(N)], jnp.float32)

    params = init_params(k_param)

    out = gnn_encoder_forward(x, adj, memt, params)
    out = jax.block_until_ready(out)

    assert out.shape == (N_GRAPHS, NUM_TARGETS)
    assert bool(jnp.all(jnp.isfinite(out)))
    print("KERNEL_OK")
</pallas_src>

<mosaic_0001>
module attributes {stable_mosaic.version = 11 : i64} {
  func.func @gat_project_kernel(%arg0: i32, %arg1: memref<128x27xf32, #tpu.memory_space<vmem>>, %arg2: memref<27x256xf32, #tpu.memory_space<vmem>>, %arg3: memref<4x128xf32, #tpu.memory_space<vmem>>, %arg4: memref<128x128xbf16, #tpu.memory_space<vmem>>, %arg5: memref<128x128xf32, #tpu.memory_space<vmem>>, %arg6: memref<4x128xf32, #tpu.memory_space<vmem>>) attributes {dimension_semantics = [#tpu.dimension_semantics<parallel>], iteration_bounds = array<i64: 1>, scalar_prefetch = 0 : i64, scratch_operands = 0 : i64, tpu.core_type = #tpu.core_type<tc>, window_params = [{transform_indices = @transform_0, window_bounds = array<i64: 128, 27>}, {pipeline_mode = #tpu.pipeline_mode<synchronous>, transform_indices = @transform_1, window_bounds = array<i64: 27, 256>}, {pipeline_mode = #tpu.pipeline_mode<synchronous>, transform_indices = @transform_2, window_bounds = array<i64: 4, 128>}, {transform_indices = @transform_3, window_bounds = array<i64: 128, 128>}, {transform_indices = @transform_4, window_bounds = array<i64: 128, 128>}, {transform_indices = @transform_5, window_bounds = array<i64: 4, 128>}]} {
    %c0 = arith.constant 0 : index
    %c0_0 = arith.constant 0 : index
    %0 = vector.load %arg1[%c0, %c0_0] : memref<128x27xf32, #tpu.memory_space<vmem>>, vector<128x27xf32>
    %1 = arith.truncf %0 : vector<128x27xf32> to vector<128x27xbf16>
    %c0_1 = arith.constant 0 : index
    %c0_2 = arith.constant 0 : index
    %2 = vector.load %arg2[%c0_1, %c0_2] : memref<27x256xf32, #tpu.memory_space<vmem>>, vector<27x256xf32>
    %3 = arith.truncf %2 : vector<27x256xf32> to vector<27x256xbf16>
    %cst = arith.constant dense<0.000000e+00> : vector<128x256xf32>
    %4 = tpu.matmul %1, %3, %cst {dimension_numbers = #tpu.dot_dimension_numbers<[1], [0], [0], [1], [0, 0, 1, 1], [], []>} : vector<128x27xbf16>, vector<27x256xbf16>, vector<128x256xf32> -> vector<128x256xf32>
    %5 = vector.extract_strided_slice %4 {offsets = [0, 0], sizes = [128, 128], strides = [1, 1]} : vector<128x256xf32> to vector<128x128xf32>
    %6 = arith.truncf %5 : vector<128x128xf32> to vector<128x128xbf16>
    %c0_3 = arith.constant 0 : index
    %c0_4 = arith.constant 0 : index
    %7 = vector.load %arg4[%c0_3, %c0_4] : memref<128x128xbf16, #tpu.memory_space<vmem>>, vector<128x128xbf16>
    tpu.vector_store %arg4[%c0_3, %c0_4], %6 {strides = array<i32>} : memref<128x128xbf16, #tpu.memory_space<vmem>>, vector<128x128xbf16>,
    %8 = vector.extract_strided_slice %4 {offsets = [0, 128], sizes = [128, 128], strides = [1, 1]} : vector<128x256xf32> to vector<128x128xf32>
    %c0_5 = arith.constant 0 : index
    %c0_6 = arith.constant 0 : index
    %9 = vector.load %arg5[%c0_5, %c0_6] : memref<128x128xf32, #tpu.memory_space<vmem>>, vector<128x128xf32>
    tpu.vector_store %arg5[%c0_5, %c0_6], %8 {strides = array<i32>} : memref<128x128xf32, #tpu.memory_space<vmem>>, vector<128x128xf32>,
    %c0_7 = arith.constant 0 : index
    %c0_8 = arith.constant 0 : index
    %10 = vector.load %arg3[%c0_7, %c0_8] : memref<4x128xf32, #tpu.memory_space<vmem>>, vector<4x128xf32>
    %11 = arith.truncf %10 : vector<4x128xf32> to vector<4x128xbf16>
    %cst_9 = arith.constant dense<0.000000e+00> : vector<4x128xf32>
    %12 = tpu.matmul %11, %6, %cst_9 {dimension_numbers = #tpu.dot_dimension_numbers<[1], [1], [0], [0], [0, 0, 1, 0], [], []>} : vector<4x128xbf16>, vector<128x128xbf16>, vector<4x128xf32> -> vector<4x128xf32>
    %c0_10 = arith.constant 0 : index
    %c0_11 = arith.constant 0 : index
    %13 = vector.load %arg6[%c0_10, %c0_11] : memref<4x128xf32, #tpu.memory_space<vmem>>, vector<4x128xf32>
    tpu.vector_store %arg6[%c0_10, %c0_11], %12 {strides = array<i32>} : memref<4x128xf32, #tpu.memory_space<vmem>>, vector<4x128xf32>,
    return
  }
  func.func @transform_0(%arg0: i32) -> (i32, i32) {
    %c0_i32 = arith.constant 0 : i32
    %c0_i32_0 = arith.constant 0 : i32
    return %arg0, %c0_i32 : i32, i32
  }
  func.func @transform_1(%arg0: i32) -> (i32, i32) {
    %c0_i32 = arith.constant 0 : i32
    %c0_i32_0 = arith.constant 0 : i32
    %c0_i32_1 = arith.constant 0 : i32
    return %c0_i32, %c0_i32_0 : i32, i32
  }
  func.func @transform_2(%arg0: i32) -> (i32, i32) {
    %c0_i32 = arith.constant 0 : i32
    %c0_i32_0 = arith.constant 0 : i32
    %c0_i32_1 = arith.constant 0 : i32
    return %c0_i32, %c0_i32_0 : i32, i32
  }
  func.func @transform_3(%arg0: i32) -> (i32, i32) {
    %c0_i32 = arith.constant 0 : i32
    %c0_i32_0 = arith.constant 0 : i32
    return %arg0, %c0_i32 : i32, i32
  }
  func.func @transform_4(%arg0: i32) -> (i32, i32) {
    %c0_i32 = arith.constant 0 : i32
    %c0_i32_0 = arith.constant 0 : i32
    return %arg0, %c0_i32 : i32, i32
  }
  func.func @transform_5(%arg0: i32) -> (i32, i32) {
    %c0_i32 = arith.constant 0 : i32
    %c0_i32_0 = arith.constant 0 : i32
    return %c0_i32, %arg0 : i32, i32
  }
}

module attributes {stable_mosaic.version = 11 : i64} {
  func.func @gat_attention_kernel(%arg0: i32, %arg1: memref<128x128xbf16, #tpu.memory_space<vmem>>, %arg2: memref<4x128xf32, #tpu.memory_space<vmem>>, %arg3: memref<128x128xi8, #tpu.memory_space<vmem>>, %arg4: memref<128x128xf32, #tpu.memory_space<vmem>>, %arg5: memref<128x4xf32, #tpu.memory_space<vmem>>, %arg6: memref<1x128xf32, #tpu.memory_space<vmem>>, %arg7: memref<128x128xf32, #tpu.memory_space<vmem>>) attributes {dimension_semantics = [#tpu.dimension_semantics<parallel>], iteration_bounds = array<i64: 1>, scalar_prefetch = 0 : i64, scratch_operands = 0 : i64, tpu.core_type = #tpu.core_type<tc>, window_params = [{pipeline_mode = #tpu.pipeline_mode<synchronous>, transform_indices = @transform_0, window_bounds = array<i64: 128, 128>}, {pipeline_mode = #tpu.pipeline_mode<synchronous>, transform_indices = @transform_1, window_bounds = array<i64: 4, 128>}, {transform_indices = @transform_2, window_bounds = array<i64: 128, 128>}, {transform_indices = @transform_3, window_bounds = array<i64: 128, 128>}, {pipeline_mode = #tpu.pipeline_mode<synchronous>, transform_indices = @transform_4, window_bounds = array<i64: 128, 4>}, {pipeline_mode = #tpu.pipeline_mode<synchronous>, transform_indices = @transform_5, window_bounds = array<i64: 1, 128>}, {transform_indices = @transform_6, window_bounds = array<i64: 128, 128>}]} {
    %c128_i32 = arith.constant 128 : i32
    %0 = arith.muli %arg0, %c128_i32 : i32
    %1 = tpu.assume_multiple %0, 128 : i32
    %c0 = arith.constant 0 : index
    %c0_0 = arith.constant 0 : index
    %2 = vector.load %arg1[%c0, %c0_0] : memref<128x128xbf16, #tpu.memory_space<vmem>>, vector<128x128xbf16>
    %3 = arith.index_cast %1 : i32 to index
    %c0_1 = arith.constant 0 : index
    %4 = vector.load %arg1[%3, %c0_1] : memref<128x128xbf16, #tpu.memory_space<vmem>>, vector<128x128xbf16>
    %c0_2 = arith.constant 0 : index
    %c0_3 = arith.constant 0 : index
    %5 = vector.load %arg5[%c0_2, %c0_3] : memref<128x4xf32, #tpu.memory_space<vmem>>, vector<128x4xf32>
    %6 = arith.truncf %5 : vector<128x4xf32> to vector<128x4xbf16>
    %cst = arith.constant dense<0.000000e+00> : vector<128x4xf32>
    %7 = tpu.matmul %4, %6, %cst {dimension_numbers = #tpu.dot_dimension_numbers<[1], [0], [0], [1], [0, 0, 1, 1], [], []>} : vector<128x128xbf16>, vector<128x4xbf16>, vector<128x4xf32> -> vector<128x4xf32>
    %c0_4 = arith.constant 0 : index
    %c0_5 = arith.constant 0 : index
    %8 = vector.load %arg2[%c0_4, %c0_5] : memref<4x128xf32, #tpu.memory_space<vmem>>, vector<4x128xf32>
    %c0_6 = arith.constant 0 : index
    %c0_7 = arith.constant 0 : index
    %9 = vector.load %arg3[%c0_6, %c0_7] : memref<128x128xi8, #tpu.memory_space<vmem>>, vector<128x128xi8>
    %10 = arith.sitofp %9 : vector<128x128xi8> to vector<128x128xf32>
    %cst_8 = arith.constant 0.000000e+00 : f32
    %11 = vector.broadcast %cst_8 : f32 to vector<128x128xf32>
    %12 = arith.cmpf ogt, %10, %11 : vector<128x128xf32>
    %cst_9 = arith.constant 0.000000e+00 : f32
    %cst_10 = arith.constant -1.000000e+30 : f32
    %13 = vector.broadcast %cst_9 : f32 to vector<128x128xf32>
    %14 = vector.broadcast %cst_10 : f32 to vector<128x128xf32>
    %15 = arith.select %12, %13, %14 : vector<128x128xi1>, vector<128x128xf32>
    %16 = vector.extract_strided_slice %7 {offsets = [0, 0], sizes = [128, 1], strides = [1, 1]} : vector<128x4xf32> to vector<128x1xf32>
    %17 = vector.extract_strided_slice %8 {offsets = [0, 0], sizes = [1, 128], strides = [1, 1]} : vector<4x128xf32> to vector<1x128xf32>
    %18 = vector.broadcast %16 : vector<128x1xf32> to vector<128x128xf32>
    %19 = vector.broadcast %17 : vector<1x128xf32> to vector<128x128xf32>
    %20 = arith.addf %18, %19 : vector<128x128xf32>
    %cst_11 = arith.constant 2.000000e-01 : f32
    %21 = vector.broadcast %cst_11 : f32 to vector<128x128xf32>
    %22 = arith.mulf %21, %20 : vector<128x128xf32>
    %23 = arith.maximumf %20, %22 : vector<128x128xf32>
    %24 = arith.addf %23, %15 : vector<128x128xf32>
    %cst_12 = arith.constant dense<0xFF800000> : vector<128xf32>
    %25 = vector.multi_reduction <maximumf>, %24, %cst_12 [1] : vector<128x128xf32> to vector<128xf32>
    %26 = vector.shape_cast %25 : vector<128xf32> to vector<128x1xf32>
    %27 = vector.broadcast %26 : vector<128x1xf32> to vector<128x128xf32>
    %28 = arith.subf %24, %27 : vector<128x128xf32>
    %29 = math.exp %28 : vector<128x128xf32>
    %cst_13 = arith.constant dense<0.000000e+00> : vector<128xf32>
    %30 = vector.multi_reduction <add>, %29, %cst_13 [1] : vector<128x128xf32> to vector<128xf32>
    %31 = vector.shape_cast %30 : vector<128xf32> to vector<128x1xf32>
    %32 = tpu.reciprocal %31 {approx = true} : vector<128x1xf32> -> vector<128x1xf32>
    %33 = vector.extract_strided_slice %2 {offsets = [0, 0], sizes = [128, 32], strides = [1, 1]} : vector<128x128xbf16> to vector<128x32xbf16>
    %34 = arith.truncf %29 : vector<128x128xf32> to vector<128x128xbf16>
    %cst_14 = arith.constant dense<0.000000e+00> : vector<128x32xf32>
    %35 = tpu.matmul %34, %33, %cst_14 {dimension_numbers = #tpu.dot_dimension_numbers<[1], [0], [0], [1], [0, 0, 1, 1], [], []>} : vector<128x128xbf16>, vector<128x32xbf16>, vector<128x32xf32> -> vector<128x32xf32>
    %36 = vector.broadcast %32 : vector<128x1xf32> to vector<128x32xf32>
    %37 = arith.mulf %35, %36 : vector<128x32xf32>
    %c0_15 = arith.constant 0 : index
    %c0_16 = arith.constant 0 : index
    %38 = vector.load %arg7[%c0_15, %c0_16] : memref<128x128xf32, #tpu.memory_space<vmem>>, vector<128x32xf32>
    tpu.vector_store %arg7[%c0_15, %c0_16], %37 {strides = array<i32>} : memref<128x128xf32, #tpu.memory_space<vmem>>, vector<128x32xf32>,
    %39 = vector.extract_strided_slice %7 {offsets = [0, 1], sizes = [128, 1], strides = [1, 1]} : vector<128x4xf32> to vector<128x1xf32>
    %40 = vector.extract_strided_slice %8 {offsets = [1, 0], sizes = [1, 128], strides = [1, 1]} : vector<4x128xf32> to vector<1x128xf32>
    %41 = vector.broadcast %39 : vector<128x1xf32> to vector<128x128xf32>
    %42 = vector.broadcast %40 : vector<1x128xf32> to vector<128x128xf32>
    %43 = arith.addf %41, %42 : vector<128x128xf32>
    %cst_17 = arith.constant 2.000000e-01 : f32
    %44 = vector.broadcast %cst_17 : f32 to vector<128x128xf32>
    %45 = arith.mulf %44, %43 : vector<128x128xf32>
    %46 = arith.maximumf %43, %45 : vector<128x128xf32>
    %47 = arith.addf %46, %15 : vector<128x128xf32>
    %cst_18 = arith.constant dense<0xFF800000> : vector<128xf32>
    %48 = vector.multi_reduction <maximumf>, %47, %cst_18 [1] : vector<128x128xf32> to vector<128xf32>
    %49 = vector.shape_cast %48 : vector<128xf32> to vector<128x1xf32>
    %50 = vector.broadcast %49 : vector<128x1xf32> to vector<128x128xf32>
    %51 = arith.subf %47, %50 : vector<128x128xf32>
    %52 = math.exp %51 : vector<128x128xf32>
    %cst_19 = arith.constant dense<0.000000e+00> : vector<128xf32>
    %53 = vector.multi_reduction <add>, %52, %cst_19 [1] : vector<128x128xf32> to vector<128xf32>
    %54 = vector.shape_cast %53 : vector<128xf32> to vector<128x1xf32>
    %55 = tpu.reciprocal %54 {approx = true} : vector<128x1xf32> -> vector<128x1xf32>
    %56 = vector.extract_strided_slice %2 {offsets = [0, 32], sizes = [128, 32], strides = [1, 1]} : vector<128x128xbf16> to vector<128x32xbf16>
    %57 = arith.truncf %52 : vector<128x128xf32> to vector<128x128xbf16>
    %cst_20 = arith.constant dense<0.000000e+00> : vector<128x32xf32>
    %58 = tpu.matmul %57, %56, %cst_20 {dimension_numbers = #tpu.dot_dimension_numbers<[1], [0], [0], [1], [0, 0, 1, 1], [], []>} : vector<128x128xbf16>, vector<128x32xbf16>, vector<128x32xf32> -> vector<128x32xf32>
    %59 = vector.broadcast %55 : vector<128x1xf32> to vector<128x32xf32>
    %60 = arith.mulf %58, %59 : vector<128x32xf32>
    %c0_21 = arith.constant 0 : index
    %c32 = arith.constant 32 : index
    %61 = vector.load %arg7[%c0_21, %c32] : memref<128x128xf32, #tpu.memory_space<vmem>>, vector<128x32xf32>
    tpu.vector_store %arg7[%c0_21, %c32], %60 {strides = array<i32>} : memref<128x128xf32, #tpu.memory_space<vmem>>, vector<128x32xf32>,
    %62 = vector.extract_strided_slice %7 {offsets = [0, 2], sizes = [128, 1], strides = [1, 1]} : vector<128x4xf32> to vector<128x1xf32>
    %63 = vector.extract_strided_slice %8 {offsets = [2, 0], sizes = [1, 128], strides = [1, 1]} : vector<4x128xf32> to vector<1x128xf32>
    %64 = vector.broadcast %62 : vector<128x1xf32> to vector<128x128xf32>
    %65 = vector.broadcast %63 : vector<1x128xf32> to vector<128x128xf32>
    %66 = arith.addf %64, %65 : vector<128x128xf32>
    %cst_22 = arith.constant 2.000000e-01 : f32
    %67 = vector.broadcast %cst_22 : f32 to vector<128x128xf32>
    %68 = arith.mulf %67, %66 : vector<128x128xf32>
    %69 = arith.maximumf %66, %68 : vector<128x128xf32>
    %70 = arith.addf %69, %15 : vector<128x128xf32>
    %cst_23 = arith.constant dense<0xFF800000> : vector<128xf32>
    %71 = vector.multi_reduction <maximumf>, %70, %cst_23 [1] : vector<128x128xf32> to vector<128xf32>
    %72 = vector.shape_cast %71 : vector<128xf32> to vector<128x1xf32>
    %73 = vector.broadcast %72 : vector<128x1xf32> to vector<128x128xf32>
    %74 = arith.subf %70, %73 : vector<128x128xf32>
    %75 = math.exp %74 : vector<128x128xf32>
    %cst_24 = arith.constant dense<0.000000e+00> : vector<128xf32>
    %76 = vector.multi_reduction <add>, %75, %cst_24 [1] : vector<128x128xf32> to vector<128xf32>
    %77 = vector.shape_cast %76 : vector<128xf32> to vector<128x1xf32>
    %78 = tpu.reciprocal %77 {approx = true} : vector<128x1xf32> -> vector<128x1xf32>
    %79 = vector.extract_strided_slice %2 {offsets = [0, 64], sizes = [128, 32], strides = [1, 1]} : vector<128x128xbf16> to vector<128x32xbf16>
    %80 = arith.truncf %75 : vector<128x128xf32> to vector<128x128xbf16>
    %cst_25 = arith.constant dense<0.000000e+00> : vector<128x32xf32>
    %81 = tpu.matmul %80, %79, %cst_25 {dimension_numbers = #tpu.dot_dimension_numbers<[1], [0], [0], [1], [0, 0, 1, 1], [], []>} : vector<128x128xbf16>, vector<128x32xbf16>, vector<128x32xf32> -> vector<128x32xf32>
    %82 = vector.broadcast %78 : vector<128x1xf32> to vector<128x32xf32>
    %83 = arith.mulf %81, %82 : vector<128x32xf32>
    %c0_26 = arith.constant 0 : index
    %c64 = arith.constant 64 : index
    %84 = vector.load %arg7[%c0_26, %c64] : memref<128x128xf32, #tpu.memory_space<vmem>>, vector<128x32xf32>
    tpu.vector_store %arg7[%c0_26, %c64], %83 {strides = array<i32>} : memref<128x128xf32, #tpu.memory_space<vmem>>, vector<128x32xf32>,
    %85 = vector.extract_strided_slice %7 {offsets = [0, 3], sizes = [128, 1], strides = [1, 1]} : vector<128x4xf32> to vector<128x1xf32>
    %86 = vector.extract_strided_slice %8 {offsets = [3, 0], sizes = [1, 128], strides = [1, 1]} : vector<4x128xf32> to vector<1x128xf32>
    %87 = vector.broadcast %85 : vector<128x1xf32> to vector<128x128xf32>
    %88 = vector.broadcast %86 : vector<1x128xf32> to vector<128x128xf32>
    %89 = arith.addf %87, %88 : vector<128x128xf32>
    %cst_27 = arith.constant 2.000000e-01 : f32
    %90 = vector.broadcast %cst_27 : f32 to vector<128x128xf32>
    %91 = arith.mulf %90, %89 : vector<128x128xf32>
    %92 = arith.maximumf %89, %91 : vector<128x128xf32>
    %93 = arith.addf %92, %15 : vector<128x128xf32>
    %cst_28 = arith.constant dense<0xFF800000> : vector<128xf32>
    %94 = vector.multi_reduction <maximumf>, %93, %cst_28 [1] : vector<128x128xf32> to vector<128xf32>
    %95 = vector.shape_cast %94 : vector<128xf32> to vector<128x1xf32>
    %96 = vector.broadcast %95 : vector<128x1xf32> to vector<128x128xf32>
    %97 = arith.subf %93, %96 : vector<128x128xf32>
    %98 = math.exp %97 : vector<128x128xf32>
    %cst_29 = arith.constant dense<0.000000e+00> : vector<128xf32>
    %99 = vector.multi_reduction <add>, %98, %cst_29 [1] : vector<128x128xf32> to vector<128xf32>
    %100 = vector.shape_cast %99 : vector<128xf32> to vector<128x1xf32>
    %101 = tpu.reciprocal %100 {approx = true} : vector<128x1xf32> -> vector<128x1xf32>
    %102 = vector.extract_strided_slice %2 {offsets = [0, 96], sizes = [128, 32], strides = [1, 1]} : vector<128x128xbf16> to vector<128x32xbf16>
    %103 = arith.truncf %98 : vector<128x128xf32> to vector<128x128xbf16>
    %cst_30 = arith.constant dense<0.000000e+00> : vector<128x32xf32>
    %104 = tpu.matmul %103, %102, %cst_30 {dimension_numbers = #tpu.dot_dimension_numbers<[1], [0], [0], [1], [0, 0, 1, 1], [], []>} : vector<128x128xbf16>, vector<128x32xbf16>, vector<128x32xf32> -> vector<128x32xf32>
    %105 = vector.broadcast %101 : vector<128x1xf32> to vector<128x32xf32>
    %106 = arith.mulf %104, %105 : vector<128x32xf32>
    %c0_31 = arith.constant 0 : index
    %c96 = arith.constant 96 : index
    %107 = vector.load %arg7[%c0_31, %c96] : memref<128x128xf32, #tpu.memory_space<vmem>>, vector<128x32xf32>
    tpu.vector_store %arg7[%c0_31, %c96], %106 {strides = array<i32>} : memref<128x128xf32, #tpu.memory_space<vmem>>, vector<128x32xf32>,
    %c0_32 = arith.constant 0 : index
    %c0_33 = arith.constant 0 : index
    %108 = vector.load %arg7[%c0_32, %c0_33] : memref<128x128xf32, #tpu.memory_space<vmem>>, vector<128x128xf32>
    %c0_34 = arith.constant 0 : index
    %c0_35 = arith.constant 0 : index
    %109 = vector.load %arg4[%c0_34, %c0_35] : memref<128x128xf32, #tpu.memory_space<vmem>>, vector<128x128xf32>
    %110 = arith.addf %108, %109 : vector<128x128xf32>
    %c0_36 = arith.constant 0 : index
    %c0_37 = arith.constant 0 : index
    %111 = vector.load %arg6[%c0_36, %c0_37] : memref<1x128xf32, #tpu.memory_space<vmem>>, vector<1x128xf32>
    %112 = vector.broadcast %111 : vector<1x128xf32> to vector<128x128xf32>
    %113 = arith.addf %110, %112 : vector<128x128xf32>
    %cst_38 = arith.constant 0.000000e+00 : f32
    %114 = vector.broadcast %cst_38 : f32 to vector<128x128xf32>
    %115 = arith.cmpf ogt, %113, %114 : vector<128x128xf32>
    %cst_39 = arith.constant 0.000000e+00 : f32
    %116 = vector.broadcast %cst_39 : f32 to vector<128x128xf32>
    %117 = arith.minimumf %113, %116 : vector<128x128xf32>
    %118 = math.exp %117 : vector<128x128xf32>
    %cst_40 = arith.constant 1.000000e+00 : f32
    %119 = vector.broadcast %cst_40 : f32 to vector<128x128xf32>
    %120 = arith.subf %118, %119 : vector<128x128xf32>
    %121 = arith.select %115, %113, %120 : vector<128x128xi1>, vector<128x128xf32>
    %c0_41 = arith.constant 0 : index
    %c0_42 = arith.constant 0 : index
    %122 = vector.load %arg7[%c0_41, %c0_42] : memref<128x128xf32, #tpu.memory_space<vmem>>, vector<128x128xf32>
    tpu.vector_store %arg7[%c0_41, %c0_42], %121 {strides = array<i32>} : memref<128x128xf32, #tpu.memory_space<vmem>>, vector<128x128xf32>,
    return
  }
  func.func @transform_0(%arg0: i32) -> (i32, i32) {
    %c0_i32 = arith.constant 0 : i32
    %c0_i32_0 = arith.constant 0 : i32
    %c0_i32_1 = arith.constant 0 : i32
    return %c0_i32, %c0_i32_0 : i32, i32
  }
  func.func @transform_1(%arg0: i32) -> (i32, i32) {
    %c0_i32 = arith.constant 0 : i32
    %c0_i32_0 = arith.constant 0 : i32
    %c0_i32_1 = arith.constant 0 : i32
    return %c0_i32, %c0_i32_0 : i32, i32
  }
  func.func @transform_2(%arg0: i32) -> (i32, i32) {
    %c0_i32 = arith.constant 0 : i32
    %c0_i32_0 = arith.constant 0 : i32
    return %arg0, %c0_i32 : i32, i32
  }
  func.func @transform_3(%arg0: i32) -> (i32, i32) {
    %c0_i32 = arith.constant 0 : i32
    %c0_i32_0 = arith.constant 0 : i32
    return %arg0, %c0_i32 : i32, i32
  }
  func.func @transform_4(%arg0: i32) -> (i32, i32) {
    %c0_i32 = arith.constant 0 : i32
    %c0_i32_0 = arith.constant 0 : i32
    %c0_i32_1 = arith.constant 0 : i32
    return %c0_i32, %c0_i32_0 : i32, i32
  }
  func.func @transform_5(%arg0: i32) -> (i32, i32) {
    %c0_i32 = arith.constant 0 : i32
    %c0_i32_0 = arith.constant 0 : i32
    %c0_i32_1 = arith.constant 0 : i32
    return %c0_i32, %c0_i32_0 : i32, i32
  }
  func.func @transform_6(%arg0: i32) -> (i32, i32) {
    %c0_i32 = arith.constant 0 : i32
    %c0_i32_0 = arith.constant 0 : i32
    return %arg0, %c0_i32 : i32, i32
  }
}

module attributes {stable_mosaic.version = 11 : i64} {
  func.func @gat_attention_kernel(%arg0: i32, %arg1: memref<128x128xbf16, #tpu.memory_space<vmem>>, %arg2: memref<4x128xf32, #tpu.memory_space<vmem>>, %arg3: memref<128x128xi8, #tpu.memory_space<vmem>>, %arg4: memref<128x128xf32, #tpu.memory_space<vmem>>, %arg5: memref<128x4xf32, #tpu.memory_space<vmem>>, %arg6: memref<1x128xf32, #tpu.memory_space<vmem>>, %arg7: memref<128x128xf32, #tpu.memory_space<vmem>>) attributes {dimension_semantics = [#tpu.dimension_semantics<parallel>], iteration_bounds = array<i64: 1>, scalar_prefetch = 0 : i64, scratch_operands = 0 : i64, tpu.core_type = #tpu.core_type<tc>, window_params = [{pipeline_mode = #tpu.pipeline_mode<synchronous>, transform_indices = @transform_0, window_bounds = array<i64: 128, 128>}, {pipeline_mode = #tpu.pipeline_mode<synchronous>, transform_indices = @transform_1, window_bounds = array<i64: 4, 128>}, {transform_indices = @transform_2, window_bounds = array<i64: 128, 128>}, {transform_indices = @transform_3, window_bounds = array<i64: 128, 128>}, {pipeline_mode = #tpu.pipeline_mode<synchronous>, transform_indices = @transform_4, window_bounds = array<i64: 128, 4>}, {pipeline_mode = #tpu.pipeline_mode<synchronous>, transform_indices = @transform_5, window_bounds = array<i64: 1, 128>}, {transform_indices = @transform_6, window_bounds = array<i64: 128, 128>}]} {
    %c128_i32 = arith.constant 128 : i32
    %0 = arith.muli %arg0, %c128_i32 : i32
    %1 = tpu.assume_multiple %0, 128 : i32
    %c0 = arith.constant 0 : index
    %c0_0 = arith.constant 0 : index
    %2 = vector.load %arg1[%c0, %c0_0] : memref<128x128xbf16, #tpu.memory_space<vmem>>, vector<128x128xbf16>
    %3 = arith.index_cast %1 : i32 to index
    %c0_1 = arith.constant 0 : index
    %4 = vector.load %arg1[%3, %c0_1] : memref<128x128xbf16, #tpu.memory_space<vmem>>, vector<128x128xbf16>
    %c0_2 = arith.constant 0 : index
    %c0_3 = arith.constant 0 : index
    %5 = vector.load %arg5[%c0_2, %c0_3] : memref<128x4xf32, #tpu.memory_space<vmem>>, vector<128x4xf32>
    %6 = arith.truncf %5 : vector<128x4xf32> to vector<128x4xbf16>
    %cst = arith.constant dense<0.000000e+00> : vector<128x4xf32>
    %7 = tpu.matmul %4, %6, %cst {dimension_numbers = #tpu.dot_dimension_numbers<[1], [0], [0], [1], [0, 0, 1, 1], [], []>} : vector<128x128xbf16>, vector<128x4xbf16>, vector<128x4xf32> -> vector<128x4xf32>
    %c0_4 = arith.constant 0 : index
    %c0_5 = arith.constant 0 : index
    %8 = vector.load %arg2[%c0_4, %c0_5] : memref<4x128xf32, #tpu.memory_space<vmem>>, vector<4x128xf32>
    %c0_6 = arith.constant 0 : index
    %c0_7 = arith.constant 0 : index
    %9 = vector.load %arg3[%c0_6, %c0_7] : memref<128x128xi8, #tpu.memory_space<vmem>>, vector<128x128xi8>
    %10 = arith.sitofp %9 : vector<128x128xi8> to vector<128x128xf32>
    %cst_8 = arith.constant 0.000000e+00 : f32
    %11 = vector.broadcast %cst_8 : f32 to vector<128x128xf32>
    %12 = arith.cmpf ogt, %10, %11 : vector<128x128xf32>
    %cst_9 = arith.constant 0.000000e+00 : f32
    %cst_10 = arith.constant -1.000000e+30 : f32
    %13 = vector.broadcast %cst_9 : f32 to vector<128x128xf32>
    %14 = vector.broadcast %cst_10 : f32 to vector<128x128xf32>
    %15 = arith.select %12, %13, %14 : vector<128x128xi1>, vector<128x128xf32>
    %16 = vector.extract_strided_slice %7 {offsets = [0, 0], sizes = [128, 1], strides = [1, 1]} : vector<128x4xf32> to vector<128x1xf32>
    %17 = vector.extract_strided_slice %8 {offsets = [0, 0], sizes = [1, 128], strides = [1, 1]} : vector<4x128xf32> to vector<1x128xf32>
    %18 = vector.broadcast %16 : vector<128x1xf32> to vector<128x128xf32>
    %19 = vector.broadcast %17 : vector<1x128xf32> to vector<128x128xf32>
    %20 = arith.addf %18, %19 : vector<128x128xf32>
    %cst_11 = arith.constant 2.000000e-01 : f32
    %21 = vector.broadcast %cst_11 : f32 to vector<128x128xf32>
    %22 = arith.mulf %21, %20 : vector<128x128xf32>
    %23 = arith.maximumf %20, %22 : vector<128x128xf32>
    %24 = arith.addf %23, %15 : vector<128x128xf32>
    %cst_12 = arith.constant dense<0xFF800000> : vector<128xf32>
    %25 = vector.multi_reduction <maximumf>, %24, %cst_12 [1] : vector<128x128xf32> to vector<128xf32>
    %26 = vector.shape_cast %25 : vector<128xf32> to vector<128x1xf32>
    %27 = vector.broadcast %26 : vector<128x1xf32> to vector<128x128xf32>
    %28 = arith.subf %24, %27 : vector<128x128xf32>
    %29 = math.exp %28 : vector<128x128xf32>
    %cst_13 = arith.constant dense<0.000000e+00> : vector<128xf32>
    %30 = vector.multi_reduction <add>, %29, %cst_13 [1] : vector<128x128xf32> to vector<128xf32>
    %31 = vector.shape_cast %30 : vector<128xf32> to vector<128x1xf32>
    %32 = tpu.reciprocal %31 {approx = true} : vector<128x1xf32> -> vector<128x1xf32>
    %33 = vector.extract_strided_slice %2 {offsets = [0, 0], sizes = [128, 32], strides = [1, 1]} : vector<128x128xbf16> to vector<128x32xbf16>
    %34 = arith.truncf %29 : vector<128x128xf32> to vector<128x128xbf16>
    %cst_14 = arith.constant dense<0.000000e+00> : vector<128x32xf32>
    %35 = tpu.matmul %34, %33, %cst_14 {dimension_numbers = #tpu.dot_dimension_numbers<[1], [0], [0], [1], [0, 0, 1, 1], [], []>} : vector<128x128xbf16>, vector<128x32xbf16>, vector<128x32xf32> -> vector<128x32xf32>
    %36 = vector.broadcast %32 : vector<128x1xf32> to vector<128x32xf32>
    %37 = arith.mulf %35, %36 : vector<128x32xf32>
    %c0_15 = arith.constant 0 : index
    %c0_16 = arith.constant 0 : index
    %38 = vector.load %arg7[%c0_15, %c0_16] : memref<128x128xf32, #tpu.memory_space<vmem>>, vector<128x32xf32>
    tpu.vector_store %arg7[%c0_15, %c0_16], %37 {strides = array<i32>} : memref<128x128xf32, #tpu.memory_space<vmem>>, vector<128x32xf32>,
    %39 = vector.extract_strided_slice %7 {offsets = [0, 1], sizes = [128, 1], strides = [1, 1]} : vector<128x4xf32> to vector<128x1xf32>
    %40 = vector.extract_strided_slice %8 {offsets = [1, 0], sizes = [1, 128], strides = [1, 1]} : vector<4x128xf32> to vector<1x128xf32>
    %41 = vector.broadcast %39 : vector<128x1xf32> to vector<128x128xf32>
    %42 = vector.broadcast %40 : vector<1x128xf32> to vector<128x128xf32>
    %43 = arith.addf %41, %42 : vector<128x128xf32>
    %cst_17 = arith.constant 2.000000e-01 : f32
    %44 = vector.broadcast %cst_17 : f32 to vector<128x128xf32>
    %45 = arith.mulf %44, %43 : vector<128x128xf32>
    %46 = arith.maximumf %43, %45 : vector<128x128xf32>
    %47 = arith.addf %46, %15 : vector<128x128xf32>
    %cst_18 = arith.constant dense<0xFF800000> : vector<128xf32>
    %48 = vector.multi_reduction <maximumf>, %47, %cst_18 [1] : vector<128x128xf32> to vector<128xf32>
    %49 = vector.shape_cast %48 : vector<128xf32> to vector<128x1xf32>
    %50 = vector.broadcast %49 : vector<128x1xf32> to vector<128x128xf32>
    %51 = arith.subf %47, %50 : vector<128x128xf32>
    %52 = math.exp %51 : vector<128x128xf32>
    %cst_19 = arith.constant dense<0.000000e+00> : vector<128xf32>
    %53 = vector.multi_reduction <add>, %52, %cst_19 [1] : vector<128x128xf32> to vector<128xf32>
    %54 = vector.shape_cast %53 : vector<128xf32> to vector<128x1xf32>
    %55 = tpu.reciprocal %54 {approx = true} : vector<128x1xf32> -> vector<128x1xf32>
    %56 = vector.extract_strided_slice %2 {offsets = [0, 32], sizes = [128, 32], strides = [1, 1]} : vector<128x128xbf16> to vector<128x32xbf16>
    %57 = arith.truncf %52 : vector<128x128xf32> to vector<128x128xbf16>
    %cst_20 = arith.constant dense<0.000000e+00> : vector<128x32xf32>
    %58 = tpu.matmul %57, %56, %cst_20 {dimension_numbers = #tpu.dot_dimension_numbers<[1], [0], [0], [1], [0, 0, 1, 1], [], []>} : vector<128x128xbf16>, vector<128x32xbf16>, vector<128x32xf32> -> vector<128x32xf32>
    %59 = vector.broadcast %55 : vector<128x1xf32> to vector<128x32xf32>
    %60 = arith.mulf %58, %59 : vector<128x32xf32>
    %c0_21 = arith.constant 0 : index
    %c32 = arith.constant 32 : index
    %61 = vector.load %arg7[%c0_21, %c32] : memref<128x128xf32, #tpu.memory_space<vmem>>, vector<128x32xf32>
    tpu.vector_store %arg7[%c0_21, %c32], %60 {strides = array<i32>} : memref<128x128xf32, #tpu.memory_space<vmem>>, vector<128x32xf32>,
    %62 = vector.extract_strided_slice %7 {offsets = [0, 2], sizes = [128, 1], strides = [1, 1]} : vector<128x4xf32> to vector<128x1xf32>
    %63 = vector.extract_strided_slice %8 {offsets = [2, 0], sizes = [1, 128], strides = [1, 1]} : vector<4x128xf32> to vector<1x128xf32>
    %64 = vector.broadcast %62 : vector<128x1xf32> to vector<128x128xf32>
    %65 = vector.broadcast %63 : vector<1x128xf32> to vector<128x128xf32>
    %66 = arith.addf %64, %65 : vector<128x128xf32>
    %cst_22 = arith.constant 2.000000e-01 : f32
    %67 = vector.broadcast %cst_22 : f32 to vector<128x128xf32>
    %68 = arith.mulf %67, %66 : vector<128x128xf32>
    %69 = arith.maximumf %66, %68 : vector<128x128xf32>
    %70 = arith.addf %69, %15 : vector<128x128xf32>
    %cst_23 = arith.constant dense<0xFF800000> : vector<128xf32>
    %71 = vector.multi_reduction <maximumf>, %70, %cst_23 [1] : vector<128x128xf32> to vector<128xf32>
    %72 = vector.shape_cast %71 : vector<128xf32> to vector<128x1xf32>
    %73 = vector.broadcast %72 : vector<128x1xf32> to vector<128x128xf32>
    %74 = arith.subf %70, %73 : vector<128x128xf32>
    %75 = math.exp %74 : vector<128x128xf32>
    %cst_24 = arith.constant dense<0.000000e+00> : vector<128xf32>
    %76 = vector.multi_reduction <add>, %75, %cst_24 [1] : vector<128x128xf32> to vector<128xf32>
    %77 = vector.shape_cast %76 : vector<128xf32> to vector<128x1xf32>
    %78 = tpu.reciprocal %77 {approx = true} : vector<128x1xf32> -> vector<128x1xf32>
    %79 = vector.extract_strided_slice %2 {offsets = [0, 64], sizes = [128, 32], strides = [1, 1]} : vector<128x128xbf16> to vector<128x32xbf16>
    %80 = arith.truncf %75 : vector<128x128xf32> to vector<128x128xbf16>
    %cst_25 = arith.constant dense<0.000000e+00> : vector<128x32xf32>
    %81 = tpu.matmul %80, %79, %cst_25 {dimension_numbers = #tpu.dot_dimension_numbers<[1], [0], [0], [1], [0, 0, 1, 1], [], []>} : vector<128x128xbf16>, vector<128x32xbf16>, vector<128x32xf32> -> vector<128x32xf32>
    %82 = vector.broadcast %78 : vector<128x1xf32> to vector<128x32xf32>
    %83 = arith.mulf %81, %82 : vector<128x32xf32>
    %c0_26 = arith.constant 0 : index
    %c64 = arith.constant 64 : index
    %84 = vector.load %arg7[%c0_26, %c64] : memref<128x128xf32, #tpu.memory_space<vmem>>, vector<128x32xf32>
    tpu.vector_store %arg7[%c0_26, %c64], %83 {strides = array<i32>} : memref<128x128xf32, #tpu.memory_space<vmem>>, vector<128x32xf32>,
    %85 = vector.extract_strided_slice %7 {offsets = [0, 3], sizes = [128, 1], strides = [1, 1]} : vector<128x4xf32> to vector<128x1xf32>
    %86 = vector.extract_strided_slice %8 {offsets = [3, 0], sizes = [1, 128], strides = [1, 1]} : vector<4x128xf32> to vector<1x128xf32>
    %87 = vector.broadcast %85 : vector<128x1xf32> to vector<128x128xf32>
    %88 = vector.broadcast %86 : vector<1x128xf32> to vector<128x128xf32>
    %89 = arith.addf %87, %88 : vector<128x128xf32>
    %cst_27 = arith.constant 2.000000e-01 : f32
    %90 = vector.broadcast %cst_27 : f32 to vector<128x128xf32>
    %91 = arith.mulf %90, %89 : vector<128x128xf32>
    %92 = arith.maximumf %89, %91 : vector<128x128xf32>
    %93 = arith.addf %92, %15 : vector<128x128xf32>
    %cst_28 = arith.constant dense<0xFF800000> : vector<128xf32>
    %94 = vector.multi_reduction <maximumf>, %93, %cst_28 [1] : vector<128x128xf32> to vector<128xf32>
    %95 = vector.shape_cast %94 : vector<128xf32> to vector<128x1xf32>
    %96 = vector.broadcast %95 : vector<128x1xf32> to vector<128x128xf32>
    %97 = arith.subf %93, %96 : vector<128x128xf32>
    %98 = math.exp %97 : vector<128x128xf32>
    %cst_29 = arith.constant dense<0.000000e+00> : vector<128xf32>
    %99 = vector.multi_reduction <add>, %98, %cst_29 [1] : vector<128x128xf32> to vector<128xf32>
    %100 = vector.shape_cast %99 : vector<128xf32> to vector<128x1xf32>
    %101 = tpu.reciprocal %100 {approx = true} : vector<128x1xf32> -> vector<128x1xf32>
    %102 = vector.extract_strided_slice %2 {offsets = [0, 96], sizes = [128, 32], strides = [1, 1]} : vector<128x128xbf16> to vector<128x32xbf16>
    %103 = arith.truncf %98 : vector<128x128xf32> to vector<128x128xbf16>
    %cst_30 = arith.constant dense<0.000000e+00> : vector<128x32xf32>
    %104 = tpu.matmul %103, %102, %cst_30 {dimension_numbers = #tpu.dot_dimension_numbers<[1], [0], [0], [1], [0, 0, 1, 1], [], []>} : vector<128x128xbf16>, vector<128x32xbf16>, vector<128x32xf32> -> vector<128x32xf32>
    %105 = vector.broadcast %101 : vector<128x1xf32> to vector<128x32xf32>
    %106 = arith.mulf %104, %105 : vector<128x32xf32>
    %c0_31 = arith.constant 0 : index
    %c96 = arith.constant 96 : index
    %107 = vector.load %arg7[%c0_31, %c96] : memref<128x128xf32, #tpu.memory_space<vmem>>, vector<128x32xf32>
    tpu.vector_store %arg7[%c0_31, %c96], %106 {strides = array<i32>} : memref<128x128xf32, #tpu.memory_space<vmem>>, vector<128x32xf32>,
    %c0_32 = arith.constant 0 : index
    %c0_33 = arith.constant 0 : index
    %108 = vector.load %arg7[%c0_32, %c0_33] : memref<128x128xf32, #tpu.memory_space<vmem>>, vector<128x128xf32>
    %c0_34 = arith.constant 0 : index
    %c0_35 = arith.constant 0 : index
    %109 = vector.load %arg4[%c0_34, %c0_35] : memref<128x128xf32, #tpu.memory_space<vmem>>, vector<128x128xf32>
    %110 = arith.addf %108, %109 : vector<128x128xf32>
    %c0_36 = arith.constant 0 : index
    %c0_37 = arith.constant 0 : index
    %111 = vector.load %arg6[%c0_36, %c0_37] : memref<1x128xf32, #tpu.memory_space<vmem>>, vector<1x128xf32>
    %112 = vector.broadcast %111 : vector<1x128xf32> to vector<128x128xf32>
    %113 = arith.addf %110, %112 : vector<128x128xf32>
    %c0_38 = arith.constant 0 : index
    %c0_39 = arith.constant 0 : index
    %114 = vector.load %arg7[%c0_38, %c0_39] : memref<128x128xf32, #tpu.memory_space<vmem>>, vector<128x128xf32>
    tpu.vector_store %arg7[%c0_38, %c0_39], %113 {strides = array<i32>} : memref<128x128xf32, #tpu.memory_space<vmem>>, vector<128x128xf32>,
    return
  }
  func.func @transform_0(%arg0: i32) -> (i32, i32) {
    %c0_i32 = arith.constant 0 : i32
    %c0_i32_0 = arith.constant 0 : i32
    %c0_i32_1 = arith.constant 0 : i32
    return %c0_i32, %c0_i32_0 : i32, i32
  }
  func.func @transform_1(%arg0: i32) -> (i32, i32) {
    %c0_i32 = arith.constant 0 : i32
    %c0_i32_0 = arith.constant 0 : i32
    %c0_i32_1 = arith.constant 0 : i32
    return %c0_i32, %c0_i32_0 : i32, i32
  }
  func.func @transform_2(%arg0: i32) -> (i32, i32) {
    %c0_i32 = arith.constant 0 : i32
    %c0_i32_0 = arith.constant 0 : i32
    return %arg0, %c0_i32 : i32, i32
  }
  func.func @transform_3(%arg0: i32) -> (i32, i32) {
    %c0_i32 = arith.constant 0 : i32
    %c0_i32_0 = arith.constant 0 : i32
    return %arg0, %c0_i32 : i32, i32
  }
  func.func @transform_4(%arg0: i32) -> (i32, i32) {
    %c0_i32 = arith.constant 0 : i32
    %c0_i32_0 = arith.constant 0 : i32
    %c0_i32_1 = arith.constant 0 : i32
    return %c0_i32, %c0_i32_0 : i32, i32
  }
  func.func @transform_5(%arg0: i32) -> (i32, i32) {
    %c0_i32 = arith.constant 0 : i32
    %c0_i32_0 = arith.constant 0 : i32
    %c0_i32_1 = arith.constant 0 : i32
    return %c0_i32, %c0_i32_0 : i32, i32
  }
  func.func @transform_6(%arg0: i32) -> (i32, i32) {
    %c0_i32 = arith.constant 0 : i32
    %c0_i32_0 = arith.constant 0 : i32
    return %arg0, %c0_i32 : i32, i32
  }
}

module attributes {stable_mosaic.version = 11 : i64} {
  func.func @gat_project_kernel(%arg0: i32, %arg1: memref<128x128xf32, #tpu.memory_space<vmem>>, %arg2: memref<128x128xf32, #tpu.memory_space<vmem>>, %arg3: memref<4x128xf32, #tpu.memory_space<vmem>>, %arg4: memref<128x128xbf16, #tpu.memory_space<vmem>>, %arg5: memref<4x128xf32, #tpu.memory_space<vmem>>) attributes {dimension_semantics = [#tpu.dimension_semantics<parallel>], iteration_bounds = array<i64: 1>, scalar_prefetch = 0 : i64, scratch_operands = 0 : i64, tpu.core_type = #tpu.core_type<tc>, window_params = [{transform_indices = @transform_0, window_bounds = array<i64: 128, 128>}, {pipeline_mode = #tpu.pipeline_mode<synchronous>, transform_indices = @transform_1, window_bounds = array<i64: 128, 128>}, {pipeline_mode = #tpu.pipeline_mode<synchronous>, transform_indices = @transform_2, window_bounds = array<i64: 4, 128>}, {transform_indices = @transform_3, window_bounds = array<i64: 128, 128>}, {transform_indices = @transform_4, window_bounds = array<i64: 4, 128>}]} {
    %c0 = arith.constant 0 : index
    %c0_0 = arith.constant 0 : index
    %0 = vector.load %arg1[%c0, %c0_0] : memref<128x128xf32, #tpu.memory_space<vmem>>, vector<128x128xf32>
    %1 = arith.truncf %0 : vector<128x128xf32> to vector<128x128xbf16>
    %c0_1 = arith.constant 0 : index
    %c0_2 = arith.constant 0 : index
    %2 = vector.load %arg2[%c0_1, %c0_2] : memref<128x128xf32, #tpu.memory_space<vmem>>, vector<128x128xf32>
    %3 = arith.truncf %2 : vector<128x128xf32> to vector<128x128xbf16>
    %cst = arith.constant dense<0.000000e+00> : vector<128x128xf32>
    %4 = tpu.matmul %1, %3, %cst {dimension_numbers = #tpu.dot_dimension_numbers<[1], [0], [0], [1], [0, 0, 1, 1], [], []>} : vector<128x128xbf16>, vector<128x128xbf16>, vector<128x128xf32> -> vector<128x128xf32>
    %5 = arith.truncf %4 : vector<128x128xf32> to vector<128x128xbf16>
    %c0_3 = arith.constant 0 : index
    %c0_4 = arith.constant 0 : index
    %6 = vector.load %arg4[%c0_3, %c0_4] : memref<128x128xbf16, #tpu.memory_space<vmem>>, vector<128x128xbf16>
    tpu.vector_store %arg4[%c0_3, %c0_4], %5 {strides = array<i32>} : memref<128x128xbf16, #tpu.memory_space<vmem>>, vector<128x128xbf16>,
    %c0_5 = arith.constant 0 : index
    %c0_6 = arith.constant 0 : index
    %7 = vector.load %arg3[%c0_5, %c0_6] : memref<4x128xf32, #tpu.memory_space<vmem>>, vector<4x128xf32>
    %8 = arith.truncf %7 : vector<4x128xf32> to vector<4x128xbf16>
    %cst_7 = arith.constant dense<0.000000e+00> : vector<4x128xf32>
    %9 = tpu.matmul %8, %5, %cst_7 {dimension_numbers = #tpu.dot_dimension_numbers<[1], [1], [0], [0], [0, 0, 1, 0], [], []>} : vector<4x128xbf16>, vector<128x128xbf16>, vector<4x128xf32> -> vector<4x128xf32>
    %c0_8 = arith.constant 0 : index
    %c0_9 = arith.constant 0 : index
    %10 = vector.load %arg5[%c0_8, %c0_9] : memref<4x128xf32, #tpu.memory_space<vmem>>, vector<4x128xf32>
    tpu.vector_store %arg5[%c0_8, %c0_9], %9 {strides = array<i32>} : memref<4x128xf32, #tpu.memory_space<vmem>>, vector<4x128xf32>,
    return
  }
  func.func @transform_0(%arg0: i32) -> (i32, i32) {
    %c0_i32 = arith.constant 0 : i32
    %c0_i32_0 = arith.constant 0 : i32
    return %arg0, %c0_i32 : i32, i32
  }
  func.func @transform_1(%arg0: i32) -> (i32, i32) {
    %c0_i32 = arith.constant 0 : i32
    %c0_i32_0 = arith.constant 0 : i32
    %c0_i32_1 = arith.constant 0 : i32
    return %c0_i32, %c0_i32_0 : i32, i32
  }
  func.func @transform_2(%arg0: i32) -> (i32, i32) {
    %c0_i32 = arith.constant 0 : i32
    %c0_i32_0 = arith.constant 0 : i32
    %c0_i32_1 = arith.constant 0 : i32
    return %c0_i32, %c0_i32_0 : i32, i32
  }
  func.func @transform_3(%arg0: i32) -> (i32, i32) {
    %c0_i32 = arith.constant 0 : i32
    %c0_i32_0 = arith.constant 0 : i32
    return %arg0, %c0_i32 : i32, i32
  }
  func.func @transform_4(%arg0: i32) -> (i32, i32) {
    %c0_i32 = arith.constant 0 : i32
    %c0_i32_0 = arith.constant 0 : i32
    return %c0_i32, %arg0 : i32, i32
  }
}

module attributes {stable_mosaic.version = 11 : i64} {
  func.func @readout_kernel(%arg0: i32, %arg1: memref<128x128xf32, #tpu.memory_space<vmem>>, %arg2: memref<4x128xf32, #tpu.memory_space<vmem>>, %arg3: memref<128x4xf32, #tpu.memory_space<vmem>>, %arg4: memref<128x32xf32, #tpu.memory_space<vmem>>, %arg5: memref<1x32xf32, #tpu.memory_space<vmem>>, %arg6: memref<1x1xf32, #tpu.memory_space<vmem>>, %arg7: memref<64x128xf32, #tpu.memory_space<vmem>>, %arg8: memref<1x128xf32, #tpu.memory_space<vmem>>, %arg9: memref<4x128xf32, #tpu.memory_space<vmem>>, %arg10: memref<4x32xf32, #tpu.memory_space<vmem>>, %arg11: memref<4x32xf32, #tpu.memory_space<vmem>>) attributes {dimension_semantics = [#tpu.dimension_semantics<arbitrary>], iteration_bounds = array<i64: 1>, scalar_prefetch = 0 : i64, scratch_operands = 2 : i64, tpu.core_type = #tpu.core_type<tc>, window_params = [{transform_indices = @transform_0, window_bounds = array<i64: 128, 128>}, {transform_indices = @transform_1, window_bounds = array<i64: 4, 128>}, {transform_indices = @transform_2, window_bounds = array<i64: 128, 4>}, {pipeline_mode = #tpu.pipeline_mode<synchronous>, transform_indices = @transform_3, window_bounds = array<i64: 128, 32>}, {pipeline_mode = #tpu.pipeline_mode<synchronous>, transform_indices = @transform_4, window_bounds = array<i64: 1, 32>}, {pipeline_mode = #tpu.pipeline_mode<synchronous>, transform_indices = @transform_5, window_bounds = array<i64: 1, 1>}, {pipeline_mode = #tpu.pipeline_mode<synchronous>, transform_indices = @transform_6, window_bounds = array<i64: 64, 128>}, {pipeline_mode = #tpu.pipeline_mode<synchronous>, transform_indices = @transform_7, window_bounds = array<i64: 1, 128>}, {pipeline_mode = #tpu.pipeline_mode<synchronous>, transform_indices = @transform_8, window_bounds = array<i64: 4, 128>}]} {
    %c0_i32 = arith.constant 0 : i32
    %0 = arith.cmpi eq, %arg0, %c0_i32 : i32
    %1 = arith.extui %0 : i1 to i32
    %c0_i32_0 = arith.constant 0 : i32
    %2 = arith.cmpi ne, %1, %c0_i32_0 : i32
    scf.if %2 {
      %cst_39 = arith.constant 0.000000e+00 : f32
      %72 = vector.broadcast %cst_39 : f32 to vector<4x32xf32>
      %c0_40 = arith.constant 0 : index
      %c0_41 = arith.constant 0 : index
      %73 = vector.load %arg10[%c0_40, %c0_41] : memref<4x32xf32, #tpu.memory_space<vmem>>, vector<4x32xf32>
      tpu.vector_store %arg10[%c0_40, %c0_41], %72 {strides = array<i32>} : memref<4x32xf32, #tpu.memory_space<vmem>>, vector<4x32xf32>,
      %cst_42 = arith.constant -1.000000e+30 : f32
      %74 = vector.broadcast %cst_42 : f32 to vector<4x32xf32>
      %c0_43 = arith.constant 0 : index
      %c0_44 = arith.constant 0 : index
      %75 = vector.load %arg11[%c0_43, %c0_44] : memref<4x32xf32, #tpu.memory_space<vmem>>, vector<4x32xf32>
      tpu.vector_store %arg11[%c0_43, %c0_44], %74 {strides = array<i32>} : memref<4x32xf32, #tpu.memory_space<vmem>>, vector<4x32xf32>,
    } else {
    }
    %c0 = arith.constant 0 : index
    %c0_1 = arith.constant 0 : index
    %3 = vector.load %arg1[%c0, %c0_1] : memref<128x128xf32, #tpu.memory_space<vmem>>, vector<128x128xf32>
    %c0_2 = arith.constant 0 : index
    %c0_3 = arith.constant 0 : index
    %4 = vector.load %arg4[%c0_2, %c0_3] : memref<128x32xf32, #tpu.memory_space<vmem>>, vector<128x32xf32>
    %cst = arith.constant dense<0.000000e+00> : vector<128x32xf32>
    %5 = tpu.matmul %3, %4, %cst {dimension_numbers = #tpu.dot_dimension_numbers<[1], [0], [0], [1], [0, 0, 1, 1], [], []>} : vector<128x128xf32>, vector<128x32xf32>, vector<128x32xf32> -> vector<128x32xf32>
    %c0_4 = arith.constant 0 : index
    %c0_5 = arith.constant 0 : index
    %6 = vector.load %arg5[%c0_4, %c0_5] : memref<1x32xf32, #tpu.memory_space<vmem>>, vector<1x32xf32>
    %7 = vector.broadcast %6 : vector<1x32xf32> to vector<128x32xf32>
    %8 = arith.mulf %5, %7 : vector<128x32xf32>
    %cst_6 = arith.constant dense<0.000000e+00> : vector<128xf32>
    %9 = vector.multi_reduction <add>, %8, %cst_6 [1] : vector<128x32xf32> to vector<128xf32>
    %10 = vector.shape_cast %9 : vector<128xf32> to vector<128x1xf32>
    %c0_7 = arith.constant 0 : index
    %c0_8 = arith.constant 0 : index
    %11 = vector.load %arg6[%c0_7, %c0_8] : memref<1x1xf32, #tpu.memory_space<vmem>>, vector<1x1xf32>
    %12 = vector.broadcast %11 : vector<1x1xf32> to vector<128x1xf32>
    %13 = arith.addf %10, %12 : vector<128x1xf32>
    %cst_9 = arith.constant 5.000000e-01 : f32
    %14 = vector.broadcast %cst_9 : f32 to vector<128x1xf32>
    %15 = arith.mulf %14, %13 : vector<128x1xf32>
    %16 = math.tanh %15 : vector<128x1xf32>
    %cst_10 = arith.constant 1.000000e+00 : f32
    %17 = vector.broadcast %cst_10 : f32 to vector<128x1xf32>
    %18 = arith.addf %16, %17 : vector<128x1xf32>
    %cst_11 = arith.constant 5.000000e-01 : f32
    %19 = vector.broadcast %cst_11 : f32 to vector<128x1xf32>
    %20 = arith.mulf %19, %18 : vector<128x1xf32>
    %c0_12 = arith.constant 0 : index
    %c0_13 = arith.constant 0 : index
    %21 = vector.load %arg10[%c0_12, %c0_13] : memref<4x32xf32, #tpu.memory_space<vmem>>, vector<4x32xf32>
    %c0_14 = arith.constant 0 : index
    %c0_15 = arith.constant 0 : index
    %22 = vector.load %arg2[%c0_14, %c0_15] : memref<4x128xf32, #tpu.memory_space<vmem>>, vector<4x128xf32>
    %23 = vector.broadcast %20 : vector<128x1xf32> to vector<128x32xf32>
    %24 = arith.mulf %5, %23 : vector<128x32xf32>
    %cst_16 = arith.constant dense<0.000000e+00> : vector<4x32xf32>
    %25 = tpu.matmul %22, %24, %cst_16 {dimension_numbers = #tpu.dot_dimension_numbers<[1], [0], [0], [1], [0, 0, 1, 1], [], []>} : vector<4x128xf32>, vector<128x32xf32>, vector<4x32xf32> -> vector<4x32xf32>
    %26 = arith.addf %21, %25 : vector<4x32xf32>
    %c0_17 = arith.constant 0 : index
    %c0_18 = arith.constant 0 : index
    %27 = vector.load %arg10[%c0_17, %c0_18] : memref<4x32xf32, #tpu.memory_space<vmem>>, vector<4x32xf32>
    tpu.vector_store %arg10[%c0_17, %c0_18], %26 {strides = array<i32>} : memref<4x32xf32, #tpu.memory_space<vmem>>, vector<4x32xf32>,
    %c0_19 = arith.constant 0 : index
    %c0_20 = arith.constant 0 : index
    %28 = vector.load %arg3[%c0_19, %c0_20] : memref<128x4xf32, #tpu.memory_space<vmem>>, vector<128x4xf32>
    %29 = vector.extract_strided_slice %28 {offsets = [0, 0], sizes = [128, 1], strides = [1, 1]} : vector<128x4xf32> to vector<128x1xf32>
    %cst_21 = arith.constant 0.000000e+00 : f32
    %30 = vector.broadcast %cst_21 : f32 to vector<128x1xf32>
    %31 = arith.cmpf one, %29, %30 : vector<128x1xf32>
    %cst_22 = arith.constant -1.000000e+30 : f32
    %32 = vector.shape_cast %31 : vector<128x1xi1> to vector<128x1xi1>
    %33 = vector.broadcast %32 : vector<128x1xi1> to vector<128x32xi1>
    %34 = vector.broadcast %cst_22 : f32 to vector<128x32xf32>
    %35 = arith.select %33, %5, %34 : vector<128x32xi1>, vector<128x32xf32>
    %cst_23 = arith.constant dense<0xFF800000> : vector<32xf32>
    %36 = vector.multi_reduction <maximumf>, %35, %cst_23 [0] : vector<128x32xf32> to vector<32xf32>
    %37 = vector.shape_cast %36 : vector<32xf32> to vector<1x32xf32>
    %38 = vector.extract_strided_slice %28 {offsets = [0, 1], sizes = [128, 1], strides = [1, 1]} : vector<128x4xf32> to vector<128x1xf32>
    %cst_24 = arith.constant 0.000000e+00 : f32
    %39 = vector.broadcast %cst_24 : f32 to vector<128x1xf32>
    %40 = arith.cmpf one, %38, %39 : vector<128x1xf32>
    %cst_25 = arith.constant -1.000000e+30 : f32
    %41 = vector.shape_cast %40 : vector<128x1xi1> to vector<128x1xi1>
    %42 = vector.broadcast %41 : vector<128x1xi1> to vector<128x32xi1>
    %43 = vector.broadcast %cst_25 : f32 to vector<128x32xf32>
    %44 = arith.select %42, %5, %43 : vector<128x32xi1>, vector<128x32xf32>
    %cst_26 = arith.constant dense<0xFF800000> : vector<32xf32>
    %45 = vector.multi_reduction <maximumf>, %44, %cst_26 [0] : vector<128x32xf32> to vector<32xf32>
    %46 = vector.shape_cast %45 : vector<32xf32> to vector<1x32xf32>
    %47 = vector.extract_strided_slice %28 {offsets = [0, 2], sizes = [128, 1], strides = [1, 1]} : vector<128x4xf32> to vector<128x1xf32>
    %cst_27 = arith.constant 0.000000e+00 : f32
    %48 = vector.broadcast %cst_27 : f32 to vector<128x1xf32>
    %49 = arith.cmpf one, %47, %48 : vector<128x1xf32>
    %cst_28 = arith.constant -1.000000e+30 : f32
    %50 = vector.shape_cast %49 : vector<128x1xi1> to vector<128x1xi1>
    %51 = vector.broadcast %50 : vector<128x1xi1> to vector<128x32xi1>
    %52 = vector.broadcast %cst_28 : f32 to vector<128x32xf32>
    %53 = arith.select %51, %5, %52 : vector<128x32xi1>, vector<128x32xf32>
    %cst_29 = arith.constant dense<0xFF800000> : vector<32xf32>
    %54 = vector.multi_reduction <maximumf>, %53, %cst_29 [0] : vector<128x32xf32> to vector<32xf32>
    %55 = vector.shape_cast %54 : vector<32xf32> to vector<1x32xf32>
    %56 = vector.extract_strided_slice %28 {offsets = [0, 3], sizes = [128, 1], strides = [1, 1]} : vector<128x4xf32> to vector<128x1xf32>
    %cst_30 = arith.constant 0.000000e+00 : f32
    %57 = vector.broadcast %cst_30 : f32 to vector<128x1xf32>
    %58 = arith.cmpf one, %56, %57 : vector<128x1xf32>
    %cst_31 = arith.constant -1.000000e+30 : f32
    %59 = vector.shape_cast %58 : vector<128x1xi1> to vector<128x1xi1>
    %60 = vector.broadcast %59 : vector<128x1xi1> to vector<128x32xi1>
    %61 = vector.broadcast %cst_31 : f32 to vector<128x32xf32>
    %62 = arith.select %60, %5, %61 : vector<128x32xi1>, vector<128x32xf32>
    %cst_32 = arith.constant dense<0xFF800000> : vector<32xf32>
    %63 = vector.multi_reduction <maximumf>, %62, %cst_32 [0] : vector<128x32xf32> to vector<32xf32>
    %64 = vector.shape_cast %63 : vector<32xf32> to vector<1x32xf32>
    %c0_33 = arith.constant 0 : index
    %c0_34 = arith.constant 0 : index
    %65 = vector.load %arg11[%c0_33, %c0_34] : memref<4x32xf32, #tpu.memory_space<vmem>>, vector<4x32xf32>
    %66 = tpu.concatenate %37, %46, %55, %64 in 0 : vector<1x32xf32>, vector<1x32xf32>, vector<1x32xf32>, vector<1x32xf32> -> vector<4x32xf32>
    %67 = arith.maximumf %65, %66 : vector<4x32xf32>
    %c0_35 = arith.constant 0 : index
    %c0_36 = arith.constant 0 : index
    %68 = vector.load %arg11[%c0_35, %c0_36] : memref<4x32xf32, #tpu.memory_space<vmem>>, vector<4x32xf32>
    tpu.vector_store %arg11[%c0_35, %c0_36], %67 {strides = array<i32>} : memref<4x32xf32, #tpu.memory_space<vmem>>, vector<4x32xf32>,
    %c0_i32_37 = arith.constant 0 : i32
    %69 = arith.cmpi eq, %arg0, %c0_i32_37 : i32
    %70 = arith.extui %69 : i1 to i32
    %c0_i32_38 = arith.constant 0 : i32
    %71 = arith.cmpi ne, %70, %c0_i32_38 : i32
    scf.if %71 {
      %c0_39 = arith.constant 0 : index
      %c0_40 = arith.constant 0 : index
      %72 = vector.load %arg10[%c0_39, %c0_40] : memref<4x32xf32, #tpu.memory_space<vmem>>, vector<4x32xf32>
      %c0_41 = arith.constant 0 : index
      %c0_42 = arith.constant 0 : index
      %73 = vector.load %arg11[%c0_41, %c0_42] : memref<4x32xf32, #tpu.memory_space<vmem>>, vector<4x32xf32>
      %74 = tpu.concatenate %72, %73 in 1 : vector<4x32xf32>, vector<4x32xf32> -> vector<4x64xf32>
      %c0_43 = arith.constant 0 : index
      %c0_44 = arith.constant 0 : index
      %75 = vector.load %arg7[%c0_43, %c0_44] : memref<64x128xf32, #tpu.memory_space<vmem>>, vector<64x128xf32>
      %cst_45 = arith.constant dense<0.000000e+00> : vector<4x128xf32>
      %76 = tpu.matmul %74, %75, %cst_45 {dimension_numbers = #tpu.dot_dimension_numbers<[1], [0], [0], [1], [0, 0, 1, 1], [], []>} : vector<4x64xf32>, vector<64x128xf32>, vector<4x128xf32> -> vector<4x128xf32>
      %c0_46 = arith.constant 0 : index
      %c0_47 = arith.constant 0 : index
      %77 = vector.load %arg8[%c0_46, %c0_47] : memref<1x128xf32, #tpu.memory_space<vmem>>, vector<1x128xf32>
      %78 = vector.broadcast %77 : vector<1x128xf32> to vector<4x128xf32>
      %79 = arith.addf %76, %78 : vector<4x128xf32>
      %cst_48 = arith.constant dense<0.000000e+00> : vector<4xf32>
      %80 = vector.multi_reduction <add>, %79, %cst_48 [1] : vector<4x128xf32> to vector<4xf32>
      %81 = vector.shape_cast %80 : vector<4xf32> to vector<4x1xf32>
      %cst_49 = arith.constant 1.280000e+02 : f32
      %82 = vector.broadcast %cst_49 : f32 to vector<4x1xf32>
      %83 = arith.divf %81, %82 : vector<4x1xf32>
      %84 = vector.broadcast %83 : vector<4x1xf32> to vector<4x128xf32>
      %85 = arith.subf %79, %84 : vector<4x128xf32>
      %86 = arith.mulf %85, %85 : vector<4x128xf32>
      %cst_50 = arith.constant dense<0.000000e+00> : vector<4xf32>
      %87 = vector.multi_reduction <add>, %86, %cst_50 [1] : vector<4x128xf32> to vector<4xf32>
      %88 = vector.shape_cast %87 : vector<4xf32> to vector<4x1xf32>
      %cst_51 = arith.constant 1.280000e+02 : f32
      %89 = vector.broadcast %cst_51 : f32 to vector<4x1xf32>
      %90 = arith.divf %88, %89 : vector<4x1xf32>
      %cst_52 = arith.constant 9.99999974E-6 : f32
      %91 = vector.broadcast %cst_52 : f32 to vector<4x1xf32>
      %92 = arith.addf %90, %91 : vector<4x1xf32>
      %93 = math.rsqrt %92 : vector<4x1xf32>
      %94 = vector.broadcast %93 : vector<4x1xf32> to vector<4x128xf32>
      %95 = arith.mulf %85, %94 : vector<4x128xf32>
      %c0_53 = arith.constant 0 : index
      %c0_54 = arith.constant 0 : index
      %96 = vector.load %arg9[%c0_53, %c0_54] : memref<4x128xf32, #tpu.memory_space<vmem>>, vector<4x128xf32>
      tpu.vector_store %arg9[%c0_53, %c0_54], %95 {strides = array<i32>} : memref<4x128xf32, #tpu.memory_space<vmem>>, vector<4x128xf32>,
    } else {
    }
    return
  }
  func.func @transform_0(%arg0: i32) -> (i32, i32) {
    %c0_i32 = arith.constant 0 : i32
    %c0_i32_0 = arith.constant 0 : i32
    return %arg0, %c0_i32 : i32, i32
  }
  func.func @transform_1(%arg0: i32) -> (i32, i32) {
    %c0_i32 = arith.constant 0 : i32
    %c0_i32_0 = arith.constant 0 : i32
    return %c0_i32, %arg0 : i32, i32
  }
  func.func @transform_2(%arg0: i32) -> (i32, i32) {
    %c0_i32 = arith.constant 0 : i32
    %c0_i32_0 = arith.constant 0 : i32
    return %arg0, %c0_i32 : i32, i32
  }
  func.func @transform_3(%arg0: i32) -> (i32, i32) {
    %c0_i32 = arith.constant 0 : i32
    %c0_i32_0 = arith.constant 0 : i32
    %c0_i32_1 = arith.constant 0 : i32
    return %c0_i32, %c0_i32_0 : i32, i32
  }
  func.func @transform_4(%arg0: i32) -> (i32, i32) {
    %c0_i32 = arith.constant 0 : i32
    %c0_i32_0 = arith.constant 0 : i32
    %c0_i32_1 = arith.constant 0 : i32
    return %c0_i32, %c0_i32_0 : i32, i32
  }
  func.func @transform_5(%arg0: i32) -> (i32, i32) {
    %c0_i32 = arith.constant 0 : i32
    %c0_i32_0 = arith.constant 0 : i32
    %c0_i32_1 = arith.constant 0 : i32
    return %c0_i32, %c0_i32_0 : i32, i32
  }
  func.func @transform_6(%arg0: i32) -> (i32, i32) {
    %c0_i32 = arith.constant 0 : i32
    %c0_i32_0 = arith.constant 0 : i32
    %c0_i32_1 = arith.constant 0 : i32
    return %c0_i32, %c0_i32_0 : i32, i32
  }
  func.func @transform_7(%arg0: i32) -> (i32, i32) {
    %c0_i32 = arith.constant 0 : i32
    %c0_i32_0 = arith.constant 0 : i32
    %c0_i32_1 = arith.constant 0 : i32
    return %c0_i32, %c0_i32_0 : i32, i32
  }
  func.func @transform_8(%arg0: i32) -> (i32, i32) {
    %c0_i32 = arith.constant 0 : i32
    %c0_i32_0 = arith.constant 0 : i32
    %c0_i32_1 = arith.constant 0 : i32
    return %c0_i32, %c0_i32_0 : i32, i32
  }
}

</mosaic_0001>

<llo_original>
// kernel: gnn_encoder_forward.5
$region0: #{gnn_encoder_forward.5}
  #allocation0 [shape = 'u32[]', space=smem, size = 0x4, offset = 0x4, fixed_abs, tag = 'smem constant byte address 0x4 - core index']
  #allocation1 [shape = 'u32[144,128]{1,0:T(1,128)}', space=vmem, size = 0x12000, scoped, tag = 'internal scratch']
  %s0 = inlined_call_operand.vmem [shape: f32[128,27], index: 0, kind: input, shape index: {}]
  %s1 = inlined_call_operand.vmem [shape: f32[27,256], index: 1, kind: input, shape index: {}]
  %s2 = inlined_call_operand.vmem [shape: f32[4,128], index: 2, kind: input, shape index: {}]
  %s3 = inlined_call_operand.vmem [shape: bf16[128,128], index: 3, kind: output, shape index: {0}]
  %s4 = inlined_call_operand.vmem [shape: f32[128,128], index: 4, kind: output, shape index: {1}]
  %s5 = inlined_call_operand.vmem [shape: f32[4,128], index: 5, kind: output, shape index: {2}]
  %6 = xla_tuple %s3, %s4, %s5
  %s7 = sld [smem:[#allocation0]]
  $region38: #{gnn_encoder_forward.5} parent=0
    _
  %s9 = ssub.s32 1, %s7
  %s10 = scalar_select 0, %s9, %s7
  // Predicated region
  $region2: #{gnn_encoder_forward.5} parent=0 // pred_check
    _
  $region3: #{gnn_encoder_forward.5} parent=0 // pred_check_branch
    %12 = sbr.rel (0) target = $region5
  $region4: #{gnn_encoder_forward.5} parent=0 // pred_region
    _
  $region5: #{gnn_encoder_forward.5} parent=0 // pred_fallthru
    _
  // Predicated region
  $region6: #{gnn_encoder_forward.5} parent=0 // pred_check
    _
  $region7: #{gnn_encoder_forward.5} parent=0 // pred_check_branch
    %14 = sbr.rel (0) target = $region9
  $region8: #{gnn_encoder_forward.5} parent=0 // pred_region
    _
  $region9: #{gnn_encoder_forward.5} parent=0 // pred_fallthru
    _
  // Predicated region
  $region10: #{gnn_encoder_forward.5} parent=0 // pred_check
    _
  $region11: #{gnn_encoder_forward.5} parent=0 // pred_check_branch
    %16 = sbr.rel (0) target = $region13
  $region12: #{gnn_encoder_forward.5} parent=0 // pred_region
    _
  $region13: #{gnn_encoder_forward.5} parent=0 // pred_fallthru
    _
  %v18 = vld [vmem:[%s0] sm:$0xff]
  %v19 = vld [vmem:[%s0 + $0x8] sm:$0xff]
  %v20 = vld [vmem:[%s0 + $0x10] sm:$0xff]
  %v21 = vld [vmem:[%s0 + $0x18] sm:$0xff]
  %v22 = vld [vmem:[%s0 + $0x20] sm:$0xff]
  %v23 = vld [vmem:[%s0 + $0x28] sm:$0xff]
  %v24 = vld [vmem:[%s0 + $0x30] sm:$0xff]
  %v25 = vld [vmem:[%s0 + $0x38] sm:$0xff]
  %v26 = vld [vmem:[%s0 + $0x40] sm:$0xff]
  %v27 = vld [vmem:[%s0 + $0x48] sm:$0xff]
  %v28 = vld [vmem:[%s0 + $0x50] sm:$0xff]
  %v29 = vld [vmem:[%s0 + $0x58] sm:$0xff]
  %v30 = vld [vmem:[%s0 + $0x60] sm:$0xff]
  %v31 = vld [vmem:[%s0 + $0x68] sm:$0xff]
  %v32 = vld [vmem:[%s0 + $0x70] sm:$0xff]
  %v33 = vld [vmem:[%s0 + $0x78] sm:$0xff]
  %v34 = vpack.c.bf16 %v19, %v18
  %v35 = vpack.c.bf16 %v21, %v20
  %v36 = vpack.c.bf16 %v23, %v22
  %v37 = vpack.c.bf16 %v25, %v24
  %v38 = vpack.c.bf16 %v27, %v26
  %v39 = vpack.c.bf16 %v29, %v28
  %v40 = vpack.c.bf16 %v31, %v30
  %v41 = vpack.c.bf16 %v33, %v32
  %v42 = vld [vmem:[%s1] sm:$0xff]
  %v43 = vld [vmem:[%s1 + $0x8] sm:$0xff]
  %v44 = vld [vmem:[%s1 + $0x10] sm:$0xff]
  %v45 = vld [vmem:[%s1 + $0x18] sm:$0xff]
  %v46 = vld [vmem:[%s1 + $0x20] sm:$0xff]
  %v47 = vld [vmem:[%s1 + $0x28] sm:$0xff]
  %v48 = vld [vmem:[%s1 + $0x30] sm:$0x7]
  %v49 = vld [vmem:[%s1 + $0x38] sm:$0x7]
  %v50 = vpack.c.bf16 %v44, %v42
  %v51 = vpack.c.bf16 %v45, %v43
  %v52 = vpack.c.bf16 %v48, %v46
  %v53 = vpack.c.bf16 %v49, %v47
  %vm54 = vcmask 220160
  %v56 = vsel %vm54, %v34, 0
  %v59 = vsel %vm54, %v35, 0
  %v62 = vsel %vm54, %v36, 0
  %v65 = vsel %vm54, %v37, 0
  %v68 = vsel %vm54, %v38, 0
  %v71 = vsel %vm54, %v39, 0
  %v74 = vsel %vm54, %v40, 0
  %v77 = vsel %vm54, %v41, 0
  %vm79 = vcmask 1044480
  %vm80 = vcmask 1045504
  %v81 = vsel %vm79, 4294967295, 65535
  %v82 = vsel %vm80, %v81, 0
  %v84 = vand.u32 %v52, %v82
  %v87 = vand.u32 %v53, %v82
  %89 = vmatprep.subr.bf16.mxu0 %v51
  %90 = vmatpush1.bf16.msra.mxu0 %v50
  %91 = vmatprep.subr.bf16.mxu0 %v87
  %92 = vmatpush1.bf16.msra.mxu0 %v84
  %93 = vmatprep.subr.bf16.mxu0 0
  %94 = vmatpush1.bf16.msra.mxu0 0
  %95 = vmatprep.subr.bf16.mxu0 0
  %96 = vmatpush1.bf16.msra.mxu0 0
  %97 = vmatprep.subr.bf16.mxu0 0
  %98 = vmatpush1.bf16.msra.mxu0 0
  %99 = vmatprep.subr.bf16.mxu0 0
  %100 = vmatpush1.bf16.msra.mxu0 0
  %101 = vmatprep.subr.bf16.mxu0 0
  %102 = vmatpush1.bf16.msra.mxu0 0
  %103 = vmatprep.subr.bf16.mxu0 0
  %104 = vmatpush1.bf16.msra.mxu0 0
  %105 = vmatprep.subr.bf16.mxu0 0
  %106 = vmatpush1.bf16.msra.mxu0 0
  %107 = vmatprep.subr.bf16.mxu0 0
  %108 = vmatpush1.bf16.msra.mxu0 0
  %109 = vmatprep.subr.bf16.mxu0 0
  %110 = vmatpush1.bf16.msra.mxu0 0
  %111 = vmatprep.subr.bf16.mxu0 0
  %112 = vmatpush1.bf16.msra.mxu0 0
  %113 = vmatprep.subr.bf16.mxu0 0
  %114 = vmatpush1.bf16.msra.mxu0 0
  %115 = vmatprep.subr.bf16.mxu0 0
  %116 = vmatpush1.bf16.msra.mxu0 0
  %117 = vmatprep.subr.bf16.mxu0 0
  %118 = vmatpush1.bf16.msra.mxu0 0
  %119 = vmatprep.subr.bf16.mxu0 0
  %120 = vmatpush1.bf16.msra.mxu0 0
  %121 = vmatprep.mubr.bf16.mxu0 0
  %122 = vmatmul.mubr.bf16.gmra.mrb[0].mxu0 %v56
  %v123 = vpop.f32.mrb[0].mxu0
  %v124 = vadd.f32 0.0, %v123
  %v125 = vpop.f32.mrb[0].mxu0
  %v126 = vadd.f32 0.0, %v125
  %v127 = vpop.f32.mrb[0].mxu0
  %v128 = vadd.f32 0.0, %v127
  %v129 = vpop.f32.mrb[0].mxu0
  %v130 = vadd.f32 0.0, %v129
  %131 = vmatprep.mubr.bf16.mxu0 0
  %132 = vmatmul.mubr.bf16.gmra.mrb[0].mxu0 %v59
  %v133 = vpop.f32.mrb[0].mxu0
  %v134 = vadd.f32 0.0, %v133
  %v135 = vpop.f32.mrb[0].mxu0
  %v136 = vadd.f32 0.0, %v135
  %v137 = vpop.f32.mrb[0].mxu0
  %v138 = vadd.f32 0.0, %v137
  %v139 = vpop.f32.mrb[0].mxu0
  %v140 = vadd.f32 0.0, %v139
  %141 = vmatprep.mubr.bf16.mxu0 0
  %142 = vmatmul.mubr.bf16.gmra.mrb[0].mxu0 %v62
  %v143 = vpop.f32.mrb[0].mxu0
  %v144 = vadd.f32 0.0, %v143
  %v145 = vpop.f32.mrb[0].mxu0
  %v146 = vadd.f32 0.0, %v145
  %v147 = vpop.f32.mrb[0].mxu0
  %v148 = vadd.f32 0.0, %v147
  %v149 = vpop.f32.mrb[0].mxu0
  %v150 = vadd.f32 0.0, %v149
  %151 = vmatprep.mubr.bf16.mxu0 0
  %152 = vmatmul.mubr.bf16.gmra.mrb[0].mxu0 %v65
  %v153 = vpop.f32.mrb[0].mxu0
  %v154 = vadd.f32 0.0, %v153
  %v155 = vpop.f32.mrb[0].mxu0
  %v156 = vadd.f32 0.0, %v155
  %v157 = vpop.f32.mrb[0].mxu0
  %v158 = vadd.f32 0.0, %v157
  %v159 = vpop.f32.mrb[0].mxu0
  %v160 = vadd.f32 0.0, %v159
  %161 = vmatprep.mubr.bf16.mxu0 0
  %162 = vmatmul.mubr.bf16.gmra.mrb[0].mxu0 %v68
  %v163 = vpop.f32.mrb[0].mxu0
  %v164 = vadd.f32 0.0, %v163
  %v165 = vpop.f32.mrb[0].mxu0
  %v166 = vadd.f32 0.0, %v165
  %v167 = vpop.f32.mrb[0].mxu0
  %v168 = vadd.f32 0.0, %v167
  %v169 = vpop.f32.mrb[0].mxu0
  %v170 = vadd.f32 0.0, %v169
  %171 = vmatprep.mubr.bf16.mxu0 0
  %172 = vmatmul.mubr.bf16.gmra.mrb[0].mxu0 %v71
  %v173 = vpop.f32.mrb[0].mxu0
  %v174 = vadd.f32 0.0, %v173
  %v175 = vpop.f32.mrb[0].mxu0
  %v176 = vadd.f32 0.0, %v175
  %v177 = vpop.f32.mrb[0].mxu0
  %v178 = vadd.f32 0.0, %v177
  %v179 = vpop.f32.mrb[0].mxu0
  %v180 = vadd.f32 0.0, %v179
  %181 = vmatprep.mubr.bf16.mxu0 0
  %182 = vmatmul.mubr.bf16.gmra.mrb[0].mxu0 %v74
  %v183 = vpop.f32.mrb[0].mxu0
  %v184 = vadd.f32 0.0, %v183
  %v185 = vpop.f32.mrb[0].mxu0
  %v186 = vadd.f32 0.0, %v185
  %v187 = vpop.f32.mrb[0].mxu0
  %v188 = vadd.f32 0.0, %v187
  %v189 = vpop.f32.mrb[0].mxu0
  %v190 = vadd.f32 0.0, %v189
  %191 = vmatprep.mubr.bf16.mxu0 0
  %192 = vmatmul.mubr.bf16.gmra.mrb[0].mxu0 %v77
  %v193 = vpop.f32.mrb[0].mxu0
  %v194 = vadd.f32 0.0, %v193
  %v195 = vpop.f32.mrb[0].mxu0
  %v196 = vadd.f32 0.0, %v195
  %v197 = vpop.f32.mrb[0].mxu0
  %v198 = vadd.f32 0.0, %v197
  %v199 = vpop.f32.mrb[0].mxu0
  %v200 = vadd.f32 0.0, %v199
  %201 = vdwg.mxu0
  %v202 = vpack.c.bf16 %v128, %v124
  %v203 = vpack.c.bf16 %v138, %v134
  %v204 = vpack.c.bf16 %v148, %v144
  %v205 = vpack.c.bf16 %v158, %v154
  %v206 = vpack.c.bf16 %v168, %v164
  %v207 = vpack.c.bf16 %v178, %v174
  %v208 = vpack.c.bf16 %v188, %v184
  %v209 = vpack.c.bf16 %v198, %v194
  %v218 = vunpack.c.l.b16 %v202
  %v219 = vunpack.c.h.b16 %v202
  %v220 = vunpack.c.l.b16 %v203
  %v221 = vunpack.c.h.b16 %v203
  %v222 = vunpack.c.l.b16 %v204
  %v223 = vunpack.c.h.b16 %v204
  %v224 = vunpack.c.l.b16 %v205
  %v225 = vunpack.c.h.b16 %v205
  %v226 = vunpack.c.l.b16 %v206
  %v227 = vunpack.c.h.b16 %v206
  %v228 = vunpack.c.l.b16 %v207
  %v229 = vunpack.c.h.b16 %v207
  %v230 = vunpack.c.l.b16 %v208
  %v231 = vunpack.c.h.b16 %v208
  %v232 = vunpack.c.l.b16 %v209
  %v233 = vunpack.c.h.b16 %v209
  %v234 = vpack.c.b16 %v218, %v218
  %v235 = vpack.c.b16 %v219, %v219
  %v236 = vpack.c.b16 %v220, %v220
  %v237 = vpack.c.b16 %v221, %v221
  %v238 = vpack.c.b16 %v222, %v222
  %v239 = vpack.c.b16 %v223, %v223
  %v240 = vpack.c.b16 %v224, %v224
  %v241 = vpack.c.b16 %v225, %v225
  %v242 = vpack.c.b16 %v226, %v226
  %v243 = vpack.c.b16 %v227, %v227
  %v244 = vpack.c.b16 %v228, %v228
  %v245 = vpack.c.b16 %v229, %v229
  %v246 = vpack.c.b16 %v230, %v230
  %v247 = vpack.c.b16 %v231, %v231
  %v248 = vpack.c.b16 %v232, %v232
  %v249 = vpack.c.b16 %v233, %v233
  %266 = vst [vmem:[%s3] sm:$0xf] %v234
  %267 = vst [vmem:[%s3 + $0x4] sm:$0xf] %v235
  %268 = vst [vmem:[%s3 + $0x8] sm:$0xf] %v236
  %269 = vst [vmem:[%s3 + $0xc] sm:$0xf] %v237
  %270 = vst [vmem:[%s3 + $0x10] sm:$0xf] %v238
  %271 = vst [vmem:[%s3 + $0x14] sm:$0xf] %v239
  %272 = vst [vmem:[%s3 + $0x18] sm:$0xf] %v240
  %273 = vst [vmem:[%s3 + $0x1c] sm:$0xf] %v241
  %274 = vst [vmem:[%s3 + $0x20] sm:$0xf] %v242
  %275 = vst [vmem:[%s3 + $0x24] sm:$0xf] %v243
  %276 = vst [vmem:[%s3 + $0x28] sm:$0xf] %v244
  %277 = vst [vmem:[%s3 + $0x2c] sm:$0xf] %v245
  %278 = vst [vmem:[%s3 + $0x30] sm:$0xf] %v246
  %279 = vst [vmem:[%s3 + $0x34] sm:$0xf] %v247
  %280 = vst [vmem:[%s3 + $0x38] sm:$0xf] %v248
  %281 = vst [vmem:[%s3 + $0x3c] sm:$0xf] %v249
  %282 = vst [vmem:[%s4] sm:$0xff] %v126
  %283 = vst [vmem:[%s4 + $0x8] sm:$0xff] %v130
  %284 = vst [vmem:[%s4 + $0x10] sm:$0xff] %v136
  %285 = vst [vmem:[%s4 + $0x18] sm:$0xff] %v140
  %286 = vst [vmem:[%s4 + $0x20] sm:$0xff] %v146
  %287 = vst [vmem:[%s4 + $0x28] sm:$0xff] %v150
  %288 = vst [vmem:[%s4 + $0x30] sm:$0xff] %v156
  %289 = vst [vmem:[%s4 + $0x38] sm:$0xff] %v160
  %290 = vst [vmem:[%s4 + $0x40] sm:$0xff] %v166
  %291 = vst [vmem:[%s4 + $0x48] sm:$0xff] %v170
  %292 = vst [vmem:[%s4 + $0x50] sm:$0xff] %v176
  %293 = vst [vmem:[%s4 + $0x58] sm:$0xff] %v180
  %294 = vst [vmem:[%s4 + $0x60] sm:$0xff] %v186
  %295 = vst [vmem:[%s4 + $0x68] sm:$0xff] %v190
  %296 = vst [vmem:[%s4 + $0x70] sm:$0xff] %v196
  %297 = vst [vmem:[%s4 + $0x78] sm:$0xff] %v200
  %v298 = vld [vmem:[%s2] sm:$0xf]
  %v299 = vpack.c.bf16 %v298, %v298
  %300 = vmatprep.subr.bf16.mxu0 0
  %301 = vmatpush1.bf16.xpose.msra.mxu0 %v202
  %302 = vmatprep.subr.bf16.mxu0 0
  %303 = vmatpush1.bf16.xpose.msra.mxu0 %v203
  %304 = vmatprep.subr.bf16.mxu0 0
  %305 = vmatpush1.bf16.xpose.msra.mxu0 %v204
  %306 = vmatprep.subr.bf16.mxu0 0
  %307 = vmatpush1.bf16.xpose.msra.mxu0 %v205
  %308 = vmatprep.subr.bf16.mxu0 0
  %309 = vmatpush1.bf16.xpose.msra.mxu0 %v206
  %310 = vmatprep.subr.bf16.mxu0 0
  %311 = vmatpush1.bf16.xpose.msra.mxu0 %v207
  %312 = vmatprep.subr.bf16.mxu0 0
  %313 = vmatpush1.bf16.xpose.msra.mxu0 %v208
  %314 = vmatprep.subr.bf16.mxu0 0
  %315 = vmatpush1.bf16.xpose.msra.mxu0 %v209
  %316 = vmatprep.subr.bf16.mxu0 0
  %317 = vmatpush1.bf16.xpose.msra.mxu0 0
  %318 = vmatprep.subr.bf16.mxu0 0
  %319 = vmatpush1.bf16.xpose.msra.mxu0 0
  %320 = vmatprep.subr.bf16.mxu0 0
  %321 = vmatpush1.bf16.xpose.msra.mxu0 0
  %322 = vmatprep.subr.bf16.mxu0 0
  %323 = vmatpush1.bf16.xpose.msra.mxu0 0
  %324 = vmatprep.subr.bf16.mxu0 0
  %325 = vmatpush1.bf16.xpose.msra.mxu0 0
  %326 = vmatprep.subr.bf16.mxu0 0
  %327 = vmatpush1.bf16.xpose.msra.mxu0 0
  %328 = vmatprep.subr.bf16.mxu0 0
  %329 = vmatpush1.bf16.xpose.msra.mxu0 0
  %330 = vmatprep.subr.bf16.mxu0 0
  %331 = vmatpush1.bf16.xpose.msra.mxu0 0
  %332 = vmatprep.mubr.bf16.mxu0 0
  %333 = vmatmul.mubr.bf16.gmra.mrb[0].mxu0 %v299
  %v334 = vpop.f32.mrb[0].mxu0
  %v335 = vadd.f32 0.0, %v334
  %v336 = vpop.f32.mrb[0].mxu0
  %v337 = vpop.f32.mrb[0].mxu0
  %v338 = vpop.f32.mrb[0].mxu0
  %339 = vdwg.mxu0
  %340 = vst [vmem:[%s5] sm:$0xf] %v335
  // Predicated region
  $region14: #{gnn_encoder_forward.5} parent=0 // pred_check
    _
  $region15: #{gnn_encoder_forward.5} parent=0 // pred_check_branch
    %342 = sbr.rel (0) target = $region17
  $region16: #{gnn_encoder_forward.5} parent=0 // pred_region
    _
  $region17: #{gnn_encoder_forward.5} parent=0 // pred_fallthru
    _
  // Predicated region
  $region18: #{gnn_encoder_forward.5} parent=0 // pred_check
    _
  $region19: #{gnn_encoder_forward.5} parent=0 // pred_check_branch
    %344 = sbr.rel (0) target = $region21
  $region20: #{gnn_encoder_forward.5} parent=0 // pred_region
    _
  $region21: #{gnn_encoder_forward.5} parent=0 // pred_fallthru
    _
  // Predicated region
  $region22: #{gnn_encoder_forward.5} parent=0 // pred_check
    _
  $region23: #{gnn_encoder_forward.5} parent=0 // pred_check_branch
    %346 = sbr.rel (0) target = $region25
  $region24: #{gnn_encoder_forward.5} parent=0 // pred_region
    _
  $region25: #{gnn_encoder_forward.5} parent=0 // pred_fallthru
    _
  // Predicated region
  $region26: #{gnn_encoder_forward.5} parent=0 // pred_check
    _
  $region27: #{gnn_encoder_forward.5} parent=0 // pred_check_branch
    %348 = sbr.rel (0) target = $region29
  $region28: #{gnn_encoder_forward.5} parent=0 // pred_region
    _
  $region29: #{gnn_encoder_forward.5} parent=0 // pred_fallthru
    _
  // Predicated region
  $region30: #{gnn_encoder_forward.5} parent=0 // pred_check
    _
  $region31: #{gnn_encoder_forward.5} parent=0 // pred_check_branch
    %350 = sbr.rel (0) target = $region33
  $region32: #{gnn_encoder_forward.5} parent=0 // pred_region
    _
  $region33: #{gnn_encoder_forward.5} parent=0 // pred_fallthru
    _
  // Predicated region
  $region34: #{gnn_encoder_forward.5} parent=0 // pred_check
    _
  $region35: #{gnn_encoder_forward.5} parent=0 // pred_check_branch
    %352 = sbr.rel (0) target = $region37
  $region36: #{gnn_encoder_forward.5} parent=0 // pred_region
    _
  $region37: #{gnn_encoder_forward.5} parent=0 // pred_fallthru
    _

// kernel: gnn_encoder_forward.7
$region0: #{gnn_encoder_forward.7}
  #allocation0 [shape = 'u32[]', space=smem, size = 0x4, offset = 0x4, fixed_abs, tag = 'smem constant byte address 0x4 - core index']
  #allocation1 [shape = 'u32[144,128]{1,0:T(1,128)}', space=vmem, size = 0x12000, scoped, tag = 'internal scratch']
  %s0 = inlined_call_operand.vmem [shape: f32[128,128], index: 0, kind: input, shape index: {}]
  %s1 = inlined_call_operand.vmem [shape: f32[128,128], index: 1, kind: input, shape index: {}]
  %s2 = inlined_call_operand.vmem [shape: f32[4,128], index: 2, kind: input, shape index: {}]
  %s3 = inlined_call_operand.vmem [shape: bf16[128,128], index: 3, kind: output, shape index: {0}]
  %s4 = inlined_call_operand.vmem [shape: f32[4,128], index: 4, kind: output, shape index: {1}]
  %5 = xla_tuple %s3, %s4
  %s6 = sld [smem:[#allocation0]]
  $region30: #{gnn_encoder_forward.7} parent=0
    _
  %s8 = ssub.s32 1, %s6
  %s9 = scalar_select 0, %s8, %s6
  // Predicated region
  $region2: #{gnn_encoder_forward.7} parent=0 // pred_check
    _
  $region3: #{gnn_encoder_forward.7} parent=0 // pred_check_branch
    %11 = sbr.rel (0) target = $region5
  $region4: #{gnn_encoder_forward.7} parent=0 // pred_region
    _
  $region5: #{gnn_encoder_forward.7} parent=0 // pred_fallthru
    _
  // Predicated region
  $region6: #{gnn_encoder_forward.7} parent=0 // pred_check
    _
  $region7: #{gnn_encoder_forward.7} parent=0 // pred_check_branch
    %13 = sbr.rel (0) target = $region9
  $region8: #{gnn_encoder_forward.7} parent=0 // pred_region
    _
  $region9: #{gnn_encoder_forward.7} parent=0 // pred_fallthru
    _
  // Predicated region
  $region10: #{gnn_encoder_forward.7} parent=0 // pred_check
    _
  $region11: #{gnn_encoder_forward.7} parent=0 // pred_check_branch
    %15 = sbr.rel (0) target = $region13
  $region12: #{gnn_encoder_forward.7} parent=0 // pred_region
    _
  $region13: #{gnn_encoder_forward.7} parent=0 // pred_fallthru
    _
  %v17 = vld [vmem:[%s0] sm:$0xff]
  %v18 = vld [vmem:[%s0 + $0x8] sm:$0xff]
  %v19 = vld [vmem:[%s0 + $0x10] sm:$0xff]
  %v20 = vld [vmem:[%s0 + $0x18] sm:$0xff]
  %v21 = vld [vmem:[%s0 + $0x20] sm:$0xff]
  %v22 = vld [vmem:[%s0 + $0x28] sm:$0xff]
  %v23 = vld [vmem:[%s0 + $0x30] sm:$0xff]
  %v24 = vld [vmem:[%s0 + $0x38] sm:$0xff]
  %v25 = vld [vmem:[%s0 + $0x40] sm:$0xff]
  %v26 = vld [vmem:[%s0 + $0x48] sm:$0xff]
  %v27 = vld [vmem:[%s0 + $0x50] sm:$0xff]
  %v28 = vld [vmem:[%s0 + $0x58] sm:$0xff]
  %v29 = vld [vmem:[%s0 + $0x60] sm:$0xff]
  %v30 = vld [vmem:[%s0 + $0x68] sm:$0xff]
  %v31 = vld [vmem:[%s0 + $0x70] sm:$0xff]
  %v32 = vld [vmem:[%s0 + $0x78] sm:$0xff]
  %v33 = vpack.c.bf16 %v18, %v17
  %v34 = vpack.c.bf16 %v20, %v19
  %v35 = vpack.c.bf16 %v22, %v21
  %v36 = vpack.c.bf16 %v24, %v23
  %v37 = vpack.c.bf16 %v26, %v25
  %v38 = vpack.c.bf16 %v28, %v27
  %v39 = vpack.c.bf16 %v30, %v29
  %v40 = vpack.c.bf16 %v32, %v31
  %v41 = vld [vmem:[%s1] sm:$0xff]
  %v42 = vld [vmem:[%s1 + $0x8] sm:$0xff]
  %v43 = vld [vmem:[%s1 + $0x10] sm:$0xff]
  %v44 = vld [vmem:[%s1 + $0x18] sm:$0xff]
  %v45 = vld [vmem:[%s1 + $0x20] sm:$0xff]
  %v46 = vld [vmem:[%s1 + $0x28] sm:$0xff]
  %v47 = vld [vmem:[%s1 + $0x30] sm:$0xff]
  %v48 = vld [vmem:[%s1 + $0x38] sm:$0xff]
  %v49 = vld [vmem:[%s1 + $0x40] sm:$0xff]
  %v50 = vld [vmem:[%s1 + $0x48] sm:$0xff]
  %v51 = vld [vmem:[%s1 + $0x50] sm:$0xff]
  %v52 = vld [vmem:[%s1 + $0x58] sm:$0xff]
  %v53 = vld [vmem:[%s1 + $0x60] sm:$0xff]
  %v54 = vld [vmem:[%s1 + $0x68] sm:$0xff]
  %v55 = vld [vmem:[%s1 + $0x70] sm:$0xff]
  %v56 = vld [vmem:[%s1 + $0x78] sm:$0xff]
  %v57 = vpack.c.bf16 %v42, %v41
  %v58 = vpack.c.bf16 %v44, %v43
  %v59 = vpack.c.bf16 %v46, %v45
  %v60 = vpack.c.bf16 %v48, %v47
  %v61 = vpack.c.bf16 %v50, %v49
  %v62 = vpack.c.bf16 %v52, %v51
  %v63 = vpack.c.bf16 %v54, %v53
  %v64 = vpack.c.bf16 %v56, %v55
  %65 = vmatprep.subr.bf16.mxu0 0
  %66 = vmatpush1.bf16.msra.mxu0 %v57
  %67 = vmatprep.subr.bf16.mxu0 0
  %68 = vmatpush1.bf16.msra.mxu0 %v58
  %69 = vmatprep.subr.bf16.mxu0 0
  %70 = vmatpush1.bf16.msra.mxu0 %v59
  %71 = vmatprep.subr.bf16.mxu0 0
  %72 = vmatpush1.bf16.msra.mxu0 %v60
  %73 = vmatprep.subr.bf16.mxu0 0
  %74 = vmatpush1.bf16.msra.mxu0 %v61
  %75 = vmatprep.subr.bf16.mxu0 0
  %76 = vmatpush1.bf16.msra.mxu0 %v62
  %77 = vmatprep.subr.bf16.mxu0 0
  %78 = vmatpush1.bf16.msra.mxu0 %v63
  %79 = vmatprep.subr.bf16.mxu0 0
  %80 = vmatpush1.bf16.msra.mxu0 %v64
  %81 = vmatprep.subr.bf16.mxu0 0
  %82 = vmatpush1.bf16.msra.mxu0 0
  %83 = vmatprep.subr.bf16.mxu0 0
  %84 = vmatpush1.bf16.msra.mxu0 0
  %85 = vmatprep.subr.bf16.mxu0 0
  %86 = vmatpush1.bf16.msra.mxu0 0
  %87 = vmatprep.subr.bf16.mxu0 0
  %88 = vmatpush1.bf16.msra.mxu0 0
  %89 = vmatprep.subr.bf16.mxu0 0
  %90 = vmatpush1.bf16.msra.mxu0 0
  %91 = vmatprep.subr.bf16.mxu0 0
  %92 = vmatpush1.bf16.msra.mxu0 0
  %93 = vmatprep.subr.bf16.mxu0 0
  %94 = vmatpush1.bf16.msra.mxu0 0
  %95 = vmatprep.subr.bf16.mxu0 0
  %96 = vmatpush1.bf16.msra.mxu0 0
  %97 = vmatprep.mubr.bf16.mxu0 0
  %98 = vmatmul.mubr.bf16.gmra.mrb[0].mxu0 %v33
  %v99 = vpop.f32.mrb[0].mxu0
  %v100 = vadd.f32 0.0, %v99
  %v101 = vpop.f32.mrb[0].mxu0
  %v102 = vpop.f32.mrb[0].mxu0
  %v103 = vadd.f32 0.0, %v102
  %v104 = vpop.f32.mrb[0].mxu0
  %105 = vmatprep.mubr.bf16.mxu0 0
  %106 = vmatmul.mubr.bf16.gmra.mrb[0].mxu0 %v34
  %v107 = vpop.f32.mrb[0].mxu0
  %v108 = vadd.f32 0.0, %v107
  %v109 = vpop.f32.mrb[0].mxu0
  %v110 = vpop.f32.mrb[0].mxu0
  %v111 = vadd.f32 0.0, %v110
  %v112 = vpop.f32.mrb[0].mxu0
  %113 = vmatprep.mubr.bf16.mxu0 0
  %114 = vmatmul.mubr.bf16.gmra.mrb[0].mxu0 %v35
  %v115 = vpop.f32.mrb[0].mxu0
  %v116 = vadd.f32 0.0, %v115
  %v117 = vpop.f32.mrb[0].mxu0
  %v118 = vpop.f32.mrb[0].mxu0
  %v119 = vadd.f32 0.0, %v118
  %v120 = vpop.f32.mrb[0].mxu0
  %121 = vmatprep.mubr.bf16.mxu0 0
  %122 = vmatmul.mubr.bf16.gmra.mrb[0].mxu0 %v36
  %v123 = vpop.f32.mrb[0].mxu0
  %v124 = vadd.f32 0.0, %v123
  %v125 = vpop.f32.mrb[0].mxu0
  %v126 = vpop.f32.mrb[0].mxu0
  %v127 = vadd.f32 0.0, %v126
  %v128 = vpop.f32.mrb[0].mxu0
  %129 = vmatprep.mubr.bf16.mxu0 0
  %130 = vmatmul.mubr.bf16.gmra.mrb[0].mxu0 %v37
  %v131 = vpop.f32.mrb[0].mxu0
  %v132 = vadd.f32 0.0, %v131
  %v133 = vpop.f32.mrb[0].mxu0
  %v134 = vpop.f32.mrb[0].mxu0
  %v135 = vadd.f32 0.0, %v134
  %v136 = vpop.f32.mrb[0].mxu0
  %137 = vmatprep.mubr.bf16.mxu0 0
  %138 = vmatmul.mubr.bf16.gmra.mrb[0].mxu0 %v38
  %v139 = vpop.f32.mrb[0].mxu0
  %v140 = vadd.f32 0.0, %v139
  %v141 = vpop.f32.mrb[0].mxu0
  %v142 = vpop.f32.mrb[0].mxu0
  %v143 = vadd.f32 0.0, %v142
  %v144 = vpop.f32.mrb[0].mxu0
  %145 = vmatprep.mubr.bf16.mxu0 0
  %146 = vmatmul.mubr.bf16.gmra.mrb[0].mxu0 %v39
  %v147 = vpop.f32.mrb[0].mxu0
  %v148 = vadd.f32 0.0, %v147
  %v149 = vpop.f32.mrb[0].mxu0
  %v150 = vpop.f32.mrb[0].mxu0
  %v151 = vadd.f32 0.0, %v150
  %v152 = vpop.f32.mrb[0].mxu0
  %153 = vmatprep.mubr.bf16.mxu0 0
  %154 = vmatmul.mubr.bf16.gmra.mrb[0].mxu0 %v40
  %v155 = vpop.f32.mrb[0].mxu0
  %v156 = vadd.f32 0.0, %v155
  %v157 = vpop.f32.mrb[0].mxu0
  %v158 = vpop.f32.mrb[0].mxu0
  %v159 = vadd.f32 0.0, %v158
  %v160 = vpop.f32.mrb[0].mxu0
  %161 = vdwg.mxu0
  %v162 = vpack.c.bf16 %v103, %v100
  %v163 = vpack.c.bf16 %v111, %v108
  %v164 = vpack.c.bf16 %v119, %v116
  %v165 = vpack.c.bf16 %v127, %v124
  %v166 = vpack.c.bf16 %v135, %v132
  %v167 = vpack.c.bf16 %v143, %v140
  %v168 = vpack.c.bf16 %v151, %v148
  %v169 = vpack.c.bf16 %v159, %v156
  %v178 = vunpack.c.l.b16 %v162
  %v179 = vunpack.c.h.b16 %v162
  %v180 = vunpack.c.l.b16 %v163
  %v181 = vunpack.c.h.b16 %v163
  %v182 = vunpack.c.l.b16 %v164
  %v183 = vunpack.c.h.b16 %v164
  %v184 = vunpack.c.l.b16 %v165
  %v185 = vunpack.c.h.b16 %v165
  %v186 = vunpack.c.l.b16 %v166
  %v187 = vunpack.c.h.b16 %v166
  %v188 = vunpack.c.l.b16 %v167
  %v189 = vunpack.c.h.b16 %v167
  %v190 = vunpack.c.l.b16 %v168
  %v191 = vunpack.c.h.b16 %v168
  %v192 = vunpack.c.l.b16 %v169
  %v193 = vunpack.c.h.b16 %v169
  %v194 = vpack.c.b16 %v178, %v178
  %v195 = vpack.c.b16 %v179, %v179
  %v196 = vpack.c.b16 %v180, %v180
  %v197 = vpack.c.b16 %v181, %v181
  %v198 = vpack.c.b16 %v182, %v182
  %v199 = vpack.c.b16 %v183, %v183
  %v200 = vpack.c.b16 %v184, %v184
  %v201 = vpack.c.b16 %v185, %v185
  %v202 = vpack.c.b16 %v186, %v186
  %v203 = vpack.c.b16 %v187, %v187
  %v204 = vpack.c.b16 %v188, %v188
  %v205 = vpack.c.b16 %v189, %v189
  %v206 = vpack.c.b16 %v190, %v190
  %v207 = vpack.c.b16 %v191, %v191
  %v208 = vpack.c.b16 %v192, %v192
  %v209 = vpack.c.b16 %v193, %v193
  %226 = vst [vmem:[%s3] sm:$0xf] %v194
  %227 = vst [vmem:[%s3 + $0x4] sm:$0xf] %v195
  %228 = vst [vmem:[%s3 + $0x8] sm:$0xf] %v196
  %229 = vst [vmem:[%s3 + $0xc] sm:$0xf] %v197
  %230 = vst [vmem:[%s3 + $0x10] sm:$0xf] %v198
  %231 = vst [vmem:[%s3 + $0x14] sm:$0xf] %v199
  %232 = vst [vmem:[%s3 + $0x18] sm:$0xf] %v200
  %233 = vst [vmem:[%s3 + $0x1c] sm:$0xf] %v201
  %234 = vst [vmem:[%s3 + $0x20] sm:$0xf] %v202
  %235 = vst [vmem:[%s3 + $0x24] sm:$0xf] %v203
  %236 = vst [vmem:[%s3 + $0x28] sm:$0xf] %v204
  %237 = vst [vmem:[%s3 + $0x2c] sm:$0xf] %v205
  %238 = vst [vmem:[%s3 + $0x30] sm:$0xf] %v206
  %239 = vst [vmem:[%s3 + $0x34] sm:$0xf] %v207
  %240 = vst [vmem:[%s3 + $0x38] sm:$0xf] %v208
  %241 = vst [vmem:[%s3 + $0x3c] sm:$0xf] %v209
  %v242 = vld [vmem:[%s2] sm:$0xf]
  %v243 = vpack.c.bf16 %v242, %v242
  %244 = vmatprep.subr.bf16.mxu0 0
  %245 = vmatpush1.bf16.xpose.msra.mxu0 %v162
  %246 = vmatprep.subr.bf16.mxu0 0
  %247 = vmatpush1.bf16.xpose.msra.mxu0 %v163
  %248 = vmatprep.subr.bf16.mxu0 0
  %249 = vmatpush1.bf16.xpose.msra.mxu0 %v164
  %250 = vmatprep.subr.bf16.mxu0 0
  %251 = vmatpush1.bf16.xpose.msra.mxu0 %v165
  %252 = vmatprep.subr.bf16.mxu0 0
  %253 = vmatpush1.bf16.xpose.msra.mxu0 %v166
  %254 = vmatprep.subr.bf16.mxu0 0
  %255 = vmatpush1.bf16.xpose.msra.mxu0 %v167
  %256 = vmatprep.subr.bf16.mxu0 0
  %257 = vmatpush1.bf16.xpose.msra.mxu0 %v168
  %258 = vmatprep.subr.bf16.mxu0 0
  %259 = vmatpush1.bf16.xpose.msra.mxu0 %v169
  %260 = vmatprep.subr.bf16.mxu0 0
  %261 = vmatpush1.bf16.xpose.msra.mxu0 0
  %262 = vmatprep.subr.bf16.mxu0 0
  %263 = vmatpush1.bf16.xpose.msra.mxu0 0
  %264 = vmatprep.subr.bf16.mxu0 0
  %265 = vmatpush1.bf16.xpose.msra.mxu0 0
  %266 = vmatprep.subr.bf16.mxu0 0
  %267 = vmatpush1.bf16.xpose.msra.mxu0 0
  %268 = vmatprep.subr.bf16.mxu0 0
  %269 = vmatpush1.bf16.xpose.msra.mxu0 0
  %270 = vmatprep.subr.bf16.mxu0 0
  %271 = vmatpush1.bf16.xpose.msra.mxu0 0
  %272 = vmatprep.subr.bf16.mxu0 0
  %273 = vmatpush1.bf16.xpose.msra.mxu0 0
  %274 = vmatprep.subr.bf16.mxu0 0
  %275 = vmatpush1.bf16.xpose.msra.mxu0 0
  %276 = vmatprep.mubr.bf16.mxu0 0
  %277 = vmatmul.mubr.bf16.gmra.mrb[0].mxu0 %v243
  %v278 = vpop.f32.mrb[0].mxu0
  %v279 = vadd.f32 0.0, %v278
  %v280 = vpop.f32.mrb[0].mxu0
  %v281 = vpop.f32.mrb[0].mxu0
  %v282 = vpop.f32.mrb[0].mxu0
  %283 = vdwg.mxu0
  %284 = vst [vmem:[%s4] sm:$0xf] %v279
  // Predicated region
  $region14: #{gnn_encoder_forward.7} parent=0 // pred_check
    _
  $region15: #{gnn_encoder_forward.7} parent=0 // pred_check_branch
    %286 = sbr.rel (0) target = $region17
  $region16: #{gnn_encoder_forward.7} parent=0 // pred_region
    _
  $region17: #{gnn_encoder_forward.7} parent=0 // pred_fallthru
    _
  // Predicated region
  $region18: #{gnn_encoder_forward.7} parent=0 // pred_check
    _
  $region19: #{gnn_encoder_forward.7} parent=0 // pred_check_branch
    %288 = sbr.rel (0) target = $region21
  $region20: #{gnn_encoder_forward.7} parent=0 // pred_region
    _
  $region21: #{gnn_encoder_forward.7} parent=0 // pred_fallthru
    _
  // Predicated region
  $region22: #{gnn_encoder_forward.7} parent=0 // pred_check
    _
  $region23: #{gnn_encoder_forward.7} parent=0 // pred_check_branch
    %290 = sbr.rel (0) target = $region25
  $region24: #{gnn_encoder_forward.7} parent=0 // pred_region
    _
  $region25: #{gnn_encoder_forward.7} parent=0 // pred_fallthru
    _
  // Predicated region
  $region26: #{gnn_encoder_forward.7} parent=0 // pred_check
    _
  $region27: #{gnn_encoder_forward.7} parent=0 // pred_check_branch
    %292 = sbr.rel (0) target = $region29
  $region28: #{gnn_encoder_forward.7} parent=0 // pred_region
    _
  $region29: #{gnn_encoder_forward.7} parent=0 // pred_fallthru
    _

// kernel: gnn_encoder_forward.8
$region0: #{gnn_encoder_forward.8}
  #allocation0 [shape = 'u32[]', space=smem, size = 0x4, offset = 0x4, fixed_abs, tag = 'smem constant byte address 0x4 - core index']
  #allocation1 [shape = 'u32[144,128]{1,0:T(1,128)}', space=vmem, size = 0x12000, scoped, tag = 'internal scratch']
  %s0 = inlined_call_operand.vmem [shape: bf16[128,128], index: 0, kind: input, shape index: {}]
  %s1 = inlined_call_operand.vmem [shape: f32[4,128], index: 1, kind: input, shape index: {}]
  %s2 = inlined_call_operand.vmem [shape: s8[128,128], index: 2, kind: input, shape index: {}]
  %s3 = inlined_call_operand.vmem [shape: f32[128,128], index: 3, kind: input, shape index: {}]
  %s4 = inlined_call_operand.vmem [shape: f32[128,4], index: 4, kind: input, shape index: {}]
  %s5 = inlined_call_operand.vmem [shape: f32[1,128], index: 5, kind: input, shape index: {}]
  %s6 = inlined_call_operand.vmem [shape: f32[128,128], index: 6, kind: output, shape index: {}]
  %s7 = sld [smem:[#allocation0]]
  $region34: #{gnn_encoder_forward.8} parent=0
    _
  %s9 = ssub.s32 1, %s7
  %s10 = scalar_select 0, %s9, %s7
  // Predicated region
  $region2: #{gnn_encoder_forward.8} parent=0 // pred_check
    _
  $region3: #{gnn_encoder_forward.8} parent=0 // pred_check_branch
    %12 = sbr.rel (0) target = $region5
  $region4: #{gnn_encoder_forward.8} parent=0 // pred_region
    _
  $region5: #{gnn_encoder_forward.8} parent=0 // pred_fallthru
    _
  // Predicated region
  $region6: #{gnn_encoder_forward.8} parent=0 // pred_check
    _
  $region7: #{gnn_encoder_forward.8} parent=0 // pred_check_branch
    %14 = sbr.rel (0) target = $region9
  $region8: #{gnn_encoder_forward.8} parent=0 // pred_region
    _
  $region9: #{gnn_encoder_forward.8} parent=0 // pred_fallthru
    _
  // Predicated region
  $region10: #{gnn_encoder_forward.8} parent=0 // pred_check
    _
  $region11: #{gnn_encoder_forward.8} parent=0 // pred_check_branch
    %16 = sbr.rel (0) target = $region13
  $region12: #{gnn_encoder_forward.8} parent=0 // pred_region
    _
  $region13: #{gnn_encoder_forward.8} parent=0 // pred_fallthru
    _
  // Predicated region
  $region14: #{gnn_encoder_forward.8} parent=0 // pred_check
    _
  $region15: #{gnn_encoder_forward.8} parent=0 // pred_check_branch
    %18 = sbr.rel (0) target = $region17
  $region16: #{gnn_encoder_forward.8} parent=0 // pred_region
    _
  $region17: #{gnn_encoder_forward.8} parent=0 // pred_fallthru
    _
  // Predicated region
  $region18: #{gnn_encoder_forward.8} parent=0 // pred_check
    _
  $region19: #{gnn_encoder_forward.8} parent=0 // pred_check_branch
    %20 = sbr.rel (0) target = $region21
  $region20: #{gnn_encoder_forward.8} parent=0 // pred_region
    _
  $region21: #{gnn_encoder_forward.8} parent=0 // pred_fallthru
    _
  // Predicated region
  $region22: #{gnn_encoder_forward.8} parent=0 // pred_check
    _
  $region23: #{gnn_encoder_forward.8} parent=0 // pred_check_branch
    %22 = sbr.rel (0) target = $region25
  $region24: #{gnn_encoder_forward.8} parent=0 // pred_region
    _
  $region25: #{gnn_encoder_forward.8} parent=0 // pred_fallthru
    _
  %s24 = smul.u32 0, 128
  %v25 = vld [vmem:[%s0] sm:$0xf]
  %v26 = vld [vmem:[%s0 + $0x4] sm:$0xf]
  %v27 = vld [vmem:[%s0 + $0x8] sm:$0xf]
  %v28 = vld [vmem:[%s0 + $0xc] sm:$0xf]
  %v29 = vld [vmem:[%s0 + $0x10] sm:$0xf]
  %v30 = vld [vmem:[%s0 + $0x14] sm:$0xf]
  %v31 = vld [vmem:[%s0 + $0x18] sm:$0xf]
  %v32 = vld [vmem:[%s0 + $0x1c] sm:$0xf]
  %v33 = vld [vmem:[%s0 + $0x20] sm:$0xf]
  %v34 = vld [vmem:[%s0 + $0x24] sm:$0xf]
  %v35 = vld [vmem:[%s0 + $0x28] sm:$0xf]
  %v36 = vld [vmem:[%s0 + $0x2c] sm:$0xf]
  %v37 = vld [vmem:[%s0 + $0x30] sm:$0xf]
  %v38 = vld [vmem:[%s0 + $0x34] sm:$0xf]
  %v39 = vld [vmem:[%s0 + $0x38] sm:$0xf]
  %v40 = vld [vmem:[%s0 + $0x3c] sm:$0xf]
  %s41 = sshra.s32 %s24, 3
  %s42 = sand.u32 %s24, 7
  %s43 = smul.addr %s41, 4
  %s44 = scalar_lea.vmem %s0, %s43
  %v45 = vld [vmem:[%s44] sm:$0xf]
  %v46 = vld [vmem:[%s44 + $0x4] sm:$0xf]
  %v47 = vld [vmem:[%s44 + $0x8] sm:$0xf]
  %v48 = vld [vmem:[%s44 + $0xc] sm:$0xf]
  %v49 = vld [vmem:[%s44 + $0x10] sm:$0xf]
  %v50 = vld [vmem:[%s44 + $0x14] sm:$0xf]
  %v51 = vld [vmem:[%s44 + $0x18] sm:$0xf]
  %v52 = vld [vmem:[%s44 + $0x1c] sm:$0xf]
  %v53 = vld [vmem:[%s44 + $0x20] sm:$0xf]
  %v54 = vld [vmem:[%s44 + $0x24] sm:$0xf]
  %v55 = vld [vmem:[%s44 + $0x28] sm:$0xf]
  %v56 = vld [vmem:[%s44 + $0x2c] sm:$0xf]
  %v57 = vld [vmem:[%s44 + $0x30] sm:$0xf]
  %v58 = vld [vmem:[%s44 + $0x34] sm:$0xf]
  %v59 = vld [vmem:[%s44 + $0x38] sm:$0xf]
  %v60 = vld [vmem:[%s44 + $0x3c] sm:$0xf]
  %v61 = vld [vmem:[%s4] sm:$0xff]
  %v62 = vld [vmem:[%s4 + $0x8] sm:$0xff]
  %v63 = vld [vmem:[%s4 + $0x10] sm:$0xff]
  %v64 = vld [vmem:[%s4 + $0x18] sm:$0xff]
  %v65 = vld [vmem:[%s4 + $0x20] sm:$0xff]
  %v66 = vld [vmem:[%s4 + $0x28] sm:$0xff]
  %v67 = vld [vmem:[%s4 + $0x30] sm:$0xff]
  %v68 = vld [vmem:[%s4 + $0x38] sm:$0xff]
  %v69 = vld [vmem:[%s4 + $0x40] sm:$0xff]
  %v70 = vld [vmem:[%s4 + $0x48] sm:$0xff]
  %v71 = vld [vmem:[%s4 + $0x50] sm:$0xff]
  %v72 = vld [vmem:[%s4 + $0x58] sm:$0xff]
  %v73 = vld [vmem:[%s4 + $0x60] sm:$0xff]
  %v74 = vld [vmem:[%s4 + $0x68] sm:$0xff]
  %v75 = vld [vmem:[%s4 + $0x70] sm:$0xff]
  %v76 = vld [vmem:[%s4 + $0x78] sm:$0xff]
  %v77 = vpack.c.bf16 %v62, %v61
  %v78 = vpack.c.bf16 %v64, %v63
  %v79 = vpack.c.bf16 %v66, %v65
  %v80 = vpack.c.bf16 %v68, %v67
  %v81 = vpack.c.bf16 %v70, %v69
  %v82 = vpack.c.bf16 %v72, %v71
  %v83 = vpack.c.bf16 %v74, %v73
  %v84 = vpack.c.bf16 %v76, %v75
  %v101 = vunpack.c.l.b16 %v45
  %v102 = vunpack.c.l.b16 %v46
  %v103 = vunpack.c.l.b16 %v47
  %v104 = vunpack.c.l.b16 %v48
  %v105 = vunpack.c.l.b16 %v49
  %v106 = vunpack.c.l.b16 %v50
  %v107 = vunpack.c.l.b16 %v51
  %v108 = vunpack.c.l.b16 %v52
  %v109 = vunpack.c.l.b16 %v53
  %v110 = vunpack.c.l.b16 %v54
  %v111 = vunpack.c.l.b16 %v55
  %v112 = vunpack.c.l.b16 %v56
  %v113 = vunpack.c.l.b16 %v57
  %v114 = vunpack.c.l.b16 %v58
  %v115 = vunpack.c.l.b16 %v59
  %v116 = vunpack.c.l.b16 %v60
  %v117 = vpack.c.b16 %v102, %v101
  %v118 = vpack.c.b16 %v104, %v103
  %v119 = vpack.c.b16 %v106, %v105
  %v120 = vpack.c.b16 %v108, %v107
  %v121 = vpack.c.b16 %v110, %v109
  %v122 = vpack.c.b16 %v112, %v111
  %v123 = vpack.c.b16 %v114, %v113
  %v124 = vpack.c.b16 %v116, %v115
  %133 = vmatprep.subr.bf16.mxu0 0
  %134 = vmatpush1.bf16.msra.mxu0 %v77
  %135 = vmatprep.subr.bf16.mxu0 0
  %136 = vmatpush1.bf16.msra.mxu0 %v78
  %137 = vmatprep.subr.bf16.mxu0 0
  %138 = vmatpush1.bf16.msra.mxu0 %v79
  %139 = vmatprep.subr.bf16.mxu0 0
  %140 = vmatpush1.bf16.msra.mxu0 %v80
  %141 = vmatprep.subr.bf16.mxu0 0
  %142 = vmatpush1.bf16.msra.mxu0 %v81
  %143 = vmatprep.subr.bf16.mxu0 0
  %144 = vmatpush1.bf16.msra.mxu0 %v82
  %145 = vmatprep.subr.bf16.mxu0 0
  %146 = vmatpush1.bf16.msra.mxu0 %v83
  %147 = vmatprep.subr.bf16.mxu0 0
  %148 = vmatpush1.bf16.msra.mxu0 %v84
  %149 = vmatprep.subr.bf16.mxu0 0
  %150 = vmatpush1.bf16.msra.mxu0 0
  %151 = vmatprep.subr.bf16.mxu0 0
  %152 = vmatpush1.bf16.msra.mxu0 0
  %153 = vmatprep.subr.bf16.mxu0 0
  %154 = vmatpush1.bf16.msra.mxu0 0
  %155 = vmatprep.subr.bf16.mxu0 0
  %156 = vmatpush1.bf16.msra.mxu0 0
  %157 = vmatprep.subr.bf16.mxu0 0
  %158 = vmatpush1.bf16.msra.mxu0 0
  %159 = vmatprep.subr.bf16.mxu0 0
  %160 = vmatpush1.bf16.msra.mxu0 0
  %161 = vmatprep.subr.bf16.mxu0 0
  %162 = vmatpush1.bf16.msra.mxu0 0
  %163 = vmatprep.subr.bf16.mxu0 0
  %164 = vmatpush1.bf16.msra.mxu0 0
  %165 = vmatprep.mubr.bf16.mxu0 0
  %166 = vmatmul.mubr.bf16.gmra.mrb[0].mxu0 %v117
  %v167 = vpop.f32.mrb[0].mxu0
  %v168 = vadd.f32 0.0, %v167
  %v169 = vpop.f32.mrb[0].mxu0
  %v170 = vpop.f32.mrb[0].mxu0
  %v171 = vadd.f32 0.0, %v170
  %v172 = vpop.f32.mrb[0].mxu0
  %173 = vmatprep.mubr.bf16.mxu0 0
  %174 = vmatmul.mubr.bf16.gmra.mrb[0].mxu0 %v118
  %v175 = vpop.f32.mrb[0].mxu0
  %v176 = vadd.f32 0.0, %v175
  %v177 = vpop.f32.mrb[0].mxu0
  %v178 = vpop.f32.mrb[0].mxu0
  %v179 = vadd.f32 0.0, %v178
  %v180 = vpop.f32.mrb[0].mxu0
  %181 = vmatprep.mubr.bf16.mxu0 0
  %182 = vmatmul.mubr.bf16.gmra.mrb[0].mxu0 %v119
  %v183 = vpop.f32.mrb[0].mxu0
  %v184 = vadd.f32 0.0, %v183
  %v185 = vpop.f32.mrb[0].mxu0
  %v186 = vpop.f32.mrb[0].mxu0
  %v187 = vadd.f32 0.0, %v186
  %v188 = vpop.f32.mrb[0].mxu0
  %189 = vmatprep.mubr.bf16.mxu0 0
  %190 = vmatmul.mubr.bf16.gmra.mrb[0].mxu0 %v120
  %v191 = vpop.f32.mrb[0].mxu0
  %v192 = vadd.f32 0.0, %v191
  %v193 = vpop.f32.mrb[0].mxu0
  %v194 = vpop.f32.mrb[0].mxu0
  %v195 = vadd.f32 0.0, %v194
  %v196 = vpop.f32.mrb[0].mxu0
  %197 = vmatprep.mubr.bf16.mxu0 0
  %198 = vmatmul.mubr.bf16.gmra.mrb[0].mxu0 %v121
  %v199 = vpop.f32.mrb[0].mxu0
  %v200 = vadd.f32 0.0, %v199
  %v201 = vpop.f32.mrb[0].mxu0
  %v202 = vpop.f32.mrb[0].mxu0
  %v203 = vadd.f32 0.0, %v202
  %v204 = vpop.f32.mrb[0].mxu0
  %205 = vmatprep.mubr.bf16.mxu0 0
  %206 = vmatmul.mubr.bf16.gmra.mrb[0].mxu0 %v122
  %v207 = vpop.f32.mrb[0].mxu0
  %v208 = vadd.f32 0.0, %v207
  %v209 = vpop.f32.mrb[0].mxu0
  %v210 = vpop.f32.mrb[0].mxu0
  %v211 = vadd.f32 0.0, %v210
  %v212 = vpop.f32.mrb[0].mxu0
  %213 = vmatprep.mubr.bf16.mxu0 0
  %214 = vmatmul.mubr.bf16.gmra.mrb[0].mxu0 %v123
  %v215 = vpop.f32.mrb[0].mxu0
  %v216 = vadd.f32 0.0, %v215
  %v217 = vpop.f32.mrb[0].mxu0
  %v218 = vpop.f32.mrb[0].mxu0
  %v219 = vadd.f32 0.0, %v218
  %v220 = vpop.f32.mrb[0].mxu0
  %221 = vmatprep.mubr.bf16.mxu0 0
  %222 = vmatmul.mubr.bf16.gmra.mrb[0].mxu0 %v124
  %v223 = vpop.f32.mrb[0].mxu0
  %v224 = vadd.f32 0.0, %v223
  %v225 = vpop.f32.mrb[0].mxu0
  %v226 = vpop.f32.mrb[0].mxu0
  %v227 = vadd.f32 0.0, %v226
  %v228 = vpop.f32.mrb[0].mxu0
  %229 = vdwg.mxu0
  %v230 = vld [vmem:[%s1] sm:$0xf]
  %v231 = vld [vmem:[%s2] sm:$0xff]
  %v232 = vld [vmem:[%s2 + $0x8] sm:$0xff]
  %v233 = vld [vmem:[%s2 + $0x10] sm:$0xff]
  %v234 = vld [vmem:[%s2 + $0x18] sm:$0xff]
  %v235 = vunpack.c.0.s8 %v231
  %v236 = vunpack.c.1.s8 %v231
  %v237 = vunpack.c.2.s8 %v231
  %v238 = vunpack.c.3.s8 %v231
  %v239 = vunpack.c.0.s8 %v232
  %v240 = vunpack.c.1.s8 %v232
  %v241 = vunpack.c.2.s8 %v232
  %v242 = vunpack.c.3.s8 %v232
  %v243 = vunpack.c.0.s8 %v233
  %v244 = vunpack.c.1.s8 %v233
  %v245 = vunpack.c.2.s8 %v233
  %v246 = vunpack.c.3.s8 %v233
  %v247 = vunpack.c.0.s8 %v234
  %v248 = vunpack.c.1.s8 %v234
  %v249 = vunpack.c.2.s8 %v234
  %v250 = vunpack.c.3.s8 %v234
  %v251 = vcvt.s32.f32 %v235
  %v252 = vcvt.s32.f32 %v236
  %v253 = vcvt.s32.f32 %v237
  %v254 = vcvt.s32.f32 %v238
  %v255 = vcvt.s32.f32 %v239
  %v256 = vcvt.s32.f32 %v240
  %v257 = vcvt.s32.f32 %v241
  %v258 = vcvt.s32.f32 %v242
  %v259 = vcvt.s32.f32 %v243
  %v260 = vcvt.s32.f32 %v244
  %v261 = vcvt.s32.f32 %v245
  %v262 = vcvt.s32.f32 %v246
  %v263 = vcvt.s32.f32 %v247
  %v264 = vcvt.s32.f32 %v248
  %v265 = vcvt.s32.f32 %v249
  %v266 = vcvt.s32.f32 %v250
  %vm267 = vcmp.gt.f32.partialorder %v251, 0.0
  %vm268 = vcmp.gt.f32.partialorder %v252, 0.0
  %vm269 = vcmp.gt.f32.partialorder %v253, 0.0
  %vm270 = vcmp.gt.f32.partialorder %v254, 0.0
  %vm271 = vcmp.gt.f32.partialorder %v255, 0.0
  %vm272 = vcmp.gt.f32.partialorder %v256, 0.0
  %vm273 = vcmp.gt.f32.partialorder %v257, 0.0
  %vm274 = vcmp.gt.f32.partialorder %v258, 0.0
  %vm275 = vcmp.gt.f32.partialorder %v259, 0.0
  %vm276 = vcmp.gt.f32.partialorder %v260, 0.0
  %vm277 = vcmp.gt.f32.partialorder %v261, 0.0
  %vm278 = vcmp.gt.f32.partialorder %v262, 0.0
  %vm279 = vcmp.gt.f32.partialorder %v263, 0.0
  %vm280 = vcmp.gt.f32.partialorder %v264, 0.0
  %vm281 = vcmp.gt.f32.partialorder %v265, 0.0
  %vm282 = vcmp.gt.f32.partialorder %v266, 0.0
  %v283 = vsel %vm267, 0.0, -1e+30
  %v284 = vsel %vm268, 0.0, -1e+30
  %v285 = vsel %vm269, 0.0, -1e+30
  %v286 = vsel %vm270, 0.0, -1e+30
  %v287 = vsel %vm271, 0.0, -1e+30
  %v288 = vsel %vm272, 0.0, -1e+30
  %v289 = vsel %vm273, 0.0, -1e+30
  %v290 = vsel %vm274, 0.0, -1e+30
  %v291 = vsel %vm275, 0.0, -1e+30
  %v292 = vsel %vm276, 0.0, -1e+30
  %v293 = vsel %vm277, 0.0, -1e+30
  %v294 = vsel %vm278, 0.0, -1e+30
  %v295 = vsel %vm279, 0.0, -1e+30
  %v296 = vsel %vm280, 0.0, -1e+30
  %v297 = vsel %vm281, 0.0, -1e+30
  %v298 = vsel %vm282, 0.0, -1e+30
  %300 = vset.pattern.permute.xlu0 0
  %301 = vperm.xlu0 %300, %v168
  %v302 = vpop.permute.xlu0 %301
  %305 = vset.pattern.permute.xlu0 0
  %306 = vperm.xlu0 %305, %v171
  %v307 = vpop.permute.xlu0 %306
  %310 = vset.pattern.permute.xlu0 0
  %311 = vperm.xlu0 %310, %v176
  %v312 = vpop.permute.xlu0 %311
  %315 = vset.pattern.permute.xlu0 0
  %316 = vperm.xlu0 %315, %v179
  %v317 = vpop.permute.xlu0 %316
  %320 = vset.pattern.permute.xlu0 0
  %321 = vperm.xlu0 %320, %v184
  %v322 = vpop.permute.xlu0 %321
  %325 = vset.pattern.permute.xlu0 0
  %326 = vperm.xlu0 %325, %v187
  %v327 = vpop.permute.xlu0 %326
  %330 = vset.pattern.permute.xlu0 0
  %331 = vperm.xlu0 %330, %v192
  %v332 = vpop.permute.xlu0 %331
  %335 = vset.pattern.permute.xlu0 0
  %336 = vperm.xlu0 %335, %v195
  %v337 = vpop.permute.xlu0 %336
  %340 = vset.pattern.permute.xlu0 0
  %341 = vperm.xlu0 %340, %v200
  %v342 = vpop.permute.xlu0 %341
  %345 = vset.pattern.permute.xlu0 0
  %346 = vperm.xlu0 %345, %v203
  %v347 = vpop.permute.xlu0 %346
  %350 = vset.pattern.permute.xlu0 0
  %351 = vperm.xlu0 %350, %v208
  %v352 = vpop.permute.xlu0 %351
  %355 = vset.pattern.permute.xlu0 0
  %356 = vperm.xlu0 %355, %v211
  %v357 = vpop.permute.xlu0 %356
  %360 = vset.pattern.permute.xlu0 0
  %361 = vperm.xlu0 %360, %v216
  %v362 = vpop.permute.xlu0 %361
  %365 = vset.pattern.permute.xlu0 0
  %366 = vperm.xlu0 %365, %v219
  %v367 = vpop.permute.xlu0 %366
  %370 = vset.pattern.permute.xlu0 0
  %371 = vperm.xlu0 %370, %v224
  %v372 = vpop.permute.xlu0 %371
  %375 = vset.pattern.permute.xlu0 0
  %376 = vperm.xlu0 %375, %v227
  %v377 = vpop.permute.xlu0 %376
  %v379 = vlaneseq
  %v380 = vshrl.u32 %v379, 7
  %v381 = vsub.s32 0, %v380
  %v382 = vrot.slane %v230, %v381
  %v383 = vadd.f32 %v302, %v382
  %v384 = vadd.f32 %v307, %v382
  %v385 = vadd.f32 %v312, %v382
  %v386 = vadd.f32 %v317, %v382
  %v387 = vadd.f32 %v322, %v382
  %v388 = vadd.f32 %v327, %v382
  %v389 = vadd.f32 %v332, %v382
  %v390 = vadd.f32 %v337, %v382
  %v391 = vadd.f32 %v342, %v382
  %v392 = vadd.f32 %v347, %v382
  %v393 = vadd.f32 %v352, %v382
  %v394 = vadd.f32 %v357, %v382
  %v395 = vadd.f32 %v362, %v382
  %v396 = vadd.f32 %v367, %v382
  %v397 = vadd.f32 %v372, %v382
  %v398 = vadd.f32 %v377, %v382
  %v399 = vmul.f32 %v383, 0.2
  %v400 = vmul.f32 %v384, 0.2
  %v401 = vmul.f32 %v385, 0.2
  %v402 = vmul.f32 %v386, 0.2
  %v403 = vmul.f32 %v387, 0.2
  %v404 = vmul.f32 %v388, 0.2
  %v405 = vmul.f32 %v389, 0.2
  %v406 = vmul.f32 %v390, 0.2
  %v407 = vmul.f32 %v391, 0.2
  %v408 = vmul.f32 %v392, 0.2
  %v409 = vmul.f32 %v393, 0.2
  %v410 = vmul.f32 %v394, 0.2
  %v411 = vmul.f32 %v395, 0.2
  %v412 = vmul.f32 %v396, 0.2
  %v413 = vmul.f32 %v397, 0.2
  %v414 = vmul.f32 %v398, 0.2
  %v415 = vmax.f32 %v383, %v399
  %v416 = vmax.f32 %v384, %v400
  %v417 = vmax.f32 %v385, %v401
  %v418 = vmax.f32 %v386, %v402
  %v419 = vmax.f32 %v387, %v403
  %v420 = vmax.f32 %v388, %v404
  %v421 = vmax.f32 %v389, %v405
  %v422 = vmax.f32 %v390, %v406
  %v423 = vmax.f32 %v391, %v407
  %v424 = vmax.f32 %v392, %v408
  %v425 = vmax.f32 %v393, %v409
  %v426 = vmax.f32 %v394, %v410
  %v427 = vmax.f32 %v395, %v411
  %v428 = vmax.f32 %v396, %v412
  %v429 = vmax.f32 %v397, %v413
  %v430 = vmax.f32 %v398, %v414
  %v431 = vadd.f32 %v415, %v283
  %v432 = vadd.f32 %v416, %v284
  %v433 = vadd.f32 %v417, %v285
  %v434 = vadd.f32 %v418, %v286
  %v435 = vadd.f32 %v419, %v287
  %v436 = vadd.f32 %v420, %v288
  %v437 = vadd.f32 %v421, %v289
  %v438 = vadd.f32 %v422, %v290
  %v439 = vadd.f32 %v423, %v291
  %v440 = vadd.f32 %v424, %v292
  %v441 = vadd.f32 %v425, %v293
  %v442 = vadd.f32 %v426, %v294
  %v443 = vadd.f32 %v427, %v295
  %v444 = vadd.f32 %v428, %v296
  %v445 = vadd.f32 %v429, %v297
  %v446 = vadd.f32 %v430, %v298
  %447 = vmax.xlane.f32.xlu0 %v431
  %v448 = vpop.xlane.xlu0 %447
  %449 = vmax.xlane.f32.xlu0 %v432
  %v450 = vpop.xlane.xlu0 %449
  %451 = vmax.xlane.f32.xlu0 %v433
  %v452 = vpop.xlane.xlu0 %451
  %453 = vmax.xlane.f32.xlu0 %v434
  %v454 = vpop.xlane.xlu0 %453
  %455 = vmax.xlane.f32.xlu0 %v435
  %v456 = vpop.xlane.xlu0 %455
  %457 = vmax.xlane.f32.xlu0 %v436
  %v458 = vpop.xlane.xlu0 %457
  %459 = vmax.xlane.f32.xlu0 %v437
  %v460 = vpop.xlane.xlu0 %459
  %461 = vmax.xlane.f32.xlu0 %v438
  %v462 = vpop.xlane.xlu0 %461
  %463 = vmax.xlane.f32.xlu0 %v439
  %v464 = vpop.xlane.xlu0 %463
  %465 = vmax.xlane.f32.xlu0 %v440
  %v466 = vpop.xlane.xlu0 %465
  %467 = vmax.xlane.f32.xlu0 %v441
  %v468 = vpop.xlane.xlu0 %467
  %469 = vmax.xlane.f32.xlu0 %v442
  %v470 = vpop.xlane.xlu0 %469
  %471 = vmax.xlane.f32.xlu0 %v443
  %v472 = vpop.xlane.xlu0 %471
  %473 = vmax.xlane.f32.xlu0 %v444
  %v474 = vpop.xlane.xlu0 %473
  %475 = vmax.xlane.f32.xlu0 %v445
  %v476 = vpop.xlane.xlu0 %475
  %477 = vmax.xlane.f32.xlu0 %v446
  %v478 = vpop.xlane.xlu0 %477
  %v479 = vsub.f32 %v431, %v448
  %v480 = vsub.f32 %v432, %v450
  %v481 = vsub.f32 %v433, %v452
  %v482 = vsub.f32 %v434, %v454
  %v483 = vsub.f32 %v435, %v456
  %v484 = vsub.f32 %v436, %v458
  %v485 = vsub.f32 %v437, %v460
  %v486 = vsub.f32 %v438, %v462
  %v487 = vsub.f32 %v439, %v464
  %v488 = vsub.f32 %v440, %v466
  %v489 = vsub.f32 %v441, %v468
  %v490 = vsub.f32 %v442, %v470
  %v491 = vsub.f32 %v443, %v472
  %v492 = vsub.f32 %v444, %v474
  %v493 = vsub.f32 %v445, %v476
  %v494 = vsub.f32 %v446, %v478
  %v495 = vmul.f32 %v479, 1.442695
  %v496 = vpow.pop %v495
  %v497 = vmul.f32 %v480, 1.442695
  %v498 = vpow.pop %v497
  %v499 = vmul.f32 %v481, 1.442695
  %v500 = vpow.pop %v499
  %v501 = vmul.f32 %v482, 1.442695
  %v502 = vpow.pop %v501
  %v503 = vmul.f32 %v483, 1.442695
  %v504 = vpow.pop %v503
  %v505 = vmul.f32 %v484, 1.442695
  %v506 = vpow.pop %v505
  %v507 = vmul.f32 %v485, 1.442695
  %v508 = vpow.pop %v507
  %v509 = vmul.f32 %v486, 1.442695
  %v510 = vpow.pop %v509
  %v511 = vmul.f32 %v487, 1.442695
  %v512 = vpow.pop %v511
  %v513 = vmul.f32 %v488, 1.442695
  %v514 = vpow.pop %v513
  %v515 = vmul.f32 %v489, 1.442695
  %v516 = vpow.pop %v515
  %v517 = vmul.f32 %v490, 1.442695
  %v518 = vpow.pop %v517
  %v519 = vmul.f32 %v491, 1.442695
  %v520 = vpow.pop %v519
  %v521 = vmul.f32 %v492, 1.442695
  %v522 = vpow.pop %v521
  %v523 = vmul.f32 %v493, 1.442695
  %v524 = vpow.pop %v523
  %v525 = vmul.f32 %v494, 1.442695
  %v526 = vpow.pop %v525
  %527 = vadd.xlane.f32.xlu0 %v496
  %v528 = vpop.xlane.xlu0 %527
  %529 = vadd.xlane.f32.xlu0 %v498
  %v530 = vpop.xlane.xlu0 %529
  %531 = vadd.xlane.f32.xlu0 %v500
  %v532 = vpop.xlane.xlu0 %531
  %533 = vadd.xlane.f32.xlu0 %v502
  %v534 = vpop.xlane.xlu0 %533
  %535 = vadd.xlane.f32.xlu0 %v504
  %v536 = vpop.xlane.xlu0 %535
  %537 = vadd.xlane.f32.xlu0 %v506
  %v538 = vpop.xlane.xlu0 %537
  %539 = vadd.xlane.f32.xlu0 %v508
  %v540 = vpop.xlane.xlu0 %539
  %541 = vadd.xlane.f32.xlu0 %v510
  %v542 = vpop.xlane.xlu0 %541
  %543 = vadd.xlane.f32.xlu0 %v512
  %v544 = vpop.xlane.xlu0 %543
  %545 = vadd.xlane.f32.xlu0 %v514
  %v546 = vpop.xlane.xlu0 %545
  %547 = vadd.xlane.f32.xlu0 %v516
  %v548 = vpop.xlane.xlu0 %547
  %549 = vadd.xlane.f32.xlu0 %v518
  %v550 = vpop.xlane.xlu0 %549
  %551 = vadd.xlane.f32.xlu0 %v520
  %v552 = vpop.xlane.xlu0 %551
  %553 = vadd.xlane.f32.xlu0 %v522
  %v554 = vpop.xlane.xlu0 %553
  %555 = vadd.xlane.f32.xlu0 %v524
  %v556 = vpop.xlane.xlu0 %555
  %557 = vadd.xlane.f32.xlu0 %v526
  %v558 = vpop.xlane.xlu0 %557
  %v559 = vrcp.pop %v528
  %v560 = vrcp.pop %v530
  %v561 = vrcp.pop %v532
  %v562 = vrcp.pop %v534
  %v563 = vrcp.pop %v536
  %v564 = vrcp.pop %v538
  %v565 = vrcp.pop %v540
  %v566 = vrcp.pop %v542
  %v567 = vrcp.pop %v544
  %v568 = vrcp.pop %v546
  %v569 = vrcp.pop %v548
  %v570 = vrcp.pop %v550
  %v571 = vrcp.pop %v552
  %v572 = vrcp.pop %v554
  %v573 = vrcp.pop %v556
  %v574 = vrcp.pop %v558
  %v575 = vpack.c.bf16 %v498, %v496
  %v576 = vpack.c.bf16 %v502, %v500
  %v577 = vpack.c.bf16 %v506, %v504
  %v578 = vpack.c.bf16 %v510, %v508
  %v579 = vpack.c.bf16 %v514, %v512
  %v580 = vpack.c.bf16 %v518, %v516
  %v581 = vpack.c.bf16 %v522, %v520
  %v582 = vpack.c.bf16 %v526, %v524
  %v599 = vunpack.c.l.b16 %v25
  %v600 = vunpack.c.l.b16 %v26
  %v601 = vunpack.c.l.b16 %v27
  %v602 = vunpack.c.l.b16 %v28
  %v603 = vunpack.c.l.b16 %v29
  %v604 = vunpack.c.l.b16 %v30
  %v605 = vunpack.c.l.b16 %v31
  %v606 = vunpack.c.l.b16 %v32
  %v607 = vunpack.c.l.b16 %v33
  %v608 = vunpack.c.l.b16 %v34
  %v609 = vunpack.c.l.b16 %v35
  %v610 = vunpack.c.l.b16 %v36
  %v611 = vunpack.c.l.b16 %v37
  %v612 = vunpack.c.l.b16 %v38
  %v613 = vunpack.c.l.b16 %v39
  %v614 = vunpack.c.l.b16 %v40
  %v615 = vpack.c.b16 %v600, %v599
  %v616 = vpack.c.b16 %v602, %v601
  %v617 = vpack.c.b16 %v604, %v603
  %v618 = vpack.c.b16 %v606, %v605
  %v619 = vpack.c.b16 %v608, %v607
  %v620 = vpack.c.b16 %v610, %v609
  %v621 = vpack.c.b16 %v612, %v611
  %v622 = vpack.c.b16 %v614, %v613
  %631 = vmatprep.subr.bf16.mxu0 0
  %632 = vmatpush1.bf16.msra.mxu0 %v615
  %633 = vmatprep.subr.bf16.mxu0 0
  %634 = vmatpush1.bf16.msra.mxu0 %v616
  %635 = vmatprep.subr.bf16.mxu0 0
  %636 = vmatpush1.bf16.msra.mxu0 %v617
  %637 = vmatprep.subr.bf16.mxu0 0
  %638 = vmatpush1.bf16.msra.mxu0 %v618
  %639 = vmatprep.subr.bf16.mxu0 0
  %640 = vmatpush1.bf16.msra.mxu0 %v619
  %641 = vmatprep.subr.bf16.mxu0 0
  %642 = vmatpush1.bf16.msra.mxu0 %v620
  %643 = vmatprep.subr.bf16.mxu0 0
  %644 = vmatpush1.bf16.msra.mxu0 %v621
  %645 = vmatprep.subr.bf16.mxu0 0
  %646 = vmatpush1.bf16.msra.mxu0 %v622
  %647 = vmatprep.subr.bf16.mxu0 0
  %648 = vmatpush1.bf16.msra.mxu0 0
  %649 = vmatprep.subr.bf16.mxu0 0
  %650 = vmatpush1.bf16.msra.mxu0 0
  %651 = vmatprep.subr.bf16.mxu0 0
  %652 = vmatpush1.bf16.msra.mxu0 0
  %653 = vmatprep.subr.bf16.mxu0 0
  %654 = vmatpush1.bf16.msra.mxu0 0
  %655 = vmatprep.subr.bf16.mxu0 0
  %656 = vmatpush1.bf16.msra.mxu0 0
  %657 = vmatprep.subr.bf16.mxu0 0
  %658 = vmatpush1.bf16.msra.mxu0 0
  %659 = vmatprep.subr.bf16.mxu0 0
  %660 = vmatpush1.bf16.msra.mxu0 0
  %661 = vmatprep.subr.bf16.mxu0 0
  %662 = vmatpush1.bf16.msra.mxu0 0
  %663 = vmatprep.mubr.bf16.mxu0 0
  %664 = vmatmul.mubr.bf16.gmra.mrb[0].mxu0 %v575
  %v665 = vpop.f32.mrb[0].mxu0
  %v666 = vadd.f32 0.0, %v665
  %v667 = vpop.f32.mrb[0].mxu0
  %v668 = vpop.f32.mrb[0].mxu0
  %v669 = vadd.f32 0.0, %v668
  %v670 = vpop.f32.mrb[0].mxu0
  %671 = vmatprep.mubr.bf16.mxu0 0
  %672 = vmatmul.mubr.bf16.gmra.mrb[0].mxu0 %v576
  %v673 = vpop.f32.mrb[0].mxu0
  %v674 = vadd.f32 0.0, %v673
  %v675 = vpop.f32.mrb[0].mxu0
  %v676 = vpop.f32.mrb[0].mxu0
  %v677 = vadd.f32 0.0, %v676
  %v678 = vpop.f32.mrb[0].mxu0
  %679 = vmatprep.mubr.bf16.mxu0 0
  %680 = vmatmul.mubr.bf16.gmra.mrb[0].mxu0 %v577
  %v681 = vpop.f32.mrb[0].mxu0
  %v682 = vadd.f32 0.0, %v681
  %v683 = vpop.f32.mrb[0].mxu0
  %v684 = vpop.f32.mrb[0].mxu0
  %v685 = vadd.f32 0.0, %v684
  %v686 = vpop.f32.mrb[0].mxu0
  %687 = vmatprep.mubr.bf16.mxu0 0
  %688 = vmatmul.mubr.bf16.gmra.mrb[0].mxu0 %v578
  %v689 = vpop.f32.mrb[0].mxu0
  %v690 = vadd.f32 0.0, %v689
  %v691 = vpop.f32.mrb[0].mxu0
  %v692 = vpop.f32.mrb[0].mxu0
  %v693 = vadd.f32 0.0, %v692
  %v694 = vpop.f32.mrb[0].mxu0
  %695 = vmatprep.mubr.bf16.mxu0 0
  %696 = vmatmul.mubr.bf16.gmra.mrb[0].mxu0 %v579
  %v697 = vpop.f32.mrb[0].mxu0
  %v698 = vadd.f32 0.0, %v697
  %v699 = vpop.f32.mrb[0].mxu0
  %v700 = vpop.f32.mrb[0].mxu0
  %v701 = vadd.f32 0.0, %v700
  %v702 = vpop.f32.mrb[0].mxu0
  %703 = vmatprep.mubr.bf16.mxu0 0
  %704 = vmatmul.mubr.bf16.gmra.mrb[0].mxu0 %v580
  %v705 = vpop.f32.mrb[0].mxu0
  %v706 = vadd.f32 0.0, %v705
  %v707 = vpop.f32.mrb[0].mxu0
  %v708 = vpop.f32.mrb[0].mxu0
  %v709 = vadd.f32 0.0, %v708
  %v710 = vpop.f32.mrb[0].mxu0
  %711 = vmatprep.mubr.bf16.mxu0 0
  %712 = vmatmul.mubr.bf16.gmra.mrb[0].mxu0 %v581
  %v713 = vpop.f32.mrb[0].mxu0
  %v714 = vadd.f32 0.0, %v713
  %v715 = vpop.f32.mrb[0].mxu0
  %v716 = vpop.f32.mrb[0].mxu0
  %v717 = vadd.f32 0.0, %v716
  %v718 = vpop.f32.mrb[0].mxu0
  %719 = vmatprep.mubr.bf16.mxu0 0
  %720 = vmatmul.mubr.bf16.gmra.mrb[0].mxu0 %v582
  %v721 = vpop.f32.mrb[0].mxu0
  %v722 = vadd.f32 0.0, %v721
  %v723 = vpop.f32.mrb[0].mxu0
  %v724 = vpop.f32.mrb[0].mxu0
  %v725 = vadd.f32 0.0, %v724
  %v726 = vpop.f32.mrb[0].mxu0
  %727 = vdwg.mxu0
  %v728 = vmul.f32 %v666, %v559
  %v729 = vmul.f32 %v669, %v560
  %v730 = vmul.f32 %v674, %v561
  %v731 = vmul.f32 %v677, %v562
  %v732 = vmul.f32 %v682, %v563
  %v733 = vmul.f32 %v685, %v564
  %v734 = vmul.f32 %v690, %v565
  %v735 = vmul.f32 %v693, %v566
  %v736 = vmul.f32 %v698, %v567
  %v737 = vmul.f32 %v701, %v568
  %v738 = vmul.f32 %v706, %v569
  %v739 = vmul.f32 %v709, %v570
  %v740 = vmul.f32 %v714, %v571
  %v741 = vmul.f32 %v717, %v572
  %v742 = vmul.f32 %v722, %v573
  %v743 = vmul.f32 %v725, %v574
  %vm744 = vcmask 261120
  %745 = vst.msk [vmem:[%s6] sm:$0xff] %vm744, %v728
  %746 = vst.msk [vmem:[%s6 + $0x8] sm:$0xff] %vm744, %v729
  %747 = vst.msk [vmem:[%s6 + $0x10] sm:$0xff] %vm744, %v730
  %748 = vst.msk [vmem:[%s6 + $0x18] sm:$0xff] %vm744, %v731
  %749 = vst.msk [vmem:[%s6 + $0x20] sm:$0xff] %vm744, %v732
  %750 = vst.msk [vmem:[%s6 + $0x28] sm:$0xff] %vm744, %v733
  %751 = vst.msk [vmem:[%s6 + $0x30] sm:$0xff] %vm744, %v734
  %752 = vst.msk [vmem:[%s6 + $0x38] sm:$0xff] %vm744, %v735
  %753 = vst.msk [vmem:[%s6 + $0x40] sm:$0xff] %vm744, %v736
  %754 = vst.msk [vmem:[%s6 + $0x48] sm:$0xff] %vm744, %v737
  %755 = vst.msk [vmem:[%s6 + $0x50] sm:$0xff] %vm744, %v738
  %756 = vst.msk [vmem:[%s6 + $0x58] sm:$0xff] %vm744, %v739
  %757 = vst.msk [vmem:[%s6 + $0x60] sm:$0xff] %vm744, %v740
  %758 = vst.msk [vmem:[%s6 + $0x68] sm:$0xff] %vm744, %v741
  %759 = vst.msk [vmem:[%s6 + $0x70] sm:$0xff] %vm744, %v742
  %760 = vst.msk [vmem:[%s6 + $0x78] sm:$0xff] %vm744, %v743
  %761 = vset.pattern.permute.xlu0 1
  %762 = vperm.xlu0 %761, %v168
  %v763 = vpop.permute.xlu0 %762
  %765 = vset.pattern.permute.xlu0 1
  %766 = vperm.xlu0 %765, %v171
  %v767 = vpop.permute.xlu0 %766
  %769 = vset.pattern.permute.xlu0 1
  %770 = vperm.xlu0 %769, %v176
  %v771 = vpop.permute.xlu0 %770
  %773 = vset.pattern.permute.xlu0 1
  %774 = vperm.xlu0 %773, %v179
  %v775 = vpop.permute.xlu0 %774
  %777 = vset.pattern.permute.xlu0 1
  %778 = vperm.xlu0 %777, %v184
  %v779 = vpop.permute.xlu0 %778
  %781 = vset.pattern.permute.xlu0 1
  %782 = vperm.xlu0 %781, %v187
  %v783 = vpop.permute.xlu0 %782
  %785 = vset.pattern.permute.xlu0 1
  %786 = vperm.xlu0 %785, %v192
  %v787 = vpop.permute.xlu0 %786
  %789 = vset.pattern.permute.xlu0 1
  %790 = vperm.xlu0 %789, %v195
  %v791 = vpop.permute.xlu0 %790
  %793 = vset.pattern.permute.xlu0 1
  %794 = vperm.xlu0 %793, %v200
  %v795 = vpop.permute.xlu0 %794
  %797 = vset.pattern.permute.xlu0 1
  %798 = vperm.xlu0 %797, %v203
  %v799 = vpop.permute.xlu0 %798
  %801 = vset.pattern.permute.xlu0 1
  %802 = vperm.xlu0 %801, %v208
  %v803 = vpop.permute.xlu0 %802
  %805 = vset.pattern.permute.xlu0 1
  %806 = vperm.xlu0 %805, %v211
  %v807 = vpop.permute.xlu0 %806
  %809 = vset.pattern.permute.xlu0 1
  %810 = vperm.xlu0 %809, %v216
  %v811 = vpop.permute.xlu0 %810
  %813 = vset.pattern.permute.xlu0 1
  %814 = vperm.xlu0 %813, %v219
  %v815 = vpop.permute.xlu0 %814
  %817 = vset.pattern.permute.xlu0 1
  %818 = vperm.xlu0 %817, %v224
  %v819 = vpop.permute.xlu0 %818
  %821 = vset.pattern.permute.xlu0 1
  %822 = vperm.xlu0 %821, %v227
  %v823 = vpop.permute.xlu0 %822
  %v825 = vlaneseq
  %v826 = vshrl.u32 %v825, 7
  %v827 = vsub.s32 1, %v826
  %v828 = vrot.slane %v230, %v827
  %v829 = vadd.f32 %v763, %v828
  %v830 = vadd.f32 %v767, %v828
  %v831 = vadd.f32 %v771, %v828
  %v832 = vadd.f32 %v775, %v828
  %v833 = vadd.f32 %v779, %v828
  %v834 = vadd.f32 %v783, %v828
  %v835 = vadd.f32 %v787, %v828
  %v836 = vadd.f32 %v791, %v828
  %v837 = vadd.f32 %v795, %v828
  %v838 = vadd.f32 %v799, %v828
  %v839 = vadd.f32 %v803, %v828
  %v840 = vadd.f32 %v807, %v828
  %v841 = vadd.f32 %v811, %v828
  %v842 = vadd.f32 %v815, %v828
  %v843 = vadd.f32 %v819, %v828
  %v844 = vadd.f32 %v823, %v828
  %v845 = vmul.f32 %v829, 0.2
  %v846 = vmul.f32 %v830, 0.2
  %v847 = vmul.f32 %v831, 0.2
  %v848 = vmul.f32 %v832, 0.2
  %v849 = vmul.f32 %v833, 0.2
  %v850 = vmul.f32 %v834, 0.2
  %v851 = vmul.f32 %v835, 0.2
  %v852 = vmul.f32 %v836, 0.2
  %v853 = vmul.f32 %v837, 0.2
  %v854 = vmul.f32 %v838, 0.2
  %v855 = vmul.f32 %v839, 0.2
  %v856 = vmul.f32 %v840, 0.2
  %v857 = vmul.f32 %v841, 0.2
  %v858 = vmul.f32 %v842, 0.2
  %v859 = vmul.f32 %v843, 0.2
  %v860 = vmul.f32 %v844, 0.2
  %v861 = vmax.f32 %v829, %v845
  %v862 = vmax.f32 %v830, %v846
  %v863 = vmax.f32 %v831, %v847
  %v864 = vmax.f32 %v832, %v848
  %v865 = vmax.f32 %v833, %v849
  %v866 = vmax.f32 %v834, %v850
  %v867 = vmax.f32 %v835, %v851
  %v868 = vmax.f32 %v836, %v852
  %v869 = vmax.f32 %v837, %v853
  %v870 = vmax.f32 %v838, %v854
  %v871 = vmax.f32 %v839, %v855
  %v872 = vmax.f32 %v840, %v856
  %v873 = vmax.f32 %v841, %v857
  %v874 = vmax.f32 %v842, %v858
  %v875 = vmax.f32 %v843, %v859
  %v876 = vmax.f32 %v844, %v860
  %v877 = vadd.f32 %v861, %v283
  %v878 = vadd.f32 %v862, %v284
  %v879 = vadd.f32 %v863, %v285
  %v880 = vadd.f32 %v864, %v286
  %v881 = vadd.f32 %v865, %v287
  %v882 = vadd.f32 %v866, %v288
  %v883 = vadd.f32 %v867, %v289
  %v884 = vadd.f32 %v868, %v290
  %v885 = vadd.f32 %v869, %v291
  %v886 = vadd.f32 %v870, %v292
  %v887 = vadd.f32 %v871, %v293
  %v888 = vadd.f32 %v872, %v294
  %v889 = vadd.f32 %v873, %v295
  %v890 = vadd.f32 %v874, %v296
  %v891 = vadd.f32 %v875, %v297
  %v892 = vadd.f32 %v876, %v298
  %893 = vmax.xlane.f32.xlu0 %v877
  %v894 = vpop.xlane.xlu0 %893
  %895 = vmax.xlane.f32.xlu0 %v878
  %v896 = vpop.xlane.xlu0 %895
  %897 = vmax.xlane.f32.xlu0 %v879
  %v898 = vpop.xlane.xlu0 %897
  %899 = vmax.xlane.f32.xlu0 %v880
  %v900 = vpop.xlane.xlu0 %899
  %901 = vmax.xlane.f32.xlu0 %v881
  %v902 = vpop.xlane.xlu0 %901
  %903 = vmax.xlane.f32.xlu0 %v882
  %v904 = vpop.xlane.xlu0 %903
  %905 = vmax.xlane.f32.xlu0 %v883
  %v906 = vpop.xlane.xlu0 %905
  %907 = vmax.xlane.f32.xlu0 %v884
  %v908 = vpop.xlane.xlu0 %907
  %909 = vmax.xlane.f32.xlu0 %v885
  %v910 = vpop.xlane.xlu0 %909
  %911 = vmax.xlane.f32.xlu0 %v886
  %v912 = vpop.xlane.xlu0 %911
  %913 = vmax.xlane.f32.xlu0 %v887
  %v914 = vpop.xlane.xlu0 %913
  %915 = vmax.xlane.f32.xlu0 %v888
  %v916 = vpop.xlane.xlu0 %915
  %917 = vmax.xlane.f32.xlu0 %v889
  %v918 = vpop.xlane.xlu0 %917
  %919 = vmax.xlane.f32.xlu0 %v890
  %v920 = vpop.xlane.xlu0 %919
  %921 = vmax.xlane.f32.xlu0 %v891
  %v922 = vpop.xlane.xlu0 %921
  %923 = vmax.xlane.f32.xlu0 %v892
  %v924 = vpop.xlane.xlu0 %923
  %v925 = vsub.f32 %v877, %v894
  %v926 = vsub.f32 %v878, %v896
  %v927 = vsub.f32 %v879, %v898
  %v928 = vsub.f32 %v880, %v900
  %v929 = vsub.f32 %v881, %v902
  %v930 = vsub.f32 %v882, %v904
  %v931 = vsub.f32 %v883, %v906
  %v932 = vsub.f32 %v884, %v908
  %v933 = vsub.f32 %v885, %v910
  %v934 = vsub.f32 %v886, %v912
  %v935 = vsub.f32 %v887, %v914
  %v936 = vsub.f32 %v888, %v916
  %v937 = vsub.f32 %v889, %v918
  %v938 = vsub.f32 %v890, %v920
  %v939 = vsub.f32 %v891, %v922
  %v940 = vsub.f32 %v892, %v924
  %v941 = vmul.f32 %v925, 1.442695
  %v942 = vpow.pop %v941
  %v943 = vmul.f32 %v926, 1.442695
  %v944 = vpow.pop %v943
  %v945 = vmul.f32 %v927, 1.442695
  %v946 = vpow.pop %v945
  %v947 = vmul.f32 %v928, 1.442695
  %v948 = vpow.pop %v947
  %v949 = vmul.f32 %v929, 1.442695
  %v950 = vpow.pop %v949
  %v951 = vmul.f32 %v930, 1.442695
  %v952 = vpow.pop %v951
  %v953 = vmul.f32 %v931, 1.442695
  %v954 = vpow.pop %v953
  %v955 = vmul.f32 %v932, 1.442695
  %v956 = vpow.pop %v955
  %v957 = vmul.f32 %v933, 1.442695
  %v958 = vpow.pop %v957
  %v959 = vmul.f32 %v934, 1.442695
  %v960 = vpow.pop %v959
  %v961 = vmul.f32 %v935, 1.442695
  %v962 = vpow.pop %v961
  %v963 = vmul.f32 %v936, 1.442695
  %v964 = vpow.pop %v963
  %v965 = vmul.f32 %v937, 1.442695
  %v966 = vpow.pop %v965
  %v967 = vmul.f32 %v938, 1.442695
  %v968 = vpow.pop %v967
  %v969 = vmul.f32 %v939, 1.442695
  %v970 = vpow.pop %v969
  %v971 = vmul.f32 %v940, 1.442695
  %v972 = vpow.pop %v971
  %973 = vadd.xlane.f32.xlu0 %v942
  %v974 = vpop.xlane.xlu0 %973
  %975 = vadd.xlane.f32.xlu0 %v944
  %v976 = vpop.xlane.xlu0 %975
  %977 = vadd.xlane.f32.xlu0 %v946
  %v978 = vpop.xlane.xlu0 %977
  %979 = vadd.xlane.f32.xlu0 %v948
  %v980 = vpop.xlane.xlu0 %979
  %981 = vadd.xlane.f32.xlu0 %v950
  %v982 = vpop.xlane.xlu0 %981
  %983 = vadd.xlane.f32.xlu0 %v952
  %v984 = vpop.xlane.xlu0 %983
  %985 = vadd.xlane.f32.xlu0 %v954
  %v986 = vpop.xlane.xlu0 %985
  %987 = vadd.xlane.f32.xlu0 %v956
  %v988 = vpop.xlane.xlu0 %987
  %989 = vadd.xlane.f32.xlu0 %v958
  %v990 = vpop.xlane.xlu0 %989
  %991 = vadd.xlane.f32.xlu0 %v960
  %v992 = vpop.xlane.xlu0 %991
  %993 = vadd.xlane.f32.xlu0 %v962
  %v994 = vpop.xlane.xlu0 %993
  %995 = vadd.xlane.f32.xlu0 %v964
  %v996 = vpop.xlane.xlu0 %995
  %997 = vadd.xlane.f32.xlu0 %v966
  %v998 = vpop.xlane.xlu0 %997
  %999 = vadd.xlane.f32.xlu0 %v968
  %v1000 = vpop.xlane.xlu0 %999
  %1001 = vadd.xlane.f32.xlu0 %v970
  %v1002 = vpop.xlane.xlu0 %1001
  %1003 = vadd.xlane.f32.xlu0 %v972
  %v1004 = vpop.xlane.xlu0 %1003
  %v1005 = vrcp.pop %v974
  %v1006 = vrcp.pop %v976
  %v1007 = vrcp.pop %v978
  %v1008 = vrcp.pop %v980
  %v1009 = vrcp.pop %v982
  %v1010 = vrcp.pop %v984
  %v1011 = vrcp.pop %v986
  %v1012 = vrcp.pop %v988
  %v1013 = vrcp.pop %v990
  %v1014 = vrcp.pop %v992
  %v1015 = vrcp.pop %v994
  %v1016 = vrcp.pop %v996
  %v1017 = vrcp.pop %v998
  %v1018 = vrcp.pop %v1000
  %v1019 = vrcp.pop %v1002
  %v1020 = vrcp.pop %v1004
  %v1021 = vpack.c.bf16 %v944, %v942
  %v1022 = vpack.c.bf16 %v948, %v946
  %v1023 = vpack.c.bf16 %v952, %v950
  %v1024 = vpack.c.bf16 %v956, %v954
  %v1025 = vpack.c.bf16 %v960, %v958
  %v1026 = vpack.c.bf16 %v964, %v962
  %v1027 = vpack.c.bf16 %v968, %v966
  %v1028 = vpack.c.bf16 %v972, %v970
  %1029 = vrot.lane.b32.xlu0 %v615, 96
  %v1030 = vpop.permute.xlu0 %1029
  %1031 = vrot.lane.b32.xlu0 %v616, 96
  %v1032 = vpop.permute.xlu0 %1031
  %1033 = vrot.lane.b32.xlu0 %v617, 96
  %v1034 = vpop.permute.xlu0 %1033
  %1035 = vrot.lane.b32.xlu0 %v618, 96
  %v1036 = vpop.permute.xlu0 %1035
  %1037 = vrot.lane.b32.xlu0 %v619, 96
  %v1038 = vpop.permute.xlu0 %1037
  %1039 = vrot.lane.b32.xlu0 %v620, 96
  %v1040 = vpop.permute.xlu0 %1039
  %1041 = vrot.lane.b32.xlu0 %v621, 96
  %v1042 = vpop.permute.xlu0 %1041
  %1043 = vrot.lane.b32.xlu0 %v622, 96
  %v1044 = vpop.permute.xlu0 %1043
  %1053 = vmatprep.subr.bf16.mxu0 0
  %1054 = vmatpush1.bf16.msra.mxu0 %v1030
  %1055 = vmatprep.subr.bf16.mxu0 0
  %1056 = vmatpush1.bf16.msra.mxu0 %v1032
  %1057 = vmatprep.subr.bf16.mxu0 0
  %1058 = vmatpush1.bf16.msra.mxu0 %v1034
  %1059 = vmatprep.subr.bf16.mxu0 0
  %1060 = vmatpush1.bf16.msra.mxu0 %v1036
  %1061 = vmatprep.subr.bf16.mxu0 0
  %1062 = vmatpush1.bf16.msra.mxu0 %v1038
  %1063 = vmatprep.subr.bf16.mxu0 0
  %1064 = vmatpush1.bf16.msra.mxu0 %v1040
  %1065 = vmatprep.subr.bf16.mxu0 0
  %1066 = vmatpush1.bf16.msra.mxu0 %v1042
  %1067 = vmatprep.subr.bf16.mxu0 0
  %1068 = vmatpush1.bf16.msra.mxu0 %v1044
  %1069 = vmatprep.subr.bf16.mxu0 0
  %1070 = vmatpush1.bf16.msra.mxu0 0
  %1071 = vmatprep.subr.bf16.mxu0 0
  %1072 = vmatpush1.bf16.msra.mxu0 0
  %1073 = vmatprep.subr.bf16.mxu0 0
  %1074 = vmatpush1.bf16.msra.mxu0 0
  %1075 = vmatprep.subr.bf16.mxu0 0
  %1076 = vmatpush1.bf16.msra.mxu0 0
  %1077 = vmatprep.subr.bf16.mxu0 0
  %1078 = vmatpush1.bf16.msra.mxu0 0
  %1079 = vmatprep.subr.bf16.mxu0 0
  %1080 = vmatpush1.bf16.msra.mxu0 0
  %1081 = vmatprep.subr.bf16.mxu0 0
  %1082 = vmatpush1.bf16.msra.mxu0 0
  %1083 = vmatprep.subr.bf16.mxu0 0
  %1084 = vmatpush1.bf16.msra.mxu0 0
  %1085 = vmatprep.mubr.bf16.mxu0 0
  %1086 = vmatmul.mubr.bf16.gmra.mrb[0].mxu0 %v1021
  %v1087 = vpop.f32.mrb[0].mxu0
  %v1088 = vadd.f32 0.0, %v1087
  %v1089 = vpop.f32.mrb[0].mxu0
  %v1090 = vpop.f32.mrb[0].mxu0
  %v1091 = vadd.f32 0.0, %v1090
  %v1092 = vpop.f32.mrb[0].mxu0
  %1093 = vmatprep.mubr.bf16.mxu0 0
  %1094 = vmatmul.mubr.bf16.gmra.mrb[0].mxu0 %v1022
  %v1095 = vpop.f32.mrb[0].mxu0
  %v1096 = vadd.f32 0.0, %v1095
  %v1097 = vpop.f32.mrb[0].mxu0
  %v1098 = vpop.f32.mrb[0].mxu0
  %v1099 = vadd.f32 0.0, %v1098
  %v1100 = vpop.f32.mrb[0].mxu0
  %1101 = vmatprep.mubr.bf16.mxu0 0
  %1102 = vmatmul.mubr.bf16.gmra.mrb[0].mxu0 %v1023
  %v1103 = vpop.f32.mrb[0].mxu0
  %v1104 = vadd.f32 0.0, %v1103
  %v1105 = vpop.f32.mrb[0].mxu0
  %v1106 = vpop.f32.mrb[0].mxu0
  %v1107 = vadd.f32 0.0, %v1106
  %v1108 = vpop.f32.mrb[0].mxu0
  %1109 = vmatprep.mubr.bf16.mxu0 0
  %1110 = vmatmul.mubr.bf16.gmra.mrb[0].mxu0 %v1024
  %v1111 = vpop.f32.mrb[0].mxu0
  %v1112 = vadd.f32 0.0, %v1111
  %v1113 = vpop.f32.mrb[0].mxu0
  %v1114 = vpop.f32.mrb[0].mxu0
  %v1115 = vadd.f32 0.0, %v1114
  %v1116 = vpop.f32.mrb[0].mxu0
  %1117 = vmatprep.mubr.bf16.mxu0 0
  %1118 = vmatmul.mubr.bf16.gmra.mrb[0].mxu0 %v1025
  %v1119 = vpop.f32.mrb[0].mxu0
  %v1120 = vadd.f32 0.0, %v1119
  %v1121 = vpop.f32.mrb[0].mxu0
  %v1122 = vpop.f32.mrb[0].mxu0
  %v1123 = vadd.f32 0.0, %v1122
  %v1124 = vpop.f32.mrb[0].mxu0
  %1125 = vmatprep.mubr.bf16.mxu0 0
  %1126 = vmatmul.mubr.bf16.gmra.mrb[0].mxu0 %v1026
  %v1127 = vpop.f32.mrb[0].mxu0
  %v1128 = vadd.f32 0.0, %v1127
  %v1129 = vpop.f32.mrb[0].mxu0
  %v1130 = vpop.f32.mrb[0].mxu0
  %v1131 = vadd.f32 0.0, %v1130
  %v1132 = vpop.f32.mrb[0].mxu0
  %1133 = vmatprep.mubr.bf16.mxu0 0
  %1134 = vmatmul.mubr.bf16.gmra.mrb[0].mxu0 %v1027
  %v1135 = vpop.f32.mrb[0].mxu0
  %v1136 = vadd.f32 0.0, %v1135
  %v1137 = vpop.f32.mrb[0].mxu0
  %v1138 = vpop.f32.mrb[0].mxu0
  %v1139 = vadd.f32 0.0, %v1138
  %v1140 = vpop.f32.mrb[0].mxu0
  %1141 = vmatprep.mubr.bf16.mxu0 0
  %1142 = vmatmul.mubr.bf16.gmra.mrb[0].mxu0 %v1028
  %v1143 = vpop.f32.mrb[0].mxu0
  %v1144 = vadd.f32 0.0, %v1143
  %v1145 = vpop.f32.mrb[0].mxu0
  %v1146 = vpop.f32.mrb[0].mxu0
  %v1147 = vadd.f32 0.0, %v1146
  %v1148 = vpop.f32.mrb[0].mxu0
  %1149 = vdwg.mxu0
  %v1150 = vmul.f32 %v1088, %v1005
  %v1151 = vmul.f32 %v1091, %v1006
  %v1152 = vmul.f32 %v1096, %v1007
  %v1153 = vmul.f32 %v1099, %v1008
  %v1154 = vmul.f32 %v1104, %v1009
  %v1155 = vmul.f32 %v1107, %v1010
  %v1156 = vmul.f32 %v1112, %v1011
  %v1157 = vmul.f32 %v1115, %v1012
  %v1158 = vmul.f32 %v1120, %v1013
  %v1159 = vmul.f32 %v1123, %v1014
  %v1160 = vmul.f32 %v1128, %v1015
  %v1161 = vmul.f32 %v1131, %v1016
  %v1162 = vmul.f32 %v1136, %v1017
  %v1163 = vmul.f32 %v1139, %v1018
  %v1164 = vmul.f32 %v1144, %v1019
  %v1165 = vmul.f32 %v1147, %v1020
  %1182 = vrot.lane.b32.xlu0 %v1150, 32
  %v1183 = vpop.permute.xlu0 %1182
  %1184 = vrot.lane.b32.xlu0 %v1151, 32
  %v1185 = vpop.permute.xlu0 %1184
  %1186 = vrot.lane.b32.xlu0 %v1152, 32
  %v1187 = vpop.permute.xlu0 %1186
  %1188 = vrot.lane.b32.xlu0 %v1153, 32
  %v1189 = vpop.permute.xlu0 %1188
  %1190 = vrot.lane.b32.xlu0 %v1154, 32
  %v1191 = vpop.permute.xlu0 %1190
  %1192 = vrot.lane.b32.xlu0 %v1155, 32
  %v1193 = vpop.permute.xlu0 %1192
  %1194 = vrot.lane.b32.xlu0 %v1156, 32
  %v1195 = vpop.permute.xlu0 %1194
  %1196 = vrot.lane.b32.xlu0 %v1157, 32
  %v1197 = vpop.permute.xlu0 %1196
  %1198 = vrot.lane.b32.xlu0 %v1158, 32
  %v1199 = vpop.permute.xlu0 %1198
  %1200 = vrot.lane.b32.xlu0 %v1159, 32
  %v1201 = vpop.permute.xlu0 %1200
  %1202 = vrot.lane.b32.xlu0 %v1160, 32
  %v1203 = vpop.permute.xlu0 %1202
  %1204 = vrot.lane.b32.xlu0 %v1161, 32
  %v1205 = vpop.permute.xlu0 %1204
  %1206 = vrot.lane.b32.xlu0 %v1162, 32
  %v1207 = vpop.permute.xlu0 %1206
  %1208 = vrot.lane.b32.xlu0 %v1163, 32
  %v1209 = vpop.permute.xlu0 %1208
  %1210 = vrot.lane.b32.xlu0 %v1164, 32
  %v1211 = vpop.permute.xlu0 %1210
  %1212 = vrot.lane.b32.xlu0 %v1165, 32
  %v1213 = vpop.permute.xlu0 %1212
  %vm1230 = vcmask 523520
  %1231 = vst.msk [vmem:[%s6] sm:$0xff] %vm1230, %v1183
  %1232 = vst.msk [vmem:[%s6 + $0x8] sm:$0xff] %vm1230, %v1185
  %1233 = vst.msk [vmem:[%s6 + $0x10] sm:$0xff] %vm1230, %v1187
  %1234 = vst.msk [vmem:[%s6 + $0x18] sm:$0xff] %vm1230, %v1189
  %1235 = vst.msk [vmem:[%s6 + $0x20] sm:$0xff] %vm1230, %v1191
  %1236 = vst.msk [vmem:[%s6 + $0x28] sm:$0xff] %vm1230, %v1193
  %1237 = vst.msk [vmem:[%s6 + $0x30] sm:$0xff] %vm1230, %v1195
  %1238 = vst.msk [vmem:[%s6 + $0x38] sm:$0xff] %vm1230, %v1197
  %1239 = vst.msk [vmem:[%s6 + $0x40] sm:$0xff] %vm1230, %v1199
  %1240 = vst.msk [vmem:[%s6 + $0x48] sm:$0xff] %vm1230, %v1201
  %1241 = vst.msk [vmem:[%s6 + $0x50] sm:$0xff] %vm1230, %v1203
  %1242 = vst.msk [vmem:[%s6 + $0x58] sm:$0xff] %vm1230, %v1205
  %1243 = vst.msk [vmem:[%s6 + $0x60] sm:$0xff] %vm1230, %v1207
  %1244 = vst.msk [vmem:[%s6 + $0x68] sm:$0xff] %vm1230, %v1209
  %1245 = vst.msk [vmem:[%s6 + $0x70] sm:$0xff] %vm1230, %v1211
  %1246 = vst.msk [vmem:[%s6 + $0x78] sm:$0xff] %vm1230, %v1213
  %1247 = vset.pattern.permute.xlu0 2
  %1248 = vperm.xlu0 %1247, %v168
  %v1249 = vpop.permute.xlu0 %1248
  %1251 = vset.pattern.permute.xlu0 2
  %1252 = vperm.xlu0 %1251, %v171
  %v1253 = vpop.permute.xlu0 %1252
  %1255 = vset.pattern.permute.xlu0 2
  %1256 = vperm.xlu0 %1255, %v176
  %v1257 = vpop.permute.xlu0 %1256
  %1259 = vset.pattern.permute.xlu0 2
  %1260 = vperm.xlu0 %1259, %v179
  %v1261 = vpop.permute.xlu0 %1260
  %1263 = vset.pattern.permute.xlu0 2
  %1264 = vperm.xlu0 %1263, %v184
  %v1265 = vpop.permute.xlu0 %1264
  %1267 = vset.pattern.permute.xlu0 2
  %1268 = vperm.xlu0 %1267, %v187
  %v1269 = vpop.permute.xlu0 %1268
  %1271 = vset.pattern.permute.xlu0 2
  %1272 = vperm.xlu0 %1271, %v192
  %v1273 = vpop.permute.xlu0 %1272
  %1275 = vset.pattern.permute.xlu0 2
  %1276 = vperm.xlu0 %1275, %v195
  %v1277 = vpop.permute.xlu0 %1276
  %1279 = vset.pattern.permute.xlu0 2
  %1280 = vperm.xlu0 %1279, %v200
  %v1281 = vpop.permute.xlu0 %1280
  %1283 = vset.pattern.permute.xlu0 2
  %1284 = vperm.xlu0 %1283, %v203
  %v1285 = vpop.permute.xlu0 %1284
  %1287 = vset.pattern.permute.xlu0 2
  %1288 = vperm.xlu0 %1287, %v208
  %v1289 = vpop.permute.xlu0 %1288
  %1291 = vset.pattern.permute.xlu0 2
  %1292 = vperm.xlu0 %1291, %v211
  %v1293 = vpop.permute.xlu0 %1292
  %1295 = vset.pattern.permute.xlu0 2
  %1296 = vperm.xlu0 %1295, %v216
  %v1297 = vpop.permute.xlu0 %1296
  %1299 = vset.pattern.permute.xlu0 2
  %1300 = vperm.xlu0 %1299, %v219
  %v1301 = vpop.permute.xlu0 %1300
  %1303 = vset.pattern.permute.xlu0 2
  %1304 = vperm.xlu0 %1303, %v224
  %v1305 = vpop.permute.xlu0 %1304
  %1307 = vset.pattern.permute.xlu0 2
  %1308 = vperm.xlu0 %1307, %v227
  %v1309 = vpop.permute.xlu0 %1308
  %v1311 = vlaneseq
  %v1312 = vshrl.u32 %v1311, 7
  %v1313 = vsub.s32 2, %v1312
  %v1314 = vrot.slane %v230, %v1313
  %v1315 = vadd.f32 %v1249, %v1314
  %v1316 = vadd.f32 %v1253, %v1314
  %v1317 = vadd.f32 %v1257, %v1314
  %v1318 = vadd.f32 %v1261, %v1314
  %v1319 = vadd.f32 %v1265, %v1314
  %v1320 = vadd.f32 %v1269, %v1314
  %v1321 = vadd.f32 %v1273, %v1314
  %v1322 = vadd.f32 %v1277, %v1314
  %v1323 = vadd.f32 %v1281, %v1314
  %v1324 = vadd.f32 %v1285, %v1314
  %v1325 = vadd.f32 %v1289, %v1314
  %v1326 = vadd.f32 %v1293, %v1314
  %v1327 = vadd.f32 %v1297, %v1314
  %v1328 = vadd.f32 %v1301, %v1314
  %v1329 = vadd.f32 %v1305, %v1314
  %v1330 = vadd.f32 %v1309, %v1314
  %v1331 = vmul.f32 %v1315, 0.2
  %v1332 = vmul.f32 %v1316, 0.2
  %v1333 = vmul.f32 %v1317, 0.2
  %v1334 = vmul.f32 %v1318, 0.2
  %v1335 = vmul.f32 %v1319, 0.2
  %v1336 = vmul.f32 %v1320, 0.2
  %v1337 = vmul.f32 %v1321, 0.2
  %v1338 = vmul.f32 %v1322, 0.2
  %v1339 = vmul.f32 %v1323, 0.2
  %v1340 = vmul.f32 %v1324, 0.2
  %v1341 = vmul.f32 %v1325, 0.2
  %v1342 = vmul.f32 %v1326, 0.2
  %v1343 = vmul.f32 %v1327, 0.2
  %v1344 = vmul.f32 %v1328, 0.2
  %v1345 = vmul.f32 %v1329, 0.2
  %v1346 = vmul.f32 %v1330, 0.2
  %v1347 = vmax.f32 %v1315, %v1331
  %v1348 = vmax.f32 %v1316, %v1332
  %v1349 = vmax.f32 %v1317, %v1333
  %v1350 = vmax.f32 %v1318, %v1334
  %v1351 = vmax.f32 %v1319, %v1335
  %v1352 = vmax.f32 %v1320, %v1336
  %v1353 = vmax.f32 %v1321, %v1337
  %v1354 = vmax.f32 %v1322, %v1338
  %v1355 = vmax.f32 %v1323, %v1339
  %v1356 = vmax.f32 %v1324, %v1340
  %v1357 = vmax.f32 %v1325, %v1341
  %v1358 = vmax.f32 %v1326, %v1342
  %v1359 = vmax.f32 %v1327, %v1343
  %v1360 = vmax.f32 %v1328, %v1344
  %v1361 = vmax.f32 %v1329, %v1345
  %v1362 = vmax.f32 %v1330, %v1346
  %v1363 = vadd.f32 %v1347, %v283
  %v1364 = vadd.f32 %v1348, %v284
  %v1365 = vadd.f32 %v1349, %v285
  %v1366 = vadd.f32 %v1350, %v286
  %v1367 = vadd.f32 %v1351, %v287
  %v1368 = vadd.f32 %v1352, %v288
  %v1369 = vadd.f32 %v1353, %v289
  %v1370 = vadd.f32 %v1354, %v290
  %v1371 = vadd.f32 %v1355, %v291
  %v1372 = vadd.f32 %v1356, %v292
  %v1373 = vadd.f32 %v1357, %v293
  %v1374 = vadd.f32 %v1358, %v294
  %v1375 = vadd.f32 %v1359, %v295
  %v1376 = vadd.f32 %v1360, %v296
  %v1377 = vadd.f32 %v1361, %v297
  %v1378 = vadd.f32 %v1362, %v298
  %1379 = vmax.xlane.f32.xlu0 %v1363
  %v1380 = vpop.xlane.xlu0 %1379
  %1381 = vmax.xlane.f32.xlu0 %v1364
  %v1382 = vpop.xlane.xlu0 %1381
  %1383 = vmax.xlane.f32.xlu0 %v1365
  %v1384 = vpop.xlane.xlu0 %1383
  %1385 = vmax.xlane.f32.xlu0 %v1366
  %v1386 = vpop.xlane.xlu0 %1385
  %1387 = vmax.xlane.f32.xlu0 %v1367
  %v1388 = vpop.xlane.xlu0 %1387
  %1389 = vmax.xlane.f32.xlu0 %v1368
  %v1390 = vpop.xlane.xlu0 %1389
  %1391 = vmax.xlane.f32.xlu0 %v1369
  %v1392 = vpop.xlane.xlu0 %1391
  %1393 = vmax.xlane.f32.xlu0 %v1370
  %v1394 = vpop.xlane.xlu0 %1393
  %1395 = vmax.xlane.f32.xlu0 %v1371
  %v1396 = vpop.xlane.xlu0 %1395
  %1397 = vmax.xlane.f32.xlu0 %v1372
  %v1398 = vpop.xlane.xlu0 %1397
  %1399 = vmax.xlane.f32.xlu0 %v1373
  %v1400 = vpop.xlane.xlu0 %1399
  %1401 = vmax.xlane.f32.xlu0 %v1374
  %v1402 = vpop.xlane.xlu0 %1401
  %1403 = vmax.xlane.f32.xlu0 %v1375
  %v1404 = vpop.xlane.xlu0 %1403
  %1405 = vmax.xlane.f32.xlu0 %v1376
  %v1406 = vpop.xlane.xlu0 %1405
  %1407 = vmax.xlane.f32.xlu0 %v1377
  %v1408 = vpop.xlane.xlu0 %1407
  %1409 = vmax.xlane.f32.xlu0 %v1378
  %v1410 = vpop.xlane.xlu0 %1409
  %v1411 = vsub.f32 %v1363, %v1380
  %v1412 = vsub.f32 %v1364, %v1382
  %v1413 = vsub.f32 %v1365, %v1384
  %v1414 = vsub.f32 %v1366, %v1386
  %v1415 = vsub.f32 %v1367, %v1388
  %v1416 = vsub.f32 %v1368, %v1390
  %v1417 = vsub.f32 %v1369, %v1392
  %v1418 = vsub.f32 %v1370, %v1394
  %v1419 = vsub.f32 %v1371, %v1396
  %v1420 = vsub.f32 %v1372, %v1398
  %v1421 = vsub.f32 %v1373, %v1400
  %v1422 = vsub.f32 %v1374, %v1402
  %v1423 = vsub.f32 %v1375, %v1404
  %v1424 = vsub.f32 %v1376, %v1406
  %v1425 = vsub.f32 %v1377, %v1408
  %v1426 = vsub.f32 %v1378, %v1410
  %v1427 = vmul.f32 %v1411, 1.442695
  %v1428 = vpow.pop %v1427
  %v1429 = vmul.f32 %v1412, 1.442695
  %v1430 = vpow.pop %v1429
  %v1431 = vmul.f32 %v1413, 1.442695
  %v1432 = vpow.pop %v1431
  %v1433 = vmul.f32 %v1414, 1.442695
  %v1434 = vpow.pop %v1433
  %v1435 = vmul.f32 %v1415, 1.442695
  %v1436 = vpow.pop %v1435
  %v1437 = vmul.f32 %v1416, 1.442695
  %v1438 = vpow.pop %v1437
  %v1439 = vmul.f32 %v1417, 1.442695
  %v1440 = vpow.pop %v1439
  %v1441 = vmul.f32 %v1418, 1.442695
  %v1442 = vpow.pop %v1441
  %v1443 = vmul.f32 %v1419, 1.442695
  %v1444 = vpow.pop %v1443
  %v1445 = vmul.f32 %v1420, 1.442695
  %v1446 = vpow.pop %v1445
  %v1447 = vmul.f32 %v1421, 1.442695
  %v1448 = vpow.pop %v1447
  %v1449 = vmul.f32 %v1422, 1.442695
  %v1450 = vpow.pop %v1449
  %v1451 = vmul.f32 %v1423, 1.442695
  %v1452 = vpow.pop %v1451
  %v1453 = vmul.f32 %v1424, 1.442695
  %v1454 = vpow.pop %v1453
  %v1455 = vmul.f32 %v1425, 1.442695
  %v1456 = vpow.pop %v1455
  %v1457 = vmul.f32 %v1426, 1.442695
  %v1458 = vpow.pop %v1457
  %1459 = vadd.xlane.f32.xlu0 %v1428
  %v1460 = vpop.xlane.xlu0 %1459
  %1461 = vadd.xlane.f32.xlu0 %v1430
  %v1462 = vpop.xlane.xlu0 %1461
  %1463 = vadd.xlane.f32.xlu0 %v1432
  %v1464 = vpop.xlane.xlu0 %1463
  %1465 = vadd.xlane.f32.xlu0 %v1434
  %v1466 = vpop.xlane.xlu0 %1465
  %1467 = vadd.xlane.f32.xlu0 %v1436
  %v1468 = vpop.xlane.xlu0 %1467
  %1469 = vadd.xlane.f32.xlu0 %v1438
  %v1470 = vpop.xlane.xlu0 %1469
  %1471 = vadd.xlane.f32.xlu0 %v1440
  %v1472 = vpop.xlane.xlu0 %1471
  %1473 = vadd.xlane.f32.xlu0 %v1442
  %v1474 = vpop.xlane.xlu0 %1473
  %1475 = vadd.xlane.f32.xlu0 %v1444
  %v1476 = vpop.xlane.xlu0 %1475
  %1477 = vadd.xlane.f32.xlu0 %v1446
  %v1478 = vpop.xlane.xlu0 %1477
  %1479 = vadd.xlane.f32.xlu0 %v1448
  %v1480 = vpop.xlane.xlu0 %1479
  %1481 = vadd.xlane.f32.xlu0 %v1450
  %v1482 = vpop.xlane.xlu0 %1481
  %1483 = vadd.xlane.f32.xlu0 %v1452
  %v1484 = vpop.xlane.xlu0 %1483
  %1485 = vadd.xlane.f32.xlu0 %v1454
  %v1486 = vpop.xlane.xlu0 %1485
  %1487 = vadd.xlane.f32.xlu0 %v1456
  %v1488 = vpop.xlane.xlu0 %1487
  %1489 = vadd.xlane.f32.xlu0 %v1458
  %v1490 = vpop.xlane.xlu0 %1489
  %v1491 = vrcp.pop %v1460
  %v1492 = vrcp.pop %v1462
  %v1493 = vrcp.pop %v1464
  %v1494 = vrcp.pop %v1466
  %v1495 = vrcp.pop %v1468
  %v1496 = vrcp.pop %v1470
  %v1497 = vrcp.pop %v1472
  %v1498 = vrcp.pop %v1474
  %v1499 = vrcp.pop %v1476
  %v1500 = vrcp.pop %v1478
  %v1501 = vrcp.pop %v1480
  %v1502 = vrcp.pop %v1482
  %v1503 = vrcp.pop %v1484
  %v1504 = vrcp.pop %v1486
  %v1505 = vrcp.pop %v1488
  %v1506 = vrcp.pop %v1490
  %v1507 = vpack.c.bf16 %v1430, %v1428
  %v1508 = vpack.c.bf16 %v1434, %v1432
  %v1509 = vpack.c.bf16 %v1438, %v1436
  %v1510 = vpack.c.bf16 %v1442, %v1440
  %v1511 = vpack.c.bf16 %v1446, %v1444
  %v1512 = vpack.c.bf16 %v1450, %v1448
  %v1513 = vpack.c.bf16 %v1454, %v1452
  %v1514 = vpack.c.bf16 %v1458, %v1456
  %1515 = vrot.lane.b32.xlu0 %v615, 64
  %v1516 = vpop.permute.xlu0 %1515
  %1517 = vrot.lane.b32.xlu0 %v616, 64
  %v1518 = vpop.permute.xlu0 %1517
  %1519 = vrot.lane.b32.xlu0 %v617, 64
  %v1520 = vpop.permute.xlu0 %1519
  %1521 = vrot.lane.b32.xlu0 %v618, 64
  %v1522 = vpop.permute.xlu0 %1521
  %1523 = vrot.lane.b32.xlu0 %v619, 64
  %v1524 = vpop.permute.xlu0 %1523
  %1525 = vrot.lane.b32.xlu0 %v620, 64
  %v1526 = vpop.permute.xlu0 %1525
  %1527 = vrot.lane.b32.xlu0 %v621, 64
  %v1528 = vpop.permute.xlu0 %1527
  %1529 = vrot.lane.b32.xlu0 %v622, 64
  %v1530 = vpop.permute.xlu0 %1529
  %1539 = vmatprep.subr.bf16.mxu0 0
  %1540 = vmatpush1.bf16.msra.mxu0 %v1516
  %1541 = vmatprep.subr.bf16.mxu0 0
  %1542 = vmatpush1.bf16.msra.mxu0 %v1518
  %1543 = vmatprep.subr.bf16.mxu0 0
  %1544 = vmatpush1.bf16.msra.mxu0 %v1520
  %1545 = vmatprep.subr.bf16.mxu0 0
  %1546 = vmatpush1.bf16.msra.mxu0 %v1522
  %1547 = vmatprep.subr.bf16.mxu0 0
  %1548 = vmatpush1.bf16.msra.mxu0 %v1524
  %1549 = vmatprep.subr.bf16.mxu0 0
  %1550 = vmatpush1.bf16.msra.mxu0 %v1526
  %1551 = vmatprep.subr.bf16.mxu0 0
  %1552 = vmatpush1.bf16.msra.mxu0 %v1528
  %1553 = vmatprep.subr.bf16.mxu0 0
  %1554 = vmatpush1.bf16.msra.mxu0 %v1530
  %1555 = vmatprep.subr.bf16.mxu0 0
  %1556 = vmatpush1.bf16.msra.mxu0 0
  %1557 = vmatprep.subr.bf16.mxu0 0
  %1558 = vmatpush1.bf16.msra.mxu0 0
  %1559 = vmatprep.subr.bf16.mxu0 0
  %1560 = vmatpush1.bf16.msra.mxu0 0
  %1561 = vmatprep.subr.bf16.mxu0 0
  %1562 = vmatpush1.bf16.msra.mxu0 0
  %1563 = vmatprep.subr.bf16.mxu0 0
  %1564 = vmatpush1.bf16.msra.mxu0 0
  %1565 = vmatprep.subr.bf16.mxu0 0
  %1566 = vmatpush1.bf16.msra.mxu0 0
  %1567 = vmatprep.subr.bf16.mxu0 0
  %1568 = vmatpush1.bf16.msra.mxu0 0
  %1569 = vmatprep.subr.bf16.mxu0 0
  %1570 = vmatpush1.bf16.msra.mxu0 0
  %1571 = vmatprep.mubr.bf16.mxu0 0
  %1572 = vmatmul.mubr.bf16.gmra.mrb[0].mxu0 %v1507
  %v1573 = vpop.f32.mrb[0].mxu0
  %v1574 = vadd.f32 0.0, %v1573
  %v1575 = vpop.f32.mrb[0].mxu0
  %v1576 = vpop.f32.mrb[0].mxu0
  %v1577 = vadd.f32 0.0, %v1576
  %v1578 = vpop.f32.mrb[0].mxu0
  %1579 = vmatprep.mubr.bf16.mxu0 0
  %1580 = vmatmul.mubr.bf16.gmra.mrb[0].mxu0 %v1508
  %v1581 = vpop.f32.mrb[0].mxu0
  %v1582 = vadd.f32 0.0, %v1581
  %v1583 = vpop.f32.mrb[0].mxu0
  %v1584 = vpop.f32.mrb[0].mxu0
  %v1585 = vadd.f32 0.0, %v1584
  %v1586 = vpop.f32.mrb[0].mxu0
  %1587 = vmatprep.mubr.bf16.mxu0 0
  %1588 = vmatmul.mubr.bf16.gmra.mrb[0].mxu0 %v1509
  %v1589 = vpop.f32.mrb[0].mxu0
  %v1590 = vadd.f32 0.0, %v1589
  %v1591 = vpop.f32.mrb[0].mxu0
  %v1592 = vpop.f32.mrb[0].mxu0
  %v1593 = vadd.f32 0.0, %v1592
  %v1594 = vpop.f32.mrb[0].mxu0
  %1595 = vmatprep.mubr.bf16.mxu0 0
  %1596 = vmatmul.mubr.bf16.gmra.mrb[0].mxu0 %v1510
  %v1597 = vpop.f32.mrb[0].mxu0
  %v1598 = vadd.f32 0.0, %v1597
  %v1599 = vpop.f32.mrb[0].mxu0
  %v1600 = vpop.f32.mrb[0].mxu0
  %v1601 = vadd.f32 0.0, %v1600
  %v1602 = vpop.f32.mrb[0].mxu0
  %1603 = vmatprep.mubr.bf16.mxu0 0
  %1604 = vmatmul.mubr.bf16.gmra.mrb[0].mxu0 %v1511
  %v1605 = vpop.f32.mrb[0].mxu0
  %v1606 = vadd.f32 0.0, %v1605
  %v1607 = vpop.f32.mrb[0].mxu0
  %v1608 = vpop.f32.mrb[0].mxu0
  %v1609 = vadd.f32 0.0, %v1608
  %v1610 = vpop.f32.mrb[0].mxu0
  %1611 = vmatprep.mubr.bf16.mxu0 0
  %1612 = vmatmul.mubr.bf16.gmra.mrb[0].mxu0 %v1512
  %v1613 = vpop.f32.mrb[0].mxu0
  %v1614 = vadd.f32 0.0, %v1613
  %v1615 = vpop.f32.mrb[0].mxu0
  %v1616 = vpop.f32.mrb[0].mxu0
  %v1617 = vadd.f32 0.0, %v1616
  %v1618 = vpop.f32.mrb[0].mxu0
  %1619 = vmatprep.mubr.bf16.mxu0 0
  %1620 = vmatmul.mubr.bf16.gmra.mrb[0].mxu0 %v1513
  %v1621 = vpop.f32.mrb[0].mxu0
  %v1622 = vadd.f32 0.0, %v1621
  %v1623 = vpop.f32.mrb[0].mxu0
  %v1624 = vpop.f32.mrb[0].mxu0
  %v1625 = vadd.f32 0.0, %v1624
  %v1626 = vpop.f32.mrb[0].mxu0
  %1627 = vmatprep.mubr.bf16.mxu0 0
  %1628 = vmatmul.mubr.bf16.gmra.mrb[0].mxu0 %v1514
  %v1629 = vpop.f32.mrb[0].mxu0
  %v1630 = vadd.f32 0.0, %v1629
  %v1631 = vpop.f32.mrb[0].mxu0
  %v1632 = vpop.f32.mrb[0].mxu0
  %v1633 = vadd.f32 0.0, %v1632
  %v1634 = vpop.f32.mrb[0].mxu0
  %1635 = vdwg.mxu0
  %v1636 = vmul.f32 %v1574, %v1491
  %v1637 = vmul.f32 %v1577, %v1492
  %v1638 = vmul.f32 %v1582, %v1493
  %v1639 = vmul.f32 %v1585, %v1494
  %v1640 = vmul.f32 %v1590, %v1495
  %v1641 = vmul.f32 %v1593, %v1496
  %v1642 = vmul.f32 %v1598, %v1497
  %v1643 = vmul.f32 %v1601, %v1498
  %v1644 = vmul.f32 %v1606, %v1499
  %v1645 = vmul.f32 %v1609, %v1500
  %v1646 = vmul.f32 %v1614, %v1501
  %v1647 = vmul.f32 %v1617, %v1502
  %v1648 = vmul.f32 %v1622, %v1503
  %v1649 = vmul.f32 %v1625, %v1504
  %v1650 = vmul.f32 %v1630, %v1505
  %v1651 = vmul.f32 %v1633, %v1506
  %1668 = vrot.lane.b32.xlu0 %v1636, 64
  %v1669 = vpop.permute.xlu0 %1668
  %1670 = vrot.lane.b32.xlu0 %v1637, 64
  %v1671 = vpop.permute.xlu0 %1670
  %1672 = vrot.lane.b32.xlu0 %v1638, 64
  %v1673 = vpop.permute.xlu0 %1672
  %1674 = vrot.lane.b32.xlu0 %v1639, 64
  %v1675 = vpop.permute.xlu0 %1674
  %1676 = vrot.lane.b32.xlu0 %v1640, 64
  %v1677 = vpop.permute.xlu0 %1676
  %1678 = vrot.lane.b32.xlu0 %v1641, 64
  %v1679 = vpop.permute.xlu0 %1678
  %1680 = vrot.lane.b32.xlu0 %v1642, 64
  %v1681 = vpop.permute.xlu0 %1680
  %1682 = vrot.lane.b32.xlu0 %v1643, 64
  %v1683 = vpop.permute.xlu0 %1682
  %1684 = vrot.lane.b32.xlu0 %v1644, 64
  %v1685 = vpop.permute.xlu0 %1684
  %1686 = vrot.lane.b32.xlu0 %v1645, 64
  %v1687 = vpop.permute.xlu0 %1686
  %1688 = vrot.lane.b32.xlu0 %v1646, 64
  %v1689 = vpop.permute.xlu0 %1688
  %1690 = vrot.lane.b32.xlu0 %v1647, 64
  %v1691 = vpop.permute.xlu0 %1690
  %1692 = vrot.lane.b32.xlu0 %v1648, 64
  %v1693 = vpop.permute.xlu0 %1692
  %1694 = vrot.lane.b32.xlu0 %v1649, 64
  %v1695 = vpop.permute.xlu0 %1694
  %1696 = vrot.lane.b32.xlu0 %v1650, 64
  %v1697 = vpop.permute.xlu0 %1696
  %1698 = vrot.lane.b32.xlu0 %v1651, 64
  %v1699 = vpop.permute.xlu0 %1698
  %vm1716 = vcmask 785920
  %1717 = vst.msk [vmem:[%s6] sm:$0xff] %vm1716, %v1669
  %1718 = vst.msk [vmem:[%s6 + $0x8] sm:$0xff] %vm1716, %v1671
  %1719 = vst.msk [vmem:[%s6 + $0x10] sm:$0xff] %vm1716, %v1673
  %1720 = vst.msk [vmem:[%s6 + $0x18] sm:$0xff] %vm1716, %v1675
  %1721 = vst.msk [vmem:[%s6 + $0x20] sm:$0xff] %vm1716, %v1677
  %1722 = vst.msk [vmem:[%s6 + $0x28] sm:$0xff] %vm1716, %v1679
  %1723 = vst.msk [vmem:[%s6 + $0x30] sm:$0xff] %vm1716, %v1681
  %1724 = vst.msk [vmem:[%s6 + $0x38] sm:$0xff] %vm1716, %v1683
  %1725 = vst.msk [vmem:[%s6 + $0x40] sm:$0xff] %vm1716, %v1685
  %1726 = vst.msk [vmem:[%s6 + $0x48] sm:$0xff] %vm1716, %v1687
  %1727 = vst.msk [vmem:[%s6 + $0x50] sm:$0xff] %vm1716, %v1689
  %1728 = vst.msk [vmem:[%s6 + $0x58] sm:$0xff] %vm1716, %v1691
  %1729 = vst.msk [vmem:[%s6 + $0x60] sm:$0xff] %vm1716, %v1693
  %1730 = vst.msk [vmem:[%s6 + $0x68] sm:$0xff] %vm1716, %v1695
  %1731 = vst.msk [vmem:[%s6 + $0x70] sm:$0xff] %vm1716, %v1697
  %1732 = vst.msk [vmem:[%s6 + $0x78] sm:$0xff] %vm1716, %v1699
  %1733 = vset.pattern.permute.xlu0 3
  %1734 = vperm.xlu0 %1733, %v168
  %v1735 = vpop.permute.xlu0 %1734
  %1737 = vset.pattern.permute.xlu0 3
  %1738 = vperm.xlu0 %1737, %v171
  %v1739 = vpop.permute.xlu0 %1738
  %1741 = vset.pattern.permute.xlu0 3
  %1742 = vperm.xlu0 %1741, %v176
  %v1743 = vpop.permute.xlu0 %1742
  %1745 = vset.pattern.permute.xlu0 3
  %1746 = vperm.xlu0 %1745, %v179
  %v1747 = vpop.permute.xlu0 %1746
  %1749 = vset.pattern.permute.xlu0 3
  %1750 = vperm.xlu0 %1749, %v184
  %v1751 = vpop.permute.xlu0 %1750
  %1753 = vset.pattern.permute.xlu0 3
  %1754 = vperm.xlu0 %1753, %v187
  %v1755 = vpop.permute.xlu0 %1754
  %1757 = vset.pattern.permute.xlu0 3
  %1758 = vperm.xlu0 %1757, %v192
  %v1759 = vpop.permute.xlu0 %1758
  %1761 = vset.pattern.permute.xlu0 3
  %1762 = vperm.xlu0 %1761, %v195
  %v1763 = vpop.permute.xlu0 %1762
  %1765 = vset.pattern.permute.xlu0 3
  %1766 = vperm.xlu0 %1765, %v200
  %v1767 = vpop.permute.xlu0 %1766
  %1769 = vset.pattern.permute.xlu0 3
  %1770 = vperm.xlu0 %1769, %v203
  %v1771 = vpop.permute.xlu0 %1770
  %1773 = vset.pattern.permute.xlu0 3
  %1774 = vperm.xlu0 %1773, %v208
  %v1775 = vpop.permute.xlu0 %1774
  %1777 = vset.pattern.permute.xlu0 3
  %1778 = vperm.xlu0 %1777, %v211
  %v1779 = vpop.permute.xlu0 %1778
  %1781 = vset.pattern.permute.xlu0 3
  %1782 = vperm.xlu0 %1781, %v216
  %v1783 = vpop.permute.xlu0 %1782
  %1785 = vset.pattern.permute.xlu0 3
  %1786 = vperm.xlu0 %1785, %v219
  %v1787 = vpop.permute.xlu0 %1786
  %1789 = vset.pattern.permute.xlu0 3
  %1790 = vperm.xlu0 %1789, %v224
  %v1791 = vpop.permute.xlu0 %1790
  %1793 = vset.pattern.permute.xlu0 3
  %1794 = vperm.xlu0 %1793, %v227
  %v1795 = vpop.permute.xlu0 %1794
  %v1797 = vlaneseq
  %v1798 = vshrl.u32 %v1797, 7
  %v1799 = vsub.s32 3, %v1798
  %v1800 = vrot.slane %v230, %v1799
  %v1801 = vadd.f32 %v1735, %v1800
  %v1802 = vadd.f32 %v1739, %v1800
  %v1803 = vadd.f32 %v1743, %v1800
  %v1804 = vadd.f32 %v1747, %v1800
  %v1805 = vadd.f32 %v1751, %v1800
  %v1806 = vadd.f32 %v1755, %v1800
  %v1807 = vadd.f32 %v1759, %v1800
  %v1808 = vadd.f32 %v1763, %v1800
  %v1809 = vadd.f32 %v1767, %v1800
  %v1810 = vadd.f32 %v1771, %v1800
  %v1811 = vadd.f32 %v1775, %v1800
  %v1812 = vadd.f32 %v1779, %v1800
  %v1813 = vadd.f32 %v1783, %v1800
  %v1814 = vadd.f32 %v1787, %v1800
  %v1815 = vadd.f32 %v1791, %v1800
  %v1816 = vadd.f32 %v1795, %v1800
  %v1817 = vmul.f32 %v1801, 0.2
  %v1818 = vmul.f32 %v1802, 0.2
  %v1819 = vmul.f32 %v1803, 0.2
  %v1820 = vmul.f32 %v1804, 0.2
  %v1821 = vmul.f32 %v1805, 0.2
  %v1822 = vmul.f32 %v1806, 0.2
  %v1823 = vmul.f32 %v1807, 0.2
  %v1824 = vmul.f32 %v1808, 0.2
  %v1825 = vmul.f32 %v1809, 0.2
  %v1826 = vmul.f32 %v1810, 0.2
  %v1827 = vmul.f32 %v1811, 0.2
  %v1828 = vmul.f32 %v1812, 0.2
  %v1829 = vmul.f32 %v1813, 0.2
  %v1830 = vmul.f32 %v1814, 0.2
  %v1831 = vmul.f32 %v1815, 0.2
  %v1832 = vmul.f32 %v1816, 0.2
  %v1833 = vmax.f32 %v1801, %v1817
  %v1834 = vmax.f32 %v1802, %v1818
  %v1835 = vmax.f32 %v1803, %v1819
  %v1836 = vmax.f32 %v1804, %v1820
  %v1837 = vmax.f32 %v1805, %v1821
  %v1838 = vmax.f32 %v1806, %v1822
  %v1839 = vmax.f32 %v1807, %v1823
  %v1840 = vmax.f32 %v1808, %v1824
  %v1841 = vmax.f32 %v1809, %v1825
  %v1842 = vmax.f32 %v1810, %v1826
  %v1843 = vmax.f32 %v1811, %v1827
  %v1844 = vmax.f32 %v1812, %v1828
  %v1845 = vmax.f32 %v1813, %v1829
  %v1846 = vmax.f32 %v1814, %v1830
  %v1847 = vmax.f32 %v1815, %v1831
  %v1848 = vmax.f32 %v1816, %v1832
  %v1849 = vadd.f32 %v1833, %v283
  %v1850 = vadd.f32 %v1834, %v284
  %v1851 = vadd.f32 %v1835, %v285
  %v1852 = vadd.f32 %v1836, %v286
  %v1853 = vadd.f32 %v1837, %v287
  %v1854 = vadd.f32 %v1838, %v288
  %v1855 = vadd.f32 %v1839, %v289
  %v1856 = vadd.f32 %v1840, %v290
  %v1857 = vadd.f32 %v1841, %v291
  %v1858 = vadd.f32 %v1842, %v292
  %v1859 = vadd.f32 %v1843, %v293
  %v1860 = vadd.f32 %v1844, %v294
  %v1861 = vadd.f32 %v1845, %v295
  %v1862 = vadd.f32 %v1846, %v296
  %v1863 = vadd.f32 %v1847, %v297
  %v1864 = vadd.f32 %v1848, %v298
  %1865 = vmax.xlane.f32.xlu0 %v1849
  %v1866 = vpop.xlane.xlu0 %1865
  %1867 = vmax.xlane.f32.xlu0 %v1850
  %v1868 = vpop.xlane.xlu0 %1867
  %1869 = vmax.xlane.f32.xlu0 %v1851
  %v1870 = vpop.xlane.xlu0 %1869
  %1871 = vmax.xlane.f32.xlu0 %v1852
  %v1872 = vpop.xlane.xlu0 %1871
  %1873 = vmax.xlane.f32.xlu0 %v1853
  %v1874 = vpop.xlane.xlu0 %1873
  %1875 = vmax.xlane.f32.xlu0 %v1854
  %v1876 = vpop.xlane.xlu0 %1875
  %1877 = vmax.xlane.f32.xlu0 %v1855
  %v1878 = vpop.xlane.xlu0 %1877
  %1879 = vmax.xlane.f32.xlu0 %v1856
  %v1880 = vpop.xlane.xlu0 %1879
  %1881 = vmax.xlane.f32.xlu0 %v1857
  %v1882 = vpop.xlane.xlu0 %1881
  %1883 = vmax.xlane.f32.xlu0 %v1858
  %v1884 = vpop.xlane.xlu0 %1883
  %1885 = vmax.xlane.f32.xlu0 %v1859
  %v1886 = vpop.xlane.xlu0 %1885
  %1887 = vmax.xlane.f32.xlu0 %v1860
  %v1888 = vpop.xlane.xlu0 %1887
  %1889 = vmax.xlane.f32.xlu0 %v1861
  %v1890 = vpop.xlane.xlu0 %1889
  %1891 = vmax.xlane.f32.xlu0 %v1862
  %v1892 = vpop.xlane.xlu0 %1891
  %1893 = vmax.xlane.f32.xlu0 %v1863
  %v1894 = vpop.xlane.xlu0 %1893
  %1895 = vmax.xlane.f32.xlu0 %v1864
  %v1896 = vpop.xlane.xlu0 %1895
  %v1897 = vsub.f32 %v1849, %v1866
  %v1898 = vsub.f32 %v1850, %v1868
  %v1899 = vsub.f32 %v1851, %v1870
  %v1900 = vsub.f32 %v1852, %v1872
  %v1901 = vsub.f32 %v1853, %v1874
  %v1902 = vsub.f32 %v1854, %v1876
  %v1903 = vsub.f32 %v1855, %v1878
  %v1904 = vsub.f32 %v1856, %v1880
  %v1905 = vsub.f32 %v1857, %v1882
  %v1906 = vsub.f32 %v1858, %v1884
  %v1907 = vsub.f32 %v1859, %v1886
  %v1908 = vsub.f32 %v1860, %v1888
  %v1909 = vsub.f32 %v1861, %v1890
  %v1910 = vsub.f32 %v1862, %v1892
  %v1911 = vsub.f32 %v1863, %v1894
  %v1912 = vsub.f32 %v1864, %v1896
  %v1913 = vmul.f32 %v1897, 1.442695
  %v1914 = vpow.pop %v1913
  %v1915 = vmul.f32 %v1898, 1.442695
  %v1916 = vpow.pop %v1915
  %v1917 = vmul.f32 %v1899, 1.442695
  %v1918 = vpow.pop %v1917
  %v1919 = vmul.f32 %v1900, 1.442695
  %v1920 = vpow.pop %v1919
  %v1921 = vmul.f32 %v1901, 1.442695
  %v1922 = vpow.pop %v1921
  %v1923 = vmul.f32 %v1902, 1.442695
  %v1924 = vpow.pop %v1923
  %v1925 = vmul.f32 %v1903, 1.442695
  %v1926 = vpow.pop %v1925
  %v1927 = vmul.f32 %v1904, 1.442695
  %v1928 = vpow.pop %v1927
  %v1929 = vmul.f32 %v1905, 1.442695
  %v1930 = vpow.pop %v1929
  %v1931 = vmul.f32 %v1906, 1.442695
  %v1932 = vpow.pop %v1931
  %v1933 = vmul.f32 %v1907, 1.442695
  %v1934 = vpow.pop %v1933
  %v1935 = vmul.f32 %v1908, 1.442695
  %v1936 = vpow.pop %v1935
  %v1937 = vmul.f32 %v1909, 1.442695
  %v1938 = vpow.pop %v1937
  %v1939 = vmul.f32 %v1910, 1.442695
  %v1940 = vpow.pop %v1939
  %v1941 = vmul.f32 %v1911, 1.442695
  %v1942 = vpow.pop %v1941
  %v1943 = vmul.f32 %v1912, 1.442695
  %v1944 = vpow.pop %v1943
  %1945 = vadd.xlane.f32.xlu0 %v1914
  %v1946 = vpop.xlane.xlu0 %1945
  %1947 = vadd.xlane.f32.xlu0 %v1916
  %v1948 = vpop.xlane.xlu0 %1947
  %1949 = vadd.xlane.f32.xlu0 %v1918
  %v1950 = vpop.xlane.xlu0 %1949
  %1951 = vadd.xlane.f32.xlu0 %v1920
  %v1952 = vpop.xlane.xlu0 %1951
  %1953 = vadd.xlane.f32.xlu0 %v1922
  %v1954 = vpop.xlane.xlu0 %1953
  %1955 = vadd.xlane.f32.xlu0 %v1924
  %v1956 = vpop.xlane.xlu0 %1955
  %1957 = vadd.xlane.f32.xlu0 %v1926
  %v1958 = vpop.xlane.xlu0 %1957
  %1959 = vadd.xlane.f32.xlu0 %v1928
  %v1960 = vpop.xlane.xlu0 %1959
  %1961 = vadd.xlane.f32.xlu0 %v1930
  %v1962 = vpop.xlane.xlu0 %1961
  %1963 = vadd.xlane.f32.xlu0 %v1932
  %v1964 = vpop.xlane.xlu0 %1963
  %1965 = vadd.xlane.f32.xlu0 %v1934
  %v1966 = vpop.xlane.xlu0 %1965
  %1967 = vadd.xlane.f32.xlu0 %v1936
  %v1968 = vpop.xlane.xlu0 %1967
  %1969 = vadd.xlane.f32.xlu0 %v1938
  %v1970 = vpop.xlane.xlu0 %1969
  %1971 = vadd.xlane.f32.xlu0 %v1940
  %v1972 = vpop.xlane.xlu0 %1971
  %1973 = vadd.xlane.f32.xlu0 %v1942
  %v1974 = vpop.xlane.xlu0 %1973
  %1975 = vadd.xlane.f32.xlu0 %v1944
  %v1976 = vpop.xlane.xlu0 %1975
  %v1977 = vrcp.pop %v1946
  %v1978 = vrcp.pop %v1948
  %v1979 = vrcp.pop %v1950
  %v1980 = vrcp.pop %v1952
  %v1981 = vrcp.pop %v1954
  %v1982 = vrcp.pop %v1956
  %v1983 = vrcp.pop %v1958
  %v1984 = vrcp.pop %v1960
  %v1985 = vrcp.pop %v1962
  %v1986 = vrcp.pop %v1964
  %v1987 = vrcp.pop %v1966
  %v1988 = vrcp.pop %v1968
  %v1989 = vrcp.pop %v1970
  %v1990 = vrcp.pop %v1972
  %v1991 = vrcp.pop %v1974
  %v1992 = vrcp.pop %v1976
  %v1993 = vpack.c.bf16 %v1916, %v1914
  %v1994 = vpack.c.bf16 %v1920, %v1918
  %v1995 = vpack.c.bf16 %v1924, %v1922
  %v1996 = vpack.c.bf16 %v1928, %v1926
  %v1997 = vpack.c.bf16 %v1932, %v1930
  %v1998 = vpack.c.bf16 %v1936, %v1934
  %v1999 = vpack.c.bf16 %v1940, %v1938
  %v2000 = vpack.c.bf16 %v1944, %v1942
  %2001 = vrot.lane.b32.xlu0 %v615, 32
  %v2002 = vpop.permute.xlu0 %2001
  %2003 = vrot.lane.b32.xlu0 %v616, 32
  %v2004 = vpop.permute.xlu0 %2003
  %2005 = vrot.lane.b32.xlu0 %v617, 32
  %v2006 = vpop.permute.xlu0 %2005
  %2007 = vrot.lane.b32.xlu0 %v618, 32
  %v2008 = vpop.permute.xlu0 %2007
  %2009 = vrot.lane.b32.xlu0 %v619, 32
  %v2010 = vpop.permute.xlu0 %2009
  %2011 = vrot.lane.b32.xlu0 %v620, 32
  %v2012 = vpop.permute.xlu0 %2011
  %2013 = vrot.lane.b32.xlu0 %v621, 32
  %v2014 = vpop.permute.xlu0 %2013
  %2015 = vrot.lane.b32.xlu0 %v622, 32
  %v2016 = vpop.permute.xlu0 %2015
  %2025 = vmatprep.subr.bf16.mxu0 0
  %2026 = vmatpush1.bf16.msra.mxu0 %v2002
  %2027 = vmatprep.subr.bf16.mxu0 0
  %2028 = vmatpush1.bf16.msra.mxu0 %v2004
  %2029 = vmatprep.subr.bf16.mxu0 0
  %2030 = vmatpush1.bf16.msra.mxu0 %v2006
  %2031 = vmatprep.subr.bf16.mxu0 0
  %2032 = vmatpush1.bf16.msra.mxu0 %v2008
  %2033 = vmatprep.subr.bf16.mxu0 0
  %2034 = vmatpush1.bf16.msra.mxu0 %v2010
  %2035 = vmatprep.subr.bf16.mxu0 0
  %2036 = vmatpush1.bf16.msra.mxu0 %v2012
  %2037 = vmatprep.subr.bf16.mxu0 0
  %2038 = vmatpush1.bf16.msra.mxu0 %v2014
  %2039 = vmatprep.subr.bf16.mxu0 0
  %2040 = vmatpush1.bf16.msra.mxu0 %v2016
  %2041 = vmatprep.subr.bf16.mxu0 0
  %2042 = vmatpush1.bf16.msra.mxu0 0
  %2043 = vmatprep.subr.bf16.mxu0 0
  %2044 = vmatpush1.bf16.msra.mxu0 0
  %2045 = vmatprep.subr.bf16.mxu0 0
  %2046 = vmatpush1.bf16.msra.mxu0 0
  %2047 = vmatprep.subr.bf16.mxu0 0
  %2048 = vmatpush1.bf16.msra.mxu0 0
  %2049 = vmatprep.subr.bf16.mxu0 0
  %2050 = vmatpush1.bf16.msra.mxu0 0
  %2051 = vmatprep.subr.bf16.mxu0 0
  %2052 = vmatpush1.bf16.msra.mxu0 0
  %2053 = vmatprep.subr.bf16.mxu0 0
  %2054 = vmatpush1.bf16.msra.mxu0 0
  %2055 = vmatprep.subr.bf16.mxu0 0
  %2056 = vmatpush1.bf16.msra.mxu0 0
  %2057 = vmatprep.mubr.bf16.mxu0 0
  %2058 = vmatmul.mubr.bf16.gmra.mrb[0].mxu0 %v1993
  %v2059 = vpop.f32.mrb[0].mxu0
  %v2060 = vadd.f32 0.0, %v2059
  %v2061 = vpop.f32.mrb[0].mxu0
  %v2062 = vpop.f32.mrb[0].mxu0
  %v2063 = vadd.f32 0.0, %v2062
  %v2064 = vpop.f32.mrb[0].mxu0
  %2065 = vmatprep.mubr.bf16.mxu0 0
  %2066 = vmatmul.mubr.bf16.gmra.mrb[0].mxu0 %v1994
  %v2067 = vpop.f32.mrb[0].mxu0
  %v2068 = vadd.f32 0.0, %v2067
  %v2069 = vpop.f32.mrb[0].mxu0
  %v2070 = vpop.f32.mrb[0].mxu0
  %v2071 = vadd.f32 0.0, %v2070
  %v2072 = vpop.f32.mrb[0].mxu0
  %2073 = vmatprep.mubr.bf16.mxu0 0
  %2074 = vmatmul.mubr.bf16.gmra.mrb[0].mxu0 %v1995
  %v2075 = vpop.f32.mrb[0].mxu0
  %v2076 = vadd.f32 0.0, %v2075
  %v2077 = vpop.f32.mrb[0].mxu0
  %v2078 = vpop.f32.mrb[0].mxu0
  %v2079 = vadd.f32 0.0, %v2078
  %v2080 = vpop.f32.mrb[0].mxu0
  %2081 = vmatprep.mubr.bf16.mxu0 0
  %2082 = vmatmul.mubr.bf16.gmra.mrb[0].mxu0 %v1996
  %v2083 = vpop.f32.mrb[0].mxu0
  %v2084 = vadd.f32 0.0, %v2083
  %v2085 = vpop.f32.mrb[0].mxu0
  %v2086 = vpop.f32.mrb[0].mxu0
  %v2087 = vadd.f32 0.0, %v2086
  %v2088 = vpop.f32.mrb[0].mxu0
  %2089 = vmatprep.mubr.bf16.mxu0 0
  %2090 = vmatmul.mubr.bf16.gmra.mrb[0].mxu0 %v1997
  %v2091 = vpop.f32.mrb[0].mxu0
  %v2092 = vadd.f32 0.0, %v2091
  %v2093 = vpop.f32.mrb[0].mxu0
  %v2094 = vpop.f32.mrb[0].mxu0
  %v2095 = vadd.f32 0.0, %v2094
  %v2096 = vpop.f32.mrb[0].mxu0
  %2097 = vmatprep.mubr.bf16.mxu0 0
  %2098 = vmatmul.mubr.bf16.gmra.mrb[0].mxu0 %v1998
  %v2099 = vpop.f32.mrb[0].mxu0
  %v2100 = vadd.f32 0.0, %v2099
  %v2101 = vpop.f32.mrb[0].mxu0
  %v2102 = vpop.f32.mrb[0].mxu0
  %v2103 = vadd.f32 0.0, %v2102
  %v2104 = vpop.f32.mrb[0].mxu0
  %2105 = vmatprep.mubr.bf16.mxu0 0
  %2106 = vmatmul.mubr.bf16.gmra.mrb[0].mxu0 %v1999
  %v2107 = vpop.f32.mrb[0].mxu0
  %v2108 = vadd.f32 0.0, %v2107
  %v2109 = vpop.f32.mrb[0].mxu0
  %v2110 = vpop.f32.mrb[0].mxu0
  %v2111 = vadd.f32 0.0, %v2110
  %v2112 = vpop.f32.mrb[0].mxu0
  %2113 = vmatprep.mubr.bf16.mxu0 0
  %2114 = vmatmul.mubr.bf16.gmra.mrb[0].mxu0 %v2000
  %v2115 = vpop.f32.mrb[0].mxu0
  %v2116 = vadd.f32 0.0, %v2115
  %v2117 = vpop.f32.mrb[0].mxu0
  %v2118 = vpop.f32.mrb[0].mxu0
  %v2119 = vadd.f32 0.0, %v2118
  %v2120 = vpop.f32.mrb[0].mxu0
  %2121 = vdwg.mxu0
  %v2122 = vmul.f32 %v2060, %v1977
  %v2123 = vmul.f32 %v2063, %v1978
  %v2124 = vmul.f32 %v2068, %v1979
  %v2125 = vmul.f32 %v2071, %v1980
  %v2126 = vmul.f32 %v2076, %v1981
  %v2127 = vmul.f32 %v2079, %v1982
  %v2128 = vmul.f32 %v2084, %v1983
  %v2129 = vmul.f32 %v2087, %v1984
  %v2130 = vmul.f32 %v2092, %v1985
  %v2131 = vmul.f32 %v2095, %v1986
  %v2132 = vmul.f32 %v2100, %v1987
  %v2133 = vmul.f32 %v2103, %v1988
  %v2134 = vmul.f32 %v2108, %v1989
  %v2135 = vmul.f32 %v2111, %v1990
  %v2136 = vmul.f32 %v2116, %v1991
  %v2137 = vmul.f32 %v2119, %v1992
  %2154 = vrot.lane.b32.xlu0 %v2122, 96
  %v2155 = vpop.permute.xlu0 %2154
  %2156 = vrot.lane.b32.xlu0 %v2123, 96
  %v2157 = vpop.permute.xlu0 %2156
  %2158 = vrot.lane.b32.xlu0 %v2124, 96
  %v2159 = vpop.permute.xlu0 %2158
  %2160 = vrot.lane.b32.xlu0 %v2125, 96
  %v2161 = vpop.permute.xlu0 %2160
  %2162 = vrot.lane.b32.xlu0 %v2126, 96
  %v2163 = vpop.permute.xlu0 %2162
  %2164 = vrot.lane.b32.xlu0 %v2127, 96
  %v2165 = vpop.permute.xlu0 %2164
  %2166 = vrot.lane.b32.xlu0 %v2128, 96
  %v2167 = vpop.permute.xlu0 %2166
  %2168 = vrot.lane.b32.xlu0 %v2129, 96
  %v2169 = vpop.permute.xlu0 %2168
  %2170 = vrot.lane.b32.xlu0 %v2130, 96
  %v2171 = vpop.permute.xlu0 %2170
  %2172 = vrot.lane.b32.xlu0 %v2131, 96
  %v2173 = vpop.permute.xlu0 %2172
  %2174 = vrot.lane.b32.xlu0 %v2132, 96
  %v2175 = vpop.permute.xlu0 %2174
  %2176 = vrot.lane.b32.xlu0 %v2133, 96
  %v2177 = vpop.permute.xlu0 %2176
  %2178 = vrot.lane.b32.xlu0 %v2134, 96
  %v2179 = vpop.permute.xlu0 %2178
  %2180 = vrot.lane.b32.xlu0 %v2135, 96
  %v2181 = vpop.permute.xlu0 %2180
  %2182 = vrot.lane.b32.xlu0 %v2136, 96
  %v2183 = vpop.permute.xlu0 %2182
  %2184 = vrot.lane.b32.xlu0 %v2137, 96
  %v2185 = vpop.permute.xlu0 %2184
  %vm2202 = vcmask 1048320
  %2203 = vst.msk [vmem:[%s6] sm:$0xff] %vm2202, %v2155
  %2204 = vst.msk [vmem:[%s6 + $0x8] sm:$0xff] %vm2202, %v2157
  %2205 = vst.msk [vmem:[%s6 + $0x10] sm:$0xff] %vm2202, %v2159
  %2206 = vst.msk [vmem:[%s6 + $0x18] sm:$0xff] %vm2202, %v2161
  %2207 = vst.msk [vmem:[%s6 + $0x20] sm:$0xff] %vm2202, %v2163
  %2208 = vst.msk [vmem:[%s6 + $0x28] sm:$0xff] %vm2202, %v2165
  %2209 = vst.msk [vmem:[%s6 + $0x30] sm:$0xff] %vm2202, %v2167
  %2210 = vst.msk [vmem:[%s6 + $0x38] sm:$0xff] %vm2202, %v2169
  %2211 = vst.msk [vmem:[%s6 + $0x40] sm:$0xff] %vm2202, %v2171
  %2212 = vst.msk [vmem:[%s6 + $0x48] sm:$0xff] %vm2202, %v2173
  %2213 = vst.msk [vmem:[%s6 + $0x50] sm:$0xff] %vm2202, %v2175
  %2214 = vst.msk [vmem:[%s6 + $0x58] sm:$0xff] %vm2202, %v2177
  %2215 = vst.msk [vmem:[%s6 + $0x60] sm:$0xff] %vm2202, %v2179
  %2216 = vst.msk [vmem:[%s6 + $0x68] sm:$0xff] %vm2202, %v2181
  %2217 = vst.msk [vmem:[%s6 + $0x70] sm:$0xff] %vm2202, %v2183
  %2218 = vst.msk [vmem:[%s6 + $0x78] sm:$0xff] %vm2202, %v2185
  %v2219 = vld [vmem:[%s6] sm:$0xff]
  %v2220 = vld [vmem:[%s6 + $0x8] sm:$0xff]
  %v2221 = vld [vmem:[%s6 + $0x10] sm:$0xff]
  %v2222 = vld [vmem:[%s6 + $0x18] sm:$0xff]
  %v2223 = vld [vmem:[%s6 + $0x20] sm:$0xff]
  %v2224 = vld [vmem:[%s6 + $0x28] sm:$0xff]
  %v2225 = vld [vmem:[%s6 + $0x30] sm:$0xff]
  %v2226 = vld [vmem:[%s6 + $0x38] sm:$0xff]
  %v2227 = vld [vmem:[%s6 + $0x40] sm:$0xff]
  %v2228 = vld [vmem:[%s6 + $0x48] sm:$0xff]
  %v2229 = vld [vmem:[%s6 + $0x50] sm:$0xff]
  %v2230 = vld [vmem:[%s6 + $0x58] sm:$0xff]
  %v2231 = vld [vmem:[%s6 + $0x60] sm:$0xff]
  %v2232 = vld [vmem:[%s6 + $0x68] sm:$0xff]
  %v2233 = vld [vmem:[%s6 + $0x70] sm:$0xff]
  %v2234 = vld [vmem:[%s6 + $0x78] sm:$0xff]
  %v2235 = vld [vmem:[%s3] sm:$0xff]
  %v2236 = vld [vmem:[%s3 + $0x8] sm:$0xff]
  %v2237 = vld [vmem:[%s3 + $0x10] sm:$0xff]
  %v2238 = vld [vmem:[%s3 + $0x18] sm:$0xff]
  %v2239 = vld [vmem:[%s3 + $0x20] sm:$0xff]
  %v2240 = vld [vmem:[%s3 + $0x28] sm:$0xff]
  %v2241 = vld [vmem:[%s3 + $0x30] sm:$0xff]
  %v2242 = vld [vmem:[%s3 + $0x38] sm:$0xff]
  %v2243 = vld [vmem:[%s3 + $0x40] sm:$0xff]
  %v2244 = vld [vmem:[%s3 + $0x48] sm:$0xff]
  %v2245 = vld [vmem:[%s3 + $0x50] sm:$0xff]
  %v2246 = vld [vmem:[%s3 + $0x58] sm:$0xff]
  %v2247 = vld [vmem:[%s3 + $0x60] sm:$0xff]
  %v2248 = vld [vmem:[%s3 + $0x68] sm:$0xff]
  %v2249 = vld [vmem:[%s3 + $0x70] sm:$0xff]
  %v2250 = vld [vmem:[%s3 + $0x78] sm:$0xff]
  %v2251 = vadd.f32 %v2219, %v2235
  %v2252 = vadd.f32 %v2220, %v2236
  %v2253 = vadd.f32 %v2221, %v2237
  %v2254 = vadd.f32 %v2222, %v2238
  %v2255 = vadd.f32 %v2223, %v2239
  %v2256 = vadd.f32 %v2224, %v2240
  %v2257 = vadd.f32 %v2225, %v2241
  %v2258 = vadd.f32 %v2226, %v2242
  %v2259 = vadd.f32 %v2227, %v2243
  %v2260 = vadd.f32 %v2228, %v2244
  %v2261 = vadd.f32 %v2229, %v2245
  %v2262 = vadd.f32 %v2230, %v2246
  %v2263 = vadd.f32 %v2231, %v2247
  %v2264 = vadd.f32 %v2232, %v2248
  %v2265 = vadd.f32 %v2233, %v2249
  %v2266 = vadd.f32 %v2234, %v2250
  %v2267 = vld [vmem:[%s5] sm:$0x1]
  %v2269 = vlaneseq
  %v2270 = vshrl.u32 %v2269, 7
  %v2271 = vsub.s32 0, %v2270
  %v2272 = vrot.slane %v2267, %v2271
  %v2274 = vadd.f32 %v2251, %v2272
  %v2275 = vadd.f32 %v2252, %v2272
  %v2276 = vadd.f32 %v2253, %v2272
  %v2277 = vadd.f32 %v2254, %v2272
  %v2278 = vadd.f32 %v2255, %v2272
  %v2279 = vadd.f32 %v2256, %v2272
  %v2280 = vadd.f32 %v2257, %v2272
  %v2281 = vadd.f32 %v2258, %v2272
  %v2282 = vadd.f32 %v2259, %v2272
  %v2283 = vadd.f32 %v2260, %v2272
  %v2284 = vadd.f32 %v2261, %v2272
  %v2285 = vadd.f32 %v2262, %v2272
  %v2286 = vadd.f32 %v2263, %v2272
  %v2287 = vadd.f32 %v2264, %v2272
  %v2288 = vadd.f32 %v2265, %v2272
  %v2289 = vadd.f32 %v2266, %v2272
  %2290 = vst [vmem:[%s6] sm:$0xff] %v2274
  %2291 = vst [vmem:[%s6 + $0x8] sm:$0xff] %v2275
  %2292 = vst [vmem:[%s6 + $0x10] sm:$0xff] %v2276
  %2293 = vst [vmem:[%s6 + $0x18] sm:$0xff] %v2277
  %2294 = vst [vmem:[%s6 + $0x20] sm:$0xff] %v2278
  %2295 = vst [vmem:[%s6 + $0x28] sm:$0xff] %v2279
  %2296 = vst [vmem:[%s6 + $0x30] sm:$0xff] %v2280
  %2297 = vst [vmem:[%s6 + $0x38] sm:$0xff] %v2281
  %2298 = vst [vmem:[%s6 + $0x40] sm:$0xff] %v2282
  %2299 = vst [vmem:[%s6 + $0x48] sm:$0xff] %v2283
  %2300 = vst [vmem:[%s6 + $0x50] sm:$0xff] %v2284
  %2301 = vst [vmem:[%s6 + $0x58] sm:$0xff] %v2285
  %2302 = vst [vmem:[%s6 + $0x60] sm:$0xff] %v2286
  %2303 = vst [vmem:[%s6 + $0x68] sm:$0xff] %v2287
  %2304 = vst [vmem:[%s6 + $0x70] sm:$0xff] %v2288
  %2305 = vst [vmem:[%s6 + $0x78] sm:$0xff] %v2289
  // Predicated region
  $region26: #{gnn_encoder_forward.8} parent=0 // pred_check
    _
  $region27: #{gnn_encoder_forward.8} parent=0 // pred_check_branch
    %2307 = sbr.rel (0) target = $region29
  $region28: #{gnn_encoder_forward.8} parent=0 // pred_region
    _
  $region29: #{gnn_encoder_forward.8} parent=0 // pred_fallthru
    _
  // Predicated region
  $region30: #{gnn_encoder_forward.8} parent=0 // pred_check
    _
  $region31: #{gnn_encoder_forward.8} parent=0 // pred_check_branch
    %2309 = sbr.rel (0) target = $region33
  $region32: #{gnn_encoder_forward.8} parent=0 // pred_region
    _
  $region33: #{gnn_encoder_forward.8} parent=0 // pred_fallthru
    _

// kernel: gnn_encoder_forward.6
$region0: #{gnn_encoder_forward.6}
  #allocation0 [shape = 'u32[]', space=smem, size = 0x4, offset = 0x4, fixed_abs, tag = 'smem constant byte address 0x4 - core index']
  #allocation1 [shape = 'u32[144,128]{1,0:T(1,128)}', space=vmem, size = 0x12000, scoped, tag = 'internal scratch']
  %s0 = inlined_call_operand.vmem [shape: bf16[128,128], index: 0, kind: input, shape index: {}]
  %s1 = inlined_call_operand.vmem [shape: f32[4,128], index: 1, kind: input, shape index: {}]
  %s2 = inlined_call_operand.vmem [shape: s8[128,128], index: 2, kind: input, shape index: {}]
  %s3 = inlined_call_operand.vmem [shape: f32[128,128], index: 3, kind: input, shape index: {}]
  %s4 = inlined_call_operand.vmem [shape: f32[128,4], index: 4, kind: input, shape index: {}]
  %s5 = inlined_call_operand.vmem [shape: f32[1,128], index: 5, kind: input, shape index: {}]
  %s6 = inlined_call_operand.vmem [shape: f32[128,128], index: 6, kind: output, shape index: {}]
  %s7 = sld [smem:[#allocation0]]
  $region34: #{gnn_encoder_forward.6} parent=0
    _
  %s9 = ssub.s32 1, %s7
  %s10 = scalar_select 0, %s9, %s7
  // Predicated region
  $region2: #{gnn_encoder_forward.6} parent=0 // pred_check
    _
  $region3: #{gnn_encoder_forward.6} parent=0 // pred_check_branch
    %12 = sbr.rel (0) target = $region5
  $region4: #{gnn_encoder_forward.6} parent=0 // pred_region
    _
  $region5: #{gnn_encoder_forward.6} parent=0 // pred_fallthru
    _
  // Predicated region
  $region6: #{gnn_encoder_forward.6} parent=0 // pred_check
    _
  $region7: #{gnn_encoder_forward.6} parent=0 // pred_check_branch
    %14 = sbr.rel (0) target = $region9
  $region8: #{gnn_encoder_forward.6} parent=0 // pred_region
    _
  $region9: #{gnn_encoder_forward.6} parent=0 // pred_fallthru
    _
  // Predicated region
  $region10: #{gnn_encoder_forward.6} parent=0 // pred_check
    _
  $region11: #{gnn_encoder_forward.6} parent=0 // pred_check_branch
    %16 = sbr.rel (0) target = $region13
  $region12: #{gnn_encoder_forward.6} parent=0 // pred_region
    _
  $region13: #{gnn_encoder_forward.6} parent=0 // pred_fallthru
    _
  // Predicated region
  $region14: #{gnn_encoder_forward.6} parent=0 // pred_check
    _
  $region15: #{gnn_encoder_forward.6} parent=0 // pred_check_branch
    %18 = sbr.rel (0) target = $region17
  $region16: #{gnn_encoder_forward.6} parent=0 // pred_region
    _
  $region17: #{gnn_encoder_forward.6} parent=0 // pred_fallthru
    _
  // Predicated region
  $region18: #{gnn_encoder_forward.6} parent=0 // pred_check
    _
  $region19: #{gnn_encoder_forward.6} parent=0 // pred_check_branch
    %20 = sbr.rel (0) target = $region21
  $region20: #{gnn_encoder_forward.6} parent=0 // pred_region
    _
  $region21: #{gnn_encoder_forward.6} parent=0 // pred_fallthru
    _
  // Predicated region
  $region22: #{gnn_encoder_forward.6} parent=0 // pred_check
    _
  $region23: #{gnn_encoder_forward.6} parent=0 // pred_check_branch
    %22 = sbr.rel (0) target = $region25
  $region24: #{gnn_encoder_forward.6} parent=0 // pred_region
    _
  $region25: #{gnn_encoder_forward.6} parent=0 // pred_fallthru
    _
  %s24 = smul.u32 0, 128
  %v25 = vld [vmem:[%s0] sm:$0xf]
  %v26 = vld [vmem:[%s0 + $0x4] sm:$0xf]
  %v27 = vld [vmem:[%s0 + $0x8] sm:$0xf]
  %v28 = vld [vmem:[%s0 + $0xc] sm:$0xf]
  %v29 = vld [vmem:[%s0 + $0x10] sm:$0xf]
  %v30 = vld [vmem:[%s0 + $0x14] sm:$0xf]
  %v31 = vld [vmem:[%s0 + $0x18] sm:$0xf]
  %v32 = vld [vmem:[%s0 + $0x1c] sm:$0xf]
  %v33 = vld [vmem:[%s0 + $0x20] sm:$0xf]
  %v34 = vld [vmem:[%s0 + $0x24] sm:$0xf]
  %v35 = vld [vmem:[%s0 + $0x28] sm:$0xf]
  %v36 = vld [vmem:[%s0 + $0x2c] sm:$0xf]
  %v37 = vld [vmem:[%s0 + $0x30] sm:$0xf]
  %v38 = vld [vmem:[%s0 + $0x34] sm:$0xf]
  %v39 = vld [vmem:[%s0 + $0x38] sm:$0xf]
  %v40 = vld [vmem:[%s0 + $0x3c] sm:$0xf]
  %s41 = sshra.s32 %s24, 3
  %s42 = sand.u32 %s24, 7
  %s43 = smul.addr %s41, 4
  %s44 = scalar_lea.vmem %s0, %s43
  %v45 = vld [vmem:[%s44] sm:$0xf]
  %v46 = vld [vmem:[%s44 + $0x4] sm:$0xf]
  %v47 = vld [vmem:[%s44 + $0x8] sm:$0xf]
  %v48 = vld [vmem:[%s44 + $0xc] sm:$0xf]
  %v49 = vld [vmem:[%s44 + $0x10] sm:$0xf]
  %v50 = vld [vmem:[%s44 + $0x14] sm:$0xf]
  %v51 = vld [vmem:[%s44 + $0x18] sm:$0xf]
  %v52 = vld [vmem:[%s44 + $0x1c] sm:$0xf]
  %v53 = vld [vmem:[%s44 + $0x20] sm:$0xf]
  %v54 = vld [vmem:[%s44 + $0x24] sm:$0xf]
  %v55 = vld [vmem:[%s44 + $0x28] sm:$0xf]
  %v56 = vld [vmem:[%s44 + $0x2c] sm:$0xf]
  %v57 = vld [vmem:[%s44 + $0x30] sm:$0xf]
  %v58 = vld [vmem:[%s44 + $0x34] sm:$0xf]
  %v59 = vld [vmem:[%s44 + $0x38] sm:$0xf]
  %v60 = vld [vmem:[%s44 + $0x3c] sm:$0xf]
  %v61 = vld [vmem:[%s4] sm:$0xff]
  %v62 = vld [vmem:[%s4 + $0x8] sm:$0xff]
  %v63 = vld [vmem:[%s4 + $0x10] sm:$0xff]
  %v64 = vld [vmem:[%s4 + $0x18] sm:$0xff]
  %v65 = vld [vmem:[%s4 + $0x20] sm:$0xff]
  %v66 = vld [vmem:[%s4 + $0x28] sm:$0xff]
  %v67 = vld [vmem:[%s4 + $0x30] sm:$0xff]
  %v68 = vld [vmem:[%s4 + $0x38] sm:$0xff]
  %v69 = vld [vmem:[%s4 + $0x40] sm:$0xff]
  %v70 = vld [vmem:[%s4 + $0x48] sm:$0xff]
  %v71 = vld [vmem:[%s4 + $0x50] sm:$0xff]
  %v72 = vld [vmem:[%s4 + $0x58] sm:$0xff]
  %v73 = vld [vmem:[%s4 + $0x60] sm:$0xff]
  %v74 = vld [vmem:[%s4 + $0x68] sm:$0xff]
  %v75 = vld [vmem:[%s4 + $0x70] sm:$0xff]
  %v76 = vld [vmem:[%s4 + $0x78] sm:$0xff]
  %v77 = vpack.c.bf16 %v62, %v61
  %v78 = vpack.c.bf16 %v64, %v63
  %v79 = vpack.c.bf16 %v66, %v65
  %v80 = vpack.c.bf16 %v68, %v67
  %v81 = vpack.c.bf16 %v70, %v69
  %v82 = vpack.c.bf16 %v72, %v71
  %v83 = vpack.c.bf16 %v74, %v73
  %v84 = vpack.c.bf16 %v76, %v75
  %v101 = vunpack.c.l.b16 %v45
  %v102 = vunpack.c.l.b16 %v46
  %v103 = vunpack.c.l.b16 %v47
  %v104 = vunpack.c.l.b16 %v48
  %v105 = vunpack.c.l.b16 %v49
  %v106 = vunpack.c.l.b16 %v50
  %v107 = vunpack.c.l.b16 %v51
  %v108 = vunpack.c.l.b16 %v52
  %v109 = vunpack.c.l.b16 %v53
  %v110 = vunpack.c.l.b16 %v54
  %v111 = vunpack.c.l.b16 %v55
  %v112 = vunpack.c.l.b16 %v56
  %v113 = vunpack.c.l.b16 %v57
  %v114 = vunpack.c.l.b16 %v58
  %v115 = vunpack.c.l.b16 %v59
  %v116 = vunpack.c.l.b16 %v60
  %v117 = vpack.c.b16 %v102, %v101
  %v118 = vpack.c.b16 %v104, %v103
  %v119 = vpack.c.b16 %v106, %v105
  %v120 = vpack.c.b16 %v108, %v107
  %v121 = vpack.c.b16 %v110, %v109
  %v122 = vpack.c.b16 %v112, %v111
  %v123 = vpack.c.b16 %v114, %v113
  %v124 = vpack.c.b16 %v116, %v115
  %133 = vmatprep.subr.bf16.mxu0 0
  %134 = vmatpush1.bf16.msra.mxu0 %v77
  %135 = vmatprep.subr.bf16.mxu0 0
  %136 = vmatpush1.bf16.msra.mxu0 %v78
  %137 = vmatprep.subr.bf16.mxu0 0
  %138 = vmatpush1.bf16.msra.mxu0 %v79
  %139 = vmatprep.subr.bf16.mxu0 0
  %140 = vmatpush1.bf16.msra.mxu0 %v80
  %141 = vmatprep.subr.bf16.mxu0 0
  %142 = vmatpush1.bf16.msra.mxu0 %v81
  %143 = vmatprep.subr.bf16.mxu0 0
  %144 = vmatpush1.bf16.msra.mxu0 %v82
  %145 = vmatprep.subr.bf16.mxu0 0
  %146 = vmatpush1.bf16.msra.mxu0 %v83
  %147 = vmatprep.subr.bf16.mxu0 0
  %148 = vmatpush1.bf16.msra.mxu0 %v84
  %149 = vmatprep.subr.bf16.mxu0 0
  %150 = vmatpush1.bf16.msra.mxu0 0
  %151 = vmatprep.subr.bf16.mxu0 0
  %152 = vmatpush1.bf16.msra.mxu0 0
  %153 = vmatprep.subr.bf16.mxu0 0
  %154 = vmatpush1.bf16.msra.mxu0 0
  %155 = vmatprep.subr.bf16.mxu0 0
  %156 = vmatpush1.bf16.msra.mxu0 0
  %157 = vmatprep.subr.bf16.mxu0 0
  %158 = vmatpush1.bf16.msra.mxu0 0
  %159 = vmatprep.subr.bf16.mxu0 0
  %160 = vmatpush1.bf16.msra.mxu0 0
  %161 = vmatprep.subr.bf16.mxu0 0
  %162 = vmatpush1.bf16.msra.mxu0 0
  %163 = vmatprep.subr.bf16.mxu0 0
  %164 = vmatpush1.bf16.msra.mxu0 0
  %165 = vmatprep.mubr.bf16.mxu0 0
  %166 = vmatmul.mubr.bf16.gmra.mrb[0].mxu0 %v117
  %v167 = vpop.f32.mrb[0].mxu0
  %v168 = vadd.f32 0.0, %v167
  %v169 = vpop.f32.mrb[0].mxu0
  %v170 = vpop.f32.mrb[0].mxu0
  %v171 = vadd.f32 0.0, %v170
  %v172 = vpop.f32.mrb[0].mxu0
  %173 = vmatprep.mubr.bf16.mxu0 0
  %174 = vmatmul.mubr.bf16.gmra.mrb[0].mxu0 %v118
  %v175 = vpop.f32.mrb[0].mxu0
  %v176 = vadd.f32 0.0, %v175
  %v177 = vpop.f32.mrb[0].mxu0
  %v178 = vpop.f32.mrb[0].mxu0
  %v179 = vadd.f32 0.0, %v178
  %v180 = vpop.f32.mrb[0].mxu0
  %181 = vmatprep.mubr.bf16.mxu0 0
  %182 = vmatmul.mubr.bf16.gmra.mrb[0].mxu0 %v119
  %v183 = vpop.f32.mrb[0].mxu0
  %v184 = vadd.f32 0.0, %v183
  %v185 = vpop.f32.mrb[0].mxu0
  %v186 = vpop.f32.mrb[0].mxu0
  %v187 = vadd.f32 0.0, %v186
  %v188 = vpop.f32.mrb[0].mxu0
  %189 = vmatprep.mubr.bf16.mxu0 0
  %190 = vmatmul.mubr.bf16.gmra.mrb[0].mxu0 %v120
  %v191 = vpop.f32.mrb[0].mxu0
  %v192 = vadd.f32 0.0, %v191
  %v193 = vpop.f32.mrb[0].mxu0
  %v194 = vpop.f32.mrb[0].mxu0
  %v195 = vadd.f32 0.0, %v194
  %v196 = vpop.f32.mrb[0].mxu0
  %197 = vmatprep.mubr.bf16.mxu0 0
  %198 = vmatmul.mubr.bf16.gmra.mrb[0].mxu0 %v121
  %v199 = vpop.f32.mrb[0].mxu0
  %v200 = vadd.f32 0.0, %v199
  %v201 = vpop.f32.mrb[0].mxu0
  %v202 = vpop.f32.mrb[0].mxu0
  %v203 = vadd.f32 0.0, %v202
  %v204 = vpop.f32.mrb[0].mxu0
  %205 = vmatprep.mubr.bf16.mxu0 0
  %206 = vmatmul.mubr.bf16.gmra.mrb[0].mxu0 %v122
  %v207 = vpop.f32.mrb[0].mxu0
  %v208 = vadd.f32 0.0, %v207
  %v209 = vpop.f32.mrb[0].mxu0
  %v210 = vpop.f32.mrb[0].mxu0
  %v211 = vadd.f32 0.0, %v210
  %v212 = vpop.f32.mrb[0].mxu0
  %213 = vmatprep.mubr.bf16.mxu0 0
  %214 = vmatmul.mubr.bf16.gmra.mrb[0].mxu0 %v123
  %v215 = vpop.f32.mrb[0].mxu0
  %v216 = vadd.f32 0.0, %v215
  %v217 = vpop.f32.mrb[0].mxu0
  %v218 = vpop.f32.mrb[0].mxu0
  %v219 = vadd.f32 0.0, %v218
  %v220 = vpop.f32.mrb[0].mxu0
  %221 = vmatprep.mubr.bf16.mxu0 0
  %222 = vmatmul.mubr.bf16.gmra.mrb[0].mxu0 %v124
  %v223 = vpop.f32.mrb[0].mxu0
  %v224 = vadd.f32 0.0, %v223
  %v225 = vpop.f32.mrb[0].mxu0
  %v226 = vpop.f32.mrb[0].mxu0
  %v227 = vadd.f32 0.0, %v226
  %v228 = vpop.f32.mrb[0].mxu0
  %229 = vdwg.mxu0
  %v230 = vld [vmem:[%s1] sm:$0xf]
  %v231 = vld [vmem:[%s2] sm:$0xff]
  %v232 = vld [vmem:[%s2 + $0x8] sm:$0xff]
  %v233 = vld [vmem:[%s2 + $0x10] sm:$0xff]
  %v234 = vld [vmem:[%s2 + $0x18] sm:$0xff]
  %v235 = vunpack.c.0.s8 %v231
  %v236 = vunpack.c.1.s8 %v231
  %v237 = vunpack.c.2.s8 %v231
  %v238 = vunpack.c.3.s8 %v231
  %v239 = vunpack.c.0.s8 %v232
  %v240 = vunpack.c.1.s8 %v232
  %v241 = vunpack.c.2.s8 %v232
  %v242 = vunpack.c.3.s8 %v232
  %v243 = vunpack.c.0.s8 %v233
  %v244 = vunpack.c.1.s8 %v233
  %v245 = vunpack.c.2.s8 %v233
  %v246 = vunpack.c.3.s8 %v233
  %v247 = vunpack.c.0.s8 %v234
  %v248 = vunpack.c.1.s8 %v234
  %v249 = vunpack.c.2.s8 %v234
  %v250 = vunpack.c.3.s8 %v234
  %v251 = vcvt.s32.f32 %v235
  %v252 = vcvt.s32.f32 %v236
  %v253 = vcvt.s32.f32 %v237
  %v254 = vcvt.s32.f32 %v238
  %v255 = vcvt.s32.f32 %v239
  %v256 = vcvt.s32.f32 %v240
  %v257 = vcvt.s32.f32 %v241
  %v258 = vcvt.s32.f32 %v242
  %v259 = vcvt.s32.f32 %v243
  %v260 = vcvt.s32.f32 %v244
  %v261 = vcvt.s32.f32 %v245
  %v262 = vcvt.s32.f32 %v246
  %v263 = vcvt.s32.f32 %v247
  %v264 = vcvt.s32.f32 %v248
  %v265 = vcvt.s32.f32 %v249
  %v266 = vcvt.s32.f32 %v250
  %vm267 = vcmp.gt.f32.partialorder %v251, 0.0
  %vm268 = vcmp.gt.f32.partialorder %v252, 0.0
  %vm269 = vcmp.gt.f32.partialorder %v253, 0.0
  %vm270 = vcmp.gt.f32.partialorder %v254, 0.0
  %vm271 = vcmp.gt.f32.partialorder %v255, 0.0
  %vm272 = vcmp.gt.f32.partialorder %v256, 0.0
  %vm273 = vcmp.gt.f32.partialorder %v257, 0.0
  %vm274 = vcmp.gt.f32.partialorder %v258, 0.0
  %vm275 = vcmp.gt.f32.partialorder %v259, 0.0
  %vm276 = vcmp.gt.f32.partialorder %v260, 0.0
  %vm277 = vcmp.gt.f32.partialorder %v261, 0.0
  %vm278 = vcmp.gt.f32.partialorder %v262, 0.0
  %vm279 = vcmp.gt.f32.partialorder %v263, 0.0
  %vm280 = vcmp.gt.f32.partialorder %v264, 0.0
  %vm281 = vcmp.gt.f32.partialorder %v265, 0.0
  %vm282 = vcmp.gt.f32.partialorder %v266, 0.0
  %v283 = vsel %vm267, 0.0, -1e+30
  %v284 = vsel %vm268, 0.0, -1e+30
  %v285 = vsel %vm269, 0.0, -1e+30
  %v286 = vsel %vm270, 0.0, -1e+30
  %v287 = vsel %vm271, 0.0, -1e+30
  %v288 = vsel %vm272, 0.0, -1e+30
  %v289 = vsel %vm273, 0.0, -1e+30
  %v290 = vsel %vm274, 0.0, -1e+30
  %v291 = vsel %vm275, 0.0, -1e+30
  %v292 = vsel %vm276, 0.0, -1e+30
  %v293 = vsel %vm277, 0.0, -1e+30
  %v294 = vsel %vm278, 0.0, -1e+30
  %v295 = vsel %vm279, 0.0, -1e+30
  %v296 = vsel %vm280, 0.0, -1e+30
  %v297 = vsel %vm281, 0.0, -1e+30
  %v298 = vsel %vm282, 0.0, -1e+30
  %300 = vset.pattern.permute.xlu0 0
  %301 = vperm.xlu0 %300, %v168
  %v302 = vpop.permute.xlu0 %301
  %305 = vset.pattern.permute.xlu0 0
  %306 = vperm.xlu0 %305, %v171
  %v307 = vpop.permute.xlu0 %306
  %310 = vset.pattern.permute.xlu0 0
  %311 = vperm.xlu0 %310, %v176
  %v312 = vpop.permute.xlu0 %311
  %315 = vset.pattern.permute.xlu0 0
  %316 = vperm.xlu0 %315, %v179
  %v317 = vpop.permute.xlu0 %316
  %320 = vset.pattern.permute.xlu0 0
  %321 = vperm.xlu0 %320, %v184
  %v322 = vpop.permute.xlu0 %321
  %325 = vset.pattern.permute.xlu0 0
  %326 = vperm.xlu0 %325, %v187
  %v327 = vpop.permute.xlu0 %326
  %330 = vset.pattern.permute.xlu0 0
  %331 = vperm.xlu0 %330, %v192
  %v332 = vpop.permute.xlu0 %331
  %335 = vset.pattern.permute.xlu0 0
  %336 = vperm.xlu0 %335, %v195
  %v337 = vpop.permute.xlu0 %336
  %340 = vset.pattern.permute.xlu0 0
  %341 = vperm.xlu0 %340, %v200
  %v342 = vpop.permute.xlu0 %341
  %345 = vset.pattern.permute.xlu0 0
  %346 = vperm.xlu0 %345, %v203
  %v347 = vpop.permute.xlu0 %346
  %350 = vset.pattern.permute.xlu0 0
  %351 = vperm.xlu0 %350, %v208
  %v352 = vpop.permute.xlu0 %351
  %355 = vset.pattern.permute.xlu0 0
  %356 = vperm.xlu0 %355, %v211
  %v357 = vpop.permute.xlu0 %356
  %360 = vset.pattern.permute.xlu0 0
  %361 = vperm.xlu0 %360, %v216
  %v362 = vpop.permute.xlu0 %361
  %365 = vset.pattern.permute.xlu0 0
  %366 = vperm.xlu0 %365, %v219
  %v367 = vpop.permute.xlu0 %366
  %370 = vset.pattern.permute.xlu0 0
  %371 = vperm.xlu0 %370, %v224
  %v372 = vpop.permute.xlu0 %371
  %375 = vset.pattern.permute.xlu0 0
  %376 = vperm.xlu0 %375, %v227
  %v377 = vpop.permute.xlu0 %376
  %v379 = vlaneseq
  %v380 = vshrl.u32 %v379, 7
  %v381 = vsub.s32 0, %v380
  %v382 = vrot.slane %v230, %v381
  %v383 = vadd.f32 %v302, %v382
  %v384 = vadd.f32 %v307, %v382
  %v385 = vadd.f32 %v312, %v382
  %v386 = vadd.f32 %v317, %v382
  %v387 = vadd.f32 %v322, %v382
  %v388 = vadd.f32 %v327, %v382
  %v389 = vadd.f32 %v332, %v382
  %v390 = vadd.f32 %v337, %v382
  %v391 = vadd.f32 %v342, %v382
  %v392 = vadd.f32 %v347, %v382
  %v393 = vadd.f32 %v352, %v382
  %v394 = vadd.f32 %v357, %v382
  %v395 = vadd.f32 %v362, %v382
  %v396 = vadd.f32 %v367, %v382
  %v397 = vadd.f32 %v372, %v382
  %v398 = vadd.f32 %v377, %v382
  %v399 = vmul.f32 %v383, 0.2
  %v400 = vmul.f32 %v384, 0.2
  %v401 = vmul.f32 %v385, 0.2
  %v402 = vmul.f32 %v386, 0.2
  %v403 = vmul.f32 %v387, 0.2
  %v404 = vmul.f32 %v388, 0.2
  %v405 = vmul.f32 %v389, 0.2
  %v406 = vmul.f32 %v390, 0.2
  %v407 = vmul.f32 %v391, 0.2
  %v408 = vmul.f32 %v392, 0.2
  %v409 = vmul.f32 %v393, 0.2
  %v410 = vmul.f32 %v394, 0.2
  %v411 = vmul.f32 %v395, 0.2
  %v412 = vmul.f32 %v396, 0.2
  %v413 = vmul.f32 %v397, 0.2
  %v414 = vmul.f32 %v398, 0.2
  %v415 = vmax.f32 %v383, %v399
  %v416 = vmax.f32 %v384, %v400
  %v417 = vmax.f32 %v385, %v401
  %v418 = vmax.f32 %v386, %v402
  %v419 = vmax.f32 %v387, %v403
  %v420 = vmax.f32 %v388, %v404
  %v421 = vmax.f32 %v389, %v405
  %v422 = vmax.f32 %v390, %v406
  %v423 = vmax.f32 %v391, %v407
  %v424 = vmax.f32 %v392, %v408
  %v425 = vmax.f32 %v393, %v409
  %v426 = vmax.f32 %v394, %v410
  %v427 = vmax.f32 %v395, %v411
  %v428 = vmax.f32 %v396, %v412
  %v429 = vmax.f32 %v397, %v413
  %v430 = vmax.f32 %v398, %v414
  %v431 = vadd.f32 %v415, %v283
  %v432 = vadd.f32 %v416, %v284
  %v433 = vadd.f32 %v417, %v285
  %v434 = vadd.f32 %v418, %v286
  %v435 = vadd.f32 %v419, %v287
  %v436 = vadd.f32 %v420, %v288
  %v437 = vadd.f32 %v421, %v289
  %v438 = vadd.f32 %v422, %v290
  %v439 = vadd.f32 %v423, %v291
  %v440 = vadd.f32 %v424, %v292
  %v441 = vadd.f32 %v425, %v293
  %v442 = vadd.f32 %v426, %v294
  %v443 = vadd.f32 %v427, %v295
  %v444 = vadd.f32 %v428, %v296
  %v445 = vadd.f32 %v429, %v297
  %v446 = vadd.f32 %v430, %v298
  %447 = vmax.xlane.f32.xlu0 %v431
  %v448 = vpop.xlane.xlu0 %447
  %449 = vmax.xlane.f32.xlu0 %v432
  %v450 = vpop.xlane.xlu0 %449
  %451 = vmax.xlane.f32.xlu0 %v433
  %v452 = vpop.xlane.xlu0 %451
  %453 = vmax.xlane.f32.xlu0 %v434
  %v454 = vpop.xlane.xlu0 %453
  %455 = vmax.xlane.f32.xlu0 %v435
  %v456 = vpop.xlane.xlu0 %455
  %457 = vmax.xlane.f32.xlu0 %v436
  %v458 = vpop.xlane.xlu0 %457
  %459 = vmax.xlane.f32.xlu0 %v437
  %v460 = vpop.xlane.xlu0 %459
  %461 = vmax.xlane.f32.xlu0 %v438
  %v462 = vpop.xlane.xlu0 %461
  %463 = vmax.xlane.f32.xlu0 %v439
  %v464 = vpop.xlane.xlu0 %463
  %465 = vmax.xlane.f32.xlu0 %v440
  %v466 = vpop.xlane.xlu0 %465
  %467 = vmax.xlane.f32.xlu0 %v441
  %v468 = vpop.xlane.xlu0 %467
  %469 = vmax.xlane.f32.xlu0 %v442
  %v470 = vpop.xlane.xlu0 %469
  %471 = vmax.xlane.f32.xlu0 %v443
  %v472 = vpop.xlane.xlu0 %471
  %473 = vmax.xlane.f32.xlu0 %v444
  %v474 = vpop.xlane.xlu0 %473
  %475 = vmax.xlane.f32.xlu0 %v445
  %v476 = vpop.xlane.xlu0 %475
  %477 = vmax.xlane.f32.xlu0 %v446
  %v478 = vpop.xlane.xlu0 %477
  %v479 = vsub.f32 %v431, %v448
  %v480 = vsub.f32 %v432, %v450
  %v481 = vsub.f32 %v433, %v452
  %v482 = vsub.f32 %v434, %v454
  %v483 = vsub.f32 %v435, %v456
  %v484 = vsub.f32 %v436, %v458
  %v485 = vsub.f32 %v437, %v460
  %v486 = vsub.f32 %v438, %v462
  %v487 = vsub.f32 %v439, %v464
  %v488 = vsub.f32 %v440, %v466
  %v489 = vsub.f32 %v441, %v468
  %v490 = vsub.f32 %v442, %v470
  %v491 = vsub.f32 %v443, %v472
  %v492 = vsub.f32 %v444, %v474
  %v493 = vsub.f32 %v445, %v476
  %v494 = vsub.f32 %v446, %v478
  %v495 = vmul.f32 %v479, 1.442695
  %v496 = vpow.pop %v495
  %v497 = vmul.f32 %v480, 1.442695
  %v498 = vpow.pop %v497
  %v499 = vmul.f32 %v481, 1.442695
  %v500 = vpow.pop %v499
  %v501 = vmul.f32 %v482, 1.442695
  %v502 = vpow.pop %v501
  %v503 = vmul.f32 %v483, 1.442695
  %v504 = vpow.pop %v503
  %v505 = vmul.f32 %v484, 1.442695
  %v506 = vpow.pop %v505
  %v507 = vmul.f32 %v485, 1.442695
  %v508 = vpow.pop %v507
  %v509 = vmul.f32 %v486, 1.442695
  %v510 = vpow.pop %v509
  %v511 = vmul.f32 %v487, 1.442695
  %v512 = vpow.pop %v511
  %v513 = vmul.f32 %v488, 1.442695
  %v514 = vpow.pop %v513
  %v515 = vmul.f32 %v489, 1.442695
  %v516 = vpow.pop %v515
  %v517 = vmul.f32 %v490, 1.442695
  %v518 = vpow.pop %v517
  %v519 = vmul.f32 %v491, 1.442695
  %v520 = vpow.pop %v519
  %v521 = vmul.f32 %v492, 1.442695
  %v522 = vpow.pop %v521
  %v523 = vmul.f32 %v493, 1.442695
  %v524 = vpow.pop %v523
  %v525 = vmul.f32 %v494, 1.442695
  %v526 = vpow.pop %v525
  %527 = vadd.xlane.f32.xlu0 %v496
  %v528 = vpop.xlane.xlu0 %527
  %529 = vadd.xlane.f32.xlu0 %v498
  %v530 = vpop.xlane.xlu0 %529
  %531 = vadd.xlane.f32.xlu0 %v500
  %v532 = vpop.xlane.xlu0 %531
  %533 = vadd.xlane.f32.xlu0 %v502
  %v534 = vpop.xlane.xlu0 %533
  %535 = vadd.xlane.f32.xlu0 %v504
  %v536 = vpop.xlane.xlu0 %535
  %537 = vadd.xlane.f32.xlu0 %v506
  %v538 = vpop.xlane.xlu0 %537
  %539 = vadd.xlane.f32.xlu0 %v508
  %v540 = vpop.xlane.xlu0 %539
  %541 = vadd.xlane.f32.xlu0 %v510
  %v542 = vpop.xlane.xlu0 %541
  %543 = vadd.xlane.f32.xlu0 %v512
  %v544 = vpop.xlane.xlu0 %543
  %545 = vadd.xlane.f32.xlu0 %v514
  %v546 = vpop.xlane.xlu0 %545
  %547 = vadd.xlane.f32.xlu0 %v516
  %v548 = vpop.xlane.xlu0 %547
  %549 = vadd.xlane.f32.xlu0 %v518
  %v550 = vpop.xlane.xlu0 %549
  %551 = vadd.xlane.f32.xlu0 %v520
  %v552 = vpop.xlane.xlu0 %551
  %553 = vadd.xlane.f32.xlu0 %v522
  %v554 = vpop.xlane.xlu0 %553
  %555 = vadd.xlane.f32.xlu0 %v524
  %v556 = vpop.xlane.xlu0 %555
  %557 = vadd.xlane.f32.xlu0 %v526
  %v558 = vpop.xlane.xlu0 %557
  %v559 = vrcp.pop %v528
  %v560 = vrcp.pop %v530
  %v561 = vrcp.pop %v532
  %v562 = vrcp.pop %v534
  %v563 = vrcp.pop %v536
  %v564 = vrcp.pop %v538
  %v565 = vrcp.pop %v540
  %v566 = vrcp.pop %v542
  %v567 = vrcp.pop %v544
  %v568 = vrcp.pop %v546
  %v569 = vrcp.pop %v548
  %v570 = vrcp.pop %v550
  %v571 = vrcp.pop %v552
  %v572 = vrcp.pop %v554
  %v573 = vrcp.pop %v556
  %v574 = vrcp.pop %v558
  %v575 = vpack.c.bf16 %v498, %v496
  %v576 = vpack.c.bf16 %v502, %v500
  %v577 = vpack.c.bf16 %v506, %v504
  %v578 = vpack.c.bf16 %v510, %v508
  %v579 = vpack.c.bf16 %v514, %v512
  %v580 = vpack.c.bf16 %v518, %v516
  %v581 = vpack.c.bf16 %v522, %v520
  %v582 = vpack.c.bf16 %v526, %v524
  %v599 = vunpack.c.l.b16 %v25
  %v600 = vunpack.c.l.b16 %v26
  %v601 = vunpack.c.l.b16 %v27
  %v602 = vunpack.c.l.b16 %v28
  %v603 = vunpack.c.l.b16 %v29
  %v604 = vunpack.c.l.b16 %v30
  %v605 = vunpack.c.l.b16 %v31
  %v606 = vunpack.c.l.b16 %v32
  %v607 = vunpack.c.l.b16 %v33
  %v608 = vunpack.c.l.b16 %v34
  %v609 = vunpack.c.l.b16 %v35
  %v610 = vunpack.c.l.b16 %v36
  %v611 = vunpack.c.l.b16 %v37
  %v612 = vunpack.c.l.b16 %v38
  %v613 = vunpack.c.l.b16 %v39
  %v614 = vunpack.c.l.b16 %v40
  %v615 = vpack.c.b16 %v600, %v599
  %v616 = vpack.c.b16 %v602, %v601
  %v617 = vpack.c.b16 %v604, %v603
  %v618 = vpack.c.b16 %v606, %v605
  %v619 = vpack.c.b16 %v608, %v607
  %v620 = vpack.c.b16 %v610, %v609
  %v621 = vpack.c.b16 %v612, %v611
  %v622 = vpack.c.b16 %v614, %v613
  %631 = vmatprep.subr.bf16.mxu0 0
  %632 = vmatpush1.bf16.msra.mxu0 %v615
  %633 = vmatprep.subr.bf16.mxu0 0
  %634 = vmatpush1.bf16.msra.mxu0 %v616
  %635 = vmatprep.subr.bf16.mxu0 0
  %636 = vmatpush1.bf16.msra.mxu0 %v617
  %637 = vmatprep.subr.bf16.mxu0 0
  %638 = vmatpush1.bf16.msra.mxu0 %v618
  %639 = vmatprep.subr.bf16.mxu0 0
  %640 = vmatpush1.bf16.msra.mxu0 %v619
  %641 = vmatprep.subr.bf16.mxu0 0
  %642 = vmatpush1.bf16.msra.mxu0 %v620
  %643 = vmatprep.subr.bf16.mxu0 0
  %644 = vmatpush1.bf16.msra.mxu0 %v621
  %645 = vmatprep.subr.bf16.mxu0 0
  %646 = vmatpush1.bf16.msra.mxu0 %v622
  %647 = vmatprep.subr.bf16.mxu0 0
  %648 = vmatpush1.bf16.msra.mxu0 0
  %649 = vmatprep.subr.bf16.mxu0 0
  %650 = vmatpush1.bf16.msra.mxu0 0
  %651 = vmatprep.subr.bf16.mxu0 0
  %652 = vmatpush1.bf16.msra.mxu0 0
  %653 = vmatprep.subr.bf16.mxu0 0
  %654 = vmatpush1.bf16.msra.mxu0 0
  %655 = vmatprep.subr.bf16.mxu0 0
  %656 = vmatpush1.bf16.msra.mxu0 0
  %657 = vmatprep.subr.bf16.mxu0 0
  %658 = vmatpush1.bf16.msra.mxu0 0
  %659 = vmatprep.subr.bf16.mxu0 0
  %660 = vmatpush1.bf16.msra.mxu0 0
  %661 = vmatprep.subr.bf16.mxu0 0
  %662 = vmatpush1.bf16.msra.mxu0 0
  %663 = vmatprep.mubr.bf16.mxu0 0
  %664 = vmatmul.mubr.bf16.gmra.mrb[0].mxu0 %v575
  %v665 = vpop.f32.mrb[0].mxu0
  %v666 = vadd.f32 0.0, %v665
  %v667 = vpop.f32.mrb[0].mxu0
  %v668 = vpop.f32.mrb[0].mxu0
  %v669 = vadd.f32 0.0, %v668
  %v670 = vpop.f32.mrb[0].mxu0
  %671 = vmatprep.mubr.bf16.mxu0 0
  %672 = vmatmul.mubr.bf16.gmra.mrb[0].mxu0 %v576
  %v673 = vpop.f32.mrb[0].mxu0
  %v674 = vadd.f32 0.0, %v673
  %v675 = vpop.f32.mrb[0].mxu0
  %v676 = vpop.f32.mrb[0].mxu0
  %v677 = vadd.f32 0.0, %v676
  %v678 = vpop.f32.mrb[0].mxu0
  %679 = vmatprep.mubr.bf16.mxu0 0
  %680 = vmatmul.mubr.bf16.gmra.mrb[0].mxu0 %v577
  %v681 = vpop.f32.mrb[0].mxu0
  %v682 = vadd.f32 0.0, %v681
  %v683 = vpop.f32.mrb[0].mxu0
  %v684 = vpop.f32.mrb[0].mxu0
  %v685 = vadd.f32 0.0, %v684
  %v686 = vpop.f32.mrb[0].mxu0
  %687 = vmatprep.mubr.bf16.mxu0 0
  %688 = vmatmul.mubr.bf16.gmra.mrb[0].mxu0 %v578
  %v689 = vpop.f32.mrb[0].mxu0
  %v690 = vadd.f32 0.0, %v689
  %v691 = vpop.f32.mrb[0].mxu0
  %v692 = vpop.f32.mrb[0].mxu0
  %v693 = vadd.f32 0.0, %v692
  %v694 = vpop.f32.mrb[0].mxu0
  %695 = vmatprep.mubr.bf16.mxu0 0
  %696 = vmatmul.mubr.bf16.gmra.mrb[0].mxu0 %v579
  %v697 = vpop.f32.mrb[0].mxu0
  %v698 = vadd.f32 0.0, %v697
  %v699 = vpop.f32.mrb[0].mxu0
  %v700 = vpop.f32.mrb[0].mxu0
  %v701 = vadd.f32 0.0, %v700
  %v702 = vpop.f32.mrb[0].mxu0
  %703 = vmatprep.mubr.bf16.mxu0 0
  %704 = vmatmul.mubr.bf16.gmra.mrb[0].mxu0 %v580
  %v705 = vpop.f32.mrb[0].mxu0
  %v706 = vadd.f32 0.0, %v705
  %v707 = vpop.f32.mrb[0].mxu0
  %v708 = vpop.f32.mrb[0].mxu0
  %v709 = vadd.f32 0.0, %v708
  %v710 = vpop.f32.mrb[0].mxu0
  %711 = vmatprep.mubr.bf16.mxu0 0
  %712 = vmatmul.mubr.bf16.gmra.mrb[0].mxu0 %v581
  %v713 = vpop.f32.mrb[0].mxu0
  %v714 = vadd.f32 0.0, %v713
  %v715 = vpop.f32.mrb[0].mxu0
  %v716 = vpop.f32.mrb[0].mxu0
  %v717 = vadd.f32 0.0, %v716
  %v718 = vpop.f32.mrb[0].mxu0
  %719 = vmatprep.mubr.bf16.mxu0 0
  %720 = vmatmul.mubr.bf16.gmra.mrb[0].mxu0 %v582
  %v721 = vpop.f32.mrb[0].mxu0
  %v722 = vadd.f32 0.0, %v721
  %v723 = vpop.f32.mrb[0].mxu0
  %v724 = vpop.f32.mrb[0].mxu0
  %v725 = vadd.f32 0.0, %v724
  %v726 = vpop.f32.mrb[0].mxu0
  %727 = vdwg.mxu0
  %v728 = vmul.f32 %v666, %v559
  %v729 = vmul.f32 %v669, %v560
  %v730 = vmul.f32 %v674, %v561
  %v731 = vmul.f32 %v677, %v562
  %v732 = vmul.f32 %v682, %v563
  %v733 = vmul.f32 %v685, %v564
  %v734 = vmul.f32 %v690, %v565
  %v735 = vmul.f32 %v693, %v566
  %v736 = vmul.f32 %v698, %v567
  %v737 = vmul.f32 %v701, %v568
  %v738 = vmul.f32 %v706, %v569
  %v739 = vmul.f32 %v709, %v570
  %v740 = vmul.f32 %v714, %v571
  %v741 = vmul.f32 %v717, %v572
  %v742 = vmul.f32 %v722, %v573
  %v743 = vmul.f32 %v725, %v574
  %vm744 = vcmask 261120
  %745 = vst.msk [vmem:[%s6] sm:$0xff] %vm744, %v728
  %746 = vst.msk [vmem:[%s6 + $0x8] sm:$0xff] %vm744, %v729
  %747 = vst.msk [vmem:[%s6 + $0x10] sm:$0xff] %vm744, %v730
  %748 = vst.msk [vmem:[%s6 + $0x18] sm:$0xff] %vm744, %v731
  %749 = vst.msk [vmem:[%s6 + $0x20] sm:$0xff] %vm744, %v732
  %750 = vst.msk [vmem:[%s6 + $0x28] sm:$0xff] %vm744, %v733
  %751 = vst.msk [vmem:[%s6 + $0x30] sm:$0xff] %vm744, %v734
  %752 = vst.msk [vmem:[%s6 + $0x38] sm:$0xff] %vm744, %v735
  %753 = vst.msk [vmem:[%s6 + $0x40] sm:$0xff] %vm744, %v736
  %754 = vst.msk [vmem:[%s6 + $0x48] sm:$0xff] %vm744, %v737
  %755 = vst.msk [vmem:[%s6 + $0x50] sm:$0xff] %vm744, %v738
  %756 = vst.msk [vmem:[%s6 + $0x58] sm:$0xff] %vm744, %v739
  %757 = vst.msk [vmem:[%s6 + $0x60] sm:$0xff] %vm744, %v740
  %758 = vst.msk [vmem:[%s6 + $0x68] sm:$0xff] %vm744, %v741
  %759 = vst.msk [vmem:[%s6 + $0x70] sm:$0xff] %vm744, %v742
  %760 = vst.msk [vmem:[%s6 + $0x78] sm:$0xff] %vm744, %v743
  %761 = vset.pattern.permute.xlu0 1
  %762 = vperm.xlu0 %761, %v168
  %v763 = vpop.permute.xlu0 %762
  %765 = vset.pattern.permute.xlu0 1
  %766 = vperm.xlu0 %765, %v171
  %v767 = vpop.permute.xlu0 %766
  %769 = vset.pattern.permute.xlu0 1
  %770 = vperm.xlu0 %769, %v176
  %v771 = vpop.permute.xlu0 %770
  %773 = vset.pattern.permute.xlu0 1
  %774 = vperm.xlu0 %773, %v179
  %v775 = vpop.permute.xlu0 %774
  %777 = vset.pattern.permute.xlu0 1
  %778 = vperm.xlu0 %777, %v184
  %v779 = vpop.permute.xlu0 %778
  %781 = vset.pattern.permute.xlu0 1
  %782 = vperm.xlu0 %781, %v187
  %v783 = vpop.permute.xlu0 %782
  %785 = vset.pattern.permute.xlu0 1
  %786 = vperm.xlu0 %785, %v192
  %v787 = vpop.permute.xlu0 %786
  %789 = vset.pattern.permute.xlu0 1
  %790 = vperm.xlu0 %789, %v195
  %v791 = vpop.permute.xlu0 %790
  %793 = vset.pattern.permute.xlu0 1
  %794 = vperm.xlu0 %793, %v200
  %v795 = vpop.permute.xlu0 %794
  %797 = vset.pattern.permute.xlu0 1
  %798 = vperm.xlu0 %797, %v203
  %v799 = vpop.permute.xlu0 %798
  %801 = vset.pattern.permute.xlu0 1
  %802 = vperm.xlu0 %801, %v208
  %v803 = vpop.permute.xlu0 %802
  %805 = vset.pattern.permute.xlu0 1
  %806 = vperm.xlu0 %805, %v211
  %v807 = vpop.permute.xlu0 %806
  %809 = vset.pattern.permute.xlu0 1
  %810 = vperm.xlu0 %809, %v216
  %v811 = vpop.permute.xlu0 %810
  %813 = vset.pattern.permute.xlu0 1
  %814 = vperm.xlu0 %813, %v219
  %v815 = vpop.permute.xlu0 %814
  %817 = vset.pattern.permute.xlu0 1
  %818 = vperm.xlu0 %817, %v224
  %v819 = vpop.permute.xlu0 %818
  %821 = vset.pattern.permute.xlu0 1
  %822 = vperm.xlu0 %821, %v227
  %v823 = vpop.permute.xlu0 %822
  %v825 = vlaneseq
  %v826 = vshrl.u32 %v825, 7
  %v827 = vsub.s32 1, %v826
  %v828 = vrot.slane %v230, %v827
  %v829 = vadd.f32 %v763, %v828
  %v830 = vadd.f32 %v767, %v828
  %v831 = vadd.f32 %v771, %v828
  %v832 = vadd.f32 %v775, %v828
  %v833 = vadd.f32 %v779, %v828
  %v834 = vadd.f32 %v783, %v828
  %v835 = vadd.f32 %v787, %v828
  %v836 = vadd.f32 %v791, %v828
  %v837 = vadd.f32 %v795, %v828
  %v838 = vadd.f32 %v799, %v828
  %v839 = vadd.f32 %v803, %v828
  %v840 = vadd.f32 %v807, %v828
  %v841 = vadd.f32 %v811, %v828
  %v842 = vadd.f32 %v815, %v828
  %v843 = vadd.f32 %v819, %v828
  %v844 = vadd.f32 %v823, %v828
  %v845 = vmul.f32 %v829, 0.2
  %v846 = vmul.f32 %v830, 0.2
  %v847 = vmul.f32 %v831, 0.2
  %v848 = vmul.f32 %v832, 0.2
  %v849 = vmul.f32 %v833, 0.2
  %v850 = vmul.f32 %v834, 0.2
  %v851 = vmul.f32 %v835, 0.2
  %v852 = vmul.f32 %v836, 0.2
  %v853 = vmul.f32 %v837, 0.2
  %v854 = vmul.f32 %v838, 0.2
  %v855 = vmul.f32 %v839, 0.2
  %v856 = vmul.f32 %v840, 0.2
  %v857 = vmul.f32 %v841, 0.2
  %v858 = vmul.f32 %v842, 0.2
  %v859 = vmul.f32 %v843, 0.2
  %v860 = vmul.f32 %v844, 0.2
  %v861 = vmax.f32 %v829, %v845
  %v862 = vmax.f32 %v830, %v846
  %v863 = vmax.f32 %v831, %v847
  %v864 = vmax.f32 %v832, %v848
  %v865 = vmax.f32 %v833, %v849
  %v866 = vmax.f32 %v834, %v850
  %v867 = vmax.f32 %v835, %v851
  %v868 = vmax.f32 %v836, %v852
  %v869 = vmax.f32 %v837, %v853
  %v870 = vmax.f32 %v838, %v854
  %v871 = vmax.f32 %v839, %v855
  %v872 = vmax.f32 %v840, %v856
  %v873 = vmax.f32 %v841, %v857
  %v874 = vmax.f32 %v842, %v858
  %v875 = vmax.f32 %v843, %v859
  %v876 = vmax.f32 %v844, %v860
  %v877 = vadd.f32 %v861, %v283
  %v878 = vadd.f32 %v862, %v284
  %v879 = vadd.f32 %v863, %v285
  %v880 = vadd.f32 %v864, %v286
  %v881 = vadd.f32 %v865, %v287
  %v882 = vadd.f32 %v866, %v288
  %v883 = vadd.f32 %v867, %v289
  %v884 = vadd.f32 %v868, %v290
  %v885 = vadd.f32 %v869, %v291
  %v886 = vadd.f32 %v870, %v292
  %v887 = vadd.f32 %v871, %v293
  %v888 = vadd.f32 %v872, %v294
  %v889 = vadd.f32 %v873, %v295
  %v890 = vadd.f32 %v874, %v296
  %v891 = vadd.f32 %v875, %v297
  %v892 = vadd.f32 %v876, %v298
  %893 = vmax.xlane.f32.xlu0 %v877
  %v894 = vpop.xlane.xlu0 %893
  %895 = vmax.xlane.f32.xlu0 %v878
  %v896 = vpop.xlane.xlu0 %895
  %897 = vmax.xlane.f32.xlu0 %v879
  %v898 = vpop.xlane.xlu0 %897
  %899 = vmax.xlane.f32.xlu0 %v880
  %v900 = vpop.xlane.xlu0 %899
  %901 = vmax.xlane.f32.xlu0 %v881
  %v902 = vpop.xlane.xlu0 %901
  %903 = vmax.xlane.f32.xlu0 %v882
  %v904 = vpop.xlane.xlu0 %903
  %905 = vmax.xlane.f32.xlu0 %v883
  %v906 = vpop.xlane.xlu0 %905
  %907 = vmax.xlane.f32.xlu0 %v884
  %v908 = vpop.xlane.xlu0 %907
  %909 = vmax.xlane.f32.xlu0 %v885
  %v910 = vpop.xlane.xlu0 %909
  %911 = vmax.xlane.f32.xlu0 %v886
  %v912 = vpop.xlane.xlu0 %911
  %913 = vmax.xlane.f32.xlu0 %v887
  %v914 = vpop.xlane.xlu0 %913
  %915 = vmax.xlane.f32.xlu0 %v888
  %v916 = vpop.xlane.xlu0 %915
  %917 = vmax.xlane.f32.xlu0 %v889
  %v918 = vpop.xlane.xlu0 %917
  %919 = vmax.xlane.f32.xlu0 %v890
  %v920 = vpop.xlane.xlu0 %919
  %921 = vmax.xlane.f32.xlu0 %v891
  %v922 = vpop.xlane.xlu0 %921
  %923 = vmax.xlane.f32.xlu0 %v892
  %v924 = vpop.xlane.xlu0 %923
  %v925 = vsub.f32 %v877, %v894
  %v926 = vsub.f32 %v878, %v896
  %v927 = vsub.f32 %v879, %v898
  %v928 = vsub.f32 %v880, %v900
  %v929 = vsub.f32 %v881, %v902
  %v930 = vsub.f32 %v882, %v904
  %v931 = vsub.f32 %v883, %v906
  %v932 = vsub.f32 %v884, %v908
  %v933 = vsub.f32 %v885, %v910
  %v934 = vsub.f32 %v886, %v912
  %v935 = vsub.f32 %v887, %v914
  %v936 = vsub.f32 %v888, %v916
  %v937 = vsub.f32 %v889, %v918
  %v938 = vsub.f32 %v890, %v920
  %v939 = vsub.f32 %v891, %v922
  %v940 = vsub.f32 %v892, %v924
  %v941 = vmul.f32 %v925, 1.442695
  %v942 = vpow.pop %v941
  %v943 = vmul.f32 %v926, 1.442695
  %v944 = vpow.pop %v943
  %v945 = vmul.f32 %v927, 1.442695
  %v946 = vpow.pop %v945
  %v947 = vmul.f32 %v928, 1.442695
  %v948 = vpow.pop %v947
  %v949 = vmul.f32 %v929, 1.442695
  %v950 = vpow.pop %v949
  %v951 = vmul.f32 %v930, 1.442695
  %v952 = vpow.pop %v951
  %v953 = vmul.f32 %v931, 1.442695
  %v954 = vpow.pop %v953
  %v955 = vmul.f32 %v932, 1.442695
  %v956 = vpow.pop %v955
  %v957 = vmul.f32 %v933, 1.442695
  %v958 = vpow.pop %v957
  %v959 = vmul.f32 %v934, 1.442695
  %v960 = vpow.pop %v959
  %v961 = vmul.f32 %v935, 1.442695
  %v962 = vpow.pop %v961
  %v963 = vmul.f32 %v936, 1.442695
  %v964 = vpow.pop %v963
  %v965 = vmul.f32 %v937, 1.442695
  %v966 = vpow.pop %v965
  %v967 = vmul.f32 %v938, 1.442695
  %v968 = vpow.pop %v967
  %v969 = vmul.f32 %v939, 1.442695
  %v970 = vpow.pop %v969
  %v971 = vmul.f32 %v940, 1.442695
  %v972 = vpow.pop %v971
  %973 = vadd.xlane.f32.xlu0 %v942
  %v974 = vpop.xlane.xlu0 %973
  %975 = vadd.xlane.f32.xlu0 %v944
  %v976 = vpop.xlane.xlu0 %975
  %977 = vadd.xlane.f32.xlu0 %v946
  %v978 = vpop.xlane.xlu0 %977
  %979 = vadd.xlane.f32.xlu0 %v948
  %v980 = vpop.xlane.xlu0 %979
  %981 = vadd.xlane.f32.xlu0 %v950
  %v982 = vpop.xlane.xlu0 %981
  %983 = vadd.xlane.f32.xlu0 %v952
  %v984 = vpop.xlane.xlu0 %983
  %985 = vadd.xlane.f32.xlu0 %v954
  %v986 = vpop.xlane.xlu0 %985
  %987 = vadd.xlane.f32.xlu0 %v956
  %v988 = vpop.xlane.xlu0 %987
  %989 = vadd.xlane.f32.xlu0 %v958
  %v990 = vpop.xlane.xlu0 %989
  %991 = vadd.xlane.f32.xlu0 %v960
  %v992 = vpop.xlane.xlu0 %991
  %993 = vadd.xlane.f32.xlu0 %v962
  %v994 = vpop.xlane.xlu0 %993
  %995 = vadd.xlane.f32.xlu0 %v964
  %v996 = vpop.xlane.xlu0 %995
  %997 = vadd.xlane.f32.xlu0 %v966
  %v998 = vpop.xlane.xlu0 %997
  %999 = vadd.xlane.f32.xlu0 %v968
  %v1000 = vpop.xlane.xlu0 %999
  %1001 = vadd.xlane.f32.xlu0 %v970
  %v1002 = vpop.xlane.xlu0 %1001
  %1003 = vadd.xlane.f32.xlu0 %v972
  %v1004 = vpop.xlane.xlu0 %1003
  %v1005 = vrcp.pop %v974
  %v1006 = vrcp.pop %v976
  %v1007 = vrcp.pop %v978
  %v1008 = vrcp.pop %v980
  %v1009 = vrcp.pop %v982
  %v1010 = vrcp.pop %v984
  %v1011 = vrcp.pop %v986
  %v1012 = vrcp.pop %v988
  %v1013 = vrcp.pop %v990
  %v1014 = vrcp.pop %v992
  %v1015 = vrcp.pop %v994
  %v1016 = vrcp.pop %v996
  %v1017 = vrcp.pop %v998
  %v1018 = vrcp.pop %v1000
  %v1019 = vrcp.pop %v1002
  %v1020 = vrcp.pop %v1004
  %v1021 = vpack.c.bf16 %v944, %v942
  %v1022 = vpack.c.bf16 %v948, %v946
  %v1023 = vpack.c.bf16 %v952, %v950
  %v1024 = vpack.c.bf16 %v956, %v954
  %v1025 = vpack.c.bf16 %v960, %v958
  %v1026 = vpack.c.bf16 %v964, %v962
  %v1027 = vpack.c.bf16 %v968, %v966
  %v1028 = vpack.c.bf16 %v972, %v970
  %1029 = vrot.lane.b32.xlu0 %v615, 96
  %v1030 = vpop.permute.xlu0 %1029
  %1031 = vrot.lane.b32.xlu0 %v616, 96
  %v1032 = vpop.permute.xlu0 %1031
  %1033 = vrot.lane.b32.xlu0 %v617, 96
  %v1034 = vpop.permute.xlu0 %1033
  %1035 = vrot.lane.b32.xlu0 %v618, 96
  %v1036 = vpop.permute.xlu0 %1035
  %1037 = vrot.lane.b32.xlu0 %v619, 96
  %v1038 = vpop.permute.xlu0 %1037
  %1039 = vrot.lane.b32.xlu0 %v620, 96
  %v1040 = vpop.permute.xlu0 %1039
  %1041 = vrot.lane.b32.xlu0 %v621, 96
  %v1042 = vpop.permute.xlu0 %1041
  %1043 = vrot.lane.b32.xlu0 %v622, 96
  %v1044 = vpop.permute.xlu0 %1043
  %1053 = vmatprep.subr.bf16.mxu0 0
  %1054 = vmatpush1.bf16.msra.mxu0 %v1030
  %1055 = vmatprep.subr.bf16.mxu0 0
  %1056 = vmatpush1.bf16.msra.mxu0 %v1032
  %1057 = vmatprep.subr.bf16.mxu0 0
  %1058 = vmatpush1.bf16.msra.mxu0 %v1034
  %1059 = vmatprep.subr.bf16.mxu0 0
  %1060 = vmatpush1.bf16.msra.mxu0 %v1036
  %1061 = vmatprep.subr.bf16.mxu0 0
  %1062 = vmatpush1.bf16.msra.mxu0 %v1038
  %1063 = vmatprep.subr.bf16.mxu0 0
  %1064 = vmatpush1.bf16.msra.mxu0 %v1040
  %1065 = vmatprep.subr.bf16.mxu0 0
  %1066 = vmatpush1.bf16.msra.mxu0 %v1042
  %1067 = vmatprep.subr.bf16.mxu0 0
  %1068 = vmatpush1.bf16.msra.mxu0 %v1044
  %1069 = vmatprep.subr.bf16.mxu0 0
  %1070 = vmatpush1.bf16.msra.mxu0 0
  %1071 = vmatprep.subr.bf16.mxu0 0
  %1072 = vmatpush1.bf16.msra.mxu0 0
  %1073 = vmatprep.subr.bf16.mxu0 0
  %1074 = vmatpush1.bf16.msra.mxu0 0
  %1075 = vmatprep.subr.bf16.mxu0 0
  %1076 = vmatpush1.bf16.msra.mxu0 0
  %1077 = vmatprep.subr.bf16.mxu0 0
  %1078 = vmatpush1.bf16.msra.mxu0 0
  %1079 = vmatprep.subr.bf16.mxu0 0
  %1080 = vmatpush1.bf16.msra.mxu0 0
  %1081 = vmatprep.subr.bf16.mxu0 0
  %1082 = vmatpush1.bf16.msra.mxu0 0
  %1083 = vmatprep.subr.bf16.mxu0 0
  %1084 = vmatpush1.bf16.msra.mxu0 0
  %1085 = vmatprep.mubr.bf16.mxu0 0
  %1086 = vmatmul.mubr.bf16.gmra.mrb[0].mxu0 %v1021
  %v1087 = vpop.f32.mrb[0].mxu0
  %v1088 = vadd.f32 0.0, %v1087
  %v1089 = vpop.f32.mrb[0].mxu0
  %v1090 = vpop.f32.mrb[0].mxu0
  %v1091 = vadd.f32 0.0, %v1090
  %v1092 = vpop.f32.mrb[0].mxu0
  %1093 = vmatprep.mubr.bf16.mxu0 0
  %1094 = vmatmul.mubr.bf16.gmra.mrb[0].mxu0 %v1022
  %v1095 = vpop.f32.mrb[0].mxu0
  %v1096 = vadd.f32 0.0, %v1095
  %v1097 = vpop.f32.mrb[0].mxu0
  %v1098 = vpop.f32.mrb[0].mxu0
  %v1099 = vadd.f32 0.0, %v1098
  %v1100 = vpop.f32.mrb[0].mxu0
  %1101 = vmatprep.mubr.bf16.mxu0 0
  %1102 = vmatmul.mubr.bf16.gmra.mrb[0].mxu0 %v1023
  %v1103 = vpop.f32.mrb[0].mxu0
  %v1104 = vadd.f32 0.0, %v1103
  %v1105 = vpop.f32.mrb[0].mxu0
  %v1106 = vpop.f32.mrb[0].mxu0
  %v1107 = vadd.f32 0.0, %v1106
  %v1108 = vpop.f32.mrb[0].mxu0
  %1109 = vmatprep.mubr.bf16.mxu0 0
  %1110 = vmatmul.mubr.bf16.gmra.mrb[0].mxu0 %v1024
  %v1111 = vpop.f32.mrb[0].mxu0
  %v1112 = vadd.f32 0.0, %v1111
  %v1113 = vpop.f32.mrb[0].mxu0
  %v1114 = vpop.f32.mrb[0].mxu0
  %v1115 = vadd.f32 0.0, %v1114
  %v1116 = vpop.f32.mrb[0].mxu0
  %1117 = vmatprep.mubr.bf16.mxu0 0
  %1118 = vmatmul.mubr.bf16.gmra.mrb[0].mxu0 %v1025
  %v1119 = vpop.f32.mrb[0].mxu0
  %v1120 = vadd.f32 0.0, %v1119
  %v1121 = vpop.f32.mrb[0].mxu0
  %v1122 = vpop.f32.mrb[0].mxu0
  %v1123 = vadd.f32 0.0, %v1122
  %v1124 = vpop.f32.mrb[0].mxu0
  %1125 = vmatprep.mubr.bf16.mxu0 0
  %1126 = vmatmul.mubr.bf16.gmra.mrb[0].mxu0 %v1026
  %v1127 = vpop.f32.mrb[0].mxu0
  %v1128 = vadd.f32 0.0, %v1127
  %v1129 = vpop.f32.mrb[0].mxu0
  %v1130 = vpop.f32.mrb[0].mxu0
  %v1131 = vadd.f32 0.0, %v1130
  %v1132 = vpop.f32.mrb[0].mxu0
  %1133 = vmatprep.mubr.bf16.mxu0 0
  %1134 = vmatmul.mubr.bf16.gmra.mrb[0].mxu0 %v1027
  %v1135 = vpop.f32.mrb[0].mxu0
  %v1136 = vadd.f32 0.0, %v1135
  %v1137 = vpop.f32.mrb[0].mxu0
  %v1138 = vpop.f32.mrb[0].mxu0
  %v1139 = vadd.f32 0.0, %v1138
  %v1140 = vpop.f32.mrb[0].mxu0
  %1141 = vmatprep.mubr.bf16.mxu0 0
  %1142 = vmatmul.mubr.bf16.gmra.mrb[0].mxu0 %v1028
  %v1143 = vpop.f32.mrb[0].mxu0
  %v1144 = vadd.f32 0.0, %v1143
  %v1145 = vpop.f32.mrb[0].mxu0
  %v1146 = vpop.f32.mrb[0].mxu0
  %v1147 = vadd.f32 0.0, %v1146
  %v1148 = vpop.f32.mrb[0].mxu0
  %1149 = vdwg.mxu0
  %v1150 = vmul.f32 %v1088, %v1005
  %v1151 = vmul.f32 %v1091, %v1006
  %v1152 = vmul.f32 %v1096, %v1007
  %v1153 = vmul.f32 %v1099, %v1008
  %v1154 = vmul.f32 %v1104, %v1009
  %v1155 = vmul.f32 %v1107, %v1010
  %v1156 = vmul.f32 %v1112, %v1011
  %v1157 = vmul.f32 %v1115, %v1012
  %v1158 = vmul.f32 %v1120, %v1013
  %v1159 = vmul.f32 %v1123, %v1014
  %v1160 = vmul.f32 %v1128, %v1015
  %v1161 = vmul.f32 %v1131, %v1016
  %v1162 = vmul.f32 %v1136, %v1017
  %v1163 = vmul.f32 %v1139, %v1018
  %v1164 = vmul.f32 %v1144, %v1019
  %v1165 = vmul.f32 %v1147, %v1020
  %1182 = vrot.lane.b32.xlu0 %v1150, 32
  %v1183 = vpop.permute.xlu0 %1182
  %1184 = vrot.lane.b32.xlu0 %v1151, 32
  %v1185 = vpop.permute.xlu0 %1184
  %1186 = vrot.lane.b32.xlu0 %v1152, 32
  %v1187 = vpop.permute.xlu0 %1186
  %1188 = vrot.lane.b32.xlu0 %v1153, 32
  %v1189 = vpop.permute.xlu0 %1188
  %1190 = vrot.lane.b32.xlu0 %v1154, 32
  %v1191 = vpop.permute.xlu0 %1190
  %1192 = vrot.lane.b32.xlu0 %v1155, 32
  %v1193 = vpop.permute.xlu0 %1192
  %1194 = vrot.lane.b32.xlu0 %v1156, 32
  %v1195 = vpop.permute.xlu0 %1194
  %1196 = vrot.lane.b32.xlu0 %v1157, 32
  %v1197 = vpop.permute.xlu0 %1196
  %1198 = vrot.lane.b32.xlu0 %v1158, 32
  %v1199 = vpop.permute.xlu0 %1198
  %1200 = vrot.lane.b32.xlu0 %v1159, 32
  %v1201 = vpop.permute.xlu0 %1200
  %1202 = vrot.lane.b32.xlu0 %v1160, 32
  %v1203 = vpop.permute.xlu0 %1202
  %1204 = vrot.lane.b32.xlu0 %v1161, 32
  %v1205 = vpop.permute.xlu0 %1204
  %1206 = vrot.lane.b32.xlu0 %v1162, 32
  %v1207 = vpop.permute.xlu0 %1206
  %1208 = vrot.lane.b32.xlu0 %v1163, 32
  %v1209 = vpop.permute.xlu0 %1208
  %1210 = vrot.lane.b32.xlu0 %v1164, 32
  %v1211 = vpop.permute.xlu0 %1210
  %1212 = vrot.lane.b32.xlu0 %v1165, 32
  %v1213 = vpop.permute.xlu0 %1212
  %vm1230 = vcmask 523520
  %1231 = vst.msk [vmem:[%s6] sm:$0xff] %vm1230, %v1183
  %1232 = vst.msk [vmem:[%s6 + $0x8] sm:$0xff] %vm1230, %v1185
  %1233 = vst.msk [vmem:[%s6 + $0x10] sm:$0xff] %vm1230, %v1187
  %1234 = vst.msk [vmem:[%s6 + $0x18] sm:$0xff] %vm1230, %v1189
  %1235 = vst.msk [vmem:[%s6 + $0x20] sm:$0xff] %vm1230, %v1191
  %1236 = vst.msk [vmem:[%s6 + $0x28] sm:$0xff] %vm1230, %v1193
  %1237 = vst.msk [vmem:[%s6 + $0x30] sm:$0xff] %vm1230, %v1195
  %1238 = vst.msk [vmem:[%s6 + $0x38] sm:$0xff] %vm1230, %v1197
  %1239 = vst.msk [vmem:[%s6 + $0x40] sm:$0xff] %vm1230, %v1199
  %1240 = vst.msk [vmem:[%s6 + $0x48] sm:$0xff] %vm1230, %v1201
  %1241 = vst.msk [vmem:[%s6 + $0x50] sm:$0xff] %vm1230, %v1203
  %1242 = vst.msk [vmem:[%s6 + $0x58] sm:$0xff] %vm1230, %v1205
  %1243 = vst.msk [vmem:[%s6 + $0x60] sm:$0xff] %vm1230, %v1207
  %1244 = vst.msk [vmem:[%s6 + $0x68] sm:$0xff] %vm1230, %v1209
  %1245 = vst.msk [vmem:[%s6 + $0x70] sm:$0xff] %vm1230, %v1211
  %1246 = vst.msk [vmem:[%s6 + $0x78] sm:$0xff] %vm1230, %v1213
  %1247 = vset.pattern.permute.xlu0 2
  %1248 = vperm.xlu0 %1247, %v168
  %v1249 = vpop.permute.xlu0 %1248
  %1251 = vset.pattern.permute.xlu0 2
  %1252 = vperm.xlu0 %1251, %v171
  %v1253 = vpop.permute.xlu0 %1252
  %1255 = vset.pattern.permute.xlu0 2
  %1256 = vperm.xlu0 %1255, %v176
  %v1257 = vpop.permute.xlu0 %1256
  %1259 = vset.pattern.permute.xlu0 2
  %1260 = vperm.xlu0 %1259, %v179
  %v1261 = vpop.permute.xlu0 %1260
  %1263 = vset.pattern.permute.xlu0 2
  %1264 = vperm.xlu0 %1263, %v184
  %v1265 = vpop.permute.xlu0 %1264
  %1267 = vset.pattern.permute.xlu0 2
  %1268 = vperm.xlu0 %1267, %v187
  %v1269 = vpop.permute.xlu0 %1268
  %1271 = vset.pattern.permute.xlu0 2
  %1272 = vperm.xlu0 %1271, %v192
  %v1273 = vpop.permute.xlu0 %1272
  %1275 = vset.pattern.permute.xlu0 2
  %1276 = vperm.xlu0 %1275, %v195
  %v1277 = vpop.permute.xlu0 %1276
  %1279 = vset.pattern.permute.xlu0 2
  %1280 = vperm.xlu0 %1279, %v200
  %v1281 = vpop.permute.xlu0 %1280
  %1283 = vset.pattern.permute.xlu0 2
  %1284 = vperm.xlu0 %1283, %v203
  %v1285 = vpop.permute.xlu0 %1284
  %1287 = vset.pattern.permute.xlu0 2
  %1288 = vperm.xlu0 %1287, %v208
  %v1289 = vpop.permute.xlu0 %1288
  %1291 = vset.pattern.permute.xlu0 2
  %1292 = vperm.xlu0 %1291, %v211
  %v1293 = vpop.permute.xlu0 %1292
  %1295 = vset.pattern.permute.xlu0 2
  %1296 = vperm.xlu0 %1295, %v216
  %v1297 = vpop.permute.xlu0 %1296
  %1299 = vset.pattern.permute.xlu0 2
  %1300 = vperm.xlu0 %1299, %v219
  %v1301 = vpop.permute.xlu0 %1300
  %1303 = vset.pattern.permute.xlu0 2
  %1304 = vperm.xlu0 %1303, %v224
  %v1305 = vpop.permute.xlu0 %1304
  %1307 = vset.pattern.permute.xlu0 2
  %1308 = vperm.xlu0 %1307, %v227
  %v1309 = vpop.permute.xlu0 %1308
  %v1311 = vlaneseq
  %v1312 = vshrl.u32 %v1311, 7
  %v1313 = vsub.s32 2, %v1312
  %v1314 = vrot.slane %v230, %v1313
  %v1315 = vadd.f32 %v1249, %v1314
  %v1316 = vadd.f32 %v1253, %v1314
  %v1317 = vadd.f32 %v1257, %v1314
  %v1318 = vadd.f32 %v1261, %v1314
  %v1319 = vadd.f32 %v1265, %v1314
  %v1320 = vadd.f32 %v1269, %v1314
  %v1321 = vadd.f32 %v1273, %v1314
  %v1322 = vadd.f32 %v1277, %v1314
  %v1323 = vadd.f32 %v1281, %v1314
  %v1324 = vadd.f32 %v1285, %v1314
  %v1325 = vadd.f32 %v1289, %v1314
  %v1326 = vadd.f32 %v1293, %v1314
  %v1327 = vadd.f32 %v1297, %v1314
  %v1328 = vadd.f32 %v1301, %v1314
  %v1329 = vadd.f32 %v1305, %v1314
  %v1330 = vadd.f32 %v1309, %v1314
  %v1331 = vmul.f32 %v1315, 0.2
  %v1332 = vmul.f32 %v1316, 0.2
  %v1333 = vmul.f32 %v1317, 0.2
  %v1334 = vmul.f32 %v1318, 0.2
  %v1335 = vmul.f32 %v1319, 0.2
  %v1336 = vmul.f32 %v1320, 0.2
  %v1337 = vmul.f32 %v1321, 0.2
  %v1338 = vmul.f32 %v1322, 0.2
  %v1339 = vmul.f32 %v1323, 0.2
  %v1340 = vmul.f32 %v1324, 0.2
  %v1341 = vmul.f32 %v1325, 0.2
  %v1342 = vmul.f32 %v1326, 0.2
  %v1343 = vmul.f32 %v1327, 0.2
  %v1344 = vmul.f32 %v1328, 0.2
  %v1345 = vmul.f32 %v1329, 0.2
  %v1346 = vmul.f32 %v1330, 0.2
  %v1347 = vmax.f32 %v1315, %v1331
  %v1348 = vmax.f32 %v1316, %v1332
  %v1349 = vmax.f32 %v1317, %v1333
  %v1350 = vmax.f32 %v1318, %v1334
  %v1351 = vmax.f32 %v1319, %v1335
  %v1352 = vmax.f32 %v1320, %v1336
  %v1353 = vmax.f32 %v1321, %v1337
  %v1354 = vmax.f32 %v1322, %v1338
  %v1355 = vmax.f32 %v1323, %v1339
  %v1356 = vmax.f32 %v1324, %v1340
  %v1357 = vmax.f32 %v1325, %v1341
  %v1358 = vmax.f32 %v1326, %v1342
  %v1359 = vmax.f32 %v1327, %v1343
  %v1360 = vmax.f32 %v1328, %v1344
  %v1361 = vmax.f32 %v1329, %v1345
  %v1362 = vmax.f32 %v1330, %v1346
  %v1363 = vadd.f32 %v1347, %v283
  %v1364 = vadd.f32 %v1348, %v284
  %v1365 = vadd.f32 %v1349, %v285
  %v1366 = vadd.f32 %v1350, %v286
  %v1367 = vadd.f32 %v1351, %v287
  %v1368 = vadd.f32 %v1352, %v288
  %v1369 = vadd.f32 %v1353, %v289
  %v1370 = vadd.f32 %v1354, %v290
  %v1371 = vadd.f32 %v1355, %v291
  %v1372 = vadd.f32 %v1356, %v292
  %v1373 = vadd.f32 %v1357, %v293
  %v1374 = vadd.f32 %v1358, %v294
  %v1375 = vadd.f32 %v1359, %v295
  %v1376 = vadd.f32 %v1360, %v296
  %v1377 = vadd.f32 %v1361, %v297
  %v1378 = vadd.f32 %v1362, %v298
  %1379 = vmax.xlane.f32.xlu0 %v1363
  %v1380 = vpop.xlane.xlu0 %1379
  %1381 = vmax.xlane.f32.xlu0 %v1364
  %v1382 = vpop.xlane.xlu0 %1381
  %1383 = vmax.xlane.f32.xlu0 %v1365
  %v1384 = vpop.xlane.xlu0 %1383
  %1385 = vmax.xlane.f32.xlu0 %v1366
  %v1386 = vpop.xlane.xlu0 %1385
  %1387 = vmax.xlane.f32.xlu0 %v1367
  %v1388 = vpop.xlane.xlu0 %1387
  %1389 = vmax.xlane.f32.xlu0 %v1368
  %v1390 = vpop.xlane.xlu0 %1389
  %1391 = vmax.xlane.f32.xlu0 %v1369
  %v1392 = vpop.xlane.xlu0 %1391
  %1393 = vmax.xlane.f32.xlu0 %v1370
  %v1394 = vpop.xlane.xlu0 %1393
  %1395 = vmax.xlane.f32.xlu0 %v1371
  %v1396 = vpop.xlane.xlu0 %1395
  %1397 = vmax.xlane.f32.xlu0 %v1372
  %v1398 = vpop.xlane.xlu0 %1397
  %1399 = vmax.xlane.f32.xlu0 %v1373
  %v1400 = vpop.xlane.xlu0 %1399
  %1401 = vmax.xlane.f32.xlu0 %v1374
  %v1402 = vpop.xlane.xlu0 %1401
  %1403 = vmax.xlane.f32.xlu0 %v1375
  %v1404 = vpop.xlane.xlu0 %1403
  %1405 = vmax.xlane.f32.xlu0 %v1376
  %v1406 = vpop.xlane.xlu0 %1405
  %1407 = vmax.xlane.f32.xlu0 %v1377
  %v1408 = vpop.xlane.xlu0 %1407
  %1409 = vmax.xlane.f32.xlu0 %v1378
  %v1410 = vpop.xlane.xlu0 %1409
  %v1411 = vsub.f32 %v1363, %v1380
  %v1412 = vsub.f32 %v1364, %v1382
  %v1413 = vsub.f32 %v1365, %v1384
  %v1414 = vsub.f32 %v1366, %v1386
  %v1415 = vsub.f32 %v1367, %v1388
  %v1416 = vsub.f32 %v1368, %v1390
  %v1417 = vsub.f32 %v1369, %v1392
  %v1418 = vsub.f32 %v1370, %v1394
  %v1419 = vsub.f32 %v1371, %v1396
  %v1420 = vsub.f32 %v1372, %v1398
  %v1421 = vsub.f32 %v1373, %v1400
  %v1422 = vsub.f32 %v1374, %v1402
  %v1423 = vsub.f32 %v1375, %v1404
  %v1424 = vsub.f32 %v1376, %v1406
  %v1425 = vsub.f32 %v1377, %v1408
  %v1426 = vsub.f32 %v1378, %v1410
  %v1427 = vmul.f32 %v1411, 1.442695
  %v1428 = vpow.pop %v1427
  %v1429 = vmul.f32 %v1412, 1.442695
  %v1430 = vpow.pop %v1429
  %v1431 = vmul.f32 %v1413, 1.442695
  %v1432 = vpow.pop %v1431
  %v1433 = vmul.f32 %v1414, 1.442695
  %v1434 = vpow.pop %v1433
  %v1435 = vmul.f32 %v1415, 1.442695
  %v1436 = vpow.pop %v1435
  %v1437 = vmul.f32 %v1416, 1.442695
  %v1438 = vpow.pop %v1437
  %v1439 = vmul.f32 %v1417, 1.442695
  %v1440 = vpow.pop %v1439
  %v1441 = vmul.f32 %v1418, 1.442695
  %v1442 = vpow.pop %v1441
  %v1443 = vmul.f32 %v1419, 1.442695
  %v1444 = vpow.pop %v1443
  %v1445 = vmul.f32 %v1420, 1.442695
  %v1446 = vpow.pop %v1445
  %v1447 = vmul.f32 %v1421, 1.442695
  %v1448 = vpow.pop %v1447
  %v1449 = vmul.f32 %v1422, 1.442695
  %v1450 = vpow.pop %v1449
  %v1451 = vmul.f32 %v1423, 1.442695
  %v1452 = vpow.pop %v1451
  %v1453 = vmul.f32 %v1424, 1.442695
  %v1454 = vpow.pop %v1453
  %v1455 = vmul.f32 %v1425, 1.442695
  %v1456 = vpow.pop %v1455
  %v1457 = vmul.f32 %v1426, 1.442695
  %v1458 = vpow.pop %v1457
  %1459 = vadd.xlane.f32.xlu0 %v1428
  %v1460 = vpop.xlane.xlu0 %1459
  %1461 = vadd.xlane.f32.xlu0 %v1430
  %v1462 = vpop.xlane.xlu0 %1461
  %1463 = vadd.xlane.f32.xlu0 %v1432
  %v1464 = vpop.xlane.xlu0 %1463
  %1465 = vadd.xlane.f32.xlu0 %v1434
  %v1466 = vpop.xlane.xlu0 %1465
  %1467 = vadd.xlane.f32.xlu0 %v1436
  %v1468 = vpop.xlane.xlu0 %1467
  %1469 = vadd.xlane.f32.xlu0 %v1438
  %v1470 = vpop.xlane.xlu0 %1469
  %1471 = vadd.xlane.f32.xlu0 %v1440
  %v1472 = vpop.xlane.xlu0 %1471
  %1473 = vadd.xlane.f32.xlu0 %v1442
  %v1474 = vpop.xlane.xlu0 %1473
  %1475 = vadd.xlane.f32.xlu0 %v1444
  %v1476 = vpop.xlane.xlu0 %1475
  %1477 = vadd.xlane.f32.xlu0 %v1446
  %v1478 = vpop.xlane.xlu0 %1477
  %1479 = vadd.xlane.f32.xlu0 %v1448
  %v1480 = vpop.xlane.xlu0 %1479
  %1481 = vadd.xlane.f32.xlu0 %v1450
  %v1482 = vpop.xlane.xlu0 %1481
  %1483 = vadd.xlane.f32.xlu0 %v1452
  %v1484 = vpop.xlane.xlu0 %1483
  %1485 = vadd.xlane.f32.xlu0 %v1454
  %v1486 = vpop.xlane.xlu0 %1485
  %1487 = vadd.xlane.f32.xlu0 %v1456
  %v1488 = vpop.xlane.xlu0 %1487
  %1489 = vadd.xlane.f32.xlu0 %v1458
  %v1490 = vpop.xlane.xlu0 %1489
  %v1491 = vrcp.pop %v1460
  %v1492 = vrcp.pop %v1462
  %v1493 = vrcp.pop %v1464
  %v1494 = vrcp.pop %v1466
  %v1495 = vrcp.pop %v1468
  %v1496 = vrcp.pop %v1470
  %v1497 = vrcp.pop %v1472
  %v1498 = vrcp.pop %v1474
  %v1499 = vrcp.pop %v1476
  %v1500 = vrcp.pop %v1478
  %v1501 = vrcp.pop %v1480
  %v1502 = vrcp.pop %v1482
  %v1503 = vrcp.pop %v1484
  %v1504 = vrcp.pop %v1486
  %v1505 = vrcp.pop %v1488
  %v1506 = vrcp.pop %v1490
  %v1507 = vpack.c.bf16 %v1430, %v1428
  %v1508 = vpack.c.bf16 %v1434, %v1432
  %v1509 = vpack.c.bf16 %v1438, %v1436
  %v1510 = vpack.c.bf16 %v1442, %v1440
  %v1511 = vpack.c.bf16 %v1446, %v1444
  %v1512 = vpack.c.bf16 %v1450, %v1448
  %v1513 = vpack.c.bf16 %v1454, %v1452
  %v1514 = vpack.c.bf16 %v1458, %v1456
  %1515 = vrot.lane.b32.xlu0 %v615, 64
  %v1516 = vpop.permute.xlu0 %1515
  %1517 = vrot.lane.b32.xlu0 %v616, 64
  %v1518 = vpop.permute.xlu0 %1517
  %1519 = vrot.lane.b32.xlu0 %v617, 64
  %v1520 = vpop.permute.xlu0 %1519
  %1521 = vrot.lane.b32.xlu0 %v618, 64
  %v1522 = vpop.permute.xlu0 %1521
  %1523 = vrot.lane.b32.xlu0 %v619, 64
  %v1524 = vpop.permute.xlu0 %1523
  %1525 = vrot.lane.b32.xlu0 %v620, 64
  %v1526 = vpop.permute.xlu0 %1525
  %1527 = vrot.lane.b32.xlu0 %v621, 64
  %v1528 = vpop.permute.xlu0 %1527
  %1529 = vrot.lane.b32.xlu0 %v622, 64
  %v1530 = vpop.permute.xlu0 %1529
  %1539 = vmatprep.subr.bf16.mxu0 0
  %1540 = vmatpush1.bf16.msra.mxu0 %v1516
  %1541 = vmatprep.subr.bf16.mxu0 0
  %1542 = vmatpush1.bf16.msra.mxu0 %v1518
  %1543 = vmatprep.subr.bf16.mxu0 0
  %1544 = vmatpush1.bf16.msra.mxu0 %v1520
  %1545 = vmatprep.subr.bf16.mxu0 0
  %1546 = vmatpush1.bf16.msra.mxu0 %v1522
  %1547 = vmatprep.subr.bf16.mxu0 0
  %1548 = vmatpush1.bf16.msra.mxu0 %v1524
  %1549 = vmatprep.subr.bf16.mxu0 0
  %1550 = vmatpush1.bf16.msra.mxu0 %v1526
  %1551 = vmatprep.subr.bf16.mxu0 0
  %1552 = vmatpush1.bf16.msra.mxu0 %v1528
  %1553 = vmatprep.subr.bf16.mxu0 0
  %1554 = vmatpush1.bf16.msra.mxu0 %v1530
  %1555 = vmatprep.subr.bf16.mxu0 0
  %1556 = vmatpush1.bf16.msra.mxu0 0
  %1557 = vmatprep.subr.bf16.mxu0 0
  %1558 = vmatpush1.bf16.msra.mxu0 0
  %1559 = vmatprep.subr.bf16.mxu0 0
  %1560 = vmatpush1.bf16.msra.mxu0 0
  %1561 = vmatprep.subr.bf16.mxu0 0
  %1562 = vmatpush1.bf16.msra.mxu0 0
  %1563 = vmatprep.subr.bf16.mxu0 0
  %1564 = vmatpush1.bf16.msra.mxu0 0
  %1565 = vmatprep.subr.bf16.mxu0 0
  %1566 = vmatpush1.bf16.msra.mxu0 0
  %1567 = vmatprep.subr.bf16.mxu0 0
  %1568 = vmatpush1.bf16.msra.mxu0 0
  %1569 = vmatprep.subr.bf16.mxu0 0
  %1570 = vmatpush1.bf16.msra.mxu0 0
  %1571 = vmatprep.mubr.bf16.mxu0 0
  %1572 = vmatmul.mubr.bf16.gmra.mrb[0].mxu0 %v1507
  %v1573 = vpop.f32.mrb[0].mxu0
  %v1574 = vadd.f32 0.0, %v1573
  %v1575 = vpop.f32.mrb[0].mxu0
  %v1576 = vpop.f32.mrb[0].mxu0
  %v1577 = vadd.f32 0.0, %v1576
  %v1578 = vpop.f32.mrb[0].mxu0
  %1579 = vmatprep.mubr.bf16.mxu0 0
  %1580 = vmatmul.mubr.bf16.gmra.mrb[0].mxu0 %v1508
  %v1581 = vpop.f32.mrb[0].mxu0
  %v1582 = vadd.f32 0.0, %v1581
  %v1583 = vpop.f32.mrb[0].mxu0
  %v1584 = vpop.f32.mrb[0].mxu0
  %v1585 = vadd.f32 0.0, %v1584
  %v1586 = vpop.f32.mrb[0].mxu0
  %1587 = vmatprep.mubr.bf16.mxu0 0
  %1588 = vmatmul.mubr.bf16.gmra.mrb[0].mxu0 %v1509
  %v1589 = vpop.f32.mrb[0].mxu0
  %v1590 = vadd.f32 0.0, %v1589
  %v1591 = vpop.f32.mrb[0].mxu0
  %v1592 = vpop.f32.mrb[0].mxu0
  %v1593 = vadd.f32 0.0, %v1592
  %v1594 = vpop.f32.mrb[0].mxu0
  %1595 = vmatprep.mubr.bf16.mxu0 0
  %1596 = vmatmul.mubr.bf16.gmra.mrb[0].mxu0 %v1510
  %v1597 = vpop.f32.mrb[0].mxu0
  %v1598 = vadd.f32 0.0, %v1597
  %v1599 = vpop.f32.mrb[0].mxu0
  %v1600 = vpop.f32.mrb[0].mxu0
  %v1601 = vadd.f32 0.0, %v1600
  %v1602 = vpop.f32.mrb[0].mxu0
  %1603 = vmatprep.mubr.bf16.mxu0 0
  %1604 = vmatmul.mubr.bf16.gmra.mrb[0].mxu0 %v1511
  %v1605 = vpop.f32.mrb[0].mxu0
  %v1606 = vadd.f32 0.0, %v1605
  %v1607 = vpop.f32.mrb[0].mxu0
  %v1608 = vpop.f32.mrb[0].mxu0
  %v1609 = vadd.f32 0.0, %v1608
  %v1610 = vpop.f32.mrb[0].mxu0
  %1611 = vmatprep.mubr.bf16.mxu0 0
  %1612 = vmatmul.mubr.bf16.gmra.mrb[0].mxu0 %v1512
  %v1613 = vpop.f32.mrb[0].mxu0
  %v1614 = vadd.f32 0.0, %v1613
  %v1615 = vpop.f32.mrb[0].mxu0
  %v1616 = vpop.f32.mrb[0].mxu0
  %v1617 = vadd.f32 0.0, %v1616
  %v1618 = vpop.f32.mrb[0].mxu0
  %1619 = vmatprep.mubr.bf16.mxu0 0
  %1620 = vmatmul.mubr.bf16.gmra.mrb[0].mxu0 %v1513
  %v1621 = vpop.f32.mrb[0].mxu0
  %v1622 = vadd.f32 0.0, %v1621
  %v1623 = vpop.f32.mrb[0].mxu0
  %v1624 = vpop.f32.mrb[0].mxu0
  %v1625 = vadd.f32 0.0, %v1624
  %v1626 = vpop.f32.mrb[0].mxu0
  %1627 = vmatprep.mubr.bf16.mxu0 0
  %1628 = vmatmul.mubr.bf16.gmra.mrb[0].mxu0 %v1514
  %v1629 = vpop.f32.mrb[0].mxu0
  %v1630 = vadd.f32 0.0, %v1629
  %v1631 = vpop.f32.mrb[0].mxu0
  %v1632 = vpop.f32.mrb[0].mxu0
  %v1633 = vadd.f32 0.0, %v1632
  %v1634 = vpop.f32.mrb[0].mxu0
  %1635 = vdwg.mxu0
  %v1636 = vmul.f32 %v1574, %v1491
  %v1637 = vmul.f32 %v1577, %v1492
  %v1638 = vmul.f32 %v1582, %v1493
  %v1639 = vmul.f32 %v1585, %v1494
  %v1640 = vmul.f32 %v1590, %v1495
  %v1641 = vmul.f32 %v1593, %v1496
  %v1642 = vmul.f32 %v1598, %v1497
  %v1643 = vmul.f32 %v1601, %v1498
  %v1644 = vmul.f32 %v1606, %v1499
  %v1645 = vmul.f32 %v1609, %v1500
  %v1646 = vmul.f32 %v1614, %v1501
  %v1647 = vmul.f32 %v1617, %v1502
  %v1648 = vmul.f32 %v1622, %v1503
  %v1649 = vmul.f32 %v1625, %v1504
  %v1650 = vmul.f32 %v1630, %v1505
  %v1651 = vmul.f32 %v1633, %v1506
  %1668 = vrot.lane.b32.xlu0 %v1636, 64
  %v1669 = vpop.permute.xlu0 %1668
  %1670 = vrot.lane.b32.xlu0 %v1637, 64
  %v1671 = vpop.permute.xlu0 %1670
  %1672 = vrot.lane.b32.xlu0 %v1638, 64
  %v1673 = vpop.permute.xlu0 %1672
  %1674 = vrot.lane.b32.xlu0 %v1639, 64
  %v1675 = vpop.permute.xlu0 %1674
  %1676 = vrot.lane.b32.xlu0 %v1640, 64
  %v1677 = vpop.permute.xlu0 %1676
  %1678 = vrot.lane.b32.xlu0 %v1641, 64
  %v1679 = vpop.permute.xlu0 %1678
  %1680 = vrot.lane.b32.xlu0 %v1642, 64
  %v1681 = vpop.permute.xlu0 %1680
  %1682 = vrot.lane.b32.xlu0 %v1643, 64
  %v1683 = vpop.permute.xlu0 %1682
  %1684 = vrot.lane.b32.xlu0 %v1644, 64
  %v1685 = vpop.permute.xlu0 %1684
  %1686 = vrot.lane.b32.xlu0 %v1645, 64
  %v1687 = vpop.permute.xlu0 %1686
  %1688 = vrot.lane.b32.xlu0 %v1646, 64
  %v1689 = vpop.permute.xlu0 %1688
  %1690 = vrot.lane.b32.xlu0 %v1647, 64
  %v1691 = vpop.permute.xlu0 %1690
  %1692 = vrot.lane.b32.xlu0 %v1648, 64
  %v1693 = vpop.permute.xlu0 %1692
  %1694 = vrot.lane.b32.xlu0 %v1649, 64
  %v1695 = vpop.permute.xlu0 %1694
  %1696 = vrot.lane.b32.xlu0 %v1650, 64
  %v1697 = vpop.permute.xlu0 %1696
  %1698 = vrot.lane.b32.xlu0 %v1651, 64
  %v1699 = vpop.permute.xlu0 %1698
  %vm1716 = vcmask 785920
  %1717 = vst.msk [vmem:[%s6] sm:$0xff] %vm1716, %v1669
  %1718 = vst.msk [vmem:[%s6 + $0x8] sm:$0xff] %vm1716, %v1671
  %1719 = vst.msk [vmem:[%s6 + $0x10] sm:$0xff] %vm1716, %v1673
  %1720 = vst.msk [vmem:[%s6 + $0x18] sm:$0xff] %vm1716, %v1675
  %1721 = vst.msk [vmem:[%s6 + $0x20] sm:$0xff] %vm1716, %v1677
  %1722 = vst.msk [vmem:[%s6 + $0x28] sm:$0xff] %vm1716, %v1679
  %1723 = vst.msk [vmem:[%s6 + $0x30] sm:$0xff] %vm1716, %v1681
  %1724 = vst.msk [vmem:[%s6 + $0x38] sm:$0xff] %vm1716, %v1683
  %1725 = vst.msk [vmem:[%s6 + $0x40] sm:$0xff] %vm1716, %v1685
  %1726 = vst.msk [vmem:[%s6 + $0x48] sm:$0xff] %vm1716, %v1687
  %1727 = vst.msk [vmem:[%s6 + $0x50] sm:$0xff] %vm1716, %v1689
  %1728 = vst.msk [vmem:[%s6 + $0x58] sm:$0xff] %vm1716, %v1691
  %1729 = vst.msk [vmem:[%s6 + $0x60] sm:$0xff] %vm1716, %v1693
  %1730 = vst.msk [vmem:[%s6 + $0x68] sm:$0xff] %vm1716, %v1695
  %1731 = vst.msk [vmem:[%s6 + $0x70] sm:$0xff] %vm1716, %v1697
  %1732 = vst.msk [vmem:[%s6 + $0x78] sm:$0xff] %vm1716, %v1699
  %1733 = vset.pattern.permute.xlu0 3
  %1734 = vperm.xlu0 %1733, %v168
  %v1735 = vpop.permute.xlu0 %1734
  %1737 = vset.pattern.permute.xlu0 3
  %1738 = vperm.xlu0 %1737, %v171
  %v1739 = vpop.permute.xlu0 %1738
  %1741 = vset.pattern.permute.xlu0 3
  %1742 = vperm.xlu0 %1741, %v176
  %v1743 = vpop.permute.xlu0 %1742
  %1745 = vset.pattern.permute.xlu0 3
  %1746 = vperm.xlu0 %1745, %v179
  %v1747 = vpop.permute.xlu0 %1746
  %1749 = vset.pattern.permute.xlu0 3
  %1750 = vperm.xlu0 %1749, %v184
  %v1751 = vpop.permute.xlu0 %1750
  %1753 = vset.pattern.permute.xlu0 3
  %1754 = vperm.xlu0 %1753, %v187
  %v1755 = vpop.permute.xlu0 %1754
  %1757 = vset.pattern.permute.xlu0 3
  %1758 = vperm.xlu0 %1757, %v192
  %v1759 = vpop.permute.xlu0 %1758
  %1761 = vset.pattern.permute.xlu0 3
  %1762 = vperm.xlu0 %1761, %v195
  %v1763 = vpop.permute.xlu0 %1762
  %1765 = vset.pattern.permute.xlu0 3
  %1766 = vperm.xlu0 %1765, %v200
  %v1767 = vpop.permute.xlu0 %1766
  %1769 = vset.pattern.permute.xlu0 3
  %1770 = vperm.xlu0 %1769, %v203
  %v1771 = vpop.permute.xlu0 %1770
  %1773 = vset.pattern.permute.xlu0 3
  %1774 = vperm.xlu0 %1773, %v208
  %v1775 = vpop.permute.xlu0 %1774
  %1777 = vset.pattern.permute.xlu0 3
  %1778 = vperm.xlu0 %1777, %v211
  %v1779 = vpop.permute.xlu0 %1778
  %1781 = vset.pattern.permute.xlu0 3
  %1782 = vperm.xlu0 %1781, %v216
  %v1783 = vpop.permute.xlu0 %1782
  %1785 = vset.pattern.permute.xlu0 3
  %1786 = vperm.xlu0 %1785, %v219
  %v1787 = vpop.permute.xlu0 %1786
  %1789 = vset.pattern.permute.xlu0 3
  %1790 = vperm.xlu0 %1789, %v224
  %v1791 = vpop.permute.xlu0 %1790
  %1793 = vset.pattern.permute.xlu0 3
  %1794 = vperm.xlu0 %1793, %v227
  %v1795 = vpop.permute.xlu0 %1794
  %v1797 = vlaneseq
  %v1798 = vshrl.u32 %v1797, 7
  %v1799 = vsub.s32 3, %v1798
  %v1800 = vrot.slane %v230, %v1799
  %v1801 = vadd.f32 %v1735, %v1800
  %v1802 = vadd.f32 %v1739, %v1800
  %v1803 = vadd.f32 %v1743, %v1800
  %v1804 = vadd.f32 %v1747, %v1800
  %v1805 = vadd.f32 %v1751, %v1800
  %v1806 = vadd.f32 %v1755, %v1800
  %v1807 = vadd.f32 %v1759, %v1800
  %v1808 = vadd.f32 %v1763, %v1800
  %v1809 = vadd.f32 %v1767, %v1800
  %v1810 = vadd.f32 %v1771, %v1800
  %v1811 = vadd.f32 %v1775, %v1800
  %v1812 = vadd.f32 %v1779, %v1800
  %v1813 = vadd.f32 %v1783, %v1800
  %v1814 = vadd.f32 %v1787, %v1800
  %v1815 = vadd.f32 %v1791, %v1800
  %v1816 = vadd.f32 %v1795, %v1800
  %v1817 = vmul.f32 %v1801, 0.2
  %v1818 = vmul.f32 %v1802, 0.2
  %v1819 = vmul.f32 %v1803, 0.2
  %v1820 = vmul.f32 %v1804, 0.2
  %v1821 = vmul.f32 %v1805, 0.2
  %v1822 = vmul.f32 %v1806, 0.2
  %v1823 = vmul.f32 %v1807, 0.2
  %v1824 = vmul.f32 %v1808, 0.2
  %v1825 = vmul.f32 %v1809, 0.2
  %v1826 = vmul.f32 %v1810, 0.2
  %v1827 = vmul.f32 %v1811, 0.2
  %v1828 = vmul.f32 %v1812, 0.2
  %v1829 = vmul.f32 %v1813, 0.2
  %v1830 = vmul.f32 %v1814, 0.2
  %v1831 = vmul.f32 %v1815, 0.2
  %v1832 = vmul.f32 %v1816, 0.2
  %v1833 = vmax.f32 %v1801, %v1817
  %v1834 = vmax.f32 %v1802, %v1818
  %v1835 = vmax.f32 %v1803, %v1819
  %v1836 = vmax.f32 %v1804, %v1820
  %v1837 = vmax.f32 %v1805, %v1821
  %v1838 = vmax.f32 %v1806, %v1822
  %v1839 = vmax.f32 %v1807, %v1823
  %v1840 = vmax.f32 %v1808, %v1824
  %v1841 = vmax.f32 %v1809, %v1825
  %v1842 = vmax.f32 %v1810, %v1826
  %v1843 = vmax.f32 %v1811, %v1827
  %v1844 = vmax.f32 %v1812, %v1828
  %v1845 = vmax.f32 %v1813, %v1829
  %v1846 = vmax.f32 %v1814, %v1830
  %v1847 = vmax.f32 %v1815, %v1831
  %v1848 = vmax.f32 %v1816, %v1832
  %v1849 = vadd.f32 %v1833, %v283
  %v1850 = vadd.f32 %v1834, %v284
  %v1851 = vadd.f32 %v1835, %v285
  %v1852 = vadd.f32 %v1836, %v286
  %v1853 = vadd.f32 %v1837, %v287
  %v1854 = vadd.f32 %v1838, %v288
  %v1855 = vadd.f32 %v1839, %v289
  %v1856 = vadd.f32 %v1840, %v290
  %v1857 = vadd.f32 %v1841, %v291
  %v1858 = vadd.f32 %v1842, %v292
  %v1859 = vadd.f32 %v1843, %v293
  %v1860 = vadd.f32 %v1844, %v294
  %v1861 = vadd.f32 %v1845, %v295
  %v1862 = vadd.f32 %v1846, %v296
  %v1863 = vadd.f32 %v1847, %v297
  %v1864 = vadd.f32 %v1848, %v298
  %1865 = vmax.xlane.f32.xlu0 %v1849
  %v1866 = vpop.xlane.xlu0 %1865
  %1867 = vmax.xlane.f32.xlu0 %v1850
  %v1868 = vpop.xlane.xlu0 %1867
  %1869 = vmax.xlane.f32.xlu0 %v1851
  %v1870 = vpop.xlane.xlu0 %1869
  %1871 = vmax.xlane.f32.xlu0 %v1852
  %v1872 = vpop.xlane.xlu0 %1871
  %1873 = vmax.xlane.f32.xlu0 %v1853
  %v1874 = vpop.xlane.xlu0 %1873
  %1875 = vmax.xlane.f32.xlu0 %v1854
  %v1876 = vpop.xlane.xlu0 %1875
  %1877 = vmax.xlane.f32.xlu0 %v1855
  %v1878 = vpop.xlane.xlu0 %1877
  %1879 = vmax.xlane.f32.xlu0 %v1856
  %v1880 = vpop.xlane.xlu0 %1879
  %1881 = vmax.xlane.f32.xlu0 %v1857
  %v1882 = vpop.xlane.xlu0 %1881
  %1883 = vmax.xlane.f32.xlu0 %v1858
  %v1884 = vpop.xlane.xlu0 %1883
  %1885 = vmax.xlane.f32.xlu0 %v1859
  %v1886 = vpop.xlane.xlu0 %1885
  %1887 = vmax.xlane.f32.xlu0 %v1860
  %v1888 = vpop.xlane.xlu0 %1887
  %1889 = vmax.xlane.f32.xlu0 %v1861
  %v1890 = vpop.xlane.xlu0 %1889
  %1891 = vmax.xlane.f32.xlu0 %v1862
  %v1892 = vpop.xlane.xlu0 %1891
  %1893 = vmax.xlane.f32.xlu0 %v1863
  %v1894 = vpop.xlane.xlu0 %1893
  %1895 = vmax.xlane.f32.xlu0 %v1864
  %v1896 = vpop.xlane.xlu0 %1895
  %v1897 = vsub.f32 %v1849, %v1866
  %v1898 = vsub.f32 %v1850, %v1868
  %v1899 = vsub.f32 %v1851, %v1870
  %v1900 = vsub.f32 %v1852, %v1872
  %v1901 = vsub.f32 %v1853, %v1874
  %v1902 = vsub.f32 %v1854, %v1876
  %v1903 = vsub.f32 %v1855, %v1878
  %v1904 = vsub.f32 %v1856, %v1880
  %v1905 = vsub.f32 %v1857, %v1882
  %v1906 = vsub.f32 %v1858, %v1884
  %v1907 = vsub.f32 %v1859, %v1886
  %v1908 = vsub.f32 %v1860, %v1888
  %v1909 = vsub.f32 %v1861, %v1890
  %v1910 = vsub.f32 %v1862, %v1892
  %v1911 = vsub.f32 %v1863, %v1894
  %v1912 = vsub.f32 %v1864, %v1896
  %v1913 = vmul.f32 %v1897, 1.442695
  %v1914 = vpow.pop %v1913
  %v1915 = vmul.f32 %v1898, 1.442695
  %v1916 = vpow.pop %v1915
  %v1917 = vmul.f32 %v1899, 1.442695
  %v1918 = vpow.pop %v1917
  %v1919 = vmul.f32 %v1900, 1.442695
  %v1920 = vpow.pop %v1919
  %v1921 = vmul.f32 %v1901, 1.442695
  %v1922 = vpow.pop %v1921
  %v1923 = vmul.f32 %v1902, 1.442695
  %v1924 = vpow.pop %v1923
  %v1925 = vmul.f32 %v1903, 1.442695
  %v1926 = vpow.pop %v1925
  %v1927 = vmul.f32 %v1904, 1.442695
  %v1928 = vpow.pop %v1927
  %v1929 = vmul.f32 %v1905, 1.442695
  %v1930 = vpow.pop %v1929
  %v1931 = vmul.f32 %v1906, 1.442695
  %v1932 = vpow.pop %v1931
  %v1933 = vmul.f32 %v1907, 1.442695
  %v1934 = vpow.pop %v1933
  %v1935 = vmul.f32 %v1908, 1.442695
  %v1936 = vpow.pop %v1935
  %v1937 = vmul.f32 %v1909, 1.442695
  %v1938 = vpow.pop %v1937
  %v1939 = vmul.f32 %v1910, 1.442695
  %v1940 = vpow.pop %v1939
  %v1941 = vmul.f32 %v1911, 1.442695
  %v1942 = vpow.pop %v1941
  %v1943 = vmul.f32 %v1912, 1.442695
  %v1944 = vpow.pop %v1943
  %1945 = vadd.xlane.f32.xlu0 %v1914
  %v1946 = vpop.xlane.xlu0 %1945
  %1947 = vadd.xlane.f32.xlu0 %v1916
  %v1948 = vpop.xlane.xlu0 %1947
  %1949 = vadd.xlane.f32.xlu0 %v1918
  %v1950 = vpop.xlane.xlu0 %1949
  %1951 = vadd.xlane.f32.xlu0 %v1920
  %v1952 = vpop.xlane.xlu0 %1951
  %1953 = vadd.xlane.f32.xlu0 %v1922
  %v1954 = vpop.xlane.xlu0 %1953
  %1955 = vadd.xlane.f32.xlu0 %v1924
  %v1956 = vpop.xlane.xlu0 %1955
  %1957 = vadd.xlane.f32.xlu0 %v1926
  %v1958 = vpop.xlane.xlu0 %1957
  %1959 = vadd.xlane.f32.xlu0 %v1928
  %v1960 = vpop.xlane.xlu0 %1959
  %1961 = vadd.xlane.f32.xlu0 %v1930
  %v1962 = vpop.xlane.xlu0 %1961
  %1963 = vadd.xlane.f32.xlu0 %v1932
  %v1964 = vpop.xlane.xlu0 %1963
  %1965 = vadd.xlane.f32.xlu0 %v1934
  %v1966 = vpop.xlane.xlu0 %1965
  %1967 = vadd.xlane.f32.xlu0 %v1936
  %v1968 = vpop.xlane.xlu0 %1967
  %1969 = vadd.xlane.f32.xlu0 %v1938
  %v1970 = vpop.xlane.xlu0 %1969
  %1971 = vadd.xlane.f32.xlu0 %v1940
  %v1972 = vpop.xlane.xlu0 %1971
  %1973 = vadd.xlane.f32.xlu0 %v1942
  %v1974 = vpop.xlane.xlu0 %1973
  %1975 = vadd.xlane.f32.xlu0 %v1944
  %v1976 = vpop.xlane.xlu0 %1975
  %v1977 = vrcp.pop %v1946
  %v1978 = vrcp.pop %v1948
  %v1979 = vrcp.pop %v1950
  %v1980 = vrcp.pop %v1952
  %v1981 = vrcp.pop %v1954
  %v1982 = vrcp.pop %v1956
  %v1983 = vrcp.pop %v1958
  %v1984 = vrcp.pop %v1960
  %v1985 = vrcp.pop %v1962
  %v1986 = vrcp.pop %v1964
  %v1987 = vrcp.pop %v1966
  %v1988 = vrcp.pop %v1968
  %v1989 = vrcp.pop %v1970
  %v1990 = vrcp.pop %v1972
  %v1991 = vrcp.pop %v1974
  %v1992 = vrcp.pop %v1976
  %v1993 = vpack.c.bf16 %v1916, %v1914
  %v1994 = vpack.c.bf16 %v1920, %v1918
  %v1995 = vpack.c.bf16 %v1924, %v1922
  %v1996 = vpack.c.bf16 %v1928, %v1926
  %v1997 = vpack.c.bf16 %v1932, %v1930
  %v1998 = vpack.c.bf16 %v1936, %v1934
  %v1999 = vpack.c.bf16 %v1940, %v1938
  %v2000 = vpack.c.bf16 %v1944, %v1942
  %2001 = vrot.lane.b32.xlu0 %v615, 32
  %v2002 = vpop.permute.xlu0 %2001
  %2003 = vrot.lane.b32.xlu0 %v616, 32
  %v2004 = vpop.permute.xlu0 %2003
  %2005 = vrot.lane.b32.xlu0 %v617, 32
  %v2006 = vpop.permute.xlu0 %2005
  %2007 = vrot.lane.b32.xlu0 %v618, 32
  %v2008 = vpop.permute.xlu0 %2007
  %2009 = vrot.lane.b32.xlu0 %v619, 32
  %v2010 = vpop.permute.xlu0 %2009
  %2011 = vrot.lane.b32.xlu0 %v620, 32
  %v2012 = vpop.permute.xlu0 %2011
  %2013 = vrot.lane.b32.xlu0 %v621, 32
  %v2014 = vpop.permute.xlu0 %2013
  %2015 = vrot.lane.b32.xlu0 %v622, 32
  %v2016 = vpop.permute.xlu0 %2015
  %2025 = vmatprep.subr.bf16.mxu0 0
  %2026 = vmatpush1.bf16.msra.mxu0 %v2002
  %2027 = vmatprep.subr.bf16.mxu0 0
  %2028 = vmatpush1.bf16.msra.mxu0 %v2004
  %2029 = vmatprep.subr.bf16.mxu0 0
  %2030 = vmatpush1.bf16.msra.mxu0 %v2006
  %2031 = vmatprep.subr.bf16.mxu0 0
  %2032 = vmatpush1.bf16.msra.mxu0 %v2008
  %2033 = vmatprep.subr.bf16.mxu0 0
  %2034 = vmatpush1.bf16.msra.mxu0 %v2010
  %2035 = vmatprep.subr.bf16.mxu0 0
  %2036 = vmatpush1.bf16.msra.mxu0 %v2012
  %2037 = vmatprep.subr.bf16.mxu0 0
  %2038 = vmatpush1.bf16.msra.mxu0 %v2014
  %2039 = vmatprep.subr.bf16.mxu0 0
  %2040 = vmatpush1.bf16.msra.mxu0 %v2016
  %2041 = vmatprep.subr.bf16.mxu0 0
  %2042 = vmatpush1.bf16.msra.mxu0 0
  %2043 = vmatprep.subr.bf16.mxu0 0
  %2044 = vmatpush1.bf16.msra.mxu0 0
  %2045 = vmatprep.subr.bf16.mxu0 0
  %2046 = vmatpush1.bf16.msra.mxu0 0
  %2047 = vmatprep.subr.bf16.mxu0 0
  %2048 = vmatpush1.bf16.msra.mxu0 0
  %2049 = vmatprep.subr.bf16.mxu0 0
  %2050 = vmatpush1.bf16.msra.mxu0 0
  %2051 = vmatprep.subr.bf16.mxu0 0
  %2052 = vmatpush1.bf16.msra.mxu0 0
  %2053 = vmatprep.subr.bf16.mxu0 0
  %2054 = vmatpush1.bf16.msra.mxu0 0
  %2055 = vmatprep.subr.bf16.mxu0 0
  %2056 = vmatpush1.bf16.msra.mxu0 0
  %2057 = vmatprep.mubr.bf16.mxu0 0
  %2058 = vmatmul.mubr.bf16.gmra.mrb[0].mxu0 %v1993
  %v2059 = vpop.f32.mrb[0].mxu0
  %v2060 = vadd.f32 0.0, %v2059
  %v2061 = vpop.f32.mrb[0].mxu0
  %v2062 = vpop.f32.mrb[0].mxu0
  %v2063 = vadd.f32 0.0, %v2062
  %v2064 = vpop.f32.mrb[0].mxu0
  %2065 = vmatprep.mubr.bf16.mxu0 0
  %2066 = vmatmul.mubr.bf16.gmra.mrb[0].mxu0 %v1994
  %v2067 = vpop.f32.mrb[0].mxu0
  %v2068 = vadd.f32 0.0, %v2067
  %v2069 = vpop.f32.mrb[0].mxu0
  %v2070 = vpop.f32.mrb[0].mxu0
  %v2071 = vadd.f32 0.0, %v2070
  %v2072 = vpop.f32.mrb[0].mxu0
  %2073 = vmatprep.mubr.bf16.mxu0 0
  %2074 = vmatmul.mubr.bf16.gmra.mrb[0].mxu0 %v1995
  %v2075 = vpop.f32.mrb[0].mxu0
  %v2076 = vadd.f32 0.0, %v2075
  %v2077 = vpop.f32.mrb[0].mxu0
  %v2078 = vpop.f32.mrb[0].mxu0
  %v2079 = vadd.f32 0.0, %v2078
  %v2080 = vpop.f32.mrb[0].mxu0
  %2081 = vmatprep.mubr.bf16.mxu0 0
  %2082 = vmatmul.mubr.bf16.gmra.mrb[0].mxu0 %v1996
  %v2083 = vpop.f32.mrb[0].mxu0
  %v2084 = vadd.f32 0.0, %v2083
  %v2085 = vpop.f32.mrb[0].mxu0
  %v2086 = vpop.f32.mrb[0].mxu0
  %v2087 = vadd.f32 0.0, %v2086
  %v2088 = vpop.f32.mrb[0].mxu0
  %2089 = vmatprep.mubr.bf16.mxu0 0
  %2090 = vmatmul.mubr.bf16.gmra.mrb[0].mxu0 %v1997
  %v2091 = vpop.f32.mrb[0].mxu0
  %v2092 = vadd.f32 0.0, %v2091
  %v2093 = vpop.f32.mrb[0].mxu0
  %v2094 = vpop.f32.mrb[0].mxu0
  %v2095 = vadd.f32 0.0, %v2094
  %v2096 = vpop.f32.mrb[0].mxu0
  %2097 = vmatprep.mubr.bf16.mxu0 0
  %2098 = vmatmul.mubr.bf16.gmra.mrb[0].mxu0 %v1998
  %v2099 = vpop.f32.mrb[0].mxu0
  %v2100 = vadd.f32 0.0, %v2099
  %v2101 = vpop.f32.mrb[0].mxu0
  %v2102 = vpop.f32.mrb[0].mxu0
  %v2103 = vadd.f32 0.0, %v2102
  %v2104 = vpop.f32.mrb[0].mxu0
  %2105 = vmatprep.mubr.bf16.mxu0 0
  %2106 = vmatmul.mubr.bf16.gmra.mrb[0].mxu0 %v1999
  %v2107 = vpop.f32.mrb[0].mxu0
  %v2108 = vadd.f32 0.0, %v2107
  %v2109 = vpop.f32.mrb[0].mxu0
  %v2110 = vpop.f32.mrb[0].mxu0
  %v2111 = vadd.f32 0.0, %v2110
  %v2112 = vpop.f32.mrb[0].mxu0
  %2113 = vmatprep.mubr.bf16.mxu0 0
  %2114 = vmatmul.mubr.bf16.gmra.mrb[0].mxu0 %v2000
  %v2115 = vpop.f32.mrb[0].mxu0
  %v2116 = vadd.f32 0.0, %v2115
  %v2117 = vpop.f32.mrb[0].mxu0
  %v2118 = vpop.f32.mrb[0].mxu0
  %v2119 = vadd.f32 0.0, %v2118
  %v2120 = vpop.f32.mrb[0].mxu0
  %2121 = vdwg.mxu0
  %v2122 = vmul.f32 %v2060, %v1977
  %v2123 = vmul.f32 %v2063, %v1978
  %v2124 = vmul.f32 %v2068, %v1979
  %v2125 = vmul.f32 %v2071, %v1980
  %v2126 = vmul.f32 %v2076, %v1981
  %v2127 = vmul.f32 %v2079, %v1982
  %v2128 = vmul.f32 %v2084, %v1983
  %v2129 = vmul.f32 %v2087, %v1984
  %v2130 = vmul.f32 %v2092, %v1985
  %v2131 = vmul.f32 %v2095, %v1986
  %v2132 = vmul.f32 %v2100, %v1987
  %v2133 = vmul.f32 %v2103, %v1988
  %v2134 = vmul.f32 %v2108, %v1989
  %v2135 = vmul.f32 %v2111, %v1990
  %v2136 = vmul.f32 %v2116, %v1991
  %v2137 = vmul.f32 %v2119, %v1992
  %2154 = vrot.lane.b32.xlu0 %v2122, 96
  %v2155 = vpop.permute.xlu0 %2154
  %2156 = vrot.lane.b32.xlu0 %v2123, 96
  %v2157 = vpop.permute.xlu0 %2156
  %2158 = vrot.lane.b32.xlu0 %v2124, 96
  %v2159 = vpop.permute.xlu0 %2158
  %2160 = vrot.lane.b32.xlu0 %v2125, 96
  %v2161 = vpop.permute.xlu0 %2160
  %2162 = vrot.lane.b32.xlu0 %v2126, 96
  %v2163 = vpop.permute.xlu0 %2162
  %2164 = vrot.lane.b32.xlu0 %v2127, 96
  %v2165 = vpop.permute.xlu0 %2164
  %2166 = vrot.lane.b32.xlu0 %v2128, 96
  %v2167 = vpop.permute.xlu0 %2166
  %2168 = vrot.lane.b32.xlu0 %v2129, 96
  %v2169 = vpop.permute.xlu0 %2168
  %2170 = vrot.lane.b32.xlu0 %v2130, 96
  %v2171 = vpop.permute.xlu0 %2170
  %2172 = vrot.lane.b32.xlu0 %v2131, 96
  %v2173 = vpop.permute.xlu0 %2172
  %2174 = vrot.lane.b32.xlu0 %v2132, 96
  %v2175 = vpop.permute.xlu0 %2174
  %2176 = vrot.lane.b32.xlu0 %v2133, 96
  %v2177 = vpop.permute.xlu0 %2176
  %2178 = vrot.lane.b32.xlu0 %v2134, 96
  %v2179 = vpop.permute.xlu0 %2178
  %2180 = vrot.lane.b32.xlu0 %v2135, 96
  %v2181 = vpop.permute.xlu0 %2180
  %2182 = vrot.lane.b32.xlu0 %v2136, 96
  %v2183 = vpop.permute.xlu0 %2182
  %2184 = vrot.lane.b32.xlu0 %v2137, 96
  %v2185 = vpop.permute.xlu0 %2184
  %vm2202 = vcmask 1048320
  %2203 = vst.msk [vmem:[%s6] sm:$0xff] %vm2202, %v2155
  %2204 = vst.msk [vmem:[%s6 + $0x8] sm:$0xff] %vm2202, %v2157
  %2205 = vst.msk [vmem:[%s6 + $0x10] sm:$0xff] %vm2202, %v2159
  %2206 = vst.msk [vmem:[%s6 + $0x18] sm:$0xff] %vm2202, %v2161
  %2207 = vst.msk [vmem:[%s6 + $0x20] sm:$0xff] %vm2202, %v2163
  %2208 = vst.msk [vmem:[%s6 + $0x28] sm:$0xff] %vm2202, %v2165
  %2209 = vst.msk [vmem:[%s6 + $0x30] sm:$0xff] %vm2202, %v2167
  %2210 = vst.msk [vmem:[%s6 + $0x38] sm:$0xff] %vm2202, %v2169
  %2211 = vst.msk [vmem:[%s6 + $0x40] sm:$0xff] %vm2202, %v2171
  %2212 = vst.msk [vmem:[%s6 + $0x48] sm:$0xff] %vm2202, %v2173
  %2213 = vst.msk [vmem:[%s6 + $0x50] sm:$0xff] %vm2202, %v2175
  %2214 = vst.msk [vmem:[%s6 + $0x58] sm:$0xff] %vm2202, %v2177
  %2215 = vst.msk [vmem:[%s6 + $0x60] sm:$0xff] %vm2202, %v2179
  %2216 = vst.msk [vmem:[%s6 + $0x68] sm:$0xff] %vm2202, %v2181
  %2217 = vst.msk [vmem:[%s6 + $0x70] sm:$0xff] %vm2202, %v2183
  %2218 = vst.msk [vmem:[%s6 + $0x78] sm:$0xff] %vm2202, %v2185
  %v2219 = vld [vmem:[%s6] sm:$0xff]
  %v2220 = vld [vmem:[%s6 + $0x8] sm:$0xff]
  %v2221 = vld [vmem:[%s6 + $0x10] sm:$0xff]
  %v2222 = vld [vmem:[%s6 + $0x18] sm:$0xff]
  %v2223 = vld [vmem:[%s6 + $0x20] sm:$0xff]
  %v2224 = vld [vmem:[%s6 + $0x28] sm:$0xff]
  %v2225 = vld [vmem:[%s6 + $0x30] sm:$0xff]
  %v2226 = vld [vmem:[%s6 + $0x38] sm:$0xff]
  %v2227 = vld [vmem:[%s6 + $0x40] sm:$0xff]
  %v2228 = vld [vmem:[%s6 + $0x48] sm:$0xff]
  %v2229 = vld [vmem:[%s6 + $0x50] sm:$0xff]
  %v2230 = vld [vmem:[%s6 + $0x58] sm:$0xff]
  %v2231 = vld [vmem:[%s6 + $0x60] sm:$0xff]
  %v2232 = vld [vmem:[%s6 + $0x68] sm:$0xff]
  %v2233 = vld [vmem:[%s6 + $0x70] sm:$0xff]
  %v2234 = vld [vmem:[%s6 + $0x78] sm:$0xff]
  %v2235 = vld [vmem:[%s3] sm:$0xff]
  %v2236 = vld [vmem:[%s3 + $0x8] sm:$0xff]
  %v2237 = vld [vmem:[%s3 + $0x10] sm:$0xff]
  %v2238 = vld [vmem:[%s3 + $0x18] sm:$0xff]
  %v2239 = vld [vmem:[%s3 + $0x20] sm:$0xff]
  %v2240 = vld [vmem:[%s3 + $0x28] sm:$0xff]
  %v2241 = vld [vmem:[%s3 + $0x30] sm:$0xff]
  %v2242 = vld [vmem:[%s3 + $0x38] sm:$0xff]
  %v2243 = vld [vmem:[%s3 + $0x40] sm:$0xff]
  %v2244 = vld [vmem:[%s3 + $0x48] sm:$0xff]
  %v2245 = vld [vmem:[%s3 + $0x50] sm:$0xff]
  %v2246 = vld [vmem:[%s3 + $0x58] sm:$0xff]
  %v2247 = vld [vmem:[%s3 + $0x60] sm:$0xff]
  %v2248 = vld [vmem:[%s3 + $0x68] sm:$0xff]
  %v2249 = vld [vmem:[%s3 + $0x70] sm:$0xff]
  %v2250 = vld [vmem:[%s3 + $0x78] sm:$0xff]
  %v2251 = vadd.f32 %v2219, %v2235
  %v2252 = vadd.f32 %v2220, %v2236
  %v2253 = vadd.f32 %v2221, %v2237
  %v2254 = vadd.f32 %v2222, %v2238
  %v2255 = vadd.f32 %v2223, %v2239
  %v2256 = vadd.f32 %v2224, %v2240
  %v2257 = vadd.f32 %v2225, %v2241
  %v2258 = vadd.f32 %v2226, %v2242
  %v2259 = vadd.f32 %v2227, %v2243
  %v2260 = vadd.f32 %v2228, %v2244
  %v2261 = vadd.f32 %v2229, %v2245
  %v2262 = vadd.f32 %v2230, %v2246
  %v2263 = vadd.f32 %v2231, %v2247
  %v2264 = vadd.f32 %v2232, %v2248
  %v2265 = vadd.f32 %v2233, %v2249
  %v2266 = vadd.f32 %v2234, %v2250
  %v2267 = vld [vmem:[%s5] sm:$0x1]
  %v2269 = vlaneseq
  %v2270 = vshrl.u32 %v2269, 7
  %v2271 = vsub.s32 0, %v2270
  %v2272 = vrot.slane %v2267, %v2271
  %v2274 = vadd.f32 %v2251, %v2272
  %v2275 = vadd.f32 %v2252, %v2272
  %v2276 = vadd.f32 %v2253, %v2272
  %v2277 = vadd.f32 %v2254, %v2272
  %v2278 = vadd.f32 %v2255, %v2272
  %v2279 = vadd.f32 %v2256, %v2272
  %v2280 = vadd.f32 %v2257, %v2272
  %v2281 = vadd.f32 %v2258, %v2272
  %v2282 = vadd.f32 %v2259, %v2272
  %v2283 = vadd.f32 %v2260, %v2272
  %v2284 = vadd.f32 %v2261, %v2272
  %v2285 = vadd.f32 %v2262, %v2272
  %v2286 = vadd.f32 %v2263, %v2272
  %v2287 = vadd.f32 %v2264, %v2272
  %v2288 = vadd.f32 %v2265, %v2272
  %v2289 = vadd.f32 %v2266, %v2272
  %vm2290 = vcmp.gt.f32.partialorder %v2274, 0.0
  %vm2291 = vcmp.gt.f32.partialorder %v2275, 0.0
  %vm2292 = vcmp.gt.f32.partialorder %v2276, 0.0
  %vm2293 = vcmp.gt.f32.partialorder %v2277, 0.0
  %vm2294 = vcmp.gt.f32.partialorder %v2278, 0.0
  %vm2295 = vcmp.gt.f32.partialorder %v2279, 0.0
  %vm2296 = vcmp.gt.f32.partialorder %v2280, 0.0
  %vm2297 = vcmp.gt.f32.partialorder %v2281, 0.0
  %vm2298 = vcmp.gt.f32.partialorder %v2282, 0.0
  %vm2299 = vcmp.gt.f32.partialorder %v2283, 0.0
  %vm2300 = vcmp.gt.f32.partialorder %v2284, 0.0
  %vm2301 = vcmp.gt.f32.partialorder %v2285, 0.0
  %vm2302 = vcmp.gt.f32.partialorder %v2286, 0.0
  %vm2303 = vcmp.gt.f32.partialorder %v2287, 0.0
  %vm2304 = vcmp.gt.f32.partialorder %v2288, 0.0
  %vm2305 = vcmp.gt.f32.partialorder %v2289, 0.0
  %v2306 = vmin.f32 %v2274, 0.0
  %v2307 = vmin.f32 %v2275, 0.0
  %v2308 = vmin.f32 %v2276, 0.0
  %v2309 = vmin.f32 %v2277, 0.0
  %v2310 = vmin.f32 %v2278, 0.0
  %v2311 = vmin.f32 %v2279, 0.0
  %v2312 = vmin.f32 %v2280, 0.0
  %v2313 = vmin.f32 %v2281, 0.0
  %v2314 = vmin.f32 %v2282, 0.0
  %v2315 = vmin.f32 %v2283, 0.0
  %v2316 = vmin.f32 %v2284, 0.0
  %v2317 = vmin.f32 %v2285, 0.0
  %v2318 = vmin.f32 %v2286, 0.0
  %v2319 = vmin.f32 %v2287, 0.0
  %v2320 = vmin.f32 %v2288, 0.0
  %v2321 = vmin.f32 %v2289, 0.0
  %v2322 = vmul.f32 %v2306, 1.442695
  %v2323 = vpow.pop %v2322
  %v2324 = vmul.f32 %v2307, 1.442695
  %v2325 = vpow.pop %v2324
  %v2326 = vmul.f32 %v2308, 1.442695
  %v2327 = vpow.pop %v2326
  %v2328 = vmul.f32 %v2309, 1.442695
  %v2329 = vpow.pop %v2328
  %v2330 = vmul.f32 %v2310, 1.442695
  %v2331 = vpow.pop %v2330
  %v2332 = vmul.f32 %v2311, 1.442695
  %v2333 = vpow.pop %v2332
  %v2334 = vmul.f32 %v2312, 1.442695
  %v2335 = vpow.pop %v2334
  %v2336 = vmul.f32 %v2313, 1.442695
  %v2337 = vpow.pop %v2336
  %v2338 = vmul.f32 %v2314, 1.442695
  %v2339 = vpow.pop %v2338
  %v2340 = vmul.f32 %v2315, 1.442695
  %v2341 = vpow.pop %v2340
  %v2342 = vmul.f32 %v2316, 1.442695
  %v2343 = vpow.pop %v2342
  %v2344 = vmul.f32 %v2317, 1.442695
  %v2345 = vpow.pop %v2344
  %v2346 = vmul.f32 %v2318, 1.442695
  %v2347 = vpow.pop %v2346
  %v2348 = vmul.f32 %v2319, 1.442695
  %v2349 = vpow.pop %v2348
  %v2350 = vmul.f32 %v2320, 1.442695
  %v2351 = vpow.pop %v2350
  %v2352 = vmul.f32 %v2321, 1.442695
  %v2353 = vpow.pop %v2352
  %v2354 = vsub.f32 %v2323, 1.0
  %v2355 = vsub.f32 %v2325, 1.0
  %v2356 = vsub.f32 %v2327, 1.0
  %v2357 = vsub.f32 %v2329, 1.0
  %v2358 = vsub.f32 %v2331, 1.0
  %v2359 = vsub.f32 %v2333, 1.0
  %v2360 = vsub.f32 %v2335, 1.0
  %v2361 = vsub.f32 %v2337, 1.0
  %v2362 = vsub.f32 %v2339, 1.0
  %v2363 = vsub.f32 %v2341, 1.0
  %v2364 = vsub.f32 %v2343, 1.0
  %v2365 = vsub.f32 %v2345, 1.0
  %v2366 = vsub.f32 %v2347, 1.0
  %v2367 = vsub.f32 %v2349, 1.0
  %v2368 = vsub.f32 %v2351, 1.0
  %v2369 = vsub.f32 %v2353, 1.0
  %v2370 = vsel %vm2290, %v2274, %v2354
  %v2371 = vsel %vm2291, %v2275, %v2355
  %v2372 = vsel %vm2292, %v2276, %v2356
  %v2373 = vsel %vm2293, %v2277, %v2357
  %v2374 = vsel %vm2294, %v2278, %v2358
  %v2375 = vsel %vm2295, %v2279, %v2359
  %v2376 = vsel %vm2296, %v2280, %v2360
  %v2377 = vsel %vm2297, %v2281, %v2361
  %v2378 = vsel %vm2298, %v2282, %v2362
  %v2379 = vsel %vm2299, %v2283, %v2363
  %v2380 = vsel %vm2300, %v2284, %v2364
  %v2381 = vsel %vm2301, %v2285, %v2365
  %v2382 = vsel %vm2302, %v2286, %v2366
  %v2383 = vsel %vm2303, %v2287, %v2367
  %v2384 = vsel %vm2304, %v2288, %v2368
  %v2385 = vsel %vm2305, %v2289, %v2369
  %2386 = vst [vmem:[%s6] sm:$0xff] %v2370
  %2387 = vst [vmem:[%s6 + $0x8] sm:$0xff] %v2371
  %2388 = vst [vmem:[%s6 + $0x10] sm:$0xff] %v2372
  %2389 = vst [vmem:[%s6 + $0x18] sm:$0xff] %v2373
  %2390 = vst [vmem:[%s6 + $0x20] sm:$0xff] %v2374
  %2391 = vst [vmem:[%s6 + $0x28] sm:$0xff] %v2375
  %2392 = vst [vmem:[%s6 + $0x30] sm:$0xff] %v2376
  %2393 = vst [vmem:[%s6 + $0x38] sm:$0xff] %v2377
  %2394 = vst [vmem:[%s6 + $0x40] sm:$0xff] %v2378
  %2395 = vst [vmem:[%s6 + $0x48] sm:$0xff] %v2379
  %2396 = vst [vmem:[%s6 + $0x50] sm:$0xff] %v2380
  %2397 = vst [vmem:[%s6 + $0x58] sm:$0xff] %v2381
  %2398 = vst [vmem:[%s6 + $0x60] sm:$0xff] %v2382
  %2399 = vst [vmem:[%s6 + $0x68] sm:$0xff] %v2383
  %2400 = vst [vmem:[%s6 + $0x70] sm:$0xff] %v2384
  %2401 = vst [vmem:[%s6 + $0x78] sm:$0xff] %v2385
  // Predicated region
  $region26: #{gnn_encoder_forward.6} parent=0 // pred_check
    _
  $region27: #{gnn_encoder_forward.6} parent=0 // pred_check_branch
    %2403 = sbr.rel (0) target = $region29
  $region28: #{gnn_encoder_forward.6} parent=0 // pred_region
    _
  $region29: #{gnn_encoder_forward.6} parent=0 // pred_fallthru
    _
  // Predicated region
  $region30: #{gnn_encoder_forward.6} parent=0 // pred_check
    _
  $region31: #{gnn_encoder_forward.6} parent=0 // pred_check_branch
    %2405 = sbr.rel (0) target = $region33
  $region32: #{gnn_encoder_forward.6} parent=0 // pred_region
    _
  $region33: #{gnn_encoder_forward.6} parent=0 // pred_fallthru
    _

// kernel: gnn_encoder_forward.9
$region0: #{gnn_encoder_forward.9}
  #allocation0 [shape = 'u32[]', space=smem, size = 0x4, offset = 0x4, fixed_abs, tag = 'smem constant byte address 0x4 - core index']
  #allocation1 [shape = 'u32[144,128]{1,0:T(1,128)}', space=vmem, size = 0x12000, scoped, tag = 'internal scratch']
  #allocation2 [shape = 'f32[4,32]{1,0:T(4,128)}', space=vmem, size = 0x800, scoped, tag = 'scratch operand']
  #allocation3 [shape = 'f32[4,32]{1,0:T(4,128)}', space=vmem, size = 0x800, scoped, tag = 'scratch operand']
  #allocation4 [shape = 'f32[1,1]{1,0:T(1,128)S(1)}', space=vmem, size = 0x200, scoped, tag = 'scoped memory for gnn_encoder_forward.9']
  %s0 = inlined_call_operand.vmem [shape: f32[128,128], index: 0, kind: input, shape index: {}]
  %s1 = inlined_call_operand.vmem [shape: f32[4,128], index: 1, kind: input, shape index: {}]
  %s2 = inlined_call_operand.vmem [shape: f32[128,4], index: 2, kind: input, shape index: {}]
  %s3 = inlined_call_operand.vmem [shape: f32[128,32], index: 3, kind: input, shape index: {}]
  %s4 = inlined_call_operand.vmem [shape: f32[1,32], index: 4, kind: input, shape index: {}]
  %s5 = inlined_call_operand.<no memory space> [shape: f32[1,1], index: 5, kind: input, shape index: {}]
  %s6 = inlined_call_operand.vmem [shape: f32[64,128], index: 6, kind: input, shape index: {}]
  %s7 = inlined_call_operand.vmem [shape: f32[1,128], index: 7, kind: input, shape index: {}]
  %s8 = inlined_call_operand.hbm [shape: f32[4,128], index: 8, kind: output, shape index: {}]
  %s9 = sld [smem:[#allocation0]]
  $region50: #{gnn_encoder_forward.9} parent=0
    _
  %s11 = ssub.s32 1, %s9
  %s12 = scalar_select 0, %s11, %s9
  %v13 = vstv %s5
  %14 = vst [vmem:[#allocation4] sm:$0x1] %v13
  $region1: #{gnn_encoder_forward.9} parent=0
    #allocation5 [shape = 'u8[2048]{0}', space=vmem, size = 0x800, scoped, tag = 'output window, operand 0, single buffered']
    #allocation6 [shape = 's32[1]{0}', space=sflag, size = 0x4, scoped, tag = 'scoped memory for gnn_encoder_forward.9']
    %15 = vsyncpa [#allocation6], 0
    // Predicated region
    $region2: #{gnn_encoder_forward.9} parent=1 // pred_check
      _
    $region3: #{gnn_encoder_forward.9} parent=1 // pred_check_branch
      %17 = sbr.rel (0) target = $region5
    $region4: #{gnn_encoder_forward.9} parent=1 // pred_region
      _
    $region5: #{gnn_encoder_forward.9} parent=1 // pred_fallthru
      _
    // Predicated region
    $region6: #{gnn_encoder_forward.9} parent=1 // pred_check
      _
    $region7: #{gnn_encoder_forward.9} parent=1 // pred_check_branch
      %19 = sbr.rel (0) target = $region9
    $region8: #{gnn_encoder_forward.9} parent=1 // pred_region
      _
    $region9: #{gnn_encoder_forward.9} parent=1 // pred_fallthru
      _
    // Predicated region
    $region10: #{gnn_encoder_forward.9} parent=1 // pred_check
      _
    $region11: #{gnn_encoder_forward.9} parent=1 // pred_check_branch
      %21 = sbr.rel (0) target = $region13
    $region12: #{gnn_encoder_forward.9} parent=1 // pred_region
      _
    $region13: #{gnn_encoder_forward.9} parent=1 // pred_fallthru
      _
    // Predicated region
    $region14: #{gnn_encoder_forward.9} parent=1 // pred_check
      _
    $region15: #{gnn_encoder_forward.9} parent=1 // pred_check_branch
      %23 = sbr.rel (0) target = $region17
    $region16: #{gnn_encoder_forward.9} parent=1 // pred_region
      _
    $region17: #{gnn_encoder_forward.9} parent=1 // pred_fallthru
      _
    // Predicated region
    $region18: #{gnn_encoder_forward.9} parent=1 // pred_check
      _
    $region19: #{gnn_encoder_forward.9} parent=1 // pred_check_branch
      %25 = sbr.rel (0) target = $region21
    $region20: #{gnn_encoder_forward.9} parent=1 // pred_region
      _
    $region21: #{gnn_encoder_forward.9} parent=1 // pred_fallthru
      _
    // Predicated region
    $region22: #{gnn_encoder_forward.9} parent=1 // pred_check
      _
    $region23: #{gnn_encoder_forward.9} parent=1 // pred_check_branch
      %27 = sbr.rel (0) target = $region25
    $region24: #{gnn_encoder_forward.9} parent=1 // pred_region
      _
    $region25: #{gnn_encoder_forward.9} parent=1 // pred_fallthru
      _
    // Predicated region
    $region26: #{gnn_encoder_forward.9} parent=1 // pred_check
      _
    $region27: #{gnn_encoder_forward.9} parent=1 // pred_check_branch
      %29 = sbr.rel (0) target = $region29
    $region28: #{gnn_encoder_forward.9} parent=1 // pred_region
      _
    $region29: #{gnn_encoder_forward.9} parent=1 // pred_fallthru
      _
    // Predicated region
    $region30: #{gnn_encoder_forward.9} parent=1 // pred_check
      _
    $region31: #{gnn_encoder_forward.9} parent=1 // pred_check_branch
      %31 = sbr.rel (0) target = $region33
    $region32: #{gnn_encoder_forward.9} parent=1 // pred_region
      _
    $region33: #{gnn_encoder_forward.9} parent=1 // pred_fallthru
      _
    %p32 = scmp.eq.s32.totalorder 0, 0
    // Predicated region
    $region34: #{gnn_encoder_forward.9} parent=1 // pred_check
      %p33 = pneg %p32
    $region35: #{gnn_encoder_forward.9} parent=1 // pred_check_branch
      %35 = sbr.rel (%p33) target = $region37
    $region36: #{gnn_encoder_forward.9} parent=1 // pred_region
      %vm36 = vcmask 257024
      %37 = vst.msk [vmem:[#allocation2] sm:$0xf] %vm36, 0.0
      %38 = vst.msk [vmem:[#allocation3] sm:$0xf] %vm36, -1e+30
    $region37: #{gnn_encoder_forward.9} parent=1 // pred_fallthru
      _
    %v39 = vld [vmem:[%s0] sm:$0xff]
    %v40 = vld [vmem:[%s0 + $0x8] sm:$0xff]
    %v41 = vld [vmem:[%s0 + $0x10] sm:$0xff]
    %v42 = vld [vmem:[%s0 + $0x18] sm:$0xff]
    %v43 = vld [vmem:[%s0 + $0x20] sm:$0xff]
    %v44 = vld [vmem:[%s0 + $0x28] sm:$0xff]
    %v45 = vld [vmem:[%s0 + $0x30] sm:$0xff]
    %v46 = vld [vmem:[%s0 + $0x38] sm:$0xff]
    %v47 = vld [vmem:[%s0 + $0x40] sm:$0xff]
    %v48 = vld [vmem:[%s0 + $0x48] sm:$0xff]
    %v49 = vld [vmem:[%s0 + $0x50] sm:$0xff]
    %v50 = vld [vmem:[%s0 + $0x58] sm:$0xff]
    %v51 = vld [vmem:[%s0 + $0x60] sm:$0xff]
    %v52 = vld [vmem:[%s0 + $0x68] sm:$0xff]
    %v53 = vld [vmem:[%s0 + $0x70] sm:$0xff]
    %v54 = vld [vmem:[%s0 + $0x78] sm:$0xff]
    %v55 = vld [vmem:[%s3] sm:$0xff]
    %v56 = vld [vmem:[%s3 + $0x8] sm:$0xff]
    %v57 = vld [vmem:[%s3 + $0x10] sm:$0xff]
    %v58 = vld [vmem:[%s3 + $0x18] sm:$0xff]
    %v59 = vld [vmem:[%s3 + $0x20] sm:$0xff]
    %v60 = vld [vmem:[%s3 + $0x28] sm:$0xff]
    %v61 = vld [vmem:[%s3 + $0x30] sm:$0xff]
    %v62 = vld [vmem:[%s3 + $0x38] sm:$0xff]
    %v63 = vld [vmem:[%s3 + $0x40] sm:$0xff]
    %v64 = vld [vmem:[%s3 + $0x48] sm:$0xff]
    %v65 = vld [vmem:[%s3 + $0x50] sm:$0xff]
    %v66 = vld [vmem:[%s3 + $0x58] sm:$0xff]
    %v67 = vld [vmem:[%s3 + $0x60] sm:$0xff]
    %v68 = vld [vmem:[%s3 + $0x68] sm:$0xff]
    %v69 = vld [vmem:[%s3 + $0x70] sm:$0xff]
    %v70 = vld [vmem:[%s3 + $0x78] sm:$0xff]
    %71 = vmatprep.subr.mxu0 0.0
    %72 = vmatpush1.msra.mxu0 %v55
    %73 = vmatprep.subr.mxu0 0.0
    %74 = vmatpush1.msra.mxu0 %v56
    %75 = vmatprep.subr.mxu0 0.0
    %76 = vmatpush1.msra.mxu0 %v57
    %77 = vmatprep.subr.mxu0 0.0
    %78 = vmatpush1.msra.mxu0 %v58
    %79 = vmatprep.subr.mxu0 0.0
    %80 = vmatpush1.msra.mxu0 %v59
    %81 = vmatprep.subr.mxu0 0.0
    %82 = vmatpush1.msra.mxu0 %v60
    %83 = vmatprep.subr.mxu0 0.0
    %84 = vmatpush1.msra.mxu0 %v61
    %85 = vmatprep.subr.mxu0 0.0
    %86 = vmatpush1.msra.mxu0 %v62
    %87 = vmatprep.subr.mxu0 0.0
    %88 = vmatpush1.msra.mxu0 %v63
    %89 = vmatprep.subr.mxu0 0.0
    %90 = vmatpush1.msra.mxu0 %v64
    %91 = vmatprep.subr.mxu0 0.0
    %92 = vmatpush1.msra.mxu0 %v65
    %93 = vmatprep.subr.mxu0 0.0
    %94 = vmatpush1.msra.mxu0 %v66
    %95 = vmatprep.subr.mxu0 0.0
    %96 = vmatpush1.msra.mxu0 %v67
    %97 = vmatprep.subr.mxu0 0.0
    %98 = vmatpush1.msra.mxu0 %v68
    %99 = vmatprep.subr.mxu0 0.0
    %100 = vmatpush1.msra.mxu0 %v69
    %101 = vmatprep.subr.mxu0 0.0
    %102 = vmatpush1.msra.mxu0 %v70
    %103 = vmatprep.subr.mxu0 0.0
    %104 = vmatpush1.msra.mxu0 0.0
    %105 = vmatprep.subr.mxu0 0.0
    %106 = vmatpush1.msra.mxu0 0.0
    %107 = vmatprep.subr.mxu0 0.0
    %108 = vmatpush1.msra.mxu0 0.0
    %109 = vmatprep.subr.mxu0 0.0
    %110 = vmatpush1.msra.mxu0 0.0
    %111 = vmatprep.subr.mxu0 0.0
    %112 = vmatpush1.msra.mxu0 0.0
    %113 = vmatprep.subr.mxu0 0.0
    %114 = vmatpush1.msra.mxu0 0.0
    %115 = vmatprep.subr.mxu0 0.0
    %116 = vmatpush1.msra.mxu0 0.0
    %117 = vmatprep.subr.mxu0 0.0
    %118 = vmatpush1.msra.mxu0 0.0
    %119 = vmatprep.subr.mxu0 0.0
    %120 = vmatpush1.msra.mxu0 0.0
    %121 = vmatprep.subr.mxu0 0.0
    %122 = vmatpush1.msra.mxu0 0.0
    %123 = vmatprep.subr.mxu0 0.0
    %124 = vmatpush1.msra.mxu0 0.0
    %125 = vmatprep.subr.mxu0 0.0
    %126 = vmatpush1.msra.mxu0 0.0
    %127 = vmatprep.subr.mxu0 0.0
    %128 = vmatpush1.msra.mxu0 0.0
    %129 = vmatprep.subr.mxu0 0.0
    %130 = vmatpush1.msra.mxu0 0.0
    %131 = vmatprep.subr.mxu0 0.0
    %132 = vmatpush1.msra.mxu0 0.0
    %133 = vmatprep.subr.mxu0 0.0
    %134 = vmatpush1.msra.mxu0 0.0
    %135 = vmatprep.mubr.f32.mxu0 0.0
    %136 = vmatmul.mubr.f32.gmra.mrb[0].mxu0 %v39
    %v137 = vpop.f32.mrb[0].mxu0
    %v138 = vadd.f32 0.0, %v137
    %v139 = vpop.f32.mrb[0].mxu0
    %140 = vmatprep.mubr.f32.mxu0 0.0
    %141 = vmatmul.mubr.f32.gmra.mrb[0].mxu0 %v40
    %v142 = vpop.f32.mrb[0].mxu0
    %v143 = vadd.f32 0.0, %v142
    %v144 = vpop.f32.mrb[0].mxu0
    %145 = vmatprep.mubr.f32.mxu0 0.0
    %146 = vmatmul.mubr.f32.gmra.mrb[0].mxu0 %v41
    %v147 = vpop.f32.mrb[0].mxu0
    %v148 = vadd.f32 0.0, %v147
    %v149 = vpop.f32.mrb[0].mxu0
    %150 = vmatprep.mubr.f32.mxu0 0.0
    %151 = vmatmul.mubr.f32.gmra.mrb[0].mxu0 %v42
    %v152 = vpop.f32.mrb[0].mxu0
    %v153 = vadd.f32 0.0, %v152
    %v154 = vpop.f32.mrb[0].mxu0
    %155 = vmatprep.mubr.f32.mxu0 0.0
    %156 = vmatmul.mubr.f32.gmra.mrb[0].mxu0 %v43
    %v157 = vpop.f32.mrb[0].mxu0
    %v158 = vadd.f32 0.0, %v157
    %v159 = vpop.f32.mrb[0].mxu0
    %160 = vmatprep.mubr.f32.mxu0 0.0
    %161 = vmatmul.mubr.f32.gmra.mrb[0].mxu0 %v44
    %v162 = vpop.f32.mrb[0].mxu0
    %v163 = vadd.f32 0.0, %v162
    %v164 = vpop.f32.mrb[0].mxu0
    %165 = vmatprep.mubr.f32.mxu0 0.0
    %166 = vmatmul.mubr.f32.gmra.mrb[0].mxu0 %v45
    %v167 = vpop.f32.mrb[0].mxu0
    %v168 = vadd.f32 0.0, %v167
    %v169 = vpop.f32.mrb[0].mxu0
    %170 = vmatprep.mubr.f32.mxu0 0.0
    %171 = vmatmul.mubr.f32.gmra.mrb[0].mxu0 %v46
    %v172 = vpop.f32.mrb[0].mxu0
    %v173 = vadd.f32 0.0, %v172
    %v174 = vpop.f32.mrb[0].mxu0
    %175 = vmatprep.mubr.f32.mxu0 0.0
    %176 = vmatmul.mubr.f32.gmra.mrb[0].mxu0 %v47
    %v177 = vpop.f32.mrb[0].mxu0
    %v178 = vadd.f32 0.0, %v177
    %v179 = vpop.f32.mrb[0].mxu0
    %180 = vmatprep.mubr.f32.mxu0 0.0
    %181 = vmatmul.mubr.f32.gmra.mrb[0].mxu0 %v48
    %v182 = vpop.f32.mrb[0].mxu0
    %v183 = vadd.f32 0.0, %v182
    %v184 = vpop.f32.mrb[0].mxu0
    %185 = vmatprep.mubr.f32.mxu0 0.0
    %186 = vmatmul.mubr.f32.gmra.mrb[0].mxu0 %v49
    %v187 = vpop.f32.mrb[0].mxu0
    %v188 = vadd.f32 0.0, %v187
    %v189 = vpop.f32.mrb[0].mxu0
    %190 = vmatprep.mubr.f32.mxu0 0.0
    %191 = vmatmul.mubr.f32.gmra.mrb[0].mxu0 %v50
    %v192 = vpop.f32.mrb[0].mxu0
    %v193 = vadd.f32 0.0, %v192
    %v194 = vpop.f32.mrb[0].mxu0
    %195 = vmatprep.mubr.f32.mxu0 0.0
    %196 = vmatmul.mubr.f32.gmra.mrb[0].mxu0 %v51
    %v197 = vpop.f32.mrb[0].mxu0
    %v198 = vadd.f32 0.0, %v197
    %v199 = vpop.f32.mrb[0].mxu0
    %200 = vmatprep.mubr.f32.mxu0 0.0
    %201 = vmatmul.mubr.f32.gmra.mrb[0].mxu0 %v52
    %v202 = vpop.f32.mrb[0].mxu0
    %v203 = vadd.f32 0.0, %v202
    %v204 = vpop.f32.mrb[0].mxu0
    %205 = vmatprep.mubr.f32.mxu0 0.0
    %206 = vmatmul.mubr.f32.gmra.mrb[0].mxu0 %v53
    %v207 = vpop.f32.mrb[0].mxu0
    %v208 = vadd.f32 0.0, %v207
    %v209 = vpop.f32.mrb[0].mxu0
    %210 = vmatprep.mubr.f32.mxu0 0.0
    %211 = vmatmul.mubr.f32.gmra.mrb[0].mxu0 %v54
    %v212 = vpop.f32.mrb[0].mxu0
    %v213 = vadd.f32 0.0, %v212
    %v214 = vpop.f32.mrb[0].mxu0
    %215 = vdwg.mxu0
    %v216 = vld [vmem:[%s4] sm:$0x1]
    %v218 = vlaneseq
    %v219 = vshrl.u32 %v218, 7
    %v220 = vsub.s32 0, %v219
    %v221 = vrot.slane %v216, %v220
    %v223 = vmul.f32 %v138, %v221
    %v224 = vmul.f32 %v143, %v221
    %v225 = vmul.f32 %v148, %v221
    %v226 = vmul.f32 %v153, %v221
    %v227 = vmul.f32 %v158, %v221
    %v228 = vmul.f32 %v163, %v221
    %v229 = vmul.f32 %v168, %v221
    %v230 = vmul.f32 %v173, %v221
    %v231 = vmul.f32 %v178, %v221
    %v232 = vmul.f32 %v183, %v221
    %v233 = vmul.f32 %v188, %v221
    %v234 = vmul.f32 %v193, %v221
    %v235 = vmul.f32 %v198, %v221
    %v236 = vmul.f32 %v203, %v221
    %v237 = vmul.f32 %v208, %v221
    %v238 = vmul.f32 %v213, %v221
    %vm239 = vcmask 261120
    %v240 = vsel %vm239, %v223, 0.0
    %241 = vadd.xlane.f32.xlu0 %v240
    %v242 = vpop.xlane.xlu0 %241
    %v243 = vsel %vm239, %v224, 0.0
    %244 = vadd.xlane.f32.xlu0 %v243
    %v245 = vpop.xlane.xlu0 %244
    %v246 = vsel %vm239, %v225, 0.0
    %247 = vadd.xlane.f32.xlu0 %v246
    %v248 = vpop.xlane.xlu0 %247
    %v249 = vsel %vm239, %v226, 0.0
    %250 = vadd.xlane.f32.xlu0 %v249
    %v251 = vpop.xlane.xlu0 %250
    %v252 = vsel %vm239, %v227, 0.0
    %253 = vadd.xlane.f32.xlu0 %v252
    %v254 = vpop.xlane.xlu0 %253
    %v255 = vsel %vm239, %v228, 0.0
    %256 = vadd.xlane.f32.xlu0 %v255
    %v257 = vpop.xlane.xlu0 %256
    %v258 = vsel %vm239, %v229, 0.0
    %259 = vadd.xlane.f32.xlu0 %v258
    %v260 = vpop.xlane.xlu0 %259
    %v261 = vsel %vm239, %v230, 0.0
    %262 = vadd.xlane.f32.xlu0 %v261
    %v263 = vpop.xlane.xlu0 %262
    %v264 = vsel %vm239, %v231, 0.0
    %265 = vadd.xlane.f32.xlu0 %v264
    %v266 = vpop.xlane.xlu0 %265
    %v267 = vsel %vm239, %v232, 0.0
    %268 = vadd.xlane.f32.xlu0 %v267
    %v269 = vpop.xlane.xlu0 %268
    %v270 = vsel %vm239, %v233, 0.0
    %271 = vadd.xlane.f32.xlu0 %v270
    %v272 = vpop.xlane.xlu0 %271
    %v273 = vsel %vm239, %v234, 0.0
    %274 = vadd.xlane.f32.xlu0 %v273
    %v275 = vpop.xlane.xlu0 %274
    %v276 = vsel %vm239, %v235, 0.0
    %277 = vadd.xlane.f32.xlu0 %v276
    %v278 = vpop.xlane.xlu0 %277
    %v279 = vsel %vm239, %v236, 0.0
    %280 = vadd.xlane.f32.xlu0 %v279
    %v281 = vpop.xlane.xlu0 %280
    %v282 = vsel %vm239, %v237, 0.0
    %283 = vadd.xlane.f32.xlu0 %v282
    %v284 = vpop.xlane.xlu0 %283
    %v285 = vsel %vm239, %v238, 0.0
    %286 = vadd.xlane.f32.xlu0 %v285
    %v287 = vpop.xlane.xlu0 %286
    %v288 = vld [vmem:[#allocation4] sm:$0x1]
    %v290 = vlaneseq
    %v291 = vshrl.u32 %v290, 7
    %v292 = vsub.s32 0, %v291
    %v293 = vrot.slane %v288, %v292
    %v295 = vadd.f32 %v242, %v293
    %v296 = vadd.f32 %v245, %v293
    %v297 = vadd.f32 %v248, %v293
    %v298 = vadd.f32 %v251, %v293
    %v299 = vadd.f32 %v254, %v293
    %v300 = vadd.f32 %v257, %v293
    %v301 = vadd.f32 %v260, %v293
    %v302 = vadd.f32 %v263, %v293
    %v303 = vadd.f32 %v266, %v293
    %v304 = vadd.f32 %v269, %v293
    %v305 = vadd.f32 %v272, %v293
    %v306 = vadd.f32 %v275, %v293
    %v307 = vadd.f32 %v278, %v293
    %v308 = vadd.f32 %v281, %v293
    %v309 = vadd.f32 %v284, %v293
    %v310 = vadd.f32 %v287, %v293
    %v311 = vmul.f32 %v295, 0.5
    %v312 = vmul.f32 %v296, 0.5
    %v313 = vmul.f32 %v297, 0.5
    %v314 = vmul.f32 %v298, 0.5
    %v315 = vmul.f32 %v299, 0.5
    %v316 = vmul.f32 %v300, 0.5
    %v317 = vmul.f32 %v301, 0.5
    %v318 = vmul.f32 %v302, 0.5
    %v319 = vmul.f32 %v303, 0.5
    %v320 = vmul.f32 %v304, 0.5
    %v321 = vmul.f32 %v305, 0.5
    %v322 = vmul.f32 %v306, 0.5
    %v323 = vmul.f32 %v307, 0.5
    %v324 = vmul.f32 %v308, 0.5
    %v325 = vmul.f32 %v309, 0.5
    %v326 = vmul.f32 %v310, 0.5
    %v327 = vtanh.pop %v311
    %v328 = vtanh.pop %v312
    %v329 = vtanh.pop %v313
    %v330 = vtanh.pop %v314
    %v331 = vtanh.pop %v315
    %v332 = vtanh.pop %v316
    %v333 = vtanh.pop %v317
    %v334 = vtanh.pop %v318
    %v335 = vtanh.pop %v319
    %v336 = vtanh.pop %v320
    %v337 = vtanh.pop %v321
    %v338 = vtanh.pop %v322
    %v339 = vtanh.pop %v323
    %v340 = vtanh.pop %v324
    %v341 = vtanh.pop %v325
    %v342 = vtanh.pop %v326
    %v343 = vadd.f32 %v327, 1.0
    %v344 = vadd.f32 %v328, 1.0
    %v345 = vadd.f32 %v329, 1.0
    %v346 = vadd.f32 %v330, 1.0
    %v347 = vadd.f32 %v331, 1.0
    %v348 = vadd.f32 %v332, 1.0
    %v349 = vadd.f32 %v333, 1.0
    %v350 = vadd.f32 %v334, 1.0
    %v351 = vadd.f32 %v335, 1.0
    %v352 = vadd.f32 %v336, 1.0
    %v353 = vadd.f32 %v337, 1.0
    %v354 = vadd.f32 %v338, 1.0
    %v355 = vadd.f32 %v339, 1.0
    %v356 = vadd.f32 %v340, 1.0
    %v357 = vadd.f32 %v341, 1.0
    %v358 = vadd.f32 %v342, 1.0
    %v359 = vmul.f32 %v343, 0.5
    %v360 = vmul.f32 %v344, 0.5
    %v361 = vmul.f32 %v345, 0.5
    %v362 = vmul.f32 %v346, 0.5
    %v363 = vmul.f32 %v347, 0.5
    %v364 = vmul.f32 %v348, 0.5
    %v365 = vmul.f32 %v349, 0.5
    %v366 = vmul.f32 %v350, 0.5
    %v367 = vmul.f32 %v351, 0.5
    %v368 = vmul.f32 %v352, 0.5
    %v369 = vmul.f32 %v353, 0.5
    %v370 = vmul.f32 %v354, 0.5
    %v371 = vmul.f32 %v355, 0.5
    %v372 = vmul.f32 %v356, 0.5
    %v373 = vmul.f32 %v357, 0.5
    %v374 = vmul.f32 %v358, 0.5
    %v375 = vld [vmem:[#allocation2] sm:$0xf]
    %v376 = vld [vmem:[%s1] sm:$0xf]
    %378 = vset.pattern.permute.xlu0 0
    %379 = vperm.xlu0 %378, %v359
    %v380 = vpop.permute.xlu0 %379
    %383 = vset.pattern.permute.xlu0 0
    %384 = vperm.xlu0 %383, %v360
    %v385 = vpop.permute.xlu0 %384
    %388 = vset.pattern.permute.xlu0 0
    %389 = vperm.xlu0 %388, %v361
    %v390 = vpop.permute.xlu0 %389
    %393 = vset.pattern.permute.xlu0 0
    %394 = vperm.xlu0 %393, %v362
    %v395 = vpop.permute.xlu0 %394
    %398 = vset.pattern.permute.xlu0 0
    %399 = vperm.xlu0 %398, %v363
    %v400 = vpop.permute.xlu0 %399
    %403 = vset.pattern.permute.xlu0 0
    %404 = vperm.xlu0 %403, %v364
    %v405 = vpop.permute.xlu0 %404
    %408 = vset.pattern.permute.xlu0 0
    %409 = vperm.xlu0 %408, %v365
    %v410 = vpop.permute.xlu0 %409
    %413 = vset.pattern.permute.xlu0 0
    %414 = vperm.xlu0 %413, %v366
    %v415 = vpop.permute.xlu0 %414
    %418 = vset.pattern.permute.xlu0 0
    %419 = vperm.xlu0 %418, %v367
    %v420 = vpop.permute.xlu0 %419
    %423 = vset.pattern.permute.xlu0 0
    %424 = vperm.xlu0 %423, %v368
    %v425 = vpop.permute.xlu0 %424
    %428 = vset.pattern.permute.xlu0 0
    %429 = vperm.xlu0 %428, %v369
    %v430 = vpop.permute.xlu0 %429
    %433 = vset.pattern.permute.xlu0 0
    %434 = vperm.xlu0 %433, %v370
    %v435 = vpop.permute.xlu0 %434
    %438 = vset.pattern.permute.xlu0 0
    %439 = vperm.xlu0 %438, %v371
    %v440 = vpop.permute.xlu0 %439
    %443 = vset.pattern.permute.xlu0 0
    %444 = vperm.xlu0 %443, %v372
    %v445 = vpop.permute.xlu0 %444
    %448 = vset.pattern.permute.xlu0 0
    %449 = vperm.xlu0 %448, %v373
    %v450 = vpop.permute.xlu0 %449
    %453 = vset.pattern.permute.xlu0 0
    %454 = vperm.xlu0 %453, %v374
    %v455 = vpop.permute.xlu0 %454
    %v457 = vmul.f32 %v138, %v380
    %v458 = vmul.f32 %v143, %v385
    %v459 = vmul.f32 %v148, %v390
    %v460 = vmul.f32 %v153, %v395
    %v461 = vmul.f32 %v158, %v400
    %v462 = vmul.f32 %v163, %v405
    %v463 = vmul.f32 %v168, %v410
    %v464 = vmul.f32 %v173, %v415
    %v465 = vmul.f32 %v178, %v420
    %v466 = vmul.f32 %v183, %v425
    %v467 = vmul.f32 %v188, %v430
    %v468 = vmul.f32 %v193, %v435
    %v469 = vmul.f32 %v198, %v440
    %v470 = vmul.f32 %v203, %v445
    %v471 = vmul.f32 %v208, %v450
    %v472 = vmul.f32 %v213, %v455
    %473 = vmatprep.subr.mxu0 0.0
    %474 = vmatpush1.msra.mxu0 %v457
    %475 = vmatprep.subr.mxu0 0.0
    %476 = vmatpush1.msra.mxu0 %v458
    %477 = vmatprep.subr.mxu0 0.0
    %478 = vmatpush1.msra.mxu0 %v459
    %479 = vmatprep.subr.mxu0 0.0
    %480 = vmatpush1.msra.mxu0 %v460
    %481 = vmatprep.subr.mxu0 0.0
    %482 = vmatpush1.msra.mxu0 %v461
    %483 = vmatprep.subr.mxu0 0.0
    %484 = vmatpush1.msra.mxu0 %v462
    %485 = vmatprep.subr.mxu0 0.0
    %486 = vmatpush1.msra.mxu0 %v463
    %487 = vmatprep.subr.mxu0 0.0
    %488 = vmatpush1.msra.mxu0 %v464
    %489 = vmatprep.subr.mxu0 0.0
    %490 = vmatpush1.msra.mxu0 %v465
    %491 = vmatprep.subr.mxu0 0.0
    %492 = vmatpush1.msra.mxu0 %v466
    %493 = vmatprep.subr.mxu0 0.0
    %494 = vmatpush1.msra.mxu0 %v467
    %495 = vmatprep.subr.mxu0 0.0
    %496 = vmatpush1.msra.mxu0 %v468
    %497 = vmatprep.subr.mxu0 0.0
    %498 = vmatpush1.msra.mxu0 %v469
    %499 = vmatprep.subr.mxu0 0.0
    %500 = vmatpush1.msra.mxu0 %v470
    %501 = vmatprep.subr.mxu0 0.0
    %502 = vmatpush1.msra.mxu0 %v471
    %503 = vmatprep.subr.mxu0 0.0
    %504 = vmatpush1.msra.mxu0 %v472
    %505 = vmatprep.subr.mxu0 0.0
    %506 = vmatpush1.msra.mxu0 0.0
    %507 = vmatprep.subr.mxu0 0.0
    %508 = vmatpush1.msra.mxu0 0.0
    %509 = vmatprep.subr.mxu0 0.0
    %510 = vmatpush1.msra.mxu0 0.0
    %511 = vmatprep.subr.mxu0 0.0
    %512 = vmatpush1.msra.mxu0 0.0
    %513 = vmatprep.subr.mxu0 0.0
    %514 = vmatpush1.msra.mxu0 0.0
    %515 = vmatprep.subr.mxu0 0.0
    %516 = vmatpush1.msra.mxu0 0.0
    %517 = vmatprep.subr.mxu0 0.0
    %518 = vmatpush1.msra.mxu0 0.0
    %519 = vmatprep.subr.mxu0 0.0
    %520 = vmatpush1.msra.mxu0 0.0
    %521 = vmatprep.subr.mxu0 0.0
    %522 = vmatpush1.msra.mxu0 0.0
    %523 = vmatprep.subr.mxu0 0.0
    %524 = vmatpush1.msra.mxu0 0.0
    %525 = vmatprep.subr.mxu0 0.0
    %526 = vmatpush1.msra.mxu0 0.0
    %527 = vmatprep.subr.mxu0 0.0
    %528 = vmatpush1.msra.mxu0 0.0
    %529 = vmatprep.subr.mxu0 0.0
    %530 = vmatpush1.msra.mxu0 0.0
    %531 = vmatprep.subr.mxu0 0.0
    %532 = vmatpush1.msra.mxu0 0.0
    %533 = vmatprep.subr.mxu0 0.0
    %534 = vmatpush1.msra.mxu0 0.0
    %535 = vmatprep.subr.mxu0 0.0
    %536 = vmatpush1.msra.mxu0 0.0
    %537 = vmatprep.mubr.f32.mxu0 0.0
    %538 = vmatmul.mubr.f32.gmra.mrb[0].mxu0 %v376
    %v539 = vpop.f32.mrb[0].mxu0
    %v540 = vadd.f32 0.0, %v539
    %v541 = vpop.f32.mrb[0].mxu0
    %542 = vdwg.mxu0
    %v543 = vadd.f32 %v375, %v540
    %vm544 = vcmask 257024
    %545 = vst.msk [vmem:[#allocation2] sm:$0xf] %vm544, %v543
    %v546 = vld [vmem:[%s2] sm:$0xff]
    %v547 = vld [vmem:[%s2 + $0x8] sm:$0xff]
    %v548 = vld [vmem:[%s2 + $0x10] sm:$0xff]
    %v549 = vld [vmem:[%s2 + $0x18] sm:$0xff]
    %v550 = vld [vmem:[%s2 + $0x20] sm:$0xff]
    %v551 = vld [vmem:[%s2 + $0x28] sm:$0xff]
    %v552 = vld [vmem:[%s2 + $0x30] sm:$0xff]
    %v553 = vld [vmem:[%s2 + $0x38] sm:$0xff]
    %v554 = vld [vmem:[%s2 + $0x40] sm:$0xff]
    %v555 = vld [vmem:[%s2 + $0x48] sm:$0xff]
    %v556 = vld [vmem:[%s2 + $0x50] sm:$0xff]
    %v557 = vld [vmem:[%s2 + $0x58] sm:$0xff]
    %v558 = vld [vmem:[%s2 + $0x60] sm:$0xff]
    %v559 = vld [vmem:[%s2 + $0x68] sm:$0xff]
    %v560 = vld [vmem:[%s2 + $0x70] sm:$0xff]
    %v561 = vld [vmem:[%s2 + $0x78] sm:$0xff]
    %vm562 = vcmp.ne.f32.partialorder %v546, 0.0
    %vm563 = vcmp.ne.f32.partialorder %v547, 0.0
    %vm564 = vcmp.ne.f32.partialorder %v548, 0.0
    %vm565 = vcmp.ne.f32.partialorder %v549, 0.0
    %vm566 = vcmp.ne.f32.partialorder %v550, 0.0
    %vm567 = vcmp.ne.f32.partialorder %v551, 0.0
    %vm568 = vcmp.ne.f32.partialorder %v552, 0.0
    %vm569 = vcmp.ne.f32.partialorder %v553, 0.0
    %vm570 = vcmp.ne.f32.partialorder %v554, 0.0
    %vm571 = vcmp.ne.f32.partialorder %v555, 0.0
    %vm572 = vcmp.ne.f32.partialorder %v556, 0.0
    %vm573 = vcmp.ne.f32.partialorder %v557, 0.0
    %vm574 = vcmp.ne.f32.partialorder %v558, 0.0
    %vm575 = vcmp.ne.f32.partialorder %v559, 0.0
    %vm576 = vcmp.ne.f32.partialorder %v560, 0.0
    %vm577 = vcmp.ne.f32.partialorder %v561, 0.0
    %v578 = vsel %vm562, 1, 0
    %v579 = vsel %vm563, 1, 0
    %v580 = vsel %vm564, 1, 0
    %v581 = vsel %vm565, 1, 0
    %v582 = vsel %vm566, 1, 0
    %v583 = vsel %vm567, 1, 0
    %v584 = vsel %vm568, 1, 0
    %v585 = vsel %vm569, 1, 0
    %v586 = vsel %vm570, 1, 0
    %v587 = vsel %vm571, 1, 0
    %v588 = vsel %vm572, 1, 0
    %v589 = vsel %vm573, 1, 0
    %v590 = vsel %vm574, 1, 0
    %v591 = vsel %vm575, 1, 0
    %v592 = vsel %vm576, 1, 0
    %v593 = vsel %vm577, 1, 0
    %594 = vset.pattern.permute.xlu0 0
    %595 = vperm.xlu0 %594, %v578
    %v596 = vpop.permute.xlu0 %595
    %597 = vset.pattern.permute.xlu0 0
    %598 = vperm.xlu0 %597, %v579
    %v599 = vpop.permute.xlu0 %598
    %600 = vset.pattern.permute.xlu0 0
    %601 = vperm.xlu0 %600, %v580
    %v602 = vpop.permute.xlu0 %601
    %603 = vset.pattern.permute.xlu0 0
    %604 = vperm.xlu0 %603, %v581
    %v605 = vpop.permute.xlu0 %604
    %606 = vset.pattern.permute.xlu0 0
    %607 = vperm.xlu0 %606, %v582
    %v608 = vpop.permute.xlu0 %607
    %609 = vset.pattern.permute.xlu0 0
    %610 = vperm.xlu0 %609, %v583
    %v611 = vpop.permute.xlu0 %610
    %612 = vset.pattern.permute.xlu0 0
    %613 = vperm.xlu0 %612, %v584
    %v614 = vpop.permute.xlu0 %613
    %615 = vset.pattern.permute.xlu0 0
    %616 = vperm.xlu0 %615, %v585
    %v617 = vpop.permute.xlu0 %616
    %618 = vset.pattern.permute.xlu0 0
    %619 = vperm.xlu0 %618, %v586
    %v620 = vpop.permute.xlu0 %619
    %621 = vset.pattern.permute.xlu0 0
    %622 = vperm.xlu0 %621, %v587
    %v623 = vpop.permute.xlu0 %622
    %624 = vset.pattern.permute.xlu0 0
    %625 = vperm.xlu0 %624, %v588
    %v626 = vpop.permute.xlu0 %625
    %627 = vset.pattern.permute.xlu0 0
    %628 = vperm.xlu0 %627, %v589
    %v629 = vpop.permute.xlu0 %628
    %630 = vset.pattern.permute.xlu0 0
    %631 = vperm.xlu0 %630, %v590
    %v632 = vpop.permute.xlu0 %631
    %633 = vset.pattern.permute.xlu0 0
    %634 = vperm.xlu0 %633, %v591
    %v635 = vpop.permute.xlu0 %634
    %636 = vset.pattern.permute.xlu0 0
    %637 = vperm.xlu0 %636, %v592
    %v638 = vpop.permute.xlu0 %637
    %639 = vset.pattern.permute.xlu0 0
    %640 = vperm.xlu0 %639, %v593
    %v641 = vpop.permute.xlu0 %640
    %vm642 = vcmp.eq.s32.totalorder %v596, 1
    %vm643 = vcmp.eq.s32.totalorder %v599, 1
    %vm644 = vcmp.eq.s32.totalorder %v602, 1
    %vm645 = vcmp.eq.s32.totalorder %v605, 1
    %vm646 = vcmp.eq.s32.totalorder %v608, 1
    %vm647 = vcmp.eq.s32.totalorder %v611, 1
    %vm648 = vcmp.eq.s32.totalorder %v614, 1
    %vm649 = vcmp.eq.s32.totalorder %v617, 1
    %vm650 = vcmp.eq.s32.totalorder %v620, 1
    %vm651 = vcmp.eq.s32.totalorder %v623, 1
    %vm652 = vcmp.eq.s32.totalorder %v626, 1
    %vm653 = vcmp.eq.s32.totalorder %v629, 1
    %vm654 = vcmp.eq.s32.totalorder %v632, 1
    %vm655 = vcmp.eq.s32.totalorder %v635, 1
    %vm656 = vcmp.eq.s32.totalorder %v638, 1
    %vm657 = vcmp.eq.s32.totalorder %v641, 1
    %v658 = vsel %vm642, %v138, -1e+30
    %v659 = vsel %vm643, %v143, -1e+30
    %v660 = vsel %vm644, %v148, -1e+30
    %v661 = vsel %vm645, %v153, -1e+30
    %v662 = vsel %vm646, %v158, -1e+30
    %v663 = vsel %vm647, %v163, -1e+30
    %v664 = vsel %vm648, %v168, -1e+30
    %v665 = vsel %vm649, %v173, -1e+30
    %v666 = vsel %vm650, %v178, -1e+30
    %v667 = vsel %vm651, %v183, -1e+30
    %v668 = vsel %vm652, %v188, -1e+30
    %v669 = vsel %vm653, %v193, -1e+30
    %v670 = vsel %vm654, %v198, -1e+30
    %v671 = vsel %vm655, %v203, -1e+30
    %v672 = vsel %vm656, %v208, -1e+30
    %v673 = vsel %vm657, %v213, -1e+30
    %v674 = vsel %vm239, %v658, -inf
    %v675 = vsel %vm239, %v659, -inf
    %v676 = vsel %vm239, %v660, -inf
    %v677 = vsel %vm239, %v661, -inf
    %v678 = vsel %vm239, %v662, -inf
    %v679 = vmax.f32 %v674, %v678
    %v680 = vsel %vm239, %v663, -inf
    %v681 = vmax.f32 %v675, %v680
    %v682 = vsel %vm239, %v664, -inf
    %v683 = vmax.f32 %v676, %v682
    %v684 = vsel %vm239, %v665, -inf
    %v685 = vmax.f32 %v677, %v684
    %v686 = vsel %vm239, %v666, -inf
    %v687 = vmax.f32 %v679, %v686
    %v688 = vsel %vm239, %v667, -inf
    %v689 = vmax.f32 %v681, %v688
    %v690 = vsel %vm239, %v668, -inf
    %v691 = vmax.f32 %v683, %v690
    %v692 = vsel %vm239, %v669, -inf
    %v693 = vmax.f32 %v685, %v692
    %v694 = vsel %vm239, %v670, -inf
    %v695 = vmax.f32 %v687, %v694
    %v696 = vsel %vm239, %v671, -inf
    %v697 = vmax.f32 %v689, %v696
    %v698 = vsel %vm239, %v672, -inf
    %v699 = vmax.f32 %v691, %v698
    %v700 = vsel %vm239, %v673, -inf
    %v701 = vmax.f32 %v693, %v700
    %v702 = vmax.f32 %v695, %v697
    %v703 = vmax.f32 %v699, %v701
    %v704 = vmax.f32 %v702, %v703
    %v705 = vrot.slane %v704, 4
    %v706 = vmax.f32 %v704, %v705
    %v707 = vrot.slane %v706, 2
    %v708 = vmax.f32 %v706, %v707
    %v709 = vrot.slane %v708, 1
    %v710 = vmax.f32 %v708, %v709
    %711 = vset.pattern.permute.xlu0 1
    %712 = vperm.xlu0 %711, %v578
    %v713 = vpop.permute.xlu0 %712
    %714 = vset.pattern.permute.xlu0 1
    %715 = vperm.xlu0 %714, %v579
    %v716 = vpop.permute.xlu0 %715
    %717 = vset.pattern.permute.xlu0 1
    %718 = vperm.xlu0 %717, %v580
    %v719 = vpop.permute.xlu0 %718
    %720 = vset.pattern.permute.xlu0 1
    %721 = vperm.xlu0 %720, %v581
    %v722 = vpop.permute.xlu0 %721
    %723 = vset.pattern.permute.xlu0 1
    %724 = vperm.xlu0 %723, %v582
    %v725 = vpop.permute.xlu0 %724
    %726 = vset.pattern.permute.xlu0 1
    %727 = vperm.xlu0 %726, %v583
    %v728 = vpop.permute.xlu0 %727
    %729 = vset.pattern.permute.xlu0 1
    %730 = vperm.xlu0 %729, %v584
    %v731 = vpop.permute.xlu0 %730
    %732 = vset.pattern.permute.xlu0 1
    %733 = vperm.xlu0 %732, %v585
    %v734 = vpop.permute.xlu0 %733
    %735 = vset.pattern.permute.xlu0 1
    %736 = vperm.xlu0 %735, %v586
    %v737 = vpop.permute.xlu0 %736
    %738 = vset.pattern.permute.xlu0 1
    %739 = vperm.xlu0 %738, %v587
    %v740 = vpop.permute.xlu0 %739
    %741 = vset.pattern.permute.xlu0 1
    %742 = vperm.xlu0 %741, %v588
    %v743 = vpop.permute.xlu0 %742
    %744 = vset.pattern.permute.xlu0 1
    %745 = vperm.xlu0 %744, %v589
    %v746 = vpop.permute.xlu0 %745
    %747 = vset.pattern.permute.xlu0 1
    %748 = vperm.xlu0 %747, %v590
    %v749 = vpop.permute.xlu0 %748
    %750 = vset.pattern.permute.xlu0 1
    %751 = vperm.xlu0 %750, %v591
    %v752 = vpop.permute.xlu0 %751
    %753 = vset.pattern.permute.xlu0 1
    %754 = vperm.xlu0 %753, %v592
    %v755 = vpop.permute.xlu0 %754
    %756 = vset.pattern.permute.xlu0 1
    %757 = vperm.xlu0 %756, %v593
    %v758 = vpop.permute.xlu0 %757
    %vm759 = vcmp.eq.s32.totalorder %v713, 1
    %vm760 = vcmp.eq.s32.totalorder %v716, 1
    %vm761 = vcmp.eq.s32.totalorder %v719, 1
    %vm762 = vcmp.eq.s32.totalorder %v722, 1
    %vm763 = vcmp.eq.s32.totalorder %v725, 1
    %vm764 = vcmp.eq.s32.totalorder %v728, 1
    %vm765 = vcmp.eq.s32.totalorder %v731, 1
    %vm766 = vcmp.eq.s32.totalorder %v734, 1
    %vm767 = vcmp.eq.s32.totalorder %v737, 1
    %vm768 = vcmp.eq.s32.totalorder %v740, 1
    %vm769 = vcmp.eq.s32.totalorder %v743, 1
    %vm770 = vcmp.eq.s32.totalorder %v746, 1
    %vm771 = vcmp.eq.s32.totalorder %v749, 1
    %vm772 = vcmp.eq.s32.totalorder %v752, 1
    %vm773 = vcmp.eq.s32.totalorder %v755, 1
    %vm774 = vcmp.eq.s32.totalorder %v758, 1
    %v775 = vsel %vm759, %v138, -1e+30
    %v776 = vsel %vm760, %v143, -1e+30
    %v777 = vsel %vm761, %v148, -1e+30
    %v778 = vsel %vm762, %v153, -1e+30
    %v779 = vsel %vm763, %v158, -1e+30
    %v780 = vsel %vm764, %v163, -1e+30
    %v781 = vsel %vm765, %v168, -1e+30
    %v782 = vsel %vm766, %v173, -1e+30
    %v783 = vsel %vm767, %v178, -1e+30
    %v784 = vsel %vm768, %v183, -1e+30
    %v785 = vsel %vm769, %v188, -1e+30
    %v786 = vsel %vm770, %v193, -1e+30
    %v787 = vsel %vm771, %v198, -1e+30
    %v788 = vsel %vm772, %v203, -1e+30
    %v789 = vsel %vm773, %v208, -1e+30
    %v790 = vsel %vm774, %v213, -1e+30
    %v791 = vsel %vm239, %v775, -inf
    %v792 = vsel %vm239, %v776, -inf
    %v793 = vsel %vm239, %v777, -inf
    %v794 = vsel %vm239, %v778, -inf
    %v795 = vsel %vm239, %v779, -inf
    %v796 = vmax.f32 %v791, %v795
    %v797 = vsel %vm239, %v780, -inf
    %v798 = vmax.f32 %v792, %v797
    %v799 = vsel %vm239, %v781, -inf
    %v800 = vmax.f32 %v793, %v799
    %v801 = vsel %vm239, %v782, -inf
    %v802 = vmax.f32 %v794, %v801
    %v803 = vsel %vm239, %v783, -inf
    %v804 = vmax.f32 %v796, %v803
    %v805 = vsel %vm239, %v784, -inf
    %v806 = vmax.f32 %v798, %v805
    %v807 = vsel %vm239, %v785, -inf
    %v808 = vmax.f32 %v800, %v807
    %v809 = vsel %vm239, %v786, -inf
    %v810 = vmax.f32 %v802, %v809
    %v811 = vsel %vm239, %v787, -inf
    %v812 = vmax.f32 %v804, %v811
    %v813 = vsel %vm239, %v788, -inf
    %v814 = vmax.f32 %v806, %v813
    %v815 = vsel %vm239, %v789, -inf
    %v816 = vmax.f32 %v808, %v815
    %v817 = vsel %vm239, %v790, -inf
    %v818 = vmax.f32 %v810, %v817
    %v819 = vmax.f32 %v812, %v814
    %v820 = vmax.f32 %v816, %v818
    %v821 = vmax.f32 %v819, %v820
    %v822 = vrot.slane %v821, 4
    %v823 = vmax.f32 %v821, %v822
    %v824 = vrot.slane %v823, 2
    %v825 = vmax.f32 %v823, %v824
    %v826 = vrot.slane %v825, 1
    %v827 = vmax.f32 %v825, %v826
    %828 = vset.pattern.permute.xlu0 2
    %829 = vperm.xlu0 %828, %v578
    %v830 = vpop.permute.xlu0 %829
    %831 = vset.pattern.permute.xlu0 2
    %832 = vperm.xlu0 %831, %v579
    %v833 = vpop.permute.xlu0 %832
    %834 = vset.pattern.permute.xlu0 2
    %835 = vperm.xlu0 %834, %v580
    %v836 = vpop.permute.xlu0 %835
    %837 = vset.pattern.permute.xlu0 2
    %838 = vperm.xlu0 %837, %v581
    %v839 = vpop.permute.xlu0 %838
    %840 = vset.pattern.permute.xlu0 2
    %841 = vperm.xlu0 %840, %v582
    %v842 = vpop.permute.xlu0 %841
    %843 = vset.pattern.permute.xlu0 2
    %844 = vperm.xlu0 %843, %v583
    %v845 = vpop.permute.xlu0 %844
    %846 = vset.pattern.permute.xlu0 2
    %847 = vperm.xlu0 %846, %v584
    %v848 = vpop.permute.xlu0 %847
    %849 = vset.pattern.permute.xlu0 2
    %850 = vperm.xlu0 %849, %v585
    %v851 = vpop.permute.xlu0 %850
    %852 = vset.pattern.permute.xlu0 2
    %853 = vperm.xlu0 %852, %v586
    %v854 = vpop.permute.xlu0 %853
    %855 = vset.pattern.permute.xlu0 2
    %856 = vperm.xlu0 %855, %v587
    %v857 = vpop.permute.xlu0 %856
    %858 = vset.pattern.permute.xlu0 2
    %859 = vperm.xlu0 %858, %v588
    %v860 = vpop.permute.xlu0 %859
    %861 = vset.pattern.permute.xlu0 2
    %862 = vperm.xlu0 %861, %v589
    %v863 = vpop.permute.xlu0 %862
    %864 = vset.pattern.permute.xlu0 2
    %865 = vperm.xlu0 %864, %v590
    %v866 = vpop.permute.xlu0 %865
    %867 = vset.pattern.permute.xlu0 2
    %868 = vperm.xlu0 %867, %v591
    %v869 = vpop.permute.xlu0 %868
    %870 = vset.pattern.permute.xlu0 2
    %871 = vperm.xlu0 %870, %v592
    %v872 = vpop.permute.xlu0 %871
    %873 = vset.pattern.permute.xlu0 2
    %874 = vperm.xlu0 %873, %v593
    %v875 = vpop.permute.xlu0 %874
    %vm876 = vcmp.eq.s32.totalorder %v830, 1
    %vm877 = vcmp.eq.s32.totalorder %v833, 1
    %vm878 = vcmp.eq.s32.totalorder %v836, 1
    %vm879 = vcmp.eq.s32.totalorder %v839, 1
    %vm880 = vcmp.eq.s32.totalorder %v842, 1
    %vm881 = vcmp.eq.s32.totalorder %v845, 1
    %vm882 = vcmp.eq.s32.totalorder %v848, 1
    %vm883 = vcmp.eq.s32.totalorder %v851, 1
    %vm884 = vcmp.eq.s32.totalorder %v854, 1
    %vm885 = vcmp.eq.s32.totalorder %v857, 1
    %vm886 = vcmp.eq.s32.totalorder %v860, 1
    %vm887 = vcmp.eq.s32.totalorder %v863, 1
    %vm888 = vcmp.eq.s32.totalorder %v866, 1
    %vm889 = vcmp.eq.s32.totalorder %v869, 1
    %vm890 = vcmp.eq.s32.totalorder %v872, 1
    %vm891 = vcmp.eq.s32.totalorder %v875, 1
    %v892 = vsel %vm876, %v138, -1e+30
    %v893 = vsel %vm877, %v143, -1e+30
    %v894 = vsel %vm878, %v148, -1e+30
    %v895 = vsel %vm879, %v153, -1e+30
    %v896 = vsel %vm880, %v158, -1e+30
    %v897 = vsel %vm881, %v163, -1e+30
    %v898 = vsel %vm882, %v168, -1e+30
    %v899 = vsel %vm883, %v173, -1e+30
    %v900 = vsel %vm884, %v178, -1e+30
    %v901 = vsel %vm885, %v183, -1e+30
    %v902 = vsel %vm886, %v188, -1e+30
    %v903 = vsel %vm887, %v193, -1e+30
    %v904 = vsel %vm888, %v198, -1e+30
    %v905 = vsel %vm889, %v203, -1e+30
    %v906 = vsel %vm890, %v208, -1e+30
    %v907 = vsel %vm891, %v213, -1e+30
    %v908 = vsel %vm239, %v892, -inf
    %v909 = vsel %vm239, %v893, -inf
    %v910 = vsel %vm239, %v894, -inf
    %v911 = vsel %vm239, %v895, -inf
    %v912 = vsel %vm239, %v896, -inf
    %v913 = vmax.f32 %v908, %v912
    %v914 = vsel %vm239, %v897, -inf
    %v915 = vmax.f32 %v909, %v914
    %v916 = vsel %vm239, %v898, -inf
    %v917 = vmax.f32 %v910, %v916
    %v918 = vsel %vm239, %v899, -inf
    %v919 = vmax.f32 %v911, %v918
    %v920 = vsel %vm239, %v900, -inf
    %v921 = vmax.f32 %v913, %v920
    %v922 = vsel %vm239, %v901, -inf
    %v923 = vmax.f32 %v915, %v922
    %v924 = vsel %vm239, %v902, -inf
    %v925 = vmax.f32 %v917, %v924
    %v926 = vsel %vm239, %v903, -inf
    %v927 = vmax.f32 %v919, %v926
    %v928 = vsel %vm239, %v904, -inf
    %v929 = vmax.f32 %v921, %v928
    %v930 = vsel %vm239, %v905, -inf
    %v931 = vmax.f32 %v923, %v930
    %v932 = vsel %vm239, %v906, -inf
    %v933 = vmax.f32 %v925, %v932
    %v934 = vsel %vm239, %v907, -inf
    %v935 = vmax.f32 %v927, %v934
    %v936 = vmax.f32 %v929, %v931
    %v937 = vmax.f32 %v933, %v935
    %v938 = vmax.f32 %v936, %v937
    %v939 = vrot.slane %v938, 4
    %v940 = vmax.f32 %v938, %v939
    %v941 = vrot.slane %v940, 2
    %v942 = vmax.f32 %v940, %v941
    %v943 = vrot.slane %v942, 1
    %v944 = vmax.f32 %v942, %v943
    %945 = vset.pattern.permute.xlu0 3
    %946 = vperm.xlu0 %945, %v578
    %v947 = vpop.permute.xlu0 %946
    %948 = vset.pattern.permute.xlu0 3
    %949 = vperm.xlu0 %948, %v579
    %v950 = vpop.permute.xlu0 %949
    %951 = vset.pattern.permute.xlu0 3
    %952 = vperm.xlu0 %951, %v580
    %v953 = vpop.permute.xlu0 %952
    %954 = vset.pattern.permute.xlu0 3
    %955 = vperm.xlu0 %954, %v581
    %v956 = vpop.permute.xlu0 %955
    %957 = vset.pattern.permute.xlu0 3
    %958 = vperm.xlu0 %957, %v582
    %v959 = vpop.permute.xlu0 %958
    %960 = vset.pattern.permute.xlu0 3
    %961 = vperm.xlu0 %960, %v583
    %v962 = vpop.permute.xlu0 %961
    %963 = vset.pattern.permute.xlu0 3
    %964 = vperm.xlu0 %963, %v584
    %v965 = vpop.permute.xlu0 %964
    %966 = vset.pattern.permute.xlu0 3
    %967 = vperm.xlu0 %966, %v585
    %v968 = vpop.permute.xlu0 %967
    %969 = vset.pattern.permute.xlu0 3
    %970 = vperm.xlu0 %969, %v586
    %v971 = vpop.permute.xlu0 %970
    %972 = vset.pattern.permute.xlu0 3
    %973 = vperm.xlu0 %972, %v587
    %v974 = vpop.permute.xlu0 %973
    %975 = vset.pattern.permute.xlu0 3
    %976 = vperm.xlu0 %975, %v588
    %v977 = vpop.permute.xlu0 %976
    %978 = vset.pattern.permute.xlu0 3
    %979 = vperm.xlu0 %978, %v589
    %v980 = vpop.permute.xlu0 %979
    %981 = vset.pattern.permute.xlu0 3
    %982 = vperm.xlu0 %981, %v590
    %v983 = vpop.permute.xlu0 %982
    %984 = vset.pattern.permute.xlu0 3
    %985 = vperm.xlu0 %984, %v591
    %v986 = vpop.permute.xlu0 %985
    %987 = vset.pattern.permute.xlu0 3
    %988 = vperm.xlu0 %987, %v592
    %v989 = vpop.permute.xlu0 %988
    %990 = vset.pattern.permute.xlu0 3
    %991 = vperm.xlu0 %990, %v593
    %v992 = vpop.permute.xlu0 %991
    %vm993 = vcmp.eq.s32.totalorder %v947, 1
    %vm994 = vcmp.eq.s32.totalorder %v950, 1
    %vm995 = vcmp.eq.s32.totalorder %v953, 1
    %vm996 = vcmp.eq.s32.totalorder %v956, 1
    %vm997 = vcmp.eq.s32.totalorder %v959, 1
    %vm998 = vcmp.eq.s32.totalorder %v962, 1
    %vm999 = vcmp.eq.s32.totalorder %v965, 1
    %vm1000 = vcmp.eq.s32.totalorder %v968, 1
    %vm1001 = vcmp.eq.s32.totalorder %v971, 1
    %vm1002 = vcmp.eq.s32.totalorder %v974, 1
    %vm1003 = vcmp.eq.s32.totalorder %v977, 1
    %vm1004 = vcmp.eq.s32.totalorder %v980, 1
    %vm1005 = vcmp.eq.s32.totalorder %v983, 1
    %vm1006 = vcmp.eq.s32.totalorder %v986, 1
    %vm1007 = vcmp.eq.s32.totalorder %v989, 1
    %vm1008 = vcmp.eq.s32.totalorder %v992, 1
    %v1009 = vsel %vm993, %v138, -1e+30
    %v1010 = vsel %vm994, %v143, -1e+30
    %v1011 = vsel %vm995, %v148, -1e+30
    %v1012 = vsel %vm996, %v153, -1e+30
    %v1013 = vsel %vm997, %v158, -1e+30
    %v1014 = vsel %vm998, %v163, -1e+30
    %v1015 = vsel %vm999, %v168, -1e+30
    %v1016 = vsel %vm1000, %v173, -1e+30
    %v1017 = vsel %vm1001, %v178, -1e+30
    %v1018 = vsel %vm1002, %v183, -1e+30
    %v1019 = vsel %vm1003, %v188, -1e+30
    %v1020 = vsel %vm1004, %v193, -1e+30
    %v1021 = vsel %vm1005, %v198, -1e+30
    %v1022 = vsel %vm1006, %v203, -1e+30
    %v1023 = vsel %vm1007, %v208, -1e+30
    %v1024 = vsel %vm1008, %v213, -1e+30
    %v1025 = vsel %vm239, %v1009, -inf
    %v1026 = vsel %vm239, %v1010, -inf
    %v1027 = vsel %vm239, %v1011, -inf
    %v1028 = vsel %vm239, %v1012, -inf
    %v1029 = vsel %vm239, %v1013, -inf
    %v1030 = vmax.f32 %v1025, %v1029
    %v1031 = vsel %vm239, %v1014, -inf
    %v1032 = vmax.f32 %v1026, %v1031
    %v1033 = vsel %vm239, %v1015, -inf
    %v1034 = vmax.f32 %v1027, %v1033
    %v1035 = vsel %vm239, %v1016, -inf
    %v1036 = vmax.f32 %v1028, %v1035
    %v1037 = vsel %vm239, %v1017, -inf
    %v1038 = vmax.f32 %v1030, %v1037
    %v1039 = vsel %vm239, %v1018, -inf
    %v1040 = vmax.f32 %v1032, %v1039
    %v1041 = vsel %vm239, %v1019, -inf
    %v1042 = vmax.f32 %v1034, %v1041
    %v1043 = vsel %vm239, %v1020, -inf
    %v1044 = vmax.f32 %v1036, %v1043
    %v1045 = vsel %vm239, %v1021, -inf
    %v1046 = vmax.f32 %v1038, %v1045
    %v1047 = vsel %vm239, %v1022, -inf
    %v1048 = vmax.f32 %v1040, %v1047
    %v1049 = vsel %vm239, %v1023, -inf
    %v1050 = vmax.f32 %v1042, %v1049
    %v1051 = vsel %vm239, %v1024, -inf
    %v1052 = vmax.f32 %v1044, %v1051
    %v1053 = vmax.f32 %v1046, %v1048
    %v1054 = vmax.f32 %v1050, %v1052
    %v1055 = vmax.f32 %v1053, %v1054
    %v1056 = vrot.slane %v1055, 4
    %v1057 = vmax.f32 %v1055, %v1056
    %v1058 = vrot.slane %v1057, 2
    %v1059 = vmax.f32 %v1057, %v1058
    %v1060 = vrot.slane %v1059, 1
    %v1061 = vmax.f32 %v1059, %v1060
    %v1062 = vld [vmem:[#allocation3] sm:$0xf]
    %vm1063 = vcmask 1040384
    %v1064 = vsel %vm1063, %v710, %v827
    %vm1065 = vcmask 1041408
    %v1066 = vsel %vm1065, %v1064, %v944
    %vm1067 = vcmask 1042432
    %v1068 = vsel %vm1067, %v1066, %v1061
    %v1069 = vmax.f32 %v1062, %v1068
    %1070 = vst.msk [vmem:[#allocation3] sm:$0xf] %vm544, %v1069
    // Predicated region
    $region38: #{gnn_encoder_forward.9} parent=1 // pred_check
      %p1071 = pneg %p32
    $region39: #{gnn_encoder_forward.9} parent=1 // pred_check_branch
      %1073 = sbr.rel (%p1071) target = $region41
    $region40: #{gnn_encoder_forward.9} parent=1 // pred_region
      %v1074 = vld [vmem:[#allocation2] sm:$0xf]
      %v1075 = vld [vmem:[#allocation3] sm:$0xf]
      %1077 = vrot.lane.b32.xlu0 %v1075, 32
      %v1078 = vpop.permute.xlu0 %1077
      %v1080 = vsel %vm239, %v1074, %v1078
      %v1081 = vld [vmem:[%s6] sm:$0xff]
      %v1082 = vld [vmem:[%s6 + $0x8] sm:$0xff]
      %v1083 = vld [vmem:[%s6 + $0x10] sm:$0xff]
      %v1084 = vld [vmem:[%s6 + $0x18] sm:$0xff]
      %v1085 = vld [vmem:[%s6 + $0x20] sm:$0xff]
      %v1086 = vld [vmem:[%s6 + $0x28] sm:$0xff]
      %v1087 = vld [vmem:[%s6 + $0x30] sm:$0xff]
      %v1088 = vld [vmem:[%s6 + $0x38] sm:$0xff]
      %v1089 = vld [vmem:[%s7] sm:$0x1]
      %v1091 = vlaneseq
      %v1092 = vshrl.u32 %v1091, 7
      %v1093 = vsub.s32 0, %v1092
      %v1094 = vrot.slane %v1089, %v1093
      %vm1096 = vcmask 523264
      %v1098 = vsel %vm1096, %v1080, 0
      %1100 = vmatprep.subr.mxu0 0.0
      %1101 = vmatpush1.msra.mxu0 %v1081
      %1102 = vmatprep.subr.mxu0 0.0
      %1103 = vmatpush1.msra.mxu0 %v1082
      %1104 = vmatprep.subr.mxu0 0.0
      %1105 = vmatpush1.msra.mxu0 %v1083
      %1106 = vmatprep.subr.mxu0 0.0
      %1107 = vmatpush1.msra.mxu0 %v1084
      %1108 = vmatprep.subr.mxu0 0.0
      %1109 = vmatpush1.msra.mxu0 %v1085
      %1110 = vmatprep.subr.mxu0 0.0
      %1111 = vmatpush1.msra.mxu0 %v1086
      %1112 = vmatprep.subr.mxu0 0.0
      %1113 = vmatpush1.msra.mxu0 %v1087
      %1114 = vmatprep.subr.mxu0 0.0
      %1115 = vmatpush1.msra.mxu0 %v1088
      %1116 = vmatprep.subr.mxu0 0.0
      %1117 = vmatpush1.msra.mxu0 0.0
      %1118 = vmatprep.subr.mxu0 0.0
      %1119 = vmatpush1.msra.mxu0 0.0
      %1120 = vmatprep.subr.mxu0 0.0
      %1121 = vmatpush1.msra.mxu0 0.0
      %1122 = vmatprep.subr.mxu0 0.0
      %1123 = vmatpush1.msra.mxu0 0.0
      %1124 = vmatprep.subr.mxu0 0.0
      %1125 = vmatpush1.msra.mxu0 0.0
      %1126 = vmatprep.subr.mxu0 0.0
      %1127 = vmatpush1.msra.mxu0 0.0
      %1128 = vmatprep.subr.mxu0 0.0
      %1129 = vmatpush1.msra.mxu0 0.0
      %1130 = vmatprep.subr.mxu0 0.0
      %1131 = vmatpush1.msra.mxu0 0.0
      %1132 = vmatprep.subr.mxu0 0.0
      %1133 = vmatpush1.msra.mxu0 0.0
      %1134 = vmatprep.subr.mxu0 0.0
      %1135 = vmatpush1.msra.mxu0 0.0
      %1136 = vmatprep.subr.mxu0 0.0
      %1137 = vmatpush1.msra.mxu0 0.0
      %1138 = vmatprep.subr.mxu0 0.0
      %1139 = vmatpush1.msra.mxu0 0.0
      %1140 = vmatprep.subr.mxu0 0.0
      %1141 = vmatpush1.msra.mxu0 0.0
      %1142 = vmatprep.subr.mxu0 0.0
      %1143 = vmatpush1.msra.mxu0 0.0
      %1144 = vmatprep.subr.mxu0 0.0
      %1145 = vmatpush1.msra.mxu0 0.0
      %1146 = vmatprep.subr.mxu0 0.0
      %1147 = vmatpush1.msra.mxu0 0.0
      %1148 = vmatprep.subr.mxu0 0.0
      %1149 = vmatpush1.msra.mxu0 0.0
      %1150 = vmatprep.subr.mxu0 0.0
      %1151 = vmatpush1.msra.mxu0 0.0
      %1152 = vmatprep.subr.mxu0 0.0
      %1153 = vmatpush1.msra.mxu0 0.0
      %1154 = vmatprep.subr.mxu0 0.0
      %1155 = vmatpush1.msra.mxu0 0.0
      %1156 = vmatprep.subr.mxu0 0.0
      %1157 = vmatpush1.msra.mxu0 0.0
      %1158 = vmatprep.subr.mxu0 0.0
      %1159 = vmatpush1.msra.mxu0 0.0
      %1160 = vmatprep.subr.mxu0 0.0
      %1161 = vmatpush1.msra.mxu0 0.0
      %1162 = vmatprep.subr.mxu0 0.0
      %1163 = vmatpush1.msra.mxu0 0.0
      %1164 = vmatprep.mubr.f32.mxu0 0.0
      %1165 = vmatmul.mubr.f32.gmra.mrb[0].mxu0 %v1098
      %v1166 = vpop.f32.mrb[0].mxu0
      %v1167 = vadd.f32 %v1094, %v1166
      %v1168 = vpop.f32.mrb[0].mxu0
      %1169 = vdwg.mxu0
      %vm1170 = vcmask 1043456
      %v1171 = vsel %vm1170, %v1167, 0.0
      %1172 = vadd.xlane.f32.xlu0 %v1171
      %v1173 = vpop.xlane.xlu0 %1172
      %v1174 = vrcp.pop 128.0
      %v1175 = vmul.f32 %v1173, %v1174
      %v1176 = vsub.f32 %v1167, %v1175
      %v1177 = vmul.f32 %v1176, %v1176
      %v1178 = vsel %vm1170, %v1177, 0.0
      %1179 = vadd.xlane.f32.xlu0 %v1178
      %v1180 = vpop.xlane.xlu0 %1179
      %v1181 = vmul.f32 %v1180, %v1174
      %v1182 = vadd.f32 %v1181, 1e-05
      %v1183 = vrsqrt.pop %v1182
      %v1184 = vmul.f32 %v1176, %v1183
      %1185 = vst [vmem:[#allocation5] sm:$0xf] %v1184
    $region41: #{gnn_encoder_forward.9} parent=1 // pred_fallthru
      _
    // Predicated region
    $region42: #{gnn_encoder_forward.9} parent=1 // pred_check
      _
    $region43: #{gnn_encoder_forward.9} parent=1 // pred_check_branch
      %1187 = sbr.rel (0) target = $region45
    $region44: #{gnn_encoder_forward.9} parent=1 // pred_region
      %s1189 = ssub.s32 64, 64
      %1190 = vsyncadd [#allocation6], %s1189
      %s1192 = sshll.u32 [#allocation5], 4
      %s1193 = int_to_ptr.vmem [resolvable:$true] %s1192
      %1195 = dma.vmem_to_hbm [thread:$0]  %s1193, 64, %s8, [#allocation6]
    $region45: #{gnn_encoder_forward.9} parent=1 // pred_fallthru
      _
    // Predicated region
    $region46: #{gnn_encoder_forward.9} parent=1 // pred_check
      _
    $region47: #{gnn_encoder_forward.9} parent=1 // pred_check_branch
      %1197 = sbr.rel (0) target = $region49
    $region48: #{gnn_encoder_forward.9} parent=1 // pred_region
      %1198 = dma.done [#allocation6], 64
    $region49: #{gnn_encoder_forward.9} parent=1 // pred_fallthru
      _
    %1199 = vsyncpa [#allocation6], 1

</llo_original>
